<compile_context>
chip_gen: v7x
topology: tpu7x:2x2x1
jax: 0.10.0
libtpu: 0.0.40
codegen_flags: <defaults>
</compile_context>

<pallas_src>
import functools
import math

import numpy as np
import jax
import jax.numpy as jnp
from jax.experimental import pallas as pl
from jax.experimental.pallas import tpu as pltpu


_MAX_LANE_TILE = 512   # 512 keeps VMEM headroom on v7x (64 MiB physical)

_W_ORDER = ("tw1", "tb1", "tw2k", "tb2", "tw3", "tb3",
            "sw1n", "sw1c", "sb1", "sw2", "sb2", "sw3", "sb3", "hw", "hb")


# ----------------------------------------------------------------------------
# Pallas kernels
# ----------------------------------------------------------------------------

def _backbone1_kernel(x_ref, w_ref, b_ref, o_ref):
    """Conv1d(k=3, pad=1, groups=4 densified to block-diag) + ReLU on (Cin, L).

    Patches are built in-kernel with lane rolls; because T < T_pad, the zero
    padding between batches along L acts as the conv boundary padding.
    """
    x = x_ref[...]
    L = x.shape[1]
    xl = pltpu.roll(x, shift=1, axis=1)        # x[:, l-1]  (tap kw = 0)
    xr = pltpu.roll(x, shift=L - 1, axis=1)    # x[:, l+1]  (tap kw = 2); shift must be >= 0
    patches = jnp.concatenate([xl, x, xr], axis=0).astype(jnp.bfloat16)   # (3*Cin, L)
    y = jnp.dot(w_ref[...], patches, preferred_element_type=jnp.float32)
    o_ref[...] = jnp.maximum(y + b_ref[...], 0.0)


def _pdist_kernel(x_ref, o_ref):
    """pd[m, n] = -||x_m - x_n||^2 for one batch element.  x_ref block: (1, T, C)."""
    x = x_ref[0]                                              # (T, C)
    g = jax.lax.dot_general(x, x, (((1,), (1,)), ((), ())),   # x @ x.T via MXU feed
                            preferred_element_type=jnp.float32)
    sq = jnp.sum(x * x, axis=1, keepdims=True)                # (T, 1)
    o_ref[0] = 2.0 * g - sq - sq.T


def _gcnext_kernel(xt_ref, xf_ref, id_ref,
                   tw1_ref, tb1_ref, tw2_ref, tb2_ref, tw3_ref, tb3_ref,
                   sw1n_ref, sw1c_ref, sb1_ref, sw2_ref, sb2_ref, sw3_ref, sb3_ref,
                   hw_ref, hb_ref,
                   o_ref, h_ref):
    """One GCNeXt block + fused 1x1-conv sigmoid head on a (C, L_tile) lane tile.

    temporal : 1x1 conv -> relu -> (1,3) grouped conv (K-stacked dense) -> relu -> 1x1
    semantic : per-neighbor 1x1 (split nbr/ctr) -> relu -> grouped 1x1 -> relu -> 1x1,
               max over k neighbors (neighbors lane-stacked so every dot is wide)
    epilogue : relu(tout + identity + sout); head = sigmoid(hw @ out + hb)
    """
    f32, bf16 = jnp.float32, jnp.bfloat16
    ident = id_ref[...]                        # (C, L) f32 — skip connection stays f32
    identb = ident.astype(bf16)
    L = ident.shape[1]
    k = xf_ref.shape[0]

    # ---- temporal branch: taps [l-ish, center, r-ish] lane-stacked ----
    xcat = jnp.concatenate([xt_ref[0], identb, xt_ref[1]], axis=1)          # (C, 3L)
    y1 = jnp.dot(tw1_ref[0], xcat, preferred_element_type=f32)
    y1 = jnp.maximum(y1 + tb1_ref[0], 0.0).astype(bf16)                     # (W, 3L)
    y1s = jnp.concatenate([y1[:, 0:L], y1[:, L:2 * L], y1[:, 2 * L:3 * L]], axis=0)  # (3W, L)
    y2 = jnp.dot(tw2_ref[0], y1s, preferred_element_type=f32)               # K-stacked taps
    y2 = jnp.maximum(y2 + tb2_ref[0], 0.0).astype(bf16)
    tout = jnp.dot(tw3_ref[0], y2, preferred_element_type=f32) + tb3_ref[0]  # (C, L)

    # ---- semantic (kNN) branch: neighbors lane-stacked, center factored out ----
    hctr = jnp.dot(sw1c_ref[0], identb, preferred_element_type=f32)          # (W, L)
    xn = jnp.concatenate([xf_ref[kn] for kn in range(k)], axis=1)            # (C, kL)
    h1 = jnp.dot(sw1n_ref[0], xn, preferred_element_type=f32)
    h1 = jnp.maximum(h1 + jnp.concatenate([hctr] * k, axis=1) + sb1_ref[0], 0.0).astype(bf16)
    h2 = jnp.dot(sw2_ref[0], h1, preferred_element_type=f32)
    h2 = jnp.maximum(h2 + sb2_ref[0], 0.0).astype(bf16)
    h3 = jnp.dot(sw3_ref[0], h2, preferred_element_type=f32) + sb3_ref[0]    # (C, kL)
    sout = h3[:, 0:L]
    for kn in range(1, k):
        sout = jnp.maximum(sout, h3[:, kn * L:(kn + 1) * L])

    out = jnp.maximum(tout + ident + sout, 0.0)
    o_ref[0] = out

    head = jax.nn.sigmoid(jnp.dot(hw_ref[0], out, preferred_element_type=f32) + hb_ref[0])
    h_ref[0] = head


# ----------------------------------------------------------------------------
# pallas_call wrappers
# ----------------------------------------------------------------------------

def backbone1_conv(x_cl, w_dense_bf16, b):
    Cin, L = x_cl.shape
    Cout = w_dense_bf16.shape[0]
    return pl.pallas_call(
        _backbone1_kernel,
        out_shape=jax.ShapeDtypeStruct((Cout, L), jnp.float32),
        grid=(1,),
        in_specs=[
            pl.BlockSpec((Cin, L), lambda i: (0, 0)),
            pl.BlockSpec((Cout, 3 * Cin), lambda i: (0, 0)),
            pl.BlockSpec((Cout, 1), lambda i: (0, 0)),
        ],
        out_specs=pl.BlockSpec((Cout, L), lambda i: (0, 0)),
    )(x_cl, w_dense_bf16, b.reshape(-1, 1))


def pairwise_neg_sqdist(x_btc):
    B, T, C = x_btc.shape
    return pl.pallas_call(
        _pdist_kernel,
        out_shape=jax.ShapeDtypeStruct((B, T, T), jnp.float32),
        grid=(B,),
        in_specs=[pl.BlockSpec((1, T, C), lambda b: (b, 0, 0))],
        out_specs=pl.BlockSpec((1, T, T), lambda b: (b, 0, 0)),
        compiler_params=pltpu.CompilerParams(dimension_semantics=("parallel",)),
        cost_estimate=pl.CostEstimate(
            flops=int(2 * B * T * T * C), transcendentals=0,
            bytes_accessed=int(4 * (B * T * C + B * T * T))),
    )(x_btc)


def _pick_lane_tile(L, cap=_MAX_LANE_TILE):
    best, t = 128, 128
    while t <= min(cap, L):
        if L % t == 0:
            best = t
        t += 128
    return best


def gcnext_multi(x_cl, xt, xf, sp):
    """S GCNeXt weight sets applied to the same graph features in one pallas_call.

    x_cl: (C, L) f32 identity, xt: (2, C, L) bf16, xf: (k, C, L) bf16.
    sp[*] are stacked per-set weights with a leading S axis.
    Grid = (lane tiles, S); lane tiles outer so the graph features stay resident
    across the S "parallel" weight-set axis (engages both v7x TensorCores).
    """
    C, L = x_cl.shape
    S, W, _ = sp["tw1"].shape
    k = xf.shape[0]
    lt = _pick_lane_tile(L)

    act_specs = [
        pl.BlockSpec((2, C, lt), lambda i, s: (0, 0, i)),
        pl.BlockSpec((k, C, lt), lambda i, s: (0, 0, i)),
        pl.BlockSpec((C, lt), lambda i, s: (0, i)),
    ]
    weight_specs = [pl.BlockSpec((1,) + tuple(sp[n].shape[1:]), lambda i, s: (s, 0, 0))
                    for n in _W_ORDER]
    out_specs = (pl.BlockSpec((1, C, lt), lambda i, s: (s, 0, i)),
                 pl.BlockSpec((1, 1, lt), lambda i, s: (s, 0, i)))
    out_shape = (jax.ShapeDtypeStruct((S, C, L), jnp.float32),
                 jax.ShapeDtypeStruct((S, 1, L), jnp.float32))

    flops = int(2 * S * L * (3 * W * C + 3 * W * W + C * W
                             + (k + 1) * W * C + k * W * W + k * C * W + C))
    args = (xt, xf, x_cl) + tuple(sp[n] for n in _W_ORDER)
    bytes_accessed = int(sum(int(np.prod(a.shape)) * a.dtype.itemsize for a in args)
                         + 4 * S * (C + 1) * L)

    return pl.pallas_call(
        _gcnext_kernel,
        out_shape=out_shape,
        grid=(L // lt, S),
        in_specs=act_specs + weight_specs,
        out_specs=out_specs,
        compiler_params=pltpu.CompilerParams(
            dimension_semantics=("parallel", "parallel")),
        cost_estimate=pl.CostEstimate(flops=flops, transcendentals=int(S * L),
                                      bytes_accessed=bytes_accessed),
    )(*args)


# ----------------------------------------------------------------------------
# Grouped-conv weight densification (block-diagonal) & per-set prep
# ----------------------------------------------------------------------------

def _dense_block_diag_1x1(w, groups):
    """(Cout, Cig) grouped 1x1 weight -> (Cout, Cin) block-diagonal."""
    Cout, Cig = w.shape
    Cog = Cout // groups
    eye = jnp.eye(groups, dtype=w.dtype)
    return jnp.einsum("gij,gh->gihj", w.reshape(groups, Cog, Cig), eye
                      ).reshape(Cout, Cig * groups)


def _dense_block_diag_1x3(w, groups):
    """(Cout, Cig, 3) grouped (1,3) weight -> (3, Cout, Cin) block-diag per tap."""
    Cout, Cig, K = w.shape
    Cog = Cout // groups
    eye = jnp.eye(groups, dtype=w.dtype)
    return jnp.einsum("gijw,gh->wgihj", w.reshape(groups, Cog, Cig, K), eye
                      ).reshape(K, Cout, Cig * groups)


def _dense_conv1d_k3(w, groups):
    """(Cout, Cig, 3) grouped Conv1d weight -> (Cout, 3*Cin), patch layout kw-major."""
    Cout, Cig, K = w.shape
    Cog = Cout // groups
    Cin = Cig * groups
    eye = jnp.eye(groups, dtype=w.dtype)
    return jnp.einsum("gijw,gh->giwhj", w.reshape(groups, Cog, Cig, K), eye
                      ).reshape(Cout, K * Cin)


def prep_gcnext(p, groups):
    bf = jnp.bfloat16
    C = p["tw1"].shape[1]
    tw2d = _dense_block_diag_1x3(p["tw2"], groups)                      # (3, W, W)
    tw2k = jnp.concatenate([tw2d[0], tw2d[1], tw2d[2]], axis=1)         # (W, 3W) K-stacked
    return {
        "tw1": p["tw1"].astype(bf), "tb1": p["tb1"].reshape(-1, 1),
        "tw2k": tw2k.astype(bf), "tb2": p["tb2"].reshape(-1, 1),
        "tw3": p["tw3"].astype(bf), "tb3": p["tb3"].reshape(-1, 1),
        "sw1n": p["sw1"][:, :C].astype(bf),          # neighbor half of style=1 channels
        "sw1c": p["sw1"][:, C:].astype(bf),          # center half (applied to identity)
        "sb1": p["sb1"].reshape(-1, 1),
        "sw2": _dense_block_diag_1x1(p["sw2"], groups).astype(bf),
        "sb2": p["sb2"].reshape(-1, 1),
        "sw3": p["sw3"].astype(bf), "sb3": p["sb3"].reshape(-1, 1),
    }


def stack_sets(dps, head_ws, head_bs):
    stacked = {n: jnp.stack([dp[n] for dp in dps], axis=0) for n in dps[0]}
    stacked["hw"] = jnp.stack(head_ws, axis=0)      # (S, 1, C) f32
    stacked["hb"] = jnp.stack(head_bs, axis=0)      # (S, 1, 1) f32
    return stacked


# ----------------------------------------------------------------------------
# Graph feature construction (gathers / top_k stay in XLA)
# ----------------------------------------------------------------------------

def _cl_to_btc(x_cl, B, T, T_pad):
    C = x_cl.shape[0]
    return x_cl.reshape(C, B, T_pad).transpose(1, 2, 0)[:, :T, :]       # (B, T, C)


def _pack_kcl(a, B, T, T_pad):
    """(B, T, K, C') -> (K, C', B*T_pad), zero padded along T."""
    K, Cp = a.shape[2], a.shape[3]
    a = jnp.pad(a, ((0, 0), (0, T_pad - T), (0, 0), (0, 0)))
    return jnp.transpose(a, (2, 3, 0, 1)).reshape(K, Cp, B * T_pad)


def build_graph_features(x_cl, nb02, k, B, T, T_pad):
    """Temporal-graph taps {0,2} + neighbor-only kNN features (bf16), computed once."""
    C = x_cl.shape[0]
    x_btc = _cl_to_btc(x_cl, B, T, T_pad)                    # (B, T, C) f32 (for pdist)
    x_flat = x_btc.reshape(B * T, C).astype(jnp.bfloat16)

    # temporal graph taps 0 and 2 (tap 1 is always the center -> supplied as identity)
    tg = jnp.take(x_flat, nb02.reshape(-1), axis=0).reshape(B, T, 2, C)
    xt = _pack_kcl(tg, B, T, T_pad)                          # (2, C, L) bf16

    # semantic kNN graph, neighbor-only (center handled via sw1_ctr @ identity in-kernel)
    pd = pairwise_neg_sqdist(x_btc)                          # (B, T, T)  Pallas
    _, idx = jax.lax.top_k(pd, k)                            # (B, T, k)
    gidx = (idx + jnp.arange(B, dtype=idx.dtype)[:, None, None] * T).reshape(-1)
    nbr = jnp.take(x_flat, gidx, axis=0).reshape(B, T, k, C)
    xf = _pack_kcl(nbr, B, T, T_pad)                         # (k, C, L) bf16
    return xt, xf, idx


# ----------------------------------------------------------------------------
# GTAD forward
# ----------------------------------------------------------------------------

def gtad_forward(snip_feature, params, neighbor_idx, *, T, T_pad, k=3, groups=32):
    B, Cin, _ = snip_feature.shape
    # the zero column(s) at the end of each batch segment double as the Conv1d /
    # lane-roll boundary padding — must exist or the roll corrupts the boundary.
    assert T_pad > T, "T_pad must exceed T (padding is the conv boundary)"
    L = B * T_pad
    assert L % 128 == 0

    x_pad = jnp.pad(snip_feature, ((0, 0), (0, 0), (0, T_pad - T)))
    x_cl = jnp.transpose(x_pad, (1, 0, 2)).reshape(Cin, L)

    # backbone1: Conv1d(feat_dim, 256, k=3, pad=1, groups=4) + ReLU
    w1 = _dense_conv1d_k3(params["bb1_w"], 4).astype(jnp.bfloat16)
    x0 = backbone1_conv(x_cl, w1, params["bb1_b"])

    nb02 = neighbor_idx[:, :, ::2]     # taps 0 and 2; tap 1 is always the center index
    dps = {n: prep_gcnext(params[n], groups)
           for n in ("g_bb1", "g_bb2", "g_rs", "g_re")}
    C = x0.shape[0]
    zero_hw = jnp.zeros((1, C), jnp.float32)
    zero_hb = jnp.zeros((1, 1), jnp.float32)

    # backbone1's GCNeXt (single weight set, dummy head)
    xt0, xf0, _ = build_graph_features(x0, nb02, k, B, T, T_pad)
    base_all, _ = gcnext_multi(x0, xt0, xf0, stack_sets([dps["g_bb1"]], [zero_hw], [zero_hb]))
    base = base_all[0]

    # graphs over base_feature are identical for backbone2 / regu_s / regu_e:
    # compute once, apply the 3 weight sets in ONE fused call (heads fused too).
    xt1, xf1, _ = build_graph_features(base, nb02, k, B, T, T_pad)
    sp = stack_sets([dps["g_bb2"], dps["g_rs"], dps["g_re"]],
                    [zero_hw, params["rs_w"], params["re_w"]],
                    [zero_hb, params["rs_b"].reshape(1, 1), params["re_b"].reshape(1, 1)])
    outs, heads = gcnext_multi(base, xt1, xf1, sp)
    gcnext = outs[0]
    regu = heads[:, 0, :].reshape(3, B, T_pad)[:, :, :T]     # row 0 is the dummy head

    def from_cl(a):
        Cc = a.shape[0]
        return a.reshape(Cc, B, T_pad).transpose(1, 0, 2)[:, :, :T]

    # goi_style == 0 -> idx_list = None; reference forward returns None.
    return from_cl(base), from_cl(gcnext), regu[1], regu[2]


# ----------------------------------------------------------------------------
# Temporal-graph neighbor indices (host-side, faithful port of get_temporal_graph)
# ----------------------------------------------------------------------------

def build_neighbor_idx(seg_lens, max_seg_length=200):
    batch_size, max_seg_num = seg_lens.shape
    L4 = max_seg_length // 4
    neighbor_idx = []
    for i in range(batch_size):
        neighbor_idx.append([])
        last_valid = 0
        skip_seg = 0
        for j in range(max_seg_num):
            for kk in range(L4):
                neighbor_idx[i].append([])
                base_idx = i * max_seg_num * max_seg_length // 4
                idx = j * max_seg_length // 4 + kk
                if kk < math.ceil(float(seg_lens[i, j]) / 4.0):
                    neighbor_idx[i][idx].append(base_idx + last_valid)
                    neighbor_idx[i][idx].append(base_idx + idx)     # tap 1 == center
                    neighbor_idx[i][idx].append(base_idx + idx)
                    last_valid = idx
                    if kk == 0 and j != 0:
                        neighbor_idx[i][skip_seg][2] = base_idx + idx
                    if kk == math.ceil(float(seg_lens[i, j]) / 4.0) - 1:
                        skip_seg = idx
                    else:
                        neighbor_idx[i][idx][2] = base_idx + idx + 1
                else:
                    neighbor_idx[i][idx].append(base_idx + idx)
                    neighbor_idx[i][idx].append(base_idx + idx)
                    neighbor_idx[i][idx].append(base_idx + idx)
    return np.asarray(neighbor_idx, dtype=np.int32)


# ----------------------------------------------------------------------------
# Deterministic parameter init (shapes from the module __init__)
# ----------------------------------------------------------------------------

def _init_w(key, shape):
    fan_in = int(np.prod(shape[1:])) if len(shape) > 1 else 1
    return (1.0 / math.sqrt(max(fan_in, 1))) * jax.random.normal(key, shape, jnp.float32)


def init_gcnext_params(key, cin=256, cout=256, groups=32, width_group=4):
    width = width_group * groups  # 128
    ks = jax.random.split(key, 12)
    return {
        "tw1": _init_w(ks[0], (width, cin)),                 "tb1": _init_w(ks[1], (width,)),
        "tw2": _init_w(ks[2], (width, width // groups, 3)),  "tb2": _init_w(ks[3], (width,)),
        "tw3": _init_w(ks[4], (cout, width)),                "tb3": _init_w(ks[5], (cout,)),
        "sw1": _init_w(ks[6], (width, cin * 2)),             "sb1": _init_w(ks[7], (width,)),
        "sw2": _init_w(ks[8], (width, width // groups)),     "sb2": _init_w(ks[9], (width,)),
        "sw3": _init_w(ks[10], (cout, width)),               "sb3": _init_w(ks[11], (cout,)),
    }


def init_params(key, feat_dim, h_dim_1d=256):
    ks = jax.random.split(key, 10)
    return {
        "bb1_w": _init_w(ks[0], (h_dim_1d, feat_dim // 4, 3)),
        "bb1_b": _init_w(ks[1], (h_dim_1d,)),
        "g_bb1": init_gcnext_params(ks[2], h_dim_1d, h_dim_1d),
        "g_bb2": init_gcnext_params(ks[3], h_dim_1d, h_dim_1d),
        "g_rs": init_gcnext_params(ks[4], h_dim_1d, h_dim_1d),
        "g_re": init_gcnext_params(ks[5], h_dim_1d, h_dim_1d),
        "rs_w": _init_w(ks[6], (1, h_dim_1d)), "rs_b": _init_w(ks[7], (1,)),
        "re_w": _init_w(ks[8], (1, h_dim_1d)), "re_b": _init_w(ks[9], (1,)),
    }


# ----------------------------------------------------------------------------
# Main
# ----------------------------------------------------------------------------

if __name__ == "__main__":
    B = 2                      # opt['batch_size']
    feat_dim = 16              # opt['feat_dim'] (divisible by 4 for the grouped conv1d)
    max_seg_num = 1
    max_seg_length = 200       # get_temporal_graph default
    T = max_seg_num * (max_seg_length // 4)   # 50 == opt['temporal_scale']

    # pad T so that L = B * T_pad is a multiple of 128 and T_pad > T
    q = 128 // math.gcd(B, 128)
    T_pad = ((T + q - 1) // q) * q
    if T_pad == T:
        T_pad += q

    seg_lens = np.array([[120], [200]], dtype=np.int32)
    neighbor_idx = jnp.asarray(build_neighbor_idx(seg_lens, max_seg_length))

    key = jax.random.PRNGKey(0)
    kp, kx = jax.random.split(key)
    params = init_params(kp, feat_dim)
    snip_feature = jax.random.normal(kx, (B, feat_dim, T), dtype=jnp.float32)

    fwd = jax.jit(functools.partial(gtad_forward, T=T, T_pad=T_pad, k=3, groups=32))
    outs = fwd(snip_feature, params, neighbor_idx)
    outs = jax.block_until_ready(outs)

    base_feature, gcnext_feature, regu_s, regu_e = outs
    assert base_feature.shape == (B, 256, T)
    assert gcnext_feature.shape == (B, 256, T)
    assert regu_s.shape == (B, T) and regu_e.shape == (B, T)
    assert bool(jnp.all(jnp.isfinite(base_feature)))
    assert bool(jnp.all(jnp.isfinite(gcnext_feature)))
    assert bool(jnp.all(jnp.isfinite(regu_s))) and bool(jnp.all(jnp.isfinite(regu_e)))
    print("KERNEL_OK")
</pallas_src>

<mosaic_0001>
module attributes {stable_mosaic.version = 11 : i64} {
  func.func @_backbone1_kernel(%arg0: i32, %arg1: memref<16x128xf32, #tpu.memory_space<vmem>>, %arg2: memref<256x48xbf16, #tpu.memory_space<vmem>>, %arg3: memref<256x1xf32, #tpu.memory_space<vmem>>, %arg4: memref<256x128xf32, #tpu.memory_space<vmem>>) attributes {dimension_semantics = [#tpu.dimension_semantics<arbitrary>], iteration_bounds = array<i64: 1>, scalar_prefetch = 0 : i64, scratch_operands = 0 : i64, tpu.core_type = #tpu.core_type<tc>, window_params = [{pipeline_mode = #tpu.pipeline_mode<synchronous>, transform_indices = @transform_0, window_bounds = array<i64: 16, 128>}, {pipeline_mode = #tpu.pipeline_mode<synchronous>, transform_indices = @transform_1, window_bounds = array<i64: 256, 48>}, {pipeline_mode = #tpu.pipeline_mode<synchronous>, transform_indices = @transform_2, window_bounds = array<i64: 256, 1>}, {pipeline_mode = #tpu.pipeline_mode<synchronous>, transform_indices = @transform_3, window_bounds = array<i64: 256, 128>}]} {
    %c0 = arith.constant 0 : index
    %c0_0 = arith.constant 0 : index
    %0 = vector.load %arg1[%c0, %c0_0] : memref<16x128xf32, #tpu.memory_space<vmem>>, vector<16x128xf32>
    %c1_i32 = arith.constant 1 : i32
    %1 = tpu.dynamic_rotate %0 by %c1_i32 dim 1 : vector<16x128xf32>, i32 -> vector<16x128xf32>
    %c127_i32 = arith.constant 127 : i32
    %2 = tpu.dynamic_rotate %0 by %c127_i32 dim 1 : vector<16x128xf32>, i32 -> vector<16x128xf32>
    %3 = tpu.concatenate %1, %0, %2 in 0 : vector<16x128xf32>, vector<16x128xf32>, vector<16x128xf32> -> vector<48x128xf32>
    %4 = arith.truncf %3 : vector<48x128xf32> to vector<48x128xbf16>
    %c0_1 = arith.constant 0 : index
    %c0_2 = arith.constant 0 : index
    %5 = vector.load %arg2[%c0_1, %c0_2] : memref<256x48xbf16, #tpu.memory_space<vmem>>, vector<256x48xbf16>
    %cst = arith.constant dense<0.000000e+00> : vector<256x128xf32>
    %6 = tpu.matmul %5, %4, %cst {dimension_numbers = #tpu.dot_dimension_numbers<[1], [0], [0], [1], [0, 0, 1, 1], [], []>} : vector<256x48xbf16>, vector<48x128xbf16>, vector<256x128xf32> -> vector<256x128xf32>
    %c0_3 = arith.constant 0 : index
    %c0_4 = arith.constant 0 : index
    %7 = vector.load %arg3[%c0_3, %c0_4] : memref<256x1xf32, #tpu.memory_space<vmem>>, vector<256x1xf32>
    %8 = vector.broadcast %7 : vector<256x1xf32> to vector<256x128xf32>
    %9 = arith.addf %6, %8 : vector<256x128xf32>
    %cst_5 = arith.constant 0.000000e+00 : f32
    %10 = vector.broadcast %cst_5 : f32 to vector<256x128xf32>
    %11 = arith.maximumf %9, %10 : vector<256x128xf32>
    %c0_6 = arith.constant 0 : index
    %c0_7 = arith.constant 0 : index
    %12 = vector.load %arg4[%c0_6, %c0_7] : memref<256x128xf32, #tpu.memory_space<vmem>>, vector<256x128xf32>
    tpu.vector_store %arg4[%c0_6, %c0_7], %11 {strides = array<i32>} : memref<256x128xf32, #tpu.memory_space<vmem>>, vector<256x128xf32>,
    return
  }
  func.func @transform_0(%arg0: i32) -> (i32, i32) {
    %c0_i32 = arith.constant 0 : i32
    %c0_i32_0 = arith.constant 0 : i32
    %c0_i32_1 = arith.constant 0 : i32
    return %c0_i32, %c0_i32_0 : i32, i32
  }
  func.func @transform_1(%arg0: i32) -> (i32, i32) {
    %c0_i32 = arith.constant 0 : i32
    %c0_i32_0 = arith.constant 0 : i32
    %c0_i32_1 = arith.constant 0 : i32
    return %c0_i32, %c0_i32_0 : i32, i32
  }
  func.func @transform_2(%arg0: i32) -> (i32, i32) {
    %c0_i32 = arith.constant 0 : i32
    %c0_i32_0 = arith.constant 0 : i32
    %c0_i32_1 = arith.constant 0 : i32
    return %c0_i32, %c0_i32_0 : i32, i32
  }
  func.func @transform_3(%arg0: i32) -> (i32, i32) {
    %c0_i32 = arith.constant 0 : i32
    %c0_i32_0 = arith.constant 0 : i32
    %c0_i32_1 = arith.constant 0 : i32
    return %c0_i32, %c0_i32_0 : i32, i32
  }
}

module attributes {stable_mosaic.version = 11 : i64} {
  func.func @_pdist_kernel(%arg0: i32, %arg1: memref<1x50x256xf32, #tpu.memory_space<vmem>>, %arg2: memref<1x50x50xf32, #tpu.memory_space<vmem>>) attributes {dimension_semantics = [#tpu.dimension_semantics<parallel>], iteration_bounds = array<i64: 2>, scalar_prefetch = 0 : i64, scratch_operands = 0 : i64, tpu.core_type = #tpu.core_type<tc>, window_params = [{transform_indices = @transform_0, window_bounds = array<i64: 1, 50, 256>}, {transform_indices = @transform_1, window_bounds = array<i64: 1, 50, 50>}]} {
    %c0 = arith.constant 0 : index
    %c0_0 = arith.constant 0 : index
    %c0_1 = arith.constant 0 : index
    %0 = vector.load %arg1[%c0, %c0_0, %c0_1] : memref<1x50x256xf32, #tpu.memory_space<vmem>>, vector<1x50x256xf32>
    %1 = vector.shape_cast %0 : vector<1x50x256xf32> to vector<50x256xf32>
    %cst = arith.constant dense<0.000000e+00> : vector<50x50xf32>
    %2 = tpu.matmul %1, %1, %cst {dimension_numbers = #tpu.dot_dimension_numbers<[1], [1], [0], [0], [0, 0, 1, 0], [], []>} : vector<50x256xf32>, vector<50x256xf32>, vector<50x50xf32> -> vector<50x50xf32>
    %3 = arith.mulf %1, %1 : vector<50x256xf32>
    %cst_2 = arith.constant dense<0.000000e+00> : vector<50xf32>
    %4 = vector.multi_reduction <add>, %3, %cst_2 [1] : vector<50x256xf32> to vector<50xf32>
    %5 = vector.shape_cast %4 : vector<50xf32> to vector<50x1xf32>
    %cst_3 = arith.constant 2.000000e+00 : f32
    %6 = vector.broadcast %cst_3 : f32 to vector<50x50xf32>
    %7 = arith.mulf %6, %2 : vector<50x50xf32>
    %8 = vector.broadcast %5 : vector<50x1xf32> to vector<50x50xf32>
    %9 = arith.subf %7, %8 : vector<50x50xf32>
    %10 = tpu.transpose %5, [1, 0] : vector<50x1xf32> -> vector<1x50xf32>
    %11 = vector.broadcast %10 : vector<1x50xf32> to vector<50x50xf32>
    %12 = arith.subf %9, %11 : vector<50x50xf32>
    %c0_4 = arith.constant 0 : index
    %c0_5 = arith.constant 0 : index
    %c0_6 = arith.constant 0 : index
    %13 = vector.load %arg2[%c0_4, %c0_5, %c0_6] : memref<1x50x50xf32, #tpu.memory_space<vmem>>, vector<1x50x50xf32>
    %14 = vector.shape_cast %13 : vector<1x50x50xf32> to vector<50x50xf32>
    %15 = vector.shape_cast %12 : vector<50x50xf32> to vector<1x50x50xf32>
    tpu.vector_store %arg2[%c0_4, %c0_5, %c0_6], %15 {strides = array<i32>} : memref<1x50x50xf32, #tpu.memory_space<vmem>>, vector<1x50x50xf32>,
    return
  }
  func.func @transform_0(%arg0: i32) -> (i32, i32, i32) {
    %c0_i32 = arith.constant 0 : i32
    %c0_i32_0 = arith.constant 0 : i32
    %c0_i32_1 = arith.constant 0 : i32
    return %arg0, %c0_i32, %c0_i32_0 : i32, i32, i32
  }
  func.func @transform_1(%arg0: i32) -> (i32, i32, i32) {
    %c0_i32 = arith.constant 0 : i32
    %c0_i32_0 = arith.constant 0 : i32
    %c0_i32_1 = arith.constant 0 : i32
    return %arg0, %c0_i32, %c0_i32_0 : i32, i32, i32
  }
}

module attributes {stable_mosaic.version = 11 : i64} {
  func.func @_gcnext_kernel(%arg0: i32, %arg1: i32, %arg2: memref<2x256x128xbf16, #tpu.memory_space<vmem>>, %arg3: memref<3x256x128xbf16, #tpu.memory_space<vmem>>, %arg4: memref<256x128xf32, #tpu.memory_space<vmem>>, %arg5: memref<1x128x256xbf16, #tpu.memory_space<vmem>>, %arg6: memref<1x128x1xf32, #tpu.memory_space<vmem>>, %arg7: memref<1x128x384xbf16, #tpu.memory_space<vmem>>, %arg8: memref<1x128x1xf32, #tpu.memory_space<vmem>>, %arg9: memref<1x256x128xbf16, #tpu.memory_space<vmem>>, %arg10: memref<1x256x1xf32, #tpu.memory_space<vmem>>, %arg11: memref<1x128x256xbf16, #tpu.memory_space<vmem>>, %arg12: memref<1x128x256xbf16, #tpu.memory_space<vmem>>, %arg13: memref<1x128x1xf32, #tpu.memory_space<vmem>>, %arg14: memref<1x128x128xbf16, #tpu.memory_space<vmem>>, %arg15: memref<1x128x1xf32, #tpu.memory_space<vmem>>, %arg16: memref<1x256x128xbf16, #tpu.memory_space<vmem>>, %arg17: memref<1x256x1xf32, #tpu.memory_space<vmem>>, %arg18: memref<1x1x256xf32, #tpu.memory_space<vmem>>, %arg19: memref<1x1x1xf32, #tpu.memory_space<vmem>>, %arg20: memref<1x256x128xf32, #tpu.memory_space<vmem>>, %arg21: memref<1x1x128xf32, #tpu.memory_space<vmem>>) attributes {dimension_semantics = [#tpu.dimension_semantics<parallel>, #tpu.dimension_semantics<parallel>], iteration_bounds = array<i64: 1, 1>, scalar_prefetch = 0 : i64, scratch_operands = 0 : i64, tpu.core_type = #tpu.core_type<tc>, window_params = [{transform_indices = @transform_0, window_bounds = array<i64: 2, 256, 128>}, {transform_indices = @transform_1, window_bounds = array<i64: 3, 256, 128>}, {transform_indices = @transform_2, window_bounds = array<i64: 256, 128>}, {transform_indices = @transform_3, window_bounds = array<i64: 1, 128, 256>}, {transform_indices = @transform_4, window_bounds = array<i64: 1, 128, 1>}, {transform_indices = @transform_5, window_bounds = array<i64: 1, 128, 384>}, {transform_indices = @transform_6, window_bounds = array<i64: 1, 128, 1>}, {transform_indices = @transform_7, window_bounds = array<i64: 1, 256, 128>}, {transform_indices = @transform_8, window_bounds = array<i64: 1, 256, 1>}, {transform_indices = @transform_9, window_bounds = array<i64: 1, 128, 256>}, {transform_indices = @transform_10, window_bounds = array<i64: 1, 128, 256>}, {transform_indices = @transform_11, window_bounds = array<i64: 1, 128, 1>}, {transform_indices = @transform_12, window_bounds = array<i64: 1, 128, 128>}, {transform_indices = @transform_13, window_bounds = array<i64: 1, 128, 1>}, {transform_indices = @transform_14, window_bounds = array<i64: 1, 256, 128>}, {transform_indices = @transform_15, window_bounds = array<i64: 1, 256, 1>}, {transform_indices = @transform_16, window_bounds = array<i64: 1, 1, 256>}, {transform_indices = @transform_17, window_bounds = array<i64: 1, 1, 1>}, {transform_indices = @transform_18, window_bounds = array<i64: 1, 256, 128>}, {transform_indices = @transform_19, window_bounds = array<i64: 1, 1, 128>}]} {
    %c0 = arith.constant 0 : index
    %c0_0 = arith.constant 0 : index
    %0 = vector.load %arg4[%c0, %c0_0] : memref<256x128xf32, #tpu.memory_space<vmem>>, vector<256x128xf32>
    %1 = arith.truncf %0 : vector<256x128xf32> to vector<256x128xbf16>
    %c0_1 = arith.constant 0 : index
    %c0_2 = arith.constant 0 : index
    %c0_3 = arith.constant 0 : index
    %2 = vector.load %arg2[%c0_1, %c0_2, %c0_3] : memref<2x256x128xbf16, #tpu.memory_space<vmem>>, vector<1x256x128xbf16>
    %3 = vector.shape_cast %2 : vector<1x256x128xbf16> to vector<256x128xbf16>
    %c1 = arith.constant 1 : index
    %c0_4 = arith.constant 0 : index
    %c0_5 = arith.constant 0 : index
    %4 = vector.load %arg2[%c1, %c0_4, %c0_5] : memref<2x256x128xbf16, #tpu.memory_space<vmem>>, vector<1x256x128xbf16>
    %5 = vector.shape_cast %4 : vector<1x256x128xbf16> to vector<256x128xbf16>
    %6 = tpu.concatenate %3, %1, %5 in 1 : vector<256x128xbf16>, vector<256x128xbf16>, vector<256x128xbf16> -> vector<256x384xbf16>
    %c0_6 = arith.constant 0 : index
    %c0_7 = arith.constant 0 : index
    %c0_8 = arith.constant 0 : index
    %7 = vector.load %arg5[%c0_6, %c0_7, %c0_8] : memref<1x128x256xbf16, #tpu.memory_space<vmem>>, vector<1x128x256xbf16>
    %8 = vector.shape_cast %7 : vector<1x128x256xbf16> to vector<128x256xbf16>
    %cst = arith.constant dense<0.000000e+00> : vector<128x384xf32>
    %9 = tpu.matmul %8, %6, %cst {dimension_numbers = #tpu.dot_dimension_numbers<[1], [0], [0], [1], [0, 0, 1, 1], [], []>} : vector<128x256xbf16>, vector<256x384xbf16>, vector<128x384xf32> -> vector<128x384xf32>
    %c0_9 = arith.constant 0 : index
    %c0_10 = arith.constant 0 : index
    %c0_11 = arith.constant 0 : index
    %10 = vector.load %arg6[%c0_9, %c0_10, %c0_11] : memref<1x128x1xf32, #tpu.memory_space<vmem>>, vector<1x128x1xf32>
    %11 = vector.shape_cast %10 : vector<1x128x1xf32> to vector<128x1xf32>
    %12 = vector.broadcast %11 : vector<128x1xf32> to vector<128x384xf32>
    %13 = arith.addf %9, %12 : vector<128x384xf32>
    %cst_12 = arith.constant 0.000000e+00 : f32
    %14 = vector.broadcast %cst_12 : f32 to vector<128x384xf32>
    %15 = arith.maximumf %13, %14 : vector<128x384xf32>
    %16 = arith.truncf %15 : vector<128x384xf32> to vector<128x384xbf16>
    %17 = vector.extract_strided_slice %16 {offsets = [0, 0], sizes = [128, 128], strides = [1, 1]} : vector<128x384xbf16> to vector<128x128xbf16>
    %18 = vector.extract_strided_slice %16 {offsets = [0, 128], sizes = [128, 128], strides = [1, 1]} : vector<128x384xbf16> to vector<128x128xbf16>
    %19 = vector.extract_strided_slice %16 {offsets = [0, 256], sizes = [128, 128], strides = [1, 1]} : vector<128x384xbf16> to vector<128x128xbf16>
    %20 = tpu.concatenate %17, %18, %19 in 0 : vector<128x128xbf16>, vector<128x128xbf16>, vector<128x128xbf16> -> vector<384x128xbf16>
    %c0_13 = arith.constant 0 : index
    %c0_14 = arith.constant 0 : index
    %c0_15 = arith.constant 0 : index
    %21 = vector.load %arg7[%c0_13, %c0_14, %c0_15] : memref<1x128x384xbf16, #tpu.memory_space<vmem>>, vector<1x128x384xbf16>
    %22 = vector.shape_cast %21 : vector<1x128x384xbf16> to vector<128x384xbf16>
    %cst_16 = arith.constant dense<0.000000e+00> : vector<128x128xf32>
    %23 = tpu.matmul %22, %20, %cst_16 {dimension_numbers = #tpu.dot_dimension_numbers<[1], [0], [0], [1], [0, 0, 1, 1], [], []>} : vector<128x384xbf16>, vector<384x128xbf16>, vector<128x128xf32> -> vector<128x128xf32>
    %c0_17 = arith.constant 0 : index
    %c0_18 = arith.constant 0 : index
    %c0_19 = arith.constant 0 : index
    %24 = vector.load %arg8[%c0_17, %c0_18, %c0_19] : memref<1x128x1xf32, #tpu.memory_space<vmem>>, vector<1x128x1xf32>
    %25 = vector.shape_cast %24 : vector<1x128x1xf32> to vector<128x1xf32>
    %26 = vector.broadcast %25 : vector<128x1xf32> to vector<128x128xf32>
    %27 = arith.addf %23, %26 : vector<128x128xf32>
    %cst_20 = arith.constant 0.000000e+00 : f32
    %28 = vector.broadcast %cst_20 : f32 to vector<128x128xf32>
    %29 = arith.maximumf %27, %28 : vector<128x128xf32>
    %30 = arith.truncf %29 : vector<128x128xf32> to vector<128x128xbf16>
    %c0_21 = arith.constant 0 : index
    %c0_22 = arith.constant 0 : index
    %c0_23 = arith.constant 0 : index
    %31 = vector.load %arg9[%c0_21, %c0_22, %c0_23] : memref<1x256x128xbf16, #tpu.memory_space<vmem>>, vector<1x256x128xbf16>
    %32 = vector.shape_cast %31 : vector<1x256x128xbf16> to vector<256x128xbf16>
    %cst_24 = arith.constant dense<0.000000e+00> : vector<256x128xf32>
    %33 = tpu.matmul %32, %30, %cst_24 {dimension_numbers = #tpu.dot_dimension_numbers<[1], [0], [0], [1], [0, 0, 1, 1], [], []>} : vector<256x128xbf16>, vector<128x128xbf16>, vector<256x128xf32> -> vector<256x128xf32>
    %c0_25 = arith.constant 0 : index
    %c0_26 = arith.constant 0 : index
    %c0_27 = arith.constant 0 : index
    %34 = vector.load %arg10[%c0_25, %c0_26, %c0_27] : memref<1x256x1xf32, #tpu.memory_space<vmem>>, vector<1x256x1xf32>
    %35 = vector.shape_cast %34 : vector<1x256x1xf32> to vector<256x1xf32>
    %36 = vector.broadcast %35 : vector<256x1xf32> to vector<256x128xf32>
    %37 = arith.addf %33, %36 : vector<256x128xf32>
    %c0_28 = arith.constant 0 : index
    %c0_29 = arith.constant 0 : index
    %c0_30 = arith.constant 0 : index
    %38 = vector.load %arg12[%c0_28, %c0_29, %c0_30] : memref<1x128x256xbf16, #tpu.memory_space<vmem>>, vector<1x128x256xbf16>
    %39 = vector.shape_cast %38 : vector<1x128x256xbf16> to vector<128x256xbf16>
    %cst_31 = arith.constant dense<0.000000e+00> : vector<128x128xf32>
    %40 = tpu.matmul %39, %1, %cst_31 {dimension_numbers = #tpu.dot_dimension_numbers<[1], [0], [0], [1], [0, 0, 1, 1], [], []>} : vector<128x256xbf16>, vector<256x128xbf16>, vector<128x128xf32> -> vector<128x128xf32>
    %c0_32 = arith.constant 0 : index
    %c0_33 = arith.constant 0 : index
    %c0_34 = arith.constant 0 : index
    %41 = vector.load %arg3[%c0_32, %c0_33, %c0_34] : memref<3x256x128xbf16, #tpu.memory_space<vmem>>, vector<1x256x128xbf16>
    %42 = vector.shape_cast %41 : vector<1x256x128xbf16> to vector<256x128xbf16>
    %c1_35 = arith.constant 1 : index
    %c0_36 = arith.constant 0 : index
    %c0_37 = arith.constant 0 : index
    %43 = vector.load %arg3[%c1_35, %c0_36, %c0_37] : memref<3x256x128xbf16, #tpu.memory_space<vmem>>, vector<1x256x128xbf16>
    %44 = vector.shape_cast %43 : vector<1x256x128xbf16> to vector<256x128xbf16>
    %c2 = arith.constant 2 : index
    %c0_38 = arith.constant 0 : index
    %c0_39 = arith.constant 0 : index
    %45 = vector.load %arg3[%c2, %c0_38, %c0_39] : memref<3x256x128xbf16, #tpu.memory_space<vmem>>, vector<1x256x128xbf16>
    %46 = vector.shape_cast %45 : vector<1x256x128xbf16> to vector<256x128xbf16>
    %47 = tpu.concatenate %42, %44, %46 in 1 : vector<256x128xbf16>, vector<256x128xbf16>, vector<256x128xbf16> -> vector<256x384xbf16>
    %c0_40 = arith.constant 0 : index
    %c0_41 = arith.constant 0 : index
    %c0_42 = arith.constant 0 : index
    %48 = vector.load %arg11[%c0_40, %c0_41, %c0_42] : memref<1x128x256xbf16, #tpu.memory_space<vmem>>, vector<1x128x256xbf16>
    %49 = vector.shape_cast %48 : vector<1x128x256xbf16> to vector<128x256xbf16>
    %cst_43 = arith.constant dense<0.000000e+00> : vector<128x384xf32>
    %50 = tpu.matmul %49, %47, %cst_43 {dimension_numbers = #tpu.dot_dimension_numbers<[1], [0], [0], [1], [0, 0, 1, 1], [], []>} : vector<128x256xbf16>, vector<256x384xbf16>, vector<128x384xf32> -> vector<128x384xf32>
    %51 = tpu.concatenate %40, %40, %40 in 1 : vector<128x128xf32>, vector<128x128xf32>, vector<128x128xf32> -> vector<128x384xf32>
    %52 = arith.addf %50, %51 : vector<128x384xf32>
    %c0_44 = arith.constant 0 : index
    %c0_45 = arith.constant 0 : index
    %c0_46 = arith.constant 0 : index
    %53 = vector.load %arg13[%c0_44, %c0_45, %c0_46] : memref<1x128x1xf32, #tpu.memory_space<vmem>>, vector<1x128x1xf32>
    %54 = vector.shape_cast %53 : vector<1x128x1xf32> to vector<128x1xf32>
    %55 = vector.broadcast %54 : vector<128x1xf32> to vector<128x384xf32>
    %56 = arith.addf %52, %55 : vector<128x384xf32>
    %cst_47 = arith.constant 0.000000e+00 : f32
    %57 = vector.broadcast %cst_47 : f32 to vector<128x384xf32>
    %58 = arith.maximumf %56, %57 : vector<128x384xf32>
    %59 = arith.truncf %58 : vector<128x384xf32> to vector<128x384xbf16>
    %c0_48 = arith.constant 0 : index
    %c0_49 = arith.constant 0 : index
    %c0_50 = arith.constant 0 : index
    %60 = vector.load %arg14[%c0_48, %c0_49, %c0_50] : memref<1x128x128xbf16, #tpu.memory_space<vmem>>, vector<1x128x128xbf16>
    %61 = vector.shape_cast %60 : vector<1x128x128xbf16> to vector<128x128xbf16>
    %cst_51 = arith.constant dense<0.000000e+00> : vector<128x384xf32>
    %62 = tpu.matmul %61, %59, %cst_51 {dimension_numbers = #tpu.dot_dimension_numbers<[1], [0], [0], [1], [0, 0, 1, 1], [], []>} : vector<128x128xbf16>, vector<128x384xbf16>, vector<128x384xf32> -> vector<128x384xf32>
    %c0_52 = arith.constant 0 : index
    %c0_53 = arith.constant 0 : index
    %c0_54 = arith.constant 0 : index
    %63 = vector.load %arg15[%c0_52, %c0_53, %c0_54] : memref<1x128x1xf32, #tpu.memory_space<vmem>>, vector<1x128x1xf32>
    %64 = vector.shape_cast %63 : vector<1x128x1xf32> to vector<128x1xf32>
    %65 = vector.broadcast %64 : vector<128x1xf32> to vector<128x384xf32>
    %66 = arith.addf %62, %65 : vector<128x384xf32>
    %cst_55 = arith.constant 0.000000e+00 : f32
    %67 = vector.broadcast %cst_55 : f32 to vector<128x384xf32>
    %68 = arith.maximumf %66, %67 : vector<128x384xf32>
    %69 = arith.truncf %68 : vector<128x384xf32> to vector<128x384xbf16>
    %c0_56 = arith.constant 0 : index
    %c0_57 = arith.constant 0 : index
    %c0_58 = arith.constant 0 : index
    %70 = vector.load %arg16[%c0_56, %c0_57, %c0_58] : memref<1x256x128xbf16, #tpu.memory_space<vmem>>, vector<1x256x128xbf16>
    %71 = vector.shape_cast %70 : vector<1x256x128xbf16> to vector<256x128xbf16>
    %cst_59 = arith.constant dense<0.000000e+00> : vector<256x384xf32>
    %72 = tpu.matmul %71, %69, %cst_59 {dimension_numbers = #tpu.dot_dimension_numbers<[1], [0], [0], [1], [0, 0, 1, 1], [], []>} : vector<256x128xbf16>, vector<128x384xbf16>, vector<256x384xf32> -> vector<256x384xf32>
    %c0_60 = arith.constant 0 : index
    %c0_61 = arith.constant 0 : index
    %c0_62 = arith.constant 0 : index
    %73 = vector.load %arg17[%c0_60, %c0_61, %c0_62] : memref<1x256x1xf32, #tpu.memory_space<vmem>>, vector<1x256x1xf32>
    %74 = vector.shape_cast %73 : vector<1x256x1xf32> to vector<256x1xf32>
    %75 = vector.broadcast %74 : vector<256x1xf32> to vector<256x384xf32>
    %76 = arith.addf %72, %75 : vector<256x384xf32>
    %77 = vector.extract_strided_slice %76 {offsets = [0, 0], sizes = [256, 128], strides = [1, 1]} : vector<256x384xf32> to vector<256x128xf32>
    %78 = vector.extract_strided_slice %76 {offsets = [0, 128], sizes = [256, 128], strides = [1, 1]} : vector<256x384xf32> to vector<256x128xf32>
    %79 = arith.maximumf %77, %78 : vector<256x128xf32>
    %80 = vector.extract_strided_slice %76 {offsets = [0, 256], sizes = [256, 128], strides = [1, 1]} : vector<256x384xf32> to vector<256x128xf32>
    %81 = arith.maximumf %79, %80 : vector<256x128xf32>
    %82 = arith.addf %37, %0 : vector<256x128xf32>
    %83 = arith.addf %82, %81 : vector<256x128xf32>
    %cst_63 = arith.constant 0.000000e+00 : f32
    %84 = vector.broadcast %cst_63 : f32 to vector<256x128xf32>
    %85 = arith.maximumf %83, %84 : vector<256x128xf32>
    %c0_64 = arith.constant 0 : index
    %c0_65 = arith.constant 0 : index
    %c0_66 = arith.constant 0 : index
    %86 = vector.load %arg20[%c0_64, %c0_65, %c0_66] : memref<1x256x128xf32, #tpu.memory_space<vmem>>, vector<1x256x128xf32>
    %87 = vector.shape_cast %86 : vector<1x256x128xf32> to vector<256x128xf32>
    %88 = vector.shape_cast %85 : vector<256x128xf32> to vector<1x256x128xf32>
    tpu.vector_store %arg20[%c0_64, %c0_65, %c0_66], %88 {strides = array<i32>} : memref<1x256x128xf32, #tpu.memory_space<vmem>>, vector<1x256x128xf32>,
    %c0_67 = arith.constant 0 : index
    %c0_68 = arith.constant 0 : index
    %c0_69 = arith.constant 0 : index
    %89 = vector.load %arg18[%c0_67, %c0_68, %c0_69] : memref<1x1x256xf32, #tpu.memory_space<vmem>>, vector<1x1x256xf32>
    %90 = vector.shape_cast %89 : vector<1x1x256xf32> to vector<1x256xf32>
    %cst_70 = arith.constant dense<0.000000e+00> : vector<1x128xf32>
    %91 = tpu.matmul %90, %85, %cst_70 {dimension_numbers = #tpu.dot_dimension_numbers<[1], [0], [0], [1], [0, 0, 1, 1], [], []>} : vector<1x256xf32>, vector<256x128xf32>, vector<1x128xf32> -> vector<1x128xf32>
    %c0_71 = arith.constant 0 : index
    %c0_72 = arith.constant 0 : index
    %c0_73 = arith.constant 0 : index
    %92 = vector.load %arg19[%c0_71, %c0_72, %c0_73] : memref<1x1x1xf32, #tpu.memory_space<vmem>>, vector<1x1x1xf32>
    %93 = vector.shape_cast %92 : vector<1x1x1xf32> to vector<1x1xf32>
    %94 = vector.broadcast %93 : vector<1x1xf32> to vector<1x128xf32>
    %95 = arith.addf %91, %94 : vector<1x128xf32>
    %96 = arith.negf %95 : vector<1x128xf32>
    %97 = math.exp %96 : vector<1x128xf32>
    %cst_74 = arith.constant 1.000000e+00 : f32
    %98 = vector.broadcast %cst_74 : f32 to vector<1x128xf32>
    %99 = arith.addf %98, %97 : vector<1x128xf32>
    %100 = arith.divf %98, %99 : vector<1x128xf32>
    %c0_75 = arith.constant 0 : index
    %c0_76 = arith.constant 0 : index
    %c0_77 = arith.constant 0 : index
    %101 = vector.load %arg21[%c0_75, %c0_76, %c0_77] : memref<1x1x128xf32, #tpu.memory_space<vmem>>, vector<1x1x128xf32>
    %102 = vector.shape_cast %101 : vector<1x1x128xf32> to vector<1x128xf32>
    %103 = vector.shape_cast %100 : vector<1x128xf32> to vector<1x1x128xf32>
    tpu.vector_store %arg21[%c0_75, %c0_76, %c0_77], %103 {strides = array<i32>} : memref<1x1x128xf32, #tpu.memory_space<vmem>>, vector<1x1x128xf32>,
    return
  }
  func.func @transform_0(%arg0: i32, %arg1: i32) -> (i32, i32, i32) {
    %c0_i32 = arith.constant 0 : i32
    %c0_i32_0 = arith.constant 0 : i32
    %c0_i32_1 = arith.constant 0 : i32
    return %c0_i32, %c0_i32_0, %arg0 : i32, i32, i32
  }
  func.func @transform_1(%arg0: i32, %arg1: i32) -> (i32, i32, i32) {
    %c0_i32 = arith.constant 0 : i32
    %c0_i32_0 = arith.constant 0 : i32
    %c0_i32_1 = arith.constant 0 : i32
    return %c0_i32, %c0_i32_0, %arg0 : i32, i32, i32
  }
  func.func @transform_2(%arg0: i32, %arg1: i32) -> (i32, i32) {
    %c0_i32 = arith.constant 0 : i32
    %c0_i32_0 = arith.constant 0 : i32
    return %c0_i32, %arg0 : i32, i32
  }
  func.func @transform_3(%arg0: i32, %arg1: i32) -> (i32, i32, i32) {
    %c0_i32 = arith.constant 0 : i32
    %c0_i32_0 = arith.constant 0 : i32
    %c0_i32_1 = arith.constant 0 : i32
    return %arg1, %c0_i32, %c0_i32_0 : i32, i32, i32
  }
  func.func @transform_4(%arg0: i32, %arg1: i32) -> (i32, i32, i32) {
    %c0_i32 = arith.constant 0 : i32
    %c0_i32_0 = arith.constant 0 : i32
    %c0_i32_1 = arith.constant 0 : i32
    return %arg1, %c0_i32, %c0_i32_0 : i32, i32, i32
  }
  func.func @transform_5(%arg0: i32, %arg1: i32) -> (i32, i32, i32) {
    %c0_i32 = arith.constant 0 : i32
    %c0_i32_0 = arith.constant 0 : i32
    %c0_i32_1 = arith.constant 0 : i32
    return %arg1, %c0_i32, %c0_i32_0 : i32, i32, i32
  }
  func.func @transform_6(%arg0: i32, %arg1: i32) -> (i32, i32, i32) {
    %c0_i32 = arith.constant 0 : i32
    %c0_i32_0 = arith.constant 0 : i32
    %c0_i32_1 = arith.constant 0 : i32
    return %arg1, %c0_i32, %c0_i32_0 : i32, i32, i32
  }
  func.func @transform_7(%arg0: i32, %arg1: i32) -> (i32, i32, i32) {
    %c0_i32 = arith.constant 0 : i32
    %c0_i32_0 = arith.constant 0 : i32
    %c0_i32_1 = arith.constant 0 : i32
    return %arg1, %c0_i32, %c0_i32_0 : i32, i32, i32
  }
  func.func @transform_8(%arg0: i32, %arg1: i32) -> (i32, i32, i32) {
    %c0_i32 = arith.constant 0 : i32
    %c0_i32_0 = arith.constant 0 : i32
    %c0_i32_1 = arith.constant 0 : i32
    return %arg1, %c0_i32, %c0_i32_0 : i32, i32, i32
  }
  func.func @transform_9(%arg0: i32, %arg1: i32) -> (i32, i32, i32) {
    %c0_i32 = arith.constant 0 : i32
    %c0_i32_0 = arith.constant 0 : i32
    %c0_i32_1 = arith.constant 0 : i32
    return %arg1, %c0_i32, %c0_i32_0 : i32, i32, i32
  }
  func.func @transform_10(%arg0: i32, %arg1: i32) -> (i32, i32, i32) {
    %c0_i32 = arith.constant 0 : i32
    %c0_i32_0 = arith.constant 0 : i32
    %c0_i32_1 = arith.constant 0 : i32
    return %arg1, %c0_i32, %c0_i32_0 : i32, i32, i32
  }
  func.func @transform_11(%arg0: i32, %arg1: i32) -> (i32, i32, i32) {
    %c0_i32 = arith.constant 0 : i32
    %c0_i32_0 = arith.constant 0 : i32
    %c0_i32_1 = arith.constant 0 : i32
    return %arg1, %c0_i32, %c0_i32_0 : i32, i32, i32
  }
  func.func @transform_12(%arg0: i32, %arg1: i32) -> (i32, i32, i32) {
    %c0_i32 = arith.constant 0 : i32
    %c0_i32_0 = arith.constant 0 : i32
    %c0_i32_1 = arith.constant 0 : i32
    return %arg1, %c0_i32, %c0_i32_0 : i32, i32, i32
  }
  func.func @transform_13(%arg0: i32, %arg1: i32) -> (i32, i32, i32) {
    %c0_i32 = arith.constant 0 : i32
    %c0_i32_0 = arith.constant 0 : i32
    %c0_i32_1 = arith.constant 0 : i32
    return %arg1, %c0_i32, %c0_i32_0 : i32, i32, i32
  }
  func.func @transform_14(%arg0: i32, %arg1: i32) -> (i32, i32, i32) {
    %c0_i32 = arith.constant 0 : i32
    %c0_i32_0 = arith.constant 0 : i32
    %c0_i32_1 = arith.constant 0 : i32
    return %arg1, %c0_i32, %c0_i32_0 : i32, i32, i32
  }
  func.func @transform_15(%arg0: i32, %arg1: i32) -> (i32, i32, i32) {
    %c0_i32 = arith.constant 0 : i32
    %c0_i32_0 = arith.constant 0 : i32
    %c0_i32_1 = arith.constant 0 : i32
    return %arg1, %c0_i32, %c0_i32_0 : i32, i32, i32
  }
  func.func @transform_16(%arg0: i32, %arg1: i32) -> (i32, i32, i32) {
    %c0_i32 = arith.constant 0 : i32
    %c0_i32_0 = arith.constant 0 : i32
    %c0_i32_1 = arith.constant 0 : i32
    return %arg1, %c0_i32, %c0_i32_0 : i32, i32, i32
  }
  func.func @transform_17(%arg0: i32, %arg1: i32) -> (i32, i32, i32) {
    %c0_i32 = arith.constant 0 : i32
    %c0_i32_0 = arith.constant 0 : i32
    %c0_i32_1 = arith.constant 0 : i32
    return %arg1, %c0_i32, %c0_i32_0 : i32, i32, i32
  }
  func.func @transform_18(%arg0: i32, %arg1: i32) -> (i32, i32, i32) {
    %c0_i32 = arith.constant 0 : i32
    %c0_i32_0 = arith.constant 0 : i32
    return %arg1, %c0_i32, %arg0 : i32, i32, i32
  }
  func.func @transform_19(%arg0: i32, %arg1: i32) -> (i32, i32, i32) {
    %c0_i32 = arith.constant 0 : i32
    %c0_i32_0 = arith.constant 0 : i32
    return %arg1, %c0_i32, %arg0 : i32, i32, i32
  }
}

module attributes {stable_mosaic.version = 11 : i64} {
  func.func @_gcnext_kernel(%arg0: i32, %arg1: i32, %arg2: memref<2x256x128xbf16, #tpu.memory_space<vmem>>, %arg3: memref<3x256x128xbf16, #tpu.memory_space<vmem>>, %arg4: memref<256x128xf32, #tpu.memory_space<vmem>>, %arg5: memref<1x128x256xbf16, #tpu.memory_space<vmem>>, %arg6: memref<1x128x1xf32, #tpu.memory_space<vmem>>, %arg7: memref<1x128x384xbf16, #tpu.memory_space<vmem>>, %arg8: memref<1x128x1xf32, #tpu.memory_space<vmem>>, %arg9: memref<1x256x128xbf16, #tpu.memory_space<vmem>>, %arg10: memref<1x256x1xf32, #tpu.memory_space<vmem>>, %arg11: memref<1x128x256xbf16, #tpu.memory_space<vmem>>, %arg12: memref<1x128x256xbf16, #tpu.memory_space<vmem>>, %arg13: memref<1x128x1xf32, #tpu.memory_space<vmem>>, %arg14: memref<1x128x128xbf16, #tpu.memory_space<vmem>>, %arg15: memref<1x128x1xf32, #tpu.memory_space<vmem>>, %arg16: memref<1x256x128xbf16, #tpu.memory_space<vmem>>, %arg17: memref<1x256x1xf32, #tpu.memory_space<vmem>>, %arg18: memref<1x1x256xf32, #tpu.memory_space<vmem>>, %arg19: memref<1x1x1xf32, #tpu.memory_space<vmem>>, %arg20: memref<1x256x128xf32, #tpu.memory_space<vmem>>, %arg21: memref<1x1x128xf32, #tpu.memory_space<vmem>>) attributes {dimension_semantics = [#tpu.dimension_semantics<parallel>, #tpu.dimension_semantics<parallel>], iteration_bounds = array<i64: 1, 3>, scalar_prefetch = 0 : i64, scratch_operands = 0 : i64, tpu.core_type = #tpu.core_type<tc>, window_params = [{transform_indices = @transform_0, window_bounds = array<i64: 2, 256, 128>}, {transform_indices = @transform_1, window_bounds = array<i64: 3, 256, 128>}, {transform_indices = @transform_2, window_bounds = array<i64: 256, 128>}, {transform_indices = @transform_3, window_bounds = array<i64: 1, 128, 256>}, {transform_indices = @transform_4, window_bounds = array<i64: 1, 128, 1>}, {transform_indices = @transform_5, window_bounds = array<i64: 1, 128, 384>}, {transform_indices = @transform_6, window_bounds = array<i64: 1, 128, 1>}, {transform_indices = @transform_7, window_bounds = array<i64: 1, 256, 128>}, {transform_indices = @transform_8, window_bounds = array<i64: 1, 256, 1>}, {transform_indices = @transform_9, window_bounds = array<i64: 1, 128, 256>}, {transform_indices = @transform_10, window_bounds = array<i64: 1, 128, 256>}, {transform_indices = @transform_11, window_bounds = array<i64: 1, 128, 1>}, {transform_indices = @transform_12, window_bounds = array<i64: 1, 128, 128>}, {transform_indices = @transform_13, window_bounds = array<i64: 1, 128, 1>}, {transform_indices = @transform_14, window_bounds = array<i64: 1, 256, 128>}, {transform_indices = @transform_15, window_bounds = array<i64: 1, 256, 1>}, {transform_indices = @transform_16, window_bounds = array<i64: 1, 1, 256>}, {transform_indices = @transform_17, window_bounds = array<i64: 1, 1, 1>}, {transform_indices = @transform_18, window_bounds = array<i64: 1, 256, 128>}, {transform_indices = @transform_19, window_bounds = array<i64: 1, 1, 128>}]} {
    %c0 = arith.constant 0 : index
    %c0_0 = arith.constant 0 : index
    %0 = vector.load %arg4[%c0, %c0_0] : memref<256x128xf32, #tpu.memory_space<vmem>>, vector<256x128xf32>
    %1 = arith.truncf %0 : vector<256x128xf32> to vector<256x128xbf16>
    %c0_1 = arith.constant 0 : index
    %c0_2 = arith.constant 0 : index
    %c0_3 = arith.constant 0 : index
    %2 = vector.load %arg2[%c0_1, %c0_2, %c0_3] : memref<2x256x128xbf16, #tpu.memory_space<vmem>>, vector<1x256x128xbf16>
    %3 = vector.shape_cast %2 : vector<1x256x128xbf16> to vector<256x128xbf16>
    %c1 = arith.constant 1 : index
    %c0_4 = arith.constant 0 : index
    %c0_5 = arith.constant 0 : index
    %4 = vector.load %arg2[%c1, %c0_4, %c0_5] : memref<2x256x128xbf16, #tpu.memory_space<vmem>>, vector<1x256x128xbf16>
    %5 = vector.shape_cast %4 : vector<1x256x128xbf16> to vector<256x128xbf16>
    %6 = tpu.concatenate %3, %1, %5 in 1 : vector<256x128xbf16>, vector<256x128xbf16>, vector<256x128xbf16> -> vector<256x384xbf16>
    %c0_6 = arith.constant 0 : index
    %c0_7 = arith.constant 0 : index
    %c0_8 = arith.constant 0 : index
    %7 = vector.load %arg5[%c0_6, %c0_7, %c0_8] : memref<1x128x256xbf16, #tpu.memory_space<vmem>>, vector<1x128x256xbf16>
    %8 = vector.shape_cast %7 : vector<1x128x256xbf16> to vector<128x256xbf16>
    %cst = arith.constant dense<0.000000e+00> : vector<128x384xf32>
    %9 = tpu.matmul %8, %6, %cst {dimension_numbers = #tpu.dot_dimension_numbers<[1], [0], [0], [1], [0, 0, 1, 1], [], []>} : vector<128x256xbf16>, vector<256x384xbf16>, vector<128x384xf32> -> vector<128x384xf32>
    %c0_9 = arith.constant 0 : index
    %c0_10 = arith.constant 0 : index
    %c0_11 = arith.constant 0 : index
    %10 = vector.load %arg6[%c0_9, %c0_10, %c0_11] : memref<1x128x1xf32, #tpu.memory_space<vmem>>, vector<1x128x1xf32>
    %11 = vector.shape_cast %10 : vector<1x128x1xf32> to vector<128x1xf32>
    %12 = vector.broadcast %11 : vector<128x1xf32> to vector<128x384xf32>
    %13 = arith.addf %9, %12 : vector<128x384xf32>
    %cst_12 = arith.constant 0.000000e+00 : f32
    %14 = vector.broadcast %cst_12 : f32 to vector<128x384xf32>
    %15 = arith.maximumf %13, %14 : vector<128x384xf32>
    %16 = arith.truncf %15 : vector<128x384xf32> to vector<128x384xbf16>
    %17 = vector.extract_strided_slice %16 {offsets = [0, 0], sizes = [128, 128], strides = [1, 1]} : vector<128x384xbf16> to vector<128x128xbf16>
    %18 = vector.extract_strided_slice %16 {offsets = [0, 128], sizes = [128, 128], strides = [1, 1]} : vector<128x384xbf16> to vector<128x128xbf16>
    %19 = vector.extract_strided_slice %16 {offsets = [0, 256], sizes = [128, 128], strides = [1, 1]} : vector<128x384xbf16> to vector<128x128xbf16>
    %20 = tpu.concatenate %17, %18, %19 in 0 : vector<128x128xbf16>, vector<128x128xbf16>, vector<128x128xbf16> -> vector<384x128xbf16>
    %c0_13 = arith.constant 0 : index
    %c0_14 = arith.constant 0 : index
    %c0_15 = arith.constant 0 : index
    %21 = vector.load %arg7[%c0_13, %c0_14, %c0_15] : memref<1x128x384xbf16, #tpu.memory_space<vmem>>, vector<1x128x384xbf16>
    %22 = vector.shape_cast %21 : vector<1x128x384xbf16> to vector<128x384xbf16>
    %cst_16 = arith.constant dense<0.000000e+00> : vector<128x128xf32>
    %23 = tpu.matmul %22, %20, %cst_16 {dimension_numbers = #tpu.dot_dimension_numbers<[1], [0], [0], [1], [0, 0, 1, 1], [], []>} : vector<128x384xbf16>, vector<384x128xbf16>, vector<128x128xf32> -> vector<128x128xf32>
    %c0_17 = arith.constant 0 : index
    %c0_18 = arith.constant 0 : index
    %c0_19 = arith.constant 0 : index
    %24 = vector.load %arg8[%c0_17, %c0_18, %c0_19] : memref<1x128x1xf32, #tpu.memory_space<vmem>>, vector<1x128x1xf32>
    %25 = vector.shape_cast %24 : vector<1x128x1xf32> to vector<128x1xf32>
    %26 = vector.broadcast %25 : vector<128x1xf32> to vector<128x128xf32>
    %27 = arith.addf %23, %26 : vector<128x128xf32>
    %cst_20 = arith.constant 0.000000e+00 : f32
    %28 = vector.broadcast %cst_20 : f32 to vector<128x128xf32>
    %29 = arith.maximumf %27, %28 : vector<128x128xf32>
    %30 = arith.truncf %29 : vector<128x128xf32> to vector<128x128xbf16>
    %c0_21 = arith.constant 0 : index
    %c0_22 = arith.constant 0 : index
    %c0_23 = arith.constant 0 : index
    %31 = vector.load %arg9[%c0_21, %c0_22, %c0_23] : memref<1x256x128xbf16, #tpu.memory_space<vmem>>, vector<1x256x128xbf16>
    %32 = vector.shape_cast %31 : vector<1x256x128xbf16> to vector<256x128xbf16>
    %cst_24 = arith.constant dense<0.000000e+00> : vector<256x128xf32>
    %33 = tpu.matmul %32, %30, %cst_24 {dimension_numbers = #tpu.dot_dimension_numbers<[1], [0], [0], [1], [0, 0, 1, 1], [], []>} : vector<256x128xbf16>, vector<128x128xbf16>, vector<256x128xf32> -> vector<256x128xf32>
    %c0_25 = arith.constant 0 : index
    %c0_26 = arith.constant 0 : index
    %c0_27 = arith.constant 0 : index
    %34 = vector.load %arg10[%c0_25, %c0_26, %c0_27] : memref<1x256x1xf32, #tpu.memory_space<vmem>>, vector<1x256x1xf32>
    %35 = vector.shape_cast %34 : vector<1x256x1xf32> to vector<256x1xf32>
    %36 = vector.broadcast %35 : vector<256x1xf32> to vector<256x128xf32>
    %37 = arith.addf %33, %36 : vector<256x128xf32>
    %c0_28 = arith.constant 0 : index
    %c0_29 = arith.constant 0 : index
    %c0_30 = arith.constant 0 : index
    %38 = vector.load %arg12[%c0_28, %c0_29, %c0_30] : memref<1x128x256xbf16, #tpu.memory_space<vmem>>, vector<1x128x256xbf16>
    %39 = vector.shape_cast %38 : vector<1x128x256xbf16> to vector<128x256xbf16>
    %cst_31 = arith.constant dense<0.000000e+00> : vector<128x128xf32>
    %40 = tpu.matmul %39, %1, %cst_31 {dimension_numbers = #tpu.dot_dimension_numbers<[1], [0], [0], [1], [0, 0, 1, 1], [], []>} : vector<128x256xbf16>, vector<256x128xbf16>, vector<128x128xf32> -> vector<128x128xf32>
    %c0_32 = arith.constant 0 : index
    %c0_33 = arith.constant 0 : index
    %c0_34 = arith.constant 0 : index
    %41 = vector.load %arg3[%c0_32, %c0_33, %c0_34] : memref<3x256x128xbf16, #tpu.memory_space<vmem>>, vector<1x256x128xbf16>
    %42 = vector.shape_cast %41 : vector<1x256x128xbf16> to vector<256x128xbf16>
    %c1_35 = arith.constant 1 : index
    %c0_36 = arith.constant 0 : index
    %c0_37 = arith.constant 0 : index
    %43 = vector.load %arg3[%c1_35, %c0_36, %c0_37] : memref<3x256x128xbf16, #tpu.memory_space<vmem>>, vector<1x256x128xbf16>
    %44 = vector.shape_cast %43 : vector<1x256x128xbf16> to vector<256x128xbf16>
    %c2 = arith.constant 2 : index
    %c0_38 = arith.constant 0 : index
    %c0_39 = arith.constant 0 : index
    %45 = vector.load %arg3[%c2, %c0_38, %c0_39] : memref<3x256x128xbf16, #tpu.memory_space<vmem>>, vector<1x256x128xbf16>
    %46 = vector.shape_cast %45 : vector<1x256x128xbf16> to vector<256x128xbf16>
    %47 = tpu.concatenate %42, %44, %46 in 1 : vector<256x128xbf16>, vector<256x128xbf16>, vector<256x128xbf16> -> vector<256x384xbf16>
    %c0_40 = arith.constant 0 : index
    %c0_41 = arith.constant 0 : index
    %c0_42 = arith.constant 0 : index
    %48 = vector.load %arg11[%c0_40, %c0_41, %c0_42] : memref<1x128x256xbf16, #tpu.memory_space<vmem>>, vector<1x128x256xbf16>
    %49 = vector.shape_cast %48 : vector<1x128x256xbf16> to vector<128x256xbf16>
    %cst_43 = arith.constant dense<0.000000e+00> : vector<128x384xf32>
    %50 = tpu.matmul %49, %47, %cst_43 {dimension_numbers = #tpu.dot_dimension_numbers<[1], [0], [0], [1], [0, 0, 1, 1], [], []>} : vector<128x256xbf16>, vector<256x384xbf16>, vector<128x384xf32> -> vector<128x384xf32>
    %51 = tpu.concatenate %40, %40, %40 in 1 : vector<128x128xf32>, vector<128x128xf32>, vector<128x128xf32> -> vector<128x384xf32>
    %52 = arith.addf %50, %51 : vector<128x384xf32>
    %c0_44 = arith.constant 0 : index
    %c0_45 = arith.constant 0 : index
    %c0_46 = arith.constant 0 : index
    %53 = vector.load %arg13[%c0_44, %c0_45, %c0_46] : memref<1x128x1xf32, #tpu.memory_space<vmem>>, vector<1x128x1xf32>
    %54 = vector.shape_cast %53 : vector<1x128x1xf32> to vector<128x1xf32>
    %55 = vector.broadcast %54 : vector<128x1xf32> to vector<128x384xf32>
    %56 = arith.addf %52, %55 : vector<128x384xf32>
    %cst_47 = arith.constant 0.000000e+00 : f32
    %57 = vector.broadcast %cst_47 : f32 to vector<128x384xf32>
    %58 = arith.maximumf %56, %57 : vector<128x384xf32>
    %59 = arith.truncf %58 : vector<128x384xf32> to vector<128x384xbf16>
    %c0_48 = arith.constant 0 : index
    %c0_49 = arith.constant 0 : index
    %c0_50 = arith.constant 0 : index
    %60 = vector.load %arg14[%c0_48, %c0_49, %c0_50] : memref<1x128x128xbf16, #tpu.memory_space<vmem>>, vector<1x128x128xbf16>
    %61 = vector.shape_cast %60 : vector<1x128x128xbf16> to vector<128x128xbf16>
    %cst_51 = arith.constant dense<0.000000e+00> : vector<128x384xf32>
    %62 = tpu.matmul %61, %59, %cst_51 {dimension_numbers = #tpu.dot_dimension_numbers<[1], [0], [0], [1], [0, 0, 1, 1], [], []>} : vector<128x128xbf16>, vector<128x384xbf16>, vector<128x384xf32> -> vector<128x384xf32>
    %c0_52 = arith.constant 0 : index
    %c0_53 = arith.constant 0 : index
    %c0_54 = arith.constant 0 : index
    %63 = vector.load %arg15[%c0_52, %c0_53, %c0_54] : memref<1x128x1xf32, #tpu.memory_space<vmem>>, vector<1x128x1xf32>
    %64 = vector.shape_cast %63 : vector<1x128x1xf32> to vector<128x1xf32>
    %65 = vector.broadcast %64 : vector<128x1xf32> to vector<128x384xf32>
    %66 = arith.addf %62, %65 : vector<128x384xf32>
    %cst_55 = arith.constant 0.000000e+00 : f32
    %67 = vector.broadcast %cst_55 : f32 to vector<128x384xf32>
    %68 = arith.maximumf %66, %67 : vector<128x384xf32>
    %69 = arith.truncf %68 : vector<128x384xf32> to vector<128x384xbf16>
    %c0_56 = arith.constant 0 : index
    %c0_57 = arith.constant 0 : index
    %c0_58 = arith.constant 0 : index
    %70 = vector.load %arg16[%c0_56, %c0_57, %c0_58] : memref<1x256x128xbf16, #tpu.memory_space<vmem>>, vector<1x256x128xbf16>
    %71 = vector.shape_cast %70 : vector<1x256x128xbf16> to vector<256x128xbf16>
    %cst_59 = arith.constant dense<0.000000e+00> : vector<256x384xf32>
    %72 = tpu.matmul %71, %69, %cst_59 {dimension_numbers = #tpu.dot_dimension_numbers<[1], [0], [0], [1], [0, 0, 1, 1], [], []>} : vector<256x128xbf16>, vector<128x384xbf16>, vector<256x384xf32> -> vector<256x384xf32>
    %c0_60 = arith.constant 0 : index
    %c0_61 = arith.constant 0 : index
    %c0_62 = arith.constant 0 : index
    %73 = vector.load %arg17[%c0_60, %c0_61, %c0_62] : memref<1x256x1xf32, #tpu.memory_space<vmem>>, vector<1x256x1xf32>
    %74 = vector.shape_cast %73 : vector<1x256x1xf32> to vector<256x1xf32>
    %75 = vector.broadcast %74 : vector<256x1xf32> to vector<256x384xf32>
    %76 = arith.addf %72, %75 : vector<256x384xf32>
    %77 = vector.extract_strided_slice %76 {offsets = [0, 0], sizes = [256, 128], strides = [1, 1]} : vector<256x384xf32> to vector<256x128xf32>
    %78 = vector.extract_strided_slice %76 {offsets = [0, 128], sizes = [256, 128], strides = [1, 1]} : vector<256x384xf32> to vector<256x128xf32>
    %79 = arith.maximumf %77, %78 : vector<256x128xf32>
    %80 = vector.extract_strided_slice %76 {offsets = [0, 256], sizes = [256, 128], strides = [1, 1]} : vector<256x384xf32> to vector<256x128xf32>
    %81 = arith.maximumf %79, %80 : vector<256x128xf32>
    %82 = arith.addf %37, %0 : vector<256x128xf32>
    %83 = arith.addf %82, %81 : vector<256x128xf32>
    %cst_63 = arith.constant 0.000000e+00 : f32
    %84 = vector.broadcast %cst_63 : f32 to vector<256x128xf32>
    %85 = arith.maximumf %83, %84 : vector<256x128xf32>
    %c0_64 = arith.constant 0 : index
    %c0_65 = arith.constant 0 : index
    %c0_66 = arith.constant 0 : index
    %86 = vector.load %arg20[%c0_64, %c0_65, %c0_66] : memref<1x256x128xf32, #tpu.memory_space<vmem>>, vector<1x256x128xf32>
    %87 = vector.shape_cast %86 : vector<1x256x128xf32> to vector<256x128xf32>
    %88 = vector.shape_cast %85 : vector<256x128xf32> to vector<1x256x128xf32>
    tpu.vector_store %arg20[%c0_64, %c0_65, %c0_66], %88 {strides = array<i32>} : memref<1x256x128xf32, #tpu.memory_space<vmem>>, vector<1x256x128xf32>,
    %c0_67 = arith.constant 0 : index
    %c0_68 = arith.constant 0 : index
    %c0_69 = arith.constant 0 : index
    %89 = vector.load %arg18[%c0_67, %c0_68, %c0_69] : memref<1x1x256xf32, #tpu.memory_space<vmem>>, vector<1x1x256xf32>
    %90 = vector.shape_cast %89 : vector<1x1x256xf32> to vector<1x256xf32>
    %cst_70 = arith.constant dense<0.000000e+00> : vector<1x128xf32>
    %91 = tpu.matmul %90, %85, %cst_70 {dimension_numbers = #tpu.dot_dimension_numbers<[1], [0], [0], [1], [0, 0, 1, 1], [], []>} : vector<1x256xf32>, vector<256x128xf32>, vector<1x128xf32> -> vector<1x128xf32>
    %c0_71 = arith.constant 0 : index
    %c0_72 = arith.constant 0 : index
    %c0_73 = arith.constant 0 : index
    %92 = vector.load %arg19[%c0_71, %c0_72, %c0_73] : memref<1x1x1xf32, #tpu.memory_space<vmem>>, vector<1x1x1xf32>
    %93 = vector.shape_cast %92 : vector<1x1x1xf32> to vector<1x1xf32>
    %94 = vector.broadcast %93 : vector<1x1xf32> to vector<1x128xf32>
    %95 = arith.addf %91, %94 : vector<1x128xf32>
    %96 = arith.negf %95 : vector<1x128xf32>
    %97 = math.exp %96 : vector<1x128xf32>
    %cst_74 = arith.constant 1.000000e+00 : f32
    %98 = vector.broadcast %cst_74 : f32 to vector<1x128xf32>
    %99 = arith.addf %98, %97 : vector<1x128xf32>
    %100 = arith.divf %98, %99 : vector<1x128xf32>
    %c0_75 = arith.constant 0 : index
    %c0_76 = arith.constant 0 : index
    %c0_77 = arith.constant 0 : index
    %101 = vector.load %arg21[%c0_75, %c0_76, %c0_77] : memref<1x1x128xf32, #tpu.memory_space<vmem>>, vector<1x1x128xf32>
    %102 = vector.shape_cast %101 : vector<1x1x128xf32> to vector<1x128xf32>
    %103 = vector.shape_cast %100 : vector<1x128xf32> to vector<1x1x128xf32>
    tpu.vector_store %arg21[%c0_75, %c0_76, %c0_77], %103 {strides = array<i32>} : memref<1x1x128xf32, #tpu.memory_space<vmem>>, vector<1x1x128xf32>,
    return
  }
  func.func @transform_0(%arg0: i32, %arg1: i32) -> (i32, i32, i32) {
    %c0_i32 = arith.constant 0 : i32
    %c0_i32_0 = arith.constant 0 : i32
    %c0_i32_1 = arith.constant 0 : i32
    return %c0_i32, %c0_i32_0, %arg0 : i32, i32, i32
  }
  func.func @transform_1(%arg0: i32, %arg1: i32) -> (i32, i32, i32) {
    %c0_i32 = arith.constant 0 : i32
    %c0_i32_0 = arith.constant 0 : i32
    %c0_i32_1 = arith.constant 0 : i32
    return %c0_i32, %c0_i32_0, %arg0 : i32, i32, i32
  }
  func.func @transform_2(%arg0: i32, %arg1: i32) -> (i32, i32) {
    %c0_i32 = arith.constant 0 : i32
    %c0_i32_0 = arith.constant 0 : i32
    return %c0_i32, %arg0 : i32, i32
  }
  func.func @transform_3(%arg0: i32, %arg1: i32) -> (i32, i32, i32) {
    %c0_i32 = arith.constant 0 : i32
    %c0_i32_0 = arith.constant 0 : i32
    %c0_i32_1 = arith.constant 0 : i32
    return %arg1, %c0_i32, %c0_i32_0 : i32, i32, i32
  }
  func.func @transform_4(%arg0: i32, %arg1: i32) -> (i32, i32, i32) {
    %c0_i32 = arith.constant 0 : i32
    %c0_i32_0 = arith.constant 0 : i32
    %c0_i32_1 = arith.constant 0 : i32
    return %arg1, %c0_i32, %c0_i32_0 : i32, i32, i32
  }
  func.func @transform_5(%arg0: i32, %arg1: i32) -> (i32, i32, i32) {
    %c0_i32 = arith.constant 0 : i32
    %c0_i32_0 = arith.constant 0 : i32
    %c0_i32_1 = arith.constant 0 : i32
    return %arg1, %c0_i32, %c0_i32_0 : i32, i32, i32
  }
  func.func @transform_6(%arg0: i32, %arg1: i32) -> (i32, i32, i32) {
    %c0_i32 = arith.constant 0 : i32
    %c0_i32_0 = arith.constant 0 : i32
    %c0_i32_1 = arith.constant 0 : i32
    return %arg1, %c0_i32, %c0_i32_0 : i32, i32, i32
  }
  func.func @transform_7(%arg0: i32, %arg1: i32) -> (i32, i32, i32) {
    %c0_i32 = arith.constant 0 : i32
    %c0_i32_0 = arith.constant 0 : i32
    %c0_i32_1 = arith.constant 0 : i32
    return %arg1, %c0_i32, %c0_i32_0 : i32, i32, i32
  }
  func.func @transform_8(%arg0: i32, %arg1: i32) -> (i32, i32, i32) {
    %c0_i32 = arith.constant 0 : i32
    %c0_i32_0 = arith.constant 0 : i32
    %c0_i32_1 = arith.constant 0 : i32
    return %arg1, %c0_i32, %c0_i32_0 : i32, i32, i32
  }
  func.func @transform_9(%arg0: i32, %arg1: i32) -> (i32, i32, i32) {
    %c0_i32 = arith.constant 0 : i32
    %c0_i32_0 = arith.constant 0 : i32
    %c0_i32_1 = arith.constant 0 : i32
    return %arg1, %c0_i32, %c0_i32_0 : i32, i32, i32
  }
  func.func @transform_10(%arg0: i32, %arg1: i32) -> (i32, i32, i32) {
    %c0_i32 = arith.constant 0 : i32
    %c0_i32_0 = arith.constant 0 : i32
    %c0_i32_1 = arith.constant 0 : i32
    return %arg1, %c0_i32, %c0_i32_0 : i32, i32, i32
  }
  func.func @transform_11(%arg0: i32, %arg1: i32) -> (i32, i32, i32) {
    %c0_i32 = arith.constant 0 : i32
    %c0_i32_0 = arith.constant 0 : i32
    %c0_i32_1 = arith.constant 0 : i32
    return %arg1, %c0_i32, %c0_i32_0 : i32, i32, i32
  }
  func.func @transform_12(%arg0: i32, %arg1: i32) -> (i32, i32, i32) {
    %c0_i32 = arith.constant 0 : i32
    %c0_i32_0 = arith.constant 0 : i32
    %c0_i32_1 = arith.constant 0 : i32
    return %arg1, %c0_i32, %c0_i32_0 : i32, i32, i32
  }
  func.func @transform_13(%arg0: i32, %arg1: i32) -> (i32, i32, i32) {
    %c0_i32 = arith.constant 0 : i32
    %c0_i32_0 = arith.constant 0 : i32
    %c0_i32_1 = arith.constant 0 : i32
    return %arg1, %c0_i32, %c0_i32_0 : i32, i32, i32
  }
  func.func @transform_14(%arg0: i32, %arg1: i32) -> (i32, i32, i32) {
    %c0_i32 = arith.constant 0 : i32
    %c0_i32_0 = arith.constant 0 : i32
    %c0_i32_1 = arith.constant 0 : i32
    return %arg1, %c0_i32, %c0_i32_0 : i32, i32, i32
  }
  func.func @transform_15(%arg0: i32, %arg1: i32) -> (i32, i32, i32) {
    %c0_i32 = arith.constant 0 : i32
    %c0_i32_0 = arith.constant 0 : i32
    %c0_i32_1 = arith.constant 0 : i32
    return %arg1, %c0_i32, %c0_i32_0 : i32, i32, i32
  }
  func.func @transform_16(%arg0: i32, %arg1: i32) -> (i32, i32, i32) {
    %c0_i32 = arith.constant 0 : i32
    %c0_i32_0 = arith.constant 0 : i32
    %c0_i32_1 = arith.constant 0 : i32
    return %arg1, %c0_i32, %c0_i32_0 : i32, i32, i32
  }
  func.func @transform_17(%arg0: i32, %arg1: i32) -> (i32, i32, i32) {
    %c0_i32 = arith.constant 0 : i32
    %c0_i32_0 = arith.constant 0 : i32
    %c0_i32_1 = arith.constant 0 : i32
    return %arg1, %c0_i32, %c0_i32_0 : i32, i32, i32
  }
  func.func @transform_18(%arg0: i32, %arg1: i32) -> (i32, i32, i32) {
    %c0_i32 = arith.constant 0 : i32
    %c0_i32_0 = arith.constant 0 : i32
    return %arg1, %c0_i32, %arg0 : i32, i32, i32
  }
  func.func @transform_19(%arg0: i32, %arg1: i32) -> (i32, i32, i32) {
    %c0_i32 = arith.constant 0 : i32
    %c0_i32_0 = arith.constant 0 : i32
    return %arg1, %c0_i32, %arg0 : i32, i32, i32
  }
}

</mosaic_0001>

<llo_original>
// kernel: gtad_forward.5
$region0: #{gtad_forward.5}
  #allocation0 [shape = 'u32[]', space=smem, size = 0x4, offset = 0x4, fixed_abs, tag = 'smem constant byte address 0x4 - core index']
  #allocation1 [shape = 'u32[144,128]{1,0:T(1,128)}', space=vmem, size = 0x12000, scoped, tag = 'internal scratch']
  %s0 = inlined_call_operand.vmem [shape: f32[16,128], index: 0, kind: input, shape index: {}]
  %s1 = inlined_call_operand.vmem [shape: bf16[256,48], index: 1, kind: input, shape index: {}]
  %s2 = inlined_call_operand.vmem [shape: f32[256,1], index: 2, kind: input, shape index: {}]
  %s3 = inlined_call_operand.vmem [shape: f32[256,128], index: 3, kind: output, shape index: {}]
  %s4 = sld [smem:[#allocation0]]
  $region22: #{gtad_forward.5} parent=0
    _
  %s6 = ssub.s32 1, %s4
  %s7 = scalar_select 0, %s6, %s4
  // Predicated region
  $region2: #{gtad_forward.5} parent=0 // pred_check
    _
  $region3: #{gtad_forward.5} parent=0 // pred_check_branch
    %9 = sbr.rel (0) target = $region5
  $region4: #{gtad_forward.5} parent=0 // pred_region
    _
  $region5: #{gtad_forward.5} parent=0 // pred_fallthru
    _
  // Predicated region
  $region6: #{gtad_forward.5} parent=0 // pred_check
    _
  $region7: #{gtad_forward.5} parent=0 // pred_check_branch
    %11 = sbr.rel (0) target = $region9
  $region8: #{gtad_forward.5} parent=0 // pred_region
    _
  $region9: #{gtad_forward.5} parent=0 // pred_fallthru
    _
  // Predicated region
  $region10: #{gtad_forward.5} parent=0 // pred_check
    _
  $region11: #{gtad_forward.5} parent=0 // pred_check_branch
    %13 = sbr.rel (0) target = $region13
  $region12: #{gtad_forward.5} parent=0 // pred_region
    _
  $region13: #{gtad_forward.5} parent=0 // pred_fallthru
    _
  %v15 = vld [vmem:[%s0] sm:$0xff]
  %v16 = vld [vmem:[%s0 + $0x8] sm:$0xff]
  %17 = vrot.lane.b32.xlu0 %v15, 1
  %v18 = vpop.permute.xlu0 %17
  %19 = vrot.lane.b32.xlu0 %v16, 1
  %v20 = vpop.permute.xlu0 %19
  %21 = vrot.lane.b32.xlu0 %v15, 127
  %v22 = vpop.permute.xlu0 %21
  %23 = vrot.lane.b32.xlu0 %v16, 127
  %v24 = vpop.permute.xlu0 %23
  %v25 = vpack.c.bf16 %v20, %v18
  %v26 = vpack.c.bf16 %v16, %v15
  %v27 = vpack.c.bf16 %v24, %v22
  %v28 = vld [vmem:[%s1] sm:$0xf]
  %v29 = vld [vmem:[%s1 + $0x4] sm:$0xf]
  %v30 = vld [vmem:[%s1 + $0x8] sm:$0xf]
  %v31 = vld [vmem:[%s1 + $0xc] sm:$0xf]
  %v32 = vld [vmem:[%s1 + $0x10] sm:$0xf]
  %v33 = vld [vmem:[%s1 + $0x14] sm:$0xf]
  %v34 = vld [vmem:[%s1 + $0x18] sm:$0xf]
  %v35 = vld [vmem:[%s1 + $0x1c] sm:$0xf]
  %v36 = vld [vmem:[%s1 + $0x20] sm:$0xf]
  %v37 = vld [vmem:[%s1 + $0x24] sm:$0xf]
  %v38 = vld [vmem:[%s1 + $0x28] sm:$0xf]
  %v39 = vld [vmem:[%s1 + $0x2c] sm:$0xf]
  %v40 = vld [vmem:[%s1 + $0x30] sm:$0xf]
  %v41 = vld [vmem:[%s1 + $0x34] sm:$0xf]
  %v42 = vld [vmem:[%s1 + $0x38] sm:$0xf]
  %v43 = vld [vmem:[%s1 + $0x3c] sm:$0xf]
  %v44 = vld [vmem:[%s1 + $0x40] sm:$0xf]
  %v45 = vld [vmem:[%s1 + $0x44] sm:$0xf]
  %v46 = vld [vmem:[%s1 + $0x48] sm:$0xf]
  %v47 = vld [vmem:[%s1 + $0x4c] sm:$0xf]
  %v48 = vld [vmem:[%s1 + $0x50] sm:$0xf]
  %v49 = vld [vmem:[%s1 + $0x54] sm:$0xf]
  %v50 = vld [vmem:[%s1 + $0x58] sm:$0xf]
  %v51 = vld [vmem:[%s1 + $0x5c] sm:$0xf]
  %v52 = vld [vmem:[%s1 + $0x60] sm:$0xf]
  %v53 = vld [vmem:[%s1 + $0x64] sm:$0xf]
  %v54 = vld [vmem:[%s1 + $0x68] sm:$0xf]
  %v55 = vld [vmem:[%s1 + $0x6c] sm:$0xf]
  %v56 = vld [vmem:[%s1 + $0x70] sm:$0xf]
  %v57 = vld [vmem:[%s1 + $0x74] sm:$0xf]
  %v58 = vld [vmem:[%s1 + $0x78] sm:$0xf]
  %v59 = vld [vmem:[%s1 + $0x7c] sm:$0xf]
  %v60 = vld [vmem:[%s2] sm:$0xff]
  %v61 = vld [vmem:[%s2 + $0x8] sm:$0xff]
  %v62 = vld [vmem:[%s2 + $0x10] sm:$0xff]
  %v63 = vld [vmem:[%s2 + $0x18] sm:$0xff]
  %v64 = vld [vmem:[%s2 + $0x20] sm:$0xff]
  %v65 = vld [vmem:[%s2 + $0x28] sm:$0xff]
  %v66 = vld [vmem:[%s2 + $0x30] sm:$0xff]
  %v67 = vld [vmem:[%s2 + $0x38] sm:$0xff]
  %v68 = vld [vmem:[%s2 + $0x40] sm:$0xff]
  %v69 = vld [vmem:[%s2 + $0x48] sm:$0xff]
  %v70 = vld [vmem:[%s2 + $0x50] sm:$0xff]
  %v71 = vld [vmem:[%s2 + $0x58] sm:$0xff]
  %v72 = vld [vmem:[%s2 + $0x60] sm:$0xff]
  %v73 = vld [vmem:[%s2 + $0x68] sm:$0xff]
  %v74 = vld [vmem:[%s2 + $0x70] sm:$0xff]
  %v75 = vld [vmem:[%s2 + $0x78] sm:$0xff]
  %v76 = vld [vmem:[%s2 + $0x80] sm:$0xff]
  %v77 = vld [vmem:[%s2 + $0x88] sm:$0xff]
  %v78 = vld [vmem:[%s2 + $0x90] sm:$0xff]
  %v79 = vld [vmem:[%s2 + $0x98] sm:$0xff]
  %v80 = vld [vmem:[%s2 + $0xa0] sm:$0xff]
  %v81 = vld [vmem:[%s2 + $0xa8] sm:$0xff]
  %v82 = vld [vmem:[%s2 + $0xb0] sm:$0xff]
  %v83 = vld [vmem:[%s2 + $0xb8] sm:$0xff]
  %v84 = vld [vmem:[%s2 + $0xc0] sm:$0xff]
  %v85 = vld [vmem:[%s2 + $0xc8] sm:$0xff]
  %v86 = vld [vmem:[%s2 + $0xd0] sm:$0xff]
  %v87 = vld [vmem:[%s2 + $0xd8] sm:$0xff]
  %v88 = vld [vmem:[%s2 + $0xe0] sm:$0xff]
  %v89 = vld [vmem:[%s2 + $0xe8] sm:$0xff]
  %v90 = vld [vmem:[%s2 + $0xf0] sm:$0xff]
  %v91 = vld [vmem:[%s2 + $0xf8] sm:$0xff]
  %93 = vset.pattern.permute.xlu0 0
  %94 = vperm.xlu0 %93, %v60
  %v95 = vpop.permute.xlu0 %94
  %98 = vset.pattern.permute.xlu0 0
  %99 = vperm.xlu0 %98, %v61
  %v100 = vpop.permute.xlu0 %99
  %103 = vset.pattern.permute.xlu0 0
  %104 = vperm.xlu0 %103, %v62
  %v105 = vpop.permute.xlu0 %104
  %108 = vset.pattern.permute.xlu0 0
  %109 = vperm.xlu0 %108, %v63
  %v110 = vpop.permute.xlu0 %109
  %113 = vset.pattern.permute.xlu0 0
  %114 = vperm.xlu0 %113, %v64
  %v115 = vpop.permute.xlu0 %114
  %118 = vset.pattern.permute.xlu0 0
  %119 = vperm.xlu0 %118, %v65
  %v120 = vpop.permute.xlu0 %119
  %123 = vset.pattern.permute.xlu0 0
  %124 = vperm.xlu0 %123, %v66
  %v125 = vpop.permute.xlu0 %124
  %128 = vset.pattern.permute.xlu0 0
  %129 = vperm.xlu0 %128, %v67
  %v130 = vpop.permute.xlu0 %129
  %133 = vset.pattern.permute.xlu0 0
  %134 = vperm.xlu0 %133, %v68
  %v135 = vpop.permute.xlu0 %134
  %138 = vset.pattern.permute.xlu0 0
  %139 = vperm.xlu0 %138, %v69
  %v140 = vpop.permute.xlu0 %139
  %143 = vset.pattern.permute.xlu0 0
  %144 = vperm.xlu0 %143, %v70
  %v145 = vpop.permute.xlu0 %144
  %148 = vset.pattern.permute.xlu0 0
  %149 = vperm.xlu0 %148, %v71
  %v150 = vpop.permute.xlu0 %149
  %153 = vset.pattern.permute.xlu0 0
  %154 = vperm.xlu0 %153, %v72
  %v155 = vpop.permute.xlu0 %154
  %158 = vset.pattern.permute.xlu0 0
  %159 = vperm.xlu0 %158, %v73
  %v160 = vpop.permute.xlu0 %159
  %163 = vset.pattern.permute.xlu0 0
  %164 = vperm.xlu0 %163, %v74
  %v165 = vpop.permute.xlu0 %164
  %168 = vset.pattern.permute.xlu0 0
  %169 = vperm.xlu0 %168, %v75
  %v170 = vpop.permute.xlu0 %169
  %173 = vset.pattern.permute.xlu0 0
  %174 = vperm.xlu0 %173, %v76
  %v175 = vpop.permute.xlu0 %174
  %178 = vset.pattern.permute.xlu0 0
  %179 = vperm.xlu0 %178, %v77
  %v180 = vpop.permute.xlu0 %179
  %183 = vset.pattern.permute.xlu0 0
  %184 = vperm.xlu0 %183, %v78
  %v185 = vpop.permute.xlu0 %184
  %188 = vset.pattern.permute.xlu0 0
  %189 = vperm.xlu0 %188, %v79
  %v190 = vpop.permute.xlu0 %189
  %193 = vset.pattern.permute.xlu0 0
  %194 = vperm.xlu0 %193, %v80
  %v195 = vpop.permute.xlu0 %194
  %198 = vset.pattern.permute.xlu0 0
  %199 = vperm.xlu0 %198, %v81
  %v200 = vpop.permute.xlu0 %199
  %203 = vset.pattern.permute.xlu0 0
  %204 = vperm.xlu0 %203, %v82
  %v205 = vpop.permute.xlu0 %204
  %208 = vset.pattern.permute.xlu0 0
  %209 = vperm.xlu0 %208, %v83
  %v210 = vpop.permute.xlu0 %209
  %213 = vset.pattern.permute.xlu0 0
  %214 = vperm.xlu0 %213, %v84
  %v215 = vpop.permute.xlu0 %214
  %218 = vset.pattern.permute.xlu0 0
  %219 = vperm.xlu0 %218, %v85
  %v220 = vpop.permute.xlu0 %219
  %223 = vset.pattern.permute.xlu0 0
  %224 = vperm.xlu0 %223, %v86
  %v225 = vpop.permute.xlu0 %224
  %228 = vset.pattern.permute.xlu0 0
  %229 = vperm.xlu0 %228, %v87
  %v230 = vpop.permute.xlu0 %229
  %233 = vset.pattern.permute.xlu0 0
  %234 = vperm.xlu0 %233, %v88
  %v235 = vpop.permute.xlu0 %234
  %238 = vset.pattern.permute.xlu0 0
  %239 = vperm.xlu0 %238, %v89
  %v240 = vpop.permute.xlu0 %239
  %243 = vset.pattern.permute.xlu0 0
  %244 = vperm.xlu0 %243, %v90
  %v245 = vpop.permute.xlu0 %244
  %248 = vset.pattern.permute.xlu0 0
  %249 = vperm.xlu0 %248, %v91
  %v250 = vpop.permute.xlu0 %249
  %v284 = vunpack.c.l.b16 %v28
  %v285 = vunpack.c.l.b16 %v29
  %v286 = vunpack.c.l.b16 %v30
  %v287 = vunpack.c.l.b16 %v31
  %v288 = vunpack.c.l.b16 %v32
  %v289 = vunpack.c.l.b16 %v33
  %v290 = vunpack.c.l.b16 %v34
  %v291 = vunpack.c.l.b16 %v35
  %v292 = vunpack.c.l.b16 %v36
  %v293 = vunpack.c.l.b16 %v37
  %v294 = vunpack.c.l.b16 %v38
  %v295 = vunpack.c.l.b16 %v39
  %v296 = vunpack.c.l.b16 %v40
  %v297 = vunpack.c.l.b16 %v41
  %v298 = vunpack.c.l.b16 %v42
  %v299 = vunpack.c.l.b16 %v43
  %v300 = vunpack.c.l.b16 %v44
  %v301 = vunpack.c.l.b16 %v45
  %v302 = vunpack.c.l.b16 %v46
  %v303 = vunpack.c.l.b16 %v47
  %v304 = vunpack.c.l.b16 %v48
  %v305 = vunpack.c.l.b16 %v49
  %v306 = vunpack.c.l.b16 %v50
  %v307 = vunpack.c.l.b16 %v51
  %v308 = vunpack.c.l.b16 %v52
  %v309 = vunpack.c.l.b16 %v53
  %v310 = vunpack.c.l.b16 %v54
  %v311 = vunpack.c.l.b16 %v55
  %v312 = vunpack.c.l.b16 %v56
  %v313 = vunpack.c.l.b16 %v57
  %v314 = vunpack.c.l.b16 %v58
  %v315 = vunpack.c.l.b16 %v59
  %v316 = vpack.c.b16 %v285, %v284
  %v317 = vpack.c.b16 %v287, %v286
  %v318 = vpack.c.b16 %v289, %v288
  %v319 = vpack.c.b16 %v291, %v290
  %v320 = vpack.c.b16 %v293, %v292
  %v321 = vpack.c.b16 %v295, %v294
  %v322 = vpack.c.b16 %v297, %v296
  %v323 = vpack.c.b16 %v299, %v298
  %v324 = vpack.c.b16 %v301, %v300
  %v325 = vpack.c.b16 %v303, %v302
  %v326 = vpack.c.b16 %v305, %v304
  %v327 = vpack.c.b16 %v307, %v306
  %v328 = vpack.c.b16 %v309, %v308
  %v329 = vpack.c.b16 %v311, %v310
  %v330 = vpack.c.b16 %v313, %v312
  %v331 = vpack.c.b16 %v315, %v314
  %vm332 = vcmask 392192
  %v334 = vsel %vm332, %v316, 0
  %v337 = vsel %vm332, %v317, 0
  %v340 = vsel %vm332, %v318, 0
  %v343 = vsel %vm332, %v319, 0
  %v346 = vsel %vm332, %v320, 0
  %v349 = vsel %vm332, %v321, 0
  %v352 = vsel %vm332, %v322, 0
  %v355 = vsel %vm332, %v323, 0
  %v358 = vsel %vm332, %v324, 0
  %v361 = vsel %vm332, %v325, 0
  %v364 = vsel %vm332, %v326, 0
  %v367 = vsel %vm332, %v327, 0
  %v370 = vsel %vm332, %v328, 0
  %v373 = vsel %vm332, %v329, 0
  %v376 = vsel %vm332, %v330, 0
  %v379 = vsel %vm332, %v331, 0
  %381 = vmatprep.subr.bf16.mxu0 0
  %382 = vmatpush1.bf16.msra.mxu0 %v25
  %383 = vmatprep.subr.bf16.mxu0 0
  %384 = vmatpush1.bf16.msra.mxu0 %v26
  %385 = vmatprep.subr.bf16.mxu0 0
  %386 = vmatpush1.bf16.msra.mxu0 %v27
  %387 = vmatprep.subr.bf16.mxu0 0
  %388 = vmatpush1.bf16.msra.mxu0 0
  %389 = vmatprep.subr.bf16.mxu0 0
  %390 = vmatpush1.bf16.msra.mxu0 0
  %391 = vmatprep.subr.bf16.mxu0 0
  %392 = vmatpush1.bf16.msra.mxu0 0
  %393 = vmatprep.subr.bf16.mxu0 0
  %394 = vmatpush1.bf16.msra.mxu0 0
  %395 = vmatprep.subr.bf16.mxu0 0
  %396 = vmatpush1.bf16.msra.mxu0 0
  %397 = vmatprep.subr.bf16.mxu0 0
  %398 = vmatpush1.bf16.msra.mxu0 0
  %399 = vmatprep.subr.bf16.mxu0 0
  %400 = vmatpush1.bf16.msra.mxu0 0
  %401 = vmatprep.subr.bf16.mxu0 0
  %402 = vmatpush1.bf16.msra.mxu0 0
  %403 = vmatprep.subr.bf16.mxu0 0
  %404 = vmatpush1.bf16.msra.mxu0 0
  %405 = vmatprep.subr.bf16.mxu0 0
  %406 = vmatpush1.bf16.msra.mxu0 0
  %407 = vmatprep.subr.bf16.mxu0 0
  %408 = vmatpush1.bf16.msra.mxu0 0
  %409 = vmatprep.subr.bf16.mxu0 0
  %410 = vmatpush1.bf16.msra.mxu0 0
  %411 = vmatprep.subr.bf16.mxu0 0
  %412 = vmatpush1.bf16.msra.mxu0 0
  %413 = vmatprep.mubr.bf16.mxu0 0
  %414 = vmatmul.mubr.bf16.gmra.mrb[0].mxu0 %v334
  %v415 = vpop.f32.mrb[0].mxu0
  %v416 = vadd.f32 %v95, %v415
  %v417 = vpop.f32.mrb[0].mxu0
  %v418 = vpop.f32.mrb[0].mxu0
  %v419 = vadd.f32 %v100, %v418
  %v420 = vpop.f32.mrb[0].mxu0
  %421 = vmatprep.mubr.bf16.mxu0 0
  %422 = vmatmul.mubr.bf16.gmra.mrb[0].mxu0 %v337
  %v423 = vpop.f32.mrb[0].mxu0
  %v424 = vadd.f32 %v105, %v423
  %v425 = vpop.f32.mrb[0].mxu0
  %v426 = vpop.f32.mrb[0].mxu0
  %v427 = vadd.f32 %v110, %v426
  %v428 = vpop.f32.mrb[0].mxu0
  %429 = vmatprep.mubr.bf16.mxu0 0
  %430 = vmatmul.mubr.bf16.gmra.mrb[0].mxu0 %v340
  %v431 = vpop.f32.mrb[0].mxu0
  %v432 = vadd.f32 %v115, %v431
  %v433 = vpop.f32.mrb[0].mxu0
  %v434 = vpop.f32.mrb[0].mxu0
  %v435 = vadd.f32 %v120, %v434
  %v436 = vpop.f32.mrb[0].mxu0
  %437 = vmatprep.mubr.bf16.mxu0 0
  %438 = vmatmul.mubr.bf16.gmra.mrb[0].mxu0 %v343
  %v439 = vpop.f32.mrb[0].mxu0
  %v440 = vadd.f32 %v125, %v439
  %v441 = vpop.f32.mrb[0].mxu0
  %v442 = vpop.f32.mrb[0].mxu0
  %v443 = vadd.f32 %v130, %v442
  %v444 = vpop.f32.mrb[0].mxu0
  %445 = vmatprep.mubr.bf16.mxu0 0
  %446 = vmatmul.mubr.bf16.gmra.mrb[0].mxu0 %v346
  %v447 = vpop.f32.mrb[0].mxu0
  %v448 = vadd.f32 %v135, %v447
  %v449 = vpop.f32.mrb[0].mxu0
  %v450 = vpop.f32.mrb[0].mxu0
  %v451 = vadd.f32 %v140, %v450
  %v452 = vpop.f32.mrb[0].mxu0
  %453 = vmatprep.mubr.bf16.mxu0 0
  %454 = vmatmul.mubr.bf16.gmra.mrb[0].mxu0 %v349
  %v455 = vpop.f32.mrb[0].mxu0
  %v456 = vadd.f32 %v145, %v455
  %v457 = vpop.f32.mrb[0].mxu0
  %v458 = vpop.f32.mrb[0].mxu0
  %v459 = vadd.f32 %v150, %v458
  %v460 = vpop.f32.mrb[0].mxu0
  %461 = vmatprep.mubr.bf16.mxu0 0
  %462 = vmatmul.mubr.bf16.gmra.mrb[0].mxu0 %v352
  %v463 = vpop.f32.mrb[0].mxu0
  %v464 = vadd.f32 %v155, %v463
  %v465 = vpop.f32.mrb[0].mxu0
  %v466 = vpop.f32.mrb[0].mxu0
  %v467 = vadd.f32 %v160, %v466
  %v468 = vpop.f32.mrb[0].mxu0
  %469 = vmatprep.mubr.bf16.mxu0 0
  %470 = vmatmul.mubr.bf16.gmra.mrb[0].mxu0 %v355
  %v471 = vpop.f32.mrb[0].mxu0
  %v472 = vadd.f32 %v165, %v471
  %v473 = vpop.f32.mrb[0].mxu0
  %v474 = vpop.f32.mrb[0].mxu0
  %v475 = vadd.f32 %v170, %v474
  %v476 = vpop.f32.mrb[0].mxu0
  %477 = vmatprep.mubr.bf16.mxu0 0
  %478 = vmatmul.mubr.bf16.gmra.mrb[0].mxu0 %v358
  %v479 = vpop.f32.mrb[0].mxu0
  %v480 = vadd.f32 %v175, %v479
  %v481 = vpop.f32.mrb[0].mxu0
  %v482 = vpop.f32.mrb[0].mxu0
  %v483 = vadd.f32 %v180, %v482
  %v484 = vpop.f32.mrb[0].mxu0
  %485 = vmatprep.mubr.bf16.mxu0 0
  %486 = vmatmul.mubr.bf16.gmra.mrb[0].mxu0 %v361
  %v487 = vpop.f32.mrb[0].mxu0
  %v488 = vadd.f32 %v185, %v487
  %v489 = vpop.f32.mrb[0].mxu0
  %v490 = vpop.f32.mrb[0].mxu0
  %v491 = vadd.f32 %v190, %v490
  %v492 = vpop.f32.mrb[0].mxu0
  %493 = vmatprep.mubr.bf16.mxu0 0
  %494 = vmatmul.mubr.bf16.gmra.mrb[0].mxu0 %v364
  %v495 = vpop.f32.mrb[0].mxu0
  %v496 = vadd.f32 %v195, %v495
  %v497 = vpop.f32.mrb[0].mxu0
  %v498 = vpop.f32.mrb[0].mxu0
  %v499 = vadd.f32 %v200, %v498
  %v500 = vpop.f32.mrb[0].mxu0
  %501 = vmatprep.mubr.bf16.mxu0 0
  %502 = vmatmul.mubr.bf16.gmra.mrb[0].mxu0 %v367
  %v503 = vpop.f32.mrb[0].mxu0
  %v504 = vadd.f32 %v205, %v503
  %v505 = vpop.f32.mrb[0].mxu0
  %v506 = vpop.f32.mrb[0].mxu0
  %v507 = vadd.f32 %v210, %v506
  %v508 = vpop.f32.mrb[0].mxu0
  %509 = vmatprep.mubr.bf16.mxu0 0
  %510 = vmatmul.mubr.bf16.gmra.mrb[0].mxu0 %v370
  %v511 = vpop.f32.mrb[0].mxu0
  %v512 = vadd.f32 %v215, %v511
  %v513 = vpop.f32.mrb[0].mxu0
  %v514 = vpop.f32.mrb[0].mxu0
  %v515 = vadd.f32 %v220, %v514
  %v516 = vpop.f32.mrb[0].mxu0
  %517 = vmatprep.mubr.bf16.mxu0 0
  %518 = vmatmul.mubr.bf16.gmra.mrb[0].mxu0 %v373
  %v519 = vpop.f32.mrb[0].mxu0
  %v520 = vadd.f32 %v225, %v519
  %v521 = vpop.f32.mrb[0].mxu0
  %v522 = vpop.f32.mrb[0].mxu0
  %v523 = vadd.f32 %v230, %v522
  %v524 = vpop.f32.mrb[0].mxu0
  %525 = vmatprep.mubr.bf16.mxu0 0
  %526 = vmatmul.mubr.bf16.gmra.mrb[0].mxu0 %v376
  %v527 = vpop.f32.mrb[0].mxu0
  %v528 = vadd.f32 %v235, %v527
  %v529 = vpop.f32.mrb[0].mxu0
  %v530 = vpop.f32.mrb[0].mxu0
  %v531 = vadd.f32 %v240, %v530
  %v532 = vpop.f32.mrb[0].mxu0
  %533 = vmatprep.mubr.bf16.mxu0 0
  %534 = vmatmul.mubr.bf16.gmra.mrb[0].mxu0 %v379
  %v535 = vpop.f32.mrb[0].mxu0
  %v536 = vadd.f32 %v245, %v535
  %v537 = vpop.f32.mrb[0].mxu0
  %v538 = vpop.f32.mrb[0].mxu0
  %v539 = vadd.f32 %v250, %v538
  %v540 = vpop.f32.mrb[0].mxu0
  %541 = vdwg.mxu0
  %v542 = vmax.f32 %v416, 0.0
  %v543 = vmax.f32 %v419, 0.0
  %v544 = vmax.f32 %v424, 0.0
  %v545 = vmax.f32 %v427, 0.0
  %v546 = vmax.f32 %v432, 0.0
  %v547 = vmax.f32 %v435, 0.0
  %v548 = vmax.f32 %v440, 0.0
  %v549 = vmax.f32 %v443, 0.0
  %v550 = vmax.f32 %v448, 0.0
  %v551 = vmax.f32 %v451, 0.0
  %v552 = vmax.f32 %v456, 0.0
  %v553 = vmax.f32 %v459, 0.0
  %v554 = vmax.f32 %v464, 0.0
  %v555 = vmax.f32 %v467, 0.0
  %v556 = vmax.f32 %v472, 0.0
  %v557 = vmax.f32 %v475, 0.0
  %v558 = vmax.f32 %v480, 0.0
  %v559 = vmax.f32 %v483, 0.0
  %v560 = vmax.f32 %v488, 0.0
  %v561 = vmax.f32 %v491, 0.0
  %v562 = vmax.f32 %v496, 0.0
  %v563 = vmax.f32 %v499, 0.0
  %v564 = vmax.f32 %v504, 0.0
  %v565 = vmax.f32 %v507, 0.0
  %v566 = vmax.f32 %v512, 0.0
  %v567 = vmax.f32 %v515, 0.0
  %v568 = vmax.f32 %v520, 0.0
  %v569 = vmax.f32 %v523, 0.0
  %v570 = vmax.f32 %v528, 0.0
  %v571 = vmax.f32 %v531, 0.0
  %v572 = vmax.f32 %v536, 0.0
  %v573 = vmax.f32 %v539, 0.0
  %574 = vst [vmem:[%s3] sm:$0xff] %v542
  %575 = vst [vmem:[%s3 + $0x8] sm:$0xff] %v543
  %576 = vst [vmem:[%s3 + $0x10] sm:$0xff] %v544
  %577 = vst [vmem:[%s3 + $0x18] sm:$0xff] %v545
  %578 = vst [vmem:[%s3 + $0x20] sm:$0xff] %v546
  %579 = vst [vmem:[%s3 + $0x28] sm:$0xff] %v547
  %580 = vst [vmem:[%s3 + $0x30] sm:$0xff] %v548
  %581 = vst [vmem:[%s3 + $0x38] sm:$0xff] %v549
  %582 = vst [vmem:[%s3 + $0x40] sm:$0xff] %v550
  %583 = vst [vmem:[%s3 + $0x48] sm:$0xff] %v551
  %584 = vst [vmem:[%s3 + $0x50] sm:$0xff] %v552
  %585 = vst [vmem:[%s3 + $0x58] sm:$0xff] %v553
  %586 = vst [vmem:[%s3 + $0x60] sm:$0xff] %v554
  %587 = vst [vmem:[%s3 + $0x68] sm:$0xff] %v555
  %588 = vst [vmem:[%s3 + $0x70] sm:$0xff] %v556
  %589 = vst [vmem:[%s3 + $0x78] sm:$0xff] %v557
  %590 = vst [vmem:[%s3 + $0x80] sm:$0xff] %v558
  %591 = vst [vmem:[%s3 + $0x88] sm:$0xff] %v559
  %592 = vst [vmem:[%s3 + $0x90] sm:$0xff] %v560
  %593 = vst [vmem:[%s3 + $0x98] sm:$0xff] %v561
  %594 = vst [vmem:[%s3 + $0xa0] sm:$0xff] %v562
  %595 = vst [vmem:[%s3 + $0xa8] sm:$0xff] %v563
  %596 = vst [vmem:[%s3 + $0xb0] sm:$0xff] %v564
  %597 = vst [vmem:[%s3 + $0xb8] sm:$0xff] %v565
  %598 = vst [vmem:[%s3 + $0xc0] sm:$0xff] %v566
  %599 = vst [vmem:[%s3 + $0xc8] sm:$0xff] %v567
  %600 = vst [vmem:[%s3 + $0xd0] sm:$0xff] %v568
  %601 = vst [vmem:[%s3 + $0xd8] sm:$0xff] %v569
  %602 = vst [vmem:[%s3 + $0xe0] sm:$0xff] %v570
  %603 = vst [vmem:[%s3 + $0xe8] sm:$0xff] %v571
  %604 = vst [vmem:[%s3 + $0xf0] sm:$0xff] %v572
  %605 = vst [vmem:[%s3 + $0xf8] sm:$0xff] %v573
  // Predicated region
  $region14: #{gtad_forward.5} parent=0 // pred_check
    _
  $region15: #{gtad_forward.5} parent=0 // pred_check_branch
    %607 = sbr.rel (0) target = $region17
  $region16: #{gtad_forward.5} parent=0 // pred_region
    _
  $region17: #{gtad_forward.5} parent=0 // pred_fallthru
    _
  // Predicated region
  $region18: #{gtad_forward.5} parent=0 // pred_check
    _
  $region19: #{gtad_forward.5} parent=0 // pred_check_branch
    %609 = sbr.rel (0) target = $region21
  $region20: #{gtad_forward.5} parent=0 // pred_region
    _
  $region21: #{gtad_forward.5} parent=0 // pred_fallthru
    _

// kernel: gtad_forward.6
$region0: #{gtad_forward.6}
  #allocation0 [shape = 'u32[]', space=smem, size = 0x4, offset = 0x4, fixed_abs, tag = 'smem constant byte address 0x4 - core index']
  #allocation1 [shape = 'u32[144,128]{1,0:T(1,128)}', space=vmem, size = 0x12000, scoped, tag = 'internal scratch']
  %s0 = inlined_call_operand.vmem [shape: f32[2,50,256], index: 0, kind: input, shape index: {}]
  %s1 = inlined_call_operand.vmem [shape: f32[2,50,50], index: 1, kind: output, shape index: {}]
  %s2 = sld [smem:[#allocation0]]
  $region37: #{gtad_forward.6} parent=0
    _
  %s4 = ssub.s32 1, %s2
  %s5 = scalar_select 0, %s4, %s2
  loop: start=0, step=1, limit=4
  $region2: #{gtad_forward.6} parent=0 // loop_pre_header
    _
  $region3: #{gtad_forward.6} parent=0 // loop_header
    %s7 = sphi 0, %s11
    %p8 = scmp.ge.s32.totalorder %s7, 4
    %s17 = sphi 0, %s19
    %s20 = sphi 0, %s17
    %s21 = sphi 0, %s20
    %s37 = sphi 0, %s21
    %s43 = sphi 0, %s45
    %s46 = sphi 0, %s43
    %s47 = sphi 0, %s46
    %s63 = sphi 0, %s47
  $region4: #{gtad_forward.6} parent=0 // loop_header_branch
    %10 = sbr.rel (%p8) target = $region8
  $region5: #{gtad_forward.6} parent=0 // loop_body
    %s12 = ssub.s32 %s7, 1
    %s13 = ssub.s32 %s7, 2
    %s14 = sadd.s32 %s7, 1
    %s15 = ssub.s32 %s7, %s14
    %p16 = scmp.eq.s32.totalorder %s15, 0
    %s18 = sadd.s32 %s17, 1
    %s19 = scalar_select %p16, %s17, %s18
    %p22 = pneg %p16
    %p23 = scmp.eq.s32.totalorder %s7, 1
    %p24 = por %p22, %p23
    %p25 = scmp.ne.s32.totalorder %s17, %s20
    %p26 = scmp.eq.s32.totalorder %s7, 0
    %p27 = por %p25, %p26
    %p28 = scmp.ne.s32.totalorder %s17, %s20
    %p29 = scmp.eq.s32.totalorder %s12, 1
    %p30 = por %p28, %p29
    %p31 = scmp.ne.s32.totalorder %s20, %s21
    %p32 = scmp.eq.s32.totalorder %s12, 0
    %p33 = por %p31, %p32
    %p34 = scmp.ne.s32.totalorder %s20, %s21
    %p35 = scmp.eq.s32.totalorder %s13, 1
    %p36 = por %p34, %p35
    %p38 = scmp.ne.s32.totalorder %s21, %s37
    %p39 = scmp.eq.s32.totalorder %s13, 0
    %p40 = por %p38, %p39
    %s41 = ssub.s32 %s7, %s14
    %p42 = scmp.eq.s32.totalorder %s41, 0
    %s44 = sadd.s32 %s43, 1
    %s45 = scalar_select %p42, %s43, %s44
    %p48 = pneg %p42
    %p49 = scmp.eq.s32.totalorder %s7, 1
    %p50 = por %p48, %p49
    %p51 = scmp.ne.s32.totalorder %s43, %s46
    %p52 = scmp.eq.s32.totalorder %s7, 0
    %p53 = por %p51, %p52
    %p54 = scmp.ne.s32.totalorder %s43, %s46
    %p55 = scmp.eq.s32.totalorder %s12, 1
    %p56 = por %p54, %p55
    %p57 = scmp.ne.s32.totalorder %s46, %s47
    %p58 = scmp.eq.s32.totalorder %s12, 0
    %p59 = por %p57, %p58
    %p60 = scmp.ne.s32.totalorder %s46, %s47
    %p61 = scmp.eq.s32.totalorder %s13, 1
    %p62 = por %p60, %p61
    %p64 = scmp.ne.s32.totalorder %s47, %s63
    %p65 = scmp.eq.s32.totalorder %s13, 0
    %p66 = por %p64, %p65
    %p67 = scmp.le.s32.totalorder 1, %s7
    %p68 = scmp.lt.s32.totalorder %s7, 3
    %p69 = pnand %p67, %p68
    %p70 = pneg %p69
    // Predicated region
    $region9: #{gtad_forward.6} parent=5 // pred_check
      _
    $region10: #{gtad_forward.6} parent=5 // pred_check_branch
      %72 = sbr.rel (%p69) target = $region12
    $region11: #{gtad_forward.6} parent=5 // pred_region
      %s73 = ssub.s32 %s7, 1
    $region12: #{gtad_forward.6} parent=5 // pred_fallthru
      _
    %p74 = scmp.lt.s32.totalorder %s7, 2
    // Predicated region
    $region13: #{gtad_forward.6} parent=5 // pred_check
      %p75 = pneg %p74
    $region14: #{gtad_forward.6} parent=5 // pred_check_branch
      %77 = sbr.rel (%p75) target = $region16
    $region15: #{gtad_forward.6} parent=5 // pred_region
      // Predicated region
      $region17: #{gtad_forward.6} parent=15 // pred_check
        %p78 = pneg %p27
      $region18: #{gtad_forward.6} parent=15 // pred_check_branch
        %80 = sbr.rel (%p78) target = $region20
      $region19: #{gtad_forward.6} parent=15 // pred_region
        %p81 = scmp.lt.s32.totalorder %s7, 1
        %s82 = scalar_select %p81, %s7, 1
        %s83 = smul.addr %s82, 14
        %s84 = smul.addr %s83, 8
        %s85 = scalar_lea.vmem %s0, %s84
      $region20: #{gtad_forward.6} parent=15 // pred_fallthru
        _
    $region16: #{gtad_forward.6} parent=5 // pred_fallthru
      _
    %p86 = scmp.le.s32.totalorder 1, %s7
    %p87 = scmp.lt.s32.totalorder %s7, 3
    %p88 = pnand %p86, %p87
    %p89 = pneg %p88
    // Predicated region
    $region21: #{gtad_forward.6} parent=5 // pred_check
      _
    $region22: #{gtad_forward.6} parent=5 // pred_check_branch
      %91 = sbr.rel (%p88) target = $region24
    $region23: #{gtad_forward.6} parent=5 // pred_region
      %s92 = ssub.s32 %s7, 1
      %p93 = scmp.lt.s32.totalorder %s12, 1
      %s94 = scalar_select %p93, %s12, 1
      %s95 = smul.addr %s94, 14
      %s96 = smul.addr %s95, 8
      %s97 = scalar_lea.vmem %s0, %s96
      %p98 = pneg %p33
      %p99 = pneg %p30
      %p100 = pneg %p59
      %p101 = pneg %p56
      %p102 = scmp.lt.s32.totalorder %s12, 1
      %s103 = scalar_select %p102, %s12, 1
      %s104 = smul.addr %s103, 7
      %s105 = smul.addr %s104, 8
      %s106 = scalar_lea.vmem %s1, %s105
      %p107 = scmp.lt.s32.totalorder %s12, 1
      %s108 = scalar_select %p107, %s12, 1
      %s109 = smul.addr %s108, 14
      %s110 = smul.addr %s109, 8
      %s111 = scalar_lea.vmem %s0, %s110
      %p112 = scmp.lt.s32.totalorder %s12, 1
      %s113 = scalar_select %p112, %s12, 1
      %s114 = smul.addr %s113, 7
      %s115 = smul.addr %s114, 8
      %s116 = scalar_lea.vmem %s1, %s115
      %v117 = vld [vmem:[%s111] sm:$0xff]
      %v118 = vld [vmem:[%s111 + $0x8] sm:$0xff]
      %v119 = vld [vmem:[%s111 + $0x10] sm:$0xff]
      %v120 = vld [vmem:[%s111 + $0x18] sm:$0xff]
      %v121 = vld [vmem:[%s111 + $0x20] sm:$0xff]
      %v122 = vld [vmem:[%s111 + $0x28] sm:$0xff]
      %v123 = vld [vmem:[%s111 + $0x30] sm:$0xff]
      %v124 = vld [vmem:[%s111 + $0x38] sm:$0xff]
      %v125 = vld [vmem:[%s111 + $0x40] sm:$0xff]
      %v126 = vld [vmem:[%s111 + $0x48] sm:$0xff]
      %v127 = vld [vmem:[%s111 + $0x50] sm:$0xff]
      %v128 = vld [vmem:[%s111 + $0x58] sm:$0xff]
      %v129 = vld [vmem:[%s111 + $0x60] sm:$0x3]
      %v130 = vld [vmem:[%s111 + $0x68] sm:$0x3]
      %131 = vmatprep.subr.mxu0 %v118
      %132 = vmatpush1.xpose.msra.mxu0 %v117
      %133 = vmatprep.subr.mxu0 %v120
      %134 = vmatpush1.xpose.msra.mxu0 %v119
      %135 = vmatprep.subr.mxu0 %v122
      %136 = vmatpush1.xpose.msra.mxu0 %v121
      %137 = vmatprep.subr.mxu0 %v124
      %138 = vmatpush1.xpose.msra.mxu0 %v123
      %139 = vmatprep.subr.mxu0 %v126
      %140 = vmatpush1.xpose.msra.mxu0 %v125
      %141 = vmatprep.subr.mxu0 %v128
      %142 = vmatpush1.xpose.msra.mxu0 %v127
      %143 = vmatprep.subr.mxu0 %v130
      %144 = vmatpush1.xpose.msra.mxu0 %v129
      %145 = vmatprep.subr.mxu0 0.0
      %146 = vmatpush1.xpose.msra.mxu0 0.0
      %147 = vmatprep.subr.mxu0 0.0
      %148 = vmatpush1.xpose.msra.mxu0 0.0
      %149 = vmatprep.subr.mxu0 0.0
      %150 = vmatpush1.xpose.msra.mxu0 0.0
      %151 = vmatprep.subr.mxu0 0.0
      %152 = vmatpush1.xpose.msra.mxu0 0.0
      %153 = vmatprep.subr.mxu0 0.0
      %154 = vmatpush1.xpose.msra.mxu0 0.0
      %155 = vmatprep.subr.mxu0 0.0
      %156 = vmatpush1.xpose.msra.mxu0 0.0
      %157 = vmatprep.subr.mxu0 0.0
      %158 = vmatpush1.xpose.msra.mxu0 0.0
      %159 = vmatprep.subr.mxu0 0.0
      %160 = vmatpush1.xpose.msra.mxu0 0.0
      %161 = vmatprep.subr.mxu0 0.0
      %162 = vmatpush1.xpose.msra.mxu0 0.0
      %163 = vmatprep.subr.mxu0 0.0
      %164 = vmatpush1.xpose.msra.mxu0 0.0
      %165 = vmatprep.subr.mxu0 0.0
      %166 = vmatpush1.xpose.msra.mxu0 0.0
      %167 = vmatprep.subr.mxu0 0.0
      %168 = vmatpush1.xpose.msra.mxu0 0.0
      %169 = vmatprep.subr.mxu0 0.0
      %170 = vmatpush1.xpose.msra.mxu0 0.0
      %171 = vmatprep.subr.mxu0 0.0
      %172 = vmatpush1.xpose.msra.mxu0 0.0
      %173 = vmatprep.subr.mxu0 0.0
      %174 = vmatpush1.xpose.msra.mxu0 0.0
      %175 = vmatprep.subr.mxu0 0.0
      %176 = vmatpush1.xpose.msra.mxu0 0.0
      %177 = vmatprep.subr.mxu0 0.0
      %178 = vmatpush1.xpose.msra.mxu0 0.0
      %179 = vmatprep.subr.mxu0 0.0
      %180 = vmatpush1.xpose.msra.mxu0 0.0
      %181 = vmatprep.subr.mxu0 0.0
      %182 = vmatpush1.xpose.msra.mxu0 0.0
      %183 = vmatprep.subr.mxu0 0.0
      %184 = vmatpush1.xpose.msra.mxu0 0.0
      %185 = vmatprep.subr.mxu0 0.0
      %186 = vmatpush1.xpose.msra.mxu0 0.0
      %187 = vmatprep.subr.mxu0 0.0
      %188 = vmatpush1.xpose.msra.mxu0 0.0
      %189 = vmatprep.subr.mxu0 0.0
      %190 = vmatpush1.xpose.msra.mxu0 0.0
      %191 = vmatprep.subr.mxu0 0.0
      %192 = vmatpush1.xpose.msra.mxu0 0.0
      %193 = vmatprep.subr.mxu0 0.0
      %194 = vmatpush1.xpose.msra.mxu0 0.0
      %195 = vmatprep.mubr.f32.mxu0 %v118
      %196 = vmatmul.mubr.f32.gmra.mrb[0].mxu0 %v117
      %v197 = vpop.f32.mrb[0].mxu0
      %v198 = vadd.f32 0.0, %v197
      %v199 = vpop.f32.mrb[0].mxu0
      %200 = vmatprep.mubr.f32.mxu0 %v120
      %201 = vmatmul.mubr.f32.gmra.mrb[0].mxu0 %v119
      %v202 = vpop.f32.mrb[0].mxu0
      %v203 = vadd.f32 0.0, %v202
      %v204 = vpop.f32.mrb[0].mxu0
      %205 = vmatprep.mubr.f32.mxu0 %v122
      %206 = vmatmul.mubr.f32.gmra.mrb[0].mxu0 %v121
      %v207 = vpop.f32.mrb[0].mxu0
      %v208 = vadd.f32 0.0, %v207
      %v209 = vpop.f32.mrb[0].mxu0
      %210 = vmatprep.mubr.f32.mxu0 %v124
      %211 = vmatmul.mubr.f32.gmra.mrb[0].mxu0 %v123
      %v212 = vpop.f32.mrb[0].mxu0
      %v213 = vadd.f32 0.0, %v212
      %v214 = vpop.f32.mrb[0].mxu0
      %215 = vmatprep.mubr.f32.mxu0 %v126
      %216 = vmatmul.mubr.f32.gmra.mrb[0].mxu0 %v125
      %v217 = vpop.f32.mrb[0].mxu0
      %v218 = vadd.f32 0.0, %v217
      %v219 = vpop.f32.mrb[0].mxu0
      %220 = vmatprep.mubr.f32.mxu0 %v128
      %221 = vmatmul.mubr.f32.gmra.mrb[0].mxu0 %v127
      %v222 = vpop.f32.mrb[0].mxu0
      %v223 = vadd.f32 0.0, %v222
      %v224 = vpop.f32.mrb[0].mxu0
      %225 = vmatprep.mubr.f32.mxu0 %v130
      %226 = vmatmul.mubr.f32.gmra.mrb[0].mxu0 %v129
      %v227 = vpop.f32.mrb[0].mxu0
      %v228 = vadd.f32 0.0, %v227
      %v229 = vpop.f32.mrb[0].mxu0
      %230 = vdwg.mxu0
      %v231 = vmul.f32 %v117, %v117
      %v232 = vmul.f32 %v118, %v118
      %v233 = vmul.f32 %v119, %v119
      %v234 = vmul.f32 %v120, %v120
      %v235 = vmul.f32 %v121, %v121
      %v236 = vmul.f32 %v122, %v122
      %v237 = vmul.f32 %v123, %v123
      %v238 = vmul.f32 %v124, %v124
      %v239 = vmul.f32 %v125, %v125
      %v240 = vmul.f32 %v126, %v126
      %v241 = vmul.f32 %v127, %v127
      %v242 = vmul.f32 %v128, %v128
      %v243 = vmul.f32 %v129, %v129
      %v244 = vmul.f32 %v130, %v130
      %v245 = vadd.f32 %v231, %v232
      %246 = vadd.xlane.f32.xlu0 %v245
      %v247 = vpop.xlane.xlu0 %246
      %v248 = vadd.f32 %v233, %v234
      %249 = vadd.xlane.f32.xlu0 %v248
      %v250 = vpop.xlane.xlu0 %249
      %v251 = vadd.f32 %v235, %v236
      %252 = vadd.xlane.f32.xlu0 %v251
      %v253 = vpop.xlane.xlu0 %252
      %v254 = vadd.f32 %v237, %v238
      %255 = vadd.xlane.f32.xlu0 %v254
      %v256 = vpop.xlane.xlu0 %255
      %v257 = vadd.f32 %v239, %v240
      %258 = vadd.xlane.f32.xlu0 %v257
      %v259 = vpop.xlane.xlu0 %258
      %v260 = vadd.f32 %v241, %v242
      %261 = vadd.xlane.f32.xlu0 %v260
      %v262 = vpop.xlane.xlu0 %261
      %vm263 = vcmask 1041408
      %v264 = vsel %vm263, %v243, 0.0
      %v265 = vsel %vm263, %v244, 0.0
      %v266 = vadd.f32 %v264, %v265
      %267 = vadd.xlane.f32.xlu0 %v266
      %v268 = vpop.xlane.xlu0 %267
      %v269 = vmul.f32 %v198, 2.0
      %v270 = vmul.f32 %v203, 2.0
      %v271 = vmul.f32 %v208, 2.0
      %v272 = vmul.f32 %v213, 2.0
      %v273 = vmul.f32 %v218, 2.0
      %v274 = vmul.f32 %v223, 2.0
      %v275 = vmul.f32 %v228, 2.0
      %v276 = vsub.f32 %v269, %v247
      %v277 = vsub.f32 %v270, %v250
      %v278 = vsub.f32 %v271, %v253
      %v279 = vsub.f32 %v272, %v256
      %v280 = vsub.f32 %v273, %v259
      %v281 = vsub.f32 %v274, %v262
      %v282 = vsub.f32 %v275, %v268
      %283 = vxpose.xlu0.b32.start [1/16] %v247, 128
      %284 = vxpose.xlu0.b32.cont [2/16] %v250, 128
      %285 = vxpose.xlu0.b32.cont [3/16] %v253, 128
      %286 = vxpose.xlu0.b32.cont [4/16] %v256, 128
      %287 = vxpose.xlu0.b32.cont [5/16] %v259, 128
      %288 = vxpose.xlu0.b32.cont [6/16] %v262, 128
      %289 = vxpose.xlu0.b32.cont [7/16] %v268, 128
      %290 = vxpose.xlu0.b32.cont [8/16] 0.0, 128
      %291 = vxpose.xlu0.b32.cont [9/16] 0.0, 128
      %292 = vxpose.xlu0.b32.cont [10/16] 0.0, 128
      %293 = vxpose.xlu0.b32.cont [11/16] 0.0, 128
      %294 = vxpose.xlu0.b32.cont [12/16] 0.0, 128
      %295 = vxpose.xlu0.b32.cont [13/16] 0.0, 128
      %296 = vxpose.xlu0.b32.cont [14/16] 0.0, 128
      %297 = vxpose.xlu0.b32.cont [15/16] 0.0, 128
      %298 = vxpose.xlu0.b32.end [16/16] 0.0, 128
      %v299 = vpop.trf.xlu0
      %v300 = vpop.trf.xlu0
      %v301 = vpop.trf.xlu0
      %v302 = vpop.trf.xlu0
      %v303 = vpop.trf.xlu0
      %v304 = vpop.trf.xlu0
      %v305 = vpop.trf.xlu0
      %v306 = vpop.trf.xlu0
      %v307 = vpop.trf.xlu0
      %v308 = vpop.trf.xlu0
      %v309 = vpop.trf.xlu0
      %v310 = vpop.trf.xlu0
      %v311 = vpop.trf.xlu0
      %v312 = vpop.trf.xlu0
      %v313 = vpop.trf.xlu0
      %v314 = vpop.trf.xlu0
      %v315 = vlaneseq
      %v316 = vshrl.u32 %v315, 7
      %v317 = vsub.s32 0, %v316
      %v318 = vrot.slane %v299, %v317
      %v319 = vsub.f32 %v276, %v318
      %v320 = vsub.f32 %v277, %v318
      %v321 = vsub.f32 %v278, %v318
      %v322 = vsub.f32 %v279, %v318
      %v323 = vsub.f32 %v280, %v318
      %v324 = vsub.f32 %v281, %v318
      %v325 = vsub.f32 %v282, %v318
      %vm326 = vcmask 408576
      %327 = vst.msk [vmem:[%s116] sm:$0xff] %vm326, %v319
      %328 = vst.msk [vmem:[%s116 + $0x8] sm:$0xff] %vm326, %v320
      %329 = vst.msk [vmem:[%s116 + $0x10] sm:$0xff] %vm326, %v321
      %330 = vst.msk [vmem:[%s116 + $0x18] sm:$0xff] %vm326, %v322
      %331 = vst.msk [vmem:[%s116 + $0x20] sm:$0xff] %vm326, %v323
      %332 = vst.msk [vmem:[%s116 + $0x28] sm:$0xff] %vm326, %v324
      %vm333 = vcmask 402432
      %334 = vst.msk [vmem:[%s116 + $0x30] sm:$0x3] %vm333, %v325
      %p335 = scmp.lt.s32.totalorder %s12, 1
      %s336 = scalar_select %p335, %s12, 1
      %s337 = smul.addr %s336, 7
      %s338 = smul.addr %s337, 8
      %s339 = scalar_lea.vmem %s1, %s338
      // Predicated region
      $region25: #{gtad_forward.6} parent=23 // pred_check
        %p340 = pneg %p56
      $region26: #{gtad_forward.6} parent=23 // pred_check_branch
        %342 = sbr.rel (%p340) target = $region28
      $region27: #{gtad_forward.6} parent=23 // pred_region
        _
      $region28: #{gtad_forward.6} parent=23 // pred_fallthru
        _
    $region24: #{gtad_forward.6} parent=5 // pred_fallthru
      _
    %p343 = scmp.le.s32.totalorder 2, %s7
    // Predicated region
    $region29: #{gtad_forward.6} parent=5 // pred_check
      %p344 = pneg %p343
    $region30: #{gtad_forward.6} parent=5 // pred_check_branch
      %346 = sbr.rel (%p344) target = $region32
    $region31: #{gtad_forward.6} parent=5 // pred_region
      %s347 = ssub.s32 %s7, 2
      // Predicated region
      $region33: #{gtad_forward.6} parent=31 // pred_check
        %p348 = pneg %p62
      $region34: #{gtad_forward.6} parent=31 // pred_check_branch
        %350 = sbr.rel (%p348) target = $region36
      $region35: #{gtad_forward.6} parent=31 // pred_region
        %p351 = scmp.lt.s32.totalorder %s13, 1
        %s352 = scalar_select %p351, %s13, 1
        %s353 = smul.addr %s352, 7
        %s354 = smul.addr %s353, 8
        %s355 = scalar_lea.vmem %s1, %s354
      $region36: #{gtad_forward.6} parent=31 // pred_fallthru
        _
    $region32: #{gtad_forward.6} parent=5 // pred_fallthru
      _
  $region6: #{gtad_forward.6} parent=0 // loop_footer
    %s11 = sadd.s32 1, %s7
  $region7: #{gtad_forward.6} parent=0 // loop_footer_branch
    %6 = sbr.rel target = $region3
  $region8: #{gtad_forward.6} parent=0 // loop_exit
    _

// kernel: gtad_forward.7
$region0: #{gtad_forward.7}
  #allocation0 [shape = 'u32[]', space=smem, size = 0x4, offset = 0x4, fixed_abs, tag = 'smem constant byte address 0x4 - core index']
  #allocation1 [shape = 'u32[144,128]{1,0:T(1,128)}', space=vmem, size = 0x12000, scoped, tag = 'internal scratch']
  #allocation2 [shape = 'f32[1,1,1]{2,1,0:T(1,128)S(1)}', space=vmem, size = 0x200, scoped, tag = 'scoped memory for gtad_forward.7']
  %s0 = inlined_call_operand.vmem [shape: bf16[2,256,128], index: 0, kind: input, shape index: {}]
  %s1 = inlined_call_operand.vmem [shape: bf16[3,256,128], index: 1, kind: input, shape index: {}]
  %s2 = inlined_call_operand.vmem [shape: f32[256,128], index: 2, kind: input, shape index: {}]
  %s3 = inlined_call_operand.vmem [shape: bf16[1,128,256], index: 3, kind: input, shape index: {}]
  %s4 = inlined_call_operand.vmem [shape: f32[1,128,1], index: 4, kind: input, shape index: {}]
  %s5 = inlined_call_operand.vmem [shape: bf16[1,128,384], index: 5, kind: input, shape index: {}]
  %s6 = inlined_call_operand.vmem [shape: f32[1,128,1], index: 6, kind: input, shape index: {}]
  %s7 = inlined_call_operand.vmem [shape: bf16[1,256,128], index: 7, kind: input, shape index: {}]
  %s8 = inlined_call_operand.vmem [shape: f32[1,256,1], index: 8, kind: input, shape index: {}]
  %s9 = inlined_call_operand.vmem [shape: bf16[1,128,256], index: 9, kind: input, shape index: {}]
  %s10 = inlined_call_operand.vmem [shape: bf16[1,128,256], index: 10, kind: input, shape index: {}]
  %s11 = inlined_call_operand.vmem [shape: f32[1,128,1], index: 11, kind: input, shape index: {}]
  %s12 = inlined_call_operand.vmem [shape: bf16[1,128,128], index: 12, kind: input, shape index: {}]
  %s13 = inlined_call_operand.vmem [shape: f32[1,128,1], index: 13, kind: input, shape index: {}]
  %s14 = inlined_call_operand.vmem [shape: bf16[1,256,128], index: 14, kind: input, shape index: {}]
  %s15 = inlined_call_operand.vmem [shape: f32[1,256,1], index: 15, kind: input, shape index: {}]
  %s16 = inlined_call_operand.vmem [shape: f32[1,1,256], index: 16, kind: input, shape index: {}]
  %s17 = inlined_call_operand.<no memory space> [shape: f32[1,1,1], index: 17, kind: input, shape index: {}]
  %s18 = inlined_call_operand.vmem [shape: f32[1,256,128], index: 18, kind: output, shape index: {0}]
  %s19 = inlined_call_operand.hbm [shape: f32[1,1,128], index: 19, kind: output, shape index: {1}]
  %20 = xla_tuple %s18, %s19
  %s21 = sld [smem:[#allocation0]]
  $region90: #{gtad_forward.7} parent=0
    _
  %s23 = ssub.s32 1, %s21
  %s24 = scalar_select 0, %s23, %s21
  %v25 = vstv %s17
  %26 = vst [vmem:[#allocation2] sm:$0x1] %v25
  $region1: #{gtad_forward.7} parent=0
    #allocation3 [shape = 'u8[512]{0}', space=vmem, size = 0x400, scoped, tag = 'output window, operand 1, single buffered']
    #allocation4 [shape = 's32[1]{0}', space=sflag, size = 0x4, scoped, tag = 'scoped memory for gtad_forward.7']
    %27 = vsyncpa [#allocation4], 0
    // Predicated region
    $region2: #{gtad_forward.7} parent=1 // pred_check
      _
    $region3: #{gtad_forward.7} parent=1 // pred_check_branch
      %29 = sbr.rel (0) target = $region5
    $region4: #{gtad_forward.7} parent=1 // pred_region
      _
    $region5: #{gtad_forward.7} parent=1 // pred_fallthru
      _
    // Predicated region
    $region6: #{gtad_forward.7} parent=1 // pred_check
      _
    $region7: #{gtad_forward.7} parent=1 // pred_check_branch
      %31 = sbr.rel (0) target = $region9
    $region8: #{gtad_forward.7} parent=1 // pred_region
      _
    $region9: #{gtad_forward.7} parent=1 // pred_fallthru
      _
    // Predicated region
    $region10: #{gtad_forward.7} parent=1 // pred_check
      _
    $region11: #{gtad_forward.7} parent=1 // pred_check_branch
      %33 = sbr.rel (0) target = $region13
    $region12: #{gtad_forward.7} parent=1 // pred_region
      _
    $region13: #{gtad_forward.7} parent=1 // pred_fallthru
      _
    // Predicated region
    $region14: #{gtad_forward.7} parent=1 // pred_check
      _
    $region15: #{gtad_forward.7} parent=1 // pred_check_branch
      %35 = sbr.rel (0) target = $region17
    $region16: #{gtad_forward.7} parent=1 // pred_region
      _
    $region17: #{gtad_forward.7} parent=1 // pred_fallthru
      _
    // Predicated region
    $region18: #{gtad_forward.7} parent=1 // pred_check
      _
    $region19: #{gtad_forward.7} parent=1 // pred_check_branch
      %37 = sbr.rel (0) target = $region21
    $region20: #{gtad_forward.7} parent=1 // pred_region
      _
    $region21: #{gtad_forward.7} parent=1 // pred_fallthru
      _
    // Predicated region
    $region22: #{gtad_forward.7} parent=1 // pred_check
      _
    $region23: #{gtad_forward.7} parent=1 // pred_check_branch
      %39 = sbr.rel (0) target = $region25
    $region24: #{gtad_forward.7} parent=1 // pred_region
      _
    $region25: #{gtad_forward.7} parent=1 // pred_fallthru
      _
    // Predicated region
    $region26: #{gtad_forward.7} parent=1 // pred_check
      _
    $region27: #{gtad_forward.7} parent=1 // pred_check_branch
      %41 = sbr.rel (0) target = $region29
    $region28: #{gtad_forward.7} parent=1 // pred_region
      _
    $region29: #{gtad_forward.7} parent=1 // pred_fallthru
      _
    // Predicated region
    $region30: #{gtad_forward.7} parent=1 // pred_check
      _
    $region31: #{gtad_forward.7} parent=1 // pred_check_branch
      %43 = sbr.rel (0) target = $region33
    $region32: #{gtad_forward.7} parent=1 // pred_region
      _
    $region33: #{gtad_forward.7} parent=1 // pred_fallthru
      _
    // Predicated region
    $region34: #{gtad_forward.7} parent=1 // pred_check
      _
    $region35: #{gtad_forward.7} parent=1 // pred_check_branch
      %45 = sbr.rel (0) target = $region37
    $region36: #{gtad_forward.7} parent=1 // pred_region
      _
    $region37: #{gtad_forward.7} parent=1 // pred_fallthru
      _
    // Predicated region
    $region38: #{gtad_forward.7} parent=1 // pred_check
      _
    $region39: #{gtad_forward.7} parent=1 // pred_check_branch
      %47 = sbr.rel (0) target = $region41
    $region40: #{gtad_forward.7} parent=1 // pred_region
      _
    $region41: #{gtad_forward.7} parent=1 // pred_fallthru
      _
    // Predicated region
    $region42: #{gtad_forward.7} parent=1 // pred_check
      _
    $region43: #{gtad_forward.7} parent=1 // pred_check_branch
      %49 = sbr.rel (0) target = $region45
    $region44: #{gtad_forward.7} parent=1 // pred_region
      _
    $region45: #{gtad_forward.7} parent=1 // pred_fallthru
      _
    // Predicated region
    $region46: #{gtad_forward.7} parent=1 // pred_check
      _
    $region47: #{gtad_forward.7} parent=1 // pred_check_branch
      %51 = sbr.rel (0) target = $region49
    $region48: #{gtad_forward.7} parent=1 // pred_region
      _
    $region49: #{gtad_forward.7} parent=1 // pred_fallthru
      _
    // Predicated region
    $region50: #{gtad_forward.7} parent=1 // pred_check
      _
    $region51: #{gtad_forward.7} parent=1 // pred_check_branch
      %53 = sbr.rel (0) target = $region53
    $region52: #{gtad_forward.7} parent=1 // pred_region
      _
    $region53: #{gtad_forward.7} parent=1 // pred_fallthru
      _
    // Predicated region
    $region54: #{gtad_forward.7} parent=1 // pred_check
      _
    $region55: #{gtad_forward.7} parent=1 // pred_check_branch
      %55 = sbr.rel (0) target = $region57
    $region56: #{gtad_forward.7} parent=1 // pred_region
      _
    $region57: #{gtad_forward.7} parent=1 // pred_fallthru
      _
    // Predicated region
    $region58: #{gtad_forward.7} parent=1 // pred_check
      _
    $region59: #{gtad_forward.7} parent=1 // pred_check_branch
      %57 = sbr.rel (0) target = $region61
    $region60: #{gtad_forward.7} parent=1 // pred_region
      _
    $region61: #{gtad_forward.7} parent=1 // pred_fallthru
      _
    // Predicated region
    $region62: #{gtad_forward.7} parent=1 // pred_check
      _
    $region63: #{gtad_forward.7} parent=1 // pred_check_branch
      %59 = sbr.rel (0) target = $region65
    $region64: #{gtad_forward.7} parent=1 // pred_region
      _
    $region65: #{gtad_forward.7} parent=1 // pred_fallthru
      _
    // Predicated region
    $region66: #{gtad_forward.7} parent=1 // pred_check
      _
    $region67: #{gtad_forward.7} parent=1 // pred_check_branch
      %61 = sbr.rel (0) target = $region69
    $region68: #{gtad_forward.7} parent=1 // pred_region
      _
    $region69: #{gtad_forward.7} parent=1 // pred_fallthru
      _
    // Predicated region
    $region70: #{gtad_forward.7} parent=1 // pred_check
      _
    $region71: #{gtad_forward.7} parent=1 // pred_check_branch
      %63 = sbr.rel (0) target = $region73
    $region72: #{gtad_forward.7} parent=1 // pred_region
      _
    $region73: #{gtad_forward.7} parent=1 // pred_fallthru
      _
    %v65 = vld [vmem:[%s2] sm:$0xff]
    %v66 = vld [vmem:[%s2 + $0x8] sm:$0xff]
    %v67 = vld [vmem:[%s2 + $0x10] sm:$0xff]
    %v68 = vld [vmem:[%s2 + $0x18] sm:$0xff]
    %v69 = vld [vmem:[%s2 + $0x20] sm:$0xff]
    %v70 = vld [vmem:[%s2 + $0x28] sm:$0xff]
    %v71 = vld [vmem:[%s2 + $0x30] sm:$0xff]
    %v72 = vld [vmem:[%s2 + $0x38] sm:$0xff]
    %v73 = vld [vmem:[%s2 + $0x40] sm:$0xff]
    %v74 = vld [vmem:[%s2 + $0x48] sm:$0xff]
    %v75 = vld [vmem:[%s2 + $0x50] sm:$0xff]
    %v76 = vld [vmem:[%s2 + $0x58] sm:$0xff]
    %v77 = vld [vmem:[%s2 + $0x60] sm:$0xff]
    %v78 = vld [vmem:[%s2 + $0x68] sm:$0xff]
    %v79 = vld [vmem:[%s2 + $0x70] sm:$0xff]
    %v80 = vld [vmem:[%s2 + $0x78] sm:$0xff]
    %v81 = vld [vmem:[%s2 + $0x80] sm:$0xff]
    %v82 = vld [vmem:[%s2 + $0x88] sm:$0xff]
    %v83 = vld [vmem:[%s2 + $0x90] sm:$0xff]
    %v84 = vld [vmem:[%s2 + $0x98] sm:$0xff]
    %v85 = vld [vmem:[%s2 + $0xa0] sm:$0xff]
    %v86 = vld [vmem:[%s2 + $0xa8] sm:$0xff]
    %v87 = vld [vmem:[%s2 + $0xb0] sm:$0xff]
    %v88 = vld [vmem:[%s2 + $0xb8] sm:$0xff]
    %v89 = vld [vmem:[%s2 + $0xc0] sm:$0xff]
    %v90 = vld [vmem:[%s2 + $0xc8] sm:$0xff]
    %v91 = vld [vmem:[%s2 + $0xd0] sm:$0xff]
    %v92 = vld [vmem:[%s2 + $0xd8] sm:$0xff]
    %v93 = vld [vmem:[%s2 + $0xe0] sm:$0xff]
    %v94 = vld [vmem:[%s2 + $0xe8] sm:$0xff]
    %v95 = vld [vmem:[%s2 + $0xf0] sm:$0xff]
    %v96 = vld [vmem:[%s2 + $0xf8] sm:$0xff]
    %v97 = vpack.c.bf16 %v66, %v65
    %v98 = vpack.c.bf16 %v68, %v67
    %v99 = vpack.c.bf16 %v70, %v69
    %v100 = vpack.c.bf16 %v72, %v71
    %v101 = vpack.c.bf16 %v74, %v73
    %v102 = vpack.c.bf16 %v76, %v75
    %v103 = vpack.c.bf16 %v78, %v77
    %v104 = vpack.c.bf16 %v80, %v79
    %v105 = vpack.c.bf16 %v82, %v81
    %v106 = vpack.c.bf16 %v84, %v83
    %v107 = vpack.c.bf16 %v86, %v85
    %v108 = vpack.c.bf16 %v88, %v87
    %v109 = vpack.c.bf16 %v90, %v89
    %v110 = vpack.c.bf16 %v92, %v91
    %v111 = vpack.c.bf16 %v94, %v93
    %v112 = vpack.c.bf16 %v96, %v95
    %v113 = vld [vmem:[%s0] sm:$0xf]
    %v114 = vld [vmem:[%s0 + $0x4] sm:$0xf]
    %v115 = vld [vmem:[%s0 + $0x8] sm:$0xf]
    %v116 = vld [vmem:[%s0 + $0xc] sm:$0xf]
    %v117 = vld [vmem:[%s0 + $0x10] sm:$0xf]
    %v118 = vld [vmem:[%s0 + $0x14] sm:$0xf]
    %v119 = vld [vmem:[%s0 + $0x18] sm:$0xf]
    %v120 = vld [vmem:[%s0 + $0x1c] sm:$0xf]
    %v121 = vld [vmem:[%s0 + $0x20] sm:$0xf]
    %v122 = vld [vmem:[%s0 + $0x24] sm:$0xf]
    %v123 = vld [vmem:[%s0 + $0x28] sm:$0xf]
    %v124 = vld [vmem:[%s0 + $0x2c] sm:$0xf]
    %v125 = vld [vmem:[%s0 + $0x30] sm:$0xf]
    %v126 = vld [vmem:[%s0 + $0x34] sm:$0xf]
    %v127 = vld [vmem:[%s0 + $0x38] sm:$0xf]
    %v128 = vld [vmem:[%s0 + $0x3c] sm:$0xf]
    %v129 = vld [vmem:[%s0 + $0x40] sm:$0xf]
    %v130 = vld [vmem:[%s0 + $0x44] sm:$0xf]
    %v131 = vld [vmem:[%s0 + $0x48] sm:$0xf]
    %v132 = vld [vmem:[%s0 + $0x4c] sm:$0xf]
    %v133 = vld [vmem:[%s0 + $0x50] sm:$0xf]
    %v134 = vld [vmem:[%s0 + $0x54] sm:$0xf]
    %v135 = vld [vmem:[%s0 + $0x58] sm:$0xf]
    %v136 = vld [vmem:[%s0 + $0x5c] sm:$0xf]
    %v137 = vld [vmem:[%s0 + $0x60] sm:$0xf]
    %v138 = vld [vmem:[%s0 + $0x64] sm:$0xf]
    %v139 = vld [vmem:[%s0 + $0x68] sm:$0xf]
    %v140 = vld [vmem:[%s0 + $0x6c] sm:$0xf]
    %v141 = vld [vmem:[%s0 + $0x70] sm:$0xf]
    %v142 = vld [vmem:[%s0 + $0x74] sm:$0xf]
    %v143 = vld [vmem:[%s0 + $0x78] sm:$0xf]
    %v144 = vld [vmem:[%s0 + $0x7c] sm:$0xf]
    %s145 = scalar_lea.vmem %s0, 128
    %v146 = vld [vmem:[%s145] sm:$0xf]
    %v147 = vld [vmem:[%s145 + $0x4] sm:$0xf]
    %v148 = vld [vmem:[%s145 + $0x8] sm:$0xf]
    %v149 = vld [vmem:[%s145 + $0xc] sm:$0xf]
    %v150 = vld [vmem:[%s145 + $0x10] sm:$0xf]
    %v151 = vld [vmem:[%s145 + $0x14] sm:$0xf]
    %v152 = vld [vmem:[%s145 + $0x18] sm:$0xf]
    %v153 = vld [vmem:[%s145 + $0x1c] sm:$0xf]
    %v154 = vld [vmem:[%s145 + $0x20] sm:$0xf]
    %v155 = vld [vmem:[%s145 + $0x24] sm:$0xf]
    %v156 = vld [vmem:[%s145 + $0x28] sm:$0xf]
    %v157 = vld [vmem:[%s145 + $0x2c] sm:$0xf]
    %v158 = vld [vmem:[%s145 + $0x30] sm:$0xf]
    %v159 = vld [vmem:[%s145 + $0x34] sm:$0xf]
    %v160 = vld [vmem:[%s145 + $0x38] sm:$0xf]
    %v161 = vld [vmem:[%s145 + $0x3c] sm:$0xf]
    %v162 = vld [vmem:[%s145 + $0x40] sm:$0xf]
    %v163 = vld [vmem:[%s145 + $0x44] sm:$0xf]
    %v164 = vld [vmem:[%s145 + $0x48] sm:$0xf]
    %v165 = vld [vmem:[%s145 + $0x4c] sm:$0xf]
    %v166 = vld [vmem:[%s145 + $0x50] sm:$0xf]
    %v167 = vld [vmem:[%s145 + $0x54] sm:$0xf]
    %v168 = vld [vmem:[%s145 + $0x58] sm:$0xf]
    %v169 = vld [vmem:[%s145 + $0x5c] sm:$0xf]
    %v170 = vld [vmem:[%s145 + $0x60] sm:$0xf]
    %v171 = vld [vmem:[%s145 + $0x64] sm:$0xf]
    %v172 = vld [vmem:[%s145 + $0x68] sm:$0xf]
    %v173 = vld [vmem:[%s145 + $0x6c] sm:$0xf]
    %v174 = vld [vmem:[%s145 + $0x70] sm:$0xf]
    %v175 = vld [vmem:[%s145 + $0x74] sm:$0xf]
    %v176 = vld [vmem:[%s145 + $0x78] sm:$0xf]
    %v177 = vld [vmem:[%s145 + $0x7c] sm:$0xf]
    %v210 = vunpack.c.l.b16 %v113
    %v211 = vunpack.c.l.b16 %v114
    %v212 = vunpack.c.l.b16 %v115
    %v213 = vunpack.c.l.b16 %v116
    %v214 = vunpack.c.l.b16 %v117
    %v215 = vunpack.c.l.b16 %v118
    %v216 = vunpack.c.l.b16 %v119
    %v217 = vunpack.c.l.b16 %v120
    %v218 = vunpack.c.l.b16 %v121
    %v219 = vunpack.c.l.b16 %v122
    %v220 = vunpack.c.l.b16 %v123
    %v221 = vunpack.c.l.b16 %v124
    %v222 = vunpack.c.l.b16 %v125
    %v223 = vunpack.c.l.b16 %v126
    %v224 = vunpack.c.l.b16 %v127
    %v225 = vunpack.c.l.b16 %v128
    %v226 = vunpack.c.l.b16 %v129
    %v227 = vunpack.c.l.b16 %v130
    %v228 = vunpack.c.l.b16 %v131
    %v229 = vunpack.c.l.b16 %v132
    %v230 = vunpack.c.l.b16 %v133
    %v231 = vunpack.c.l.b16 %v134
    %v232 = vunpack.c.l.b16 %v135
    %v233 = vunpack.c.l.b16 %v136
    %v234 = vunpack.c.l.b16 %v137
    %v235 = vunpack.c.l.b16 %v138
    %v236 = vunpack.c.l.b16 %v139
    %v237 = vunpack.c.l.b16 %v140
    %v238 = vunpack.c.l.b16 %v141
    %v239 = vunpack.c.l.b16 %v142
    %v240 = vunpack.c.l.b16 %v143
    %v241 = vunpack.c.l.b16 %v144
    %v242 = vpack.c.b16 %v211, %v210
    %v243 = vpack.c.b16 %v213, %v212
    %v244 = vpack.c.b16 %v215, %v214
    %v245 = vpack.c.b16 %v217, %v216
    %v246 = vpack.c.b16 %v219, %v218
    %v247 = vpack.c.b16 %v221, %v220
    %v248 = vpack.c.b16 %v223, %v222
    %v249 = vpack.c.b16 %v225, %v224
    %v250 = vpack.c.b16 %v227, %v226
    %v251 = vpack.c.b16 %v229, %v228
    %v252 = vpack.c.b16 %v231, %v230
    %v253 = vpack.c.b16 %v233, %v232
    %v254 = vpack.c.b16 %v235, %v234
    %v255 = vpack.c.b16 %v237, %v236
    %v256 = vpack.c.b16 %v239, %v238
    %v257 = vpack.c.b16 %v241, %v240
    %v306 = vunpack.c.l.b16 %v146
    %v307 = vunpack.c.l.b16 %v147
    %v308 = vunpack.c.l.b16 %v148
    %v309 = vunpack.c.l.b16 %v149
    %v310 = vunpack.c.l.b16 %v150
    %v311 = vunpack.c.l.b16 %v151
    %v312 = vunpack.c.l.b16 %v152
    %v313 = vunpack.c.l.b16 %v153
    %v314 = vunpack.c.l.b16 %v154
    %v315 = vunpack.c.l.b16 %v155
    %v316 = vunpack.c.l.b16 %v156
    %v317 = vunpack.c.l.b16 %v157
    %v318 = vunpack.c.l.b16 %v158
    %v319 = vunpack.c.l.b16 %v159
    %v320 = vunpack.c.l.b16 %v160
    %v321 = vunpack.c.l.b16 %v161
    %v322 = vunpack.c.l.b16 %v162
    %v323 = vunpack.c.l.b16 %v163
    %v324 = vunpack.c.l.b16 %v164
    %v325 = vunpack.c.l.b16 %v165
    %v326 = vunpack.c.l.b16 %v166
    %v327 = vunpack.c.l.b16 %v167
    %v328 = vunpack.c.l.b16 %v168
    %v329 = vunpack.c.l.b16 %v169
    %v330 = vunpack.c.l.b16 %v170
    %v331 = vunpack.c.l.b16 %v171
    %v332 = vunpack.c.l.b16 %v172
    %v333 = vunpack.c.l.b16 %v173
    %v334 = vunpack.c.l.b16 %v174
    %v335 = vunpack.c.l.b16 %v175
    %v336 = vunpack.c.l.b16 %v176
    %v337 = vunpack.c.l.b16 %v177
    %v338 = vpack.c.b16 %v307, %v306
    %v339 = vpack.c.b16 %v309, %v308
    %v340 = vpack.c.b16 %v311, %v310
    %v341 = vpack.c.b16 %v313, %v312
    %v342 = vpack.c.b16 %v315, %v314
    %v343 = vpack.c.b16 %v317, %v316
    %v344 = vpack.c.b16 %v319, %v318
    %v345 = vpack.c.b16 %v321, %v320
    %v346 = vpack.c.b16 %v323, %v322
    %v347 = vpack.c.b16 %v325, %v324
    %v348 = vpack.c.b16 %v327, %v326
    %v349 = vpack.c.b16 %v329, %v328
    %v350 = vpack.c.b16 %v331, %v330
    %v351 = vpack.c.b16 %v333, %v332
    %v352 = vpack.c.b16 %v335, %v334
    %v353 = vpack.c.b16 %v337, %v336
    %v370 = vld [vmem:[%s3] sm:$0xff]
    %v371 = vld [vmem:[%s3 + $0x8] sm:$0xff]
    %v372 = vld [vmem:[%s3 + $0x10] sm:$0xff]
    %v373 = vld [vmem:[%s3 + $0x18] sm:$0xff]
    %v374 = vld [vmem:[%s3 + $0x20] sm:$0xff]
    %v375 = vld [vmem:[%s3 + $0x28] sm:$0xff]
    %v376 = vld [vmem:[%s3 + $0x30] sm:$0xff]
    %v377 = vld [vmem:[%s3 + $0x38] sm:$0xff]
    %v378 = vld [vmem:[%s3 + $0x40] sm:$0xff]
    %v379 = vld [vmem:[%s3 + $0x48] sm:$0xff]
    %v380 = vld [vmem:[%s3 + $0x50] sm:$0xff]
    %v381 = vld [vmem:[%s3 + $0x58] sm:$0xff]
    %v382 = vld [vmem:[%s3 + $0x60] sm:$0xff]
    %v383 = vld [vmem:[%s3 + $0x68] sm:$0xff]
    %v384 = vld [vmem:[%s3 + $0x70] sm:$0xff]
    %v385 = vld [vmem:[%s3 + $0x78] sm:$0xff]
    %v386 = vld [vmem:[%s4] sm:$0xff]
    %v387 = vld [vmem:[%s4 + $0x8] sm:$0xff]
    %v388 = vld [vmem:[%s4 + $0x10] sm:$0xff]
    %v389 = vld [vmem:[%s4 + $0x18] sm:$0xff]
    %v390 = vld [vmem:[%s4 + $0x20] sm:$0xff]
    %v391 = vld [vmem:[%s4 + $0x28] sm:$0xff]
    %v392 = vld [vmem:[%s4 + $0x30] sm:$0xff]
    %v393 = vld [vmem:[%s4 + $0x38] sm:$0xff]
    %v394 = vld [vmem:[%s4 + $0x40] sm:$0xff]
    %v395 = vld [vmem:[%s4 + $0x48] sm:$0xff]
    %v396 = vld [vmem:[%s4 + $0x50] sm:$0xff]
    %v397 = vld [vmem:[%s4 + $0x58] sm:$0xff]
    %v398 = vld [vmem:[%s4 + $0x60] sm:$0xff]
    %v399 = vld [vmem:[%s4 + $0x68] sm:$0xff]
    %v400 = vld [vmem:[%s4 + $0x70] sm:$0xff]
    %v401 = vld [vmem:[%s4 + $0x78] sm:$0xff]
    %403 = vset.pattern.permute.xlu0 0
    %404 = vperm.xlu0 %403, %v386
    %v405 = vpop.permute.xlu0 %404
    %408 = vset.pattern.permute.xlu0 0
    %409 = vperm.xlu0 %408, %v387
    %v410 = vpop.permute.xlu0 %409
    %413 = vset.pattern.permute.xlu0 0
    %414 = vperm.xlu0 %413, %v388
    %v415 = vpop.permute.xlu0 %414
    %418 = vset.pattern.permute.xlu0 0
    %419 = vperm.xlu0 %418, %v389
    %v420 = vpop.permute.xlu0 %419
    %423 = vset.pattern.permute.xlu0 0
    %424 = vperm.xlu0 %423, %v390
    %v425 = vpop.permute.xlu0 %424
    %428 = vset.pattern.permute.xlu0 0
    %429 = vperm.xlu0 %428, %v391
    %v430 = vpop.permute.xlu0 %429
    %433 = vset.pattern.permute.xlu0 0
    %434 = vperm.xlu0 %433, %v392
    %v435 = vpop.permute.xlu0 %434
    %438 = vset.pattern.permute.xlu0 0
    %439 = vperm.xlu0 %438, %v393
    %v440 = vpop.permute.xlu0 %439
    %443 = vset.pattern.permute.xlu0 0
    %444 = vperm.xlu0 %443, %v394
    %v445 = vpop.permute.xlu0 %444
    %448 = vset.pattern.permute.xlu0 0
    %449 = vperm.xlu0 %448, %v395
    %v450 = vpop.permute.xlu0 %449
    %453 = vset.pattern.permute.xlu0 0
    %454 = vperm.xlu0 %453, %v396
    %v455 = vpop.permute.xlu0 %454
    %458 = vset.pattern.permute.xlu0 0
    %459 = vperm.xlu0 %458, %v397
    %v460 = vpop.permute.xlu0 %459
    %463 = vset.pattern.permute.xlu0 0
    %464 = vperm.xlu0 %463, %v398
    %v465 = vpop.permute.xlu0 %464
    %468 = vset.pattern.permute.xlu0 0
    %469 = vperm.xlu0 %468, %v399
    %v470 = vpop.permute.xlu0 %469
    %473 = vset.pattern.permute.xlu0 0
    %474 = vperm.xlu0 %473, %v400
    %v475 = vpop.permute.xlu0 %474
    %478 = vset.pattern.permute.xlu0 0
    %479 = vperm.xlu0 %478, %v401
    %v480 = vpop.permute.xlu0 %479
    %v498 = vunpack.c.l.b16 %v370
    %v499 = vunpack.c.h.b16 %v370
    %v500 = vunpack.c.l.b16 %v371
    %v501 = vunpack.c.h.b16 %v371
    %v502 = vunpack.c.l.b16 %v372
    %v503 = vunpack.c.h.b16 %v372
    %v504 = vunpack.c.l.b16 %v373
    %v505 = vunpack.c.h.b16 %v373
    %v506 = vunpack.c.l.b16 %v374
    %v507 = vunpack.c.h.b16 %v374
    %v508 = vunpack.c.l.b16 %v375
    %v509 = vunpack.c.h.b16 %v375
    %v510 = vunpack.c.l.b16 %v376
    %v511 = vunpack.c.h.b16 %v376
    %v512 = vunpack.c.l.b16 %v377
    %v513 = vunpack.c.h.b16 %v377
    %v514 = vunpack.c.l.b16 %v378
    %v515 = vunpack.c.h.b16 %v378
    %v516 = vunpack.c.l.b16 %v379
    %v517 = vunpack.c.h.b16 %v379
    %v518 = vunpack.c.l.b16 %v380
    %v519 = vunpack.c.h.b16 %v380
    %v520 = vunpack.c.l.b16 %v381
    %v521 = vunpack.c.h.b16 %v381
    %v522 = vunpack.c.l.b16 %v382
    %v523 = vunpack.c.h.b16 %v382
    %v524 = vunpack.c.l.b16 %v383
    %v525 = vunpack.c.h.b16 %v383
    %v526 = vunpack.c.l.b16 %v384
    %v527 = vunpack.c.h.b16 %v384
    %v528 = vunpack.c.l.b16 %v385
    %v529 = vunpack.c.h.b16 %v385
    %v530 = vpack.c.b16 %v500, %v498
    %v531 = vpack.c.b16 %v501, %v499
    %v532 = vpack.c.b16 %v504, %v502
    %v533 = vpack.c.b16 %v505, %v503
    %v534 = vpack.c.b16 %v508, %v506
    %v535 = vpack.c.b16 %v509, %v507
    %v536 = vpack.c.b16 %v512, %v510
    %v537 = vpack.c.b16 %v513, %v511
    %v538 = vpack.c.b16 %v516, %v514
    %v539 = vpack.c.b16 %v517, %v515
    %v540 = vpack.c.b16 %v520, %v518
    %v541 = vpack.c.b16 %v521, %v519
    %v542 = vpack.c.b16 %v524, %v522
    %v543 = vpack.c.b16 %v525, %v523
    %v544 = vpack.c.b16 %v528, %v526
    %v545 = vpack.c.b16 %v529, %v527
    %562 = vmatprep.subr.bf16.mxu0 %v97
    %563 = vmatpush1.bf16.msra.mxu0 %v242
    %564 = vmatprep.subr.bf16.mxu0 %v98
    %565 = vmatpush1.bf16.msra.mxu0 %v243
    %566 = vmatprep.subr.bf16.mxu0 %v99
    %567 = vmatpush1.bf16.msra.mxu0 %v244
    %568 = vmatprep.subr.bf16.mxu0 %v100
    %569 = vmatpush1.bf16.msra.mxu0 %v245
    %570 = vmatprep.subr.bf16.mxu0 %v101
    %571 = vmatpush1.bf16.msra.mxu0 %v246
    %572 = vmatprep.subr.bf16.mxu0 %v102
    %573 = vmatpush1.bf16.msra.mxu0 %v247
    %574 = vmatprep.subr.bf16.mxu0 %v103
    %575 = vmatpush1.bf16.msra.mxu0 %v248
    %576 = vmatprep.subr.bf16.mxu0 %v104
    %577 = vmatpush1.bf16.msra.mxu0 %v249
    %578 = vmatprep.subr.bf16.mxu0 %v105
    %579 = vmatpush1.bf16.msra.mxu0 %v250
    %580 = vmatprep.subr.bf16.mxu0 %v106
    %581 = vmatpush1.bf16.msra.mxu0 %v251
    %582 = vmatprep.subr.bf16.mxu0 %v107
    %583 = vmatpush1.bf16.msra.mxu0 %v252
    %584 = vmatprep.subr.bf16.mxu0 %v108
    %585 = vmatpush1.bf16.msra.mxu0 %v253
    %586 = vmatprep.subr.bf16.mxu0 %v109
    %587 = vmatpush1.bf16.msra.mxu0 %v254
    %588 = vmatprep.subr.bf16.mxu0 %v110
    %589 = vmatpush1.bf16.msra.mxu0 %v255
    %590 = vmatprep.subr.bf16.mxu0 %v111
    %591 = vmatpush1.bf16.msra.mxu0 %v256
    %592 = vmatprep.subr.bf16.mxu0 %v112
    %593 = vmatpush1.bf16.msra.mxu0 %v257
    %594 = vmatprep.mubr.bf16.mxu0 %v531
    %595 = vmatmul.mubr.bf16.gmra.mrb[0].mxu0 %v530
    %v596 = vpop.f32.mrb[0].mxu0
    %v597 = vadd.f32 %v405, %v596
    %v598 = vpop.f32.mrb[0].mxu0
    %v599 = vadd.f32 %v405, %v598
    %v600 = vpop.f32.mrb[0].mxu0
    %v601 = vadd.f32 %v410, %v600
    %v602 = vpop.f32.mrb[0].mxu0
    %v603 = vadd.f32 %v410, %v602
    %604 = vmatprep.mubr.bf16.mxu0 %v533
    %605 = vmatmul.mubr.bf16.gmra.mrb[0].mxu0 %v532
    %v606 = vpop.f32.mrb[0].mxu0
    %v607 = vadd.f32 %v415, %v606
    %v608 = vpop.f32.mrb[0].mxu0
    %v609 = vadd.f32 %v415, %v608
    %v610 = vpop.f32.mrb[0].mxu0
    %v611 = vadd.f32 %v420, %v610
    %v612 = vpop.f32.mrb[0].mxu0
    %v613 = vadd.f32 %v420, %v612
    %614 = vmatprep.mubr.bf16.mxu0 %v535
    %615 = vmatmul.mubr.bf16.gmra.mrb[0].mxu0 %v534
    %v616 = vpop.f32.mrb[0].mxu0
    %v617 = vadd.f32 %v425, %v616
    %v618 = vpop.f32.mrb[0].mxu0
    %v619 = vadd.f32 %v425, %v618
    %v620 = vpop.f32.mrb[0].mxu0
    %v621 = vadd.f32 %v430, %v620
    %v622 = vpop.f32.mrb[0].mxu0
    %v623 = vadd.f32 %v430, %v622
    %624 = vmatprep.mubr.bf16.mxu0 %v537
    %625 = vmatmul.mubr.bf16.gmra.mrb[0].mxu0 %v536
    %v626 = vpop.f32.mrb[0].mxu0
    %v627 = vadd.f32 %v435, %v626
    %v628 = vpop.f32.mrb[0].mxu0
    %v629 = vadd.f32 %v435, %v628
    %v630 = vpop.f32.mrb[0].mxu0
    %v631 = vadd.f32 %v440, %v630
    %v632 = vpop.f32.mrb[0].mxu0
    %v633 = vadd.f32 %v440, %v632
    %634 = vmatprep.mubr.bf16.mxu0 %v539
    %635 = vmatmul.mubr.bf16.gmra.mrb[0].mxu0 %v538
    %v636 = vpop.f32.mrb[0].mxu0
    %v637 = vadd.f32 %v445, %v636
    %v638 = vpop.f32.mrb[0].mxu0
    %v639 = vadd.f32 %v445, %v638
    %v640 = vpop.f32.mrb[0].mxu0
    %v641 = vadd.f32 %v450, %v640
    %v642 = vpop.f32.mrb[0].mxu0
    %v643 = vadd.f32 %v450, %v642
    %644 = vmatprep.mubr.bf16.mxu0 %v541
    %645 = vmatmul.mubr.bf16.gmra.mrb[0].mxu0 %v540
    %v646 = vpop.f32.mrb[0].mxu0
    %v647 = vadd.f32 %v455, %v646
    %v648 = vpop.f32.mrb[0].mxu0
    %v649 = vadd.f32 %v455, %v648
    %v650 = vpop.f32.mrb[0].mxu0
    %v651 = vadd.f32 %v460, %v650
    %v652 = vpop.f32.mrb[0].mxu0
    %v653 = vadd.f32 %v460, %v652
    %654 = vmatprep.mubr.bf16.mxu0 %v543
    %655 = vmatmul.mubr.bf16.gmra.mrb[0].mxu0 %v542
    %v656 = vpop.f32.mrb[0].mxu0
    %v657 = vadd.f32 %v465, %v656
    %v658 = vpop.f32.mrb[0].mxu0
    %v659 = vadd.f32 %v465, %v658
    %v660 = vpop.f32.mrb[0].mxu0
    %v661 = vadd.f32 %v470, %v660
    %v662 = vpop.f32.mrb[0].mxu0
    %v663 = vadd.f32 %v470, %v662
    %664 = vmatprep.mubr.bf16.mxu0 %v545
    %665 = vmatmul.mubr.bf16.gmra.mrb[0].mxu0 %v544
    %v666 = vpop.f32.mrb[0].mxu0
    %v667 = vadd.f32 %v475, %v666
    %v668 = vpop.f32.mrb[0].mxu0
    %v669 = vadd.f32 %v475, %v668
    %v670 = vpop.f32.mrb[0].mxu0
    %v671 = vadd.f32 %v480, %v670
    %v672 = vpop.f32.mrb[0].mxu0
    %v673 = vadd.f32 %v480, %v672
    %674 = vdwg.mxu0
    %675 = vmatprep.subr.bf16.mxu0 0
    %676 = vmatpush1.bf16.msra.mxu0 %v338
    %677 = vmatprep.subr.bf16.mxu0 0
    %678 = vmatpush1.bf16.msra.mxu0 %v339
    %679 = vmatprep.subr.bf16.mxu0 0
    %680 = vmatpush1.bf16.msra.mxu0 %v340
    %681 = vmatprep.subr.bf16.mxu0 0
    %682 = vmatpush1.bf16.msra.mxu0 %v341
    %683 = vmatprep.subr.bf16.mxu0 0
    %684 = vmatpush1.bf16.msra.mxu0 %v342
    %685 = vmatprep.subr.bf16.mxu0 0
    %686 = vmatpush1.bf16.msra.mxu0 %v343
    %687 = vmatprep.subr.bf16.mxu0 0
    %688 = vmatpush1.bf16.msra.mxu0 %v344
    %689 = vmatprep.subr.bf16.mxu0 0
    %690 = vmatpush1.bf16.msra.mxu0 %v345
    %691 = vmatprep.subr.bf16.mxu0 0
    %692 = vmatpush1.bf16.msra.mxu0 %v346
    %693 = vmatprep.subr.bf16.mxu0 0
    %694 = vmatpush1.bf16.msra.mxu0 %v347
    %695 = vmatprep.subr.bf16.mxu0 0
    %696 = vmatpush1.bf16.msra.mxu0 %v348
    %697 = vmatprep.subr.bf16.mxu0 0
    %698 = vmatpush1.bf16.msra.mxu0 %v349
    %699 = vmatprep.subr.bf16.mxu0 0
    %700 = vmatpush1.bf16.msra.mxu0 %v350
    %701 = vmatprep.subr.bf16.mxu0 0
    %702 = vmatpush1.bf16.msra.mxu0 %v351
    %703 = vmatprep.subr.bf16.mxu0 0
    %704 = vmatpush1.bf16.msra.mxu0 %v352
    %705 = vmatprep.subr.bf16.mxu0 0
    %706 = vmatpush1.bf16.msra.mxu0 %v353
    %707 = vmatprep.mubr.bf16.mxu0 %v531
    %708 = vmatmul.mubr.bf16.gmra.mrb[0].mxu0 %v530
    %v709 = vpop.f32.mrb[0].mxu0
    %v710 = vadd.f32 %v405, %v709
    %v711 = vpop.f32.mrb[0].mxu0
    %v712 = vpop.f32.mrb[0].mxu0
    %v713 = vadd.f32 %v410, %v712
    %v714 = vpop.f32.mrb[0].mxu0
    %715 = vmatprep.mubr.bf16.mxu0 %v533
    %716 = vmatmul.mubr.bf16.gmra.mrb[0].mxu0 %v532
    %v717 = vpop.f32.mrb[0].mxu0
    %v718 = vadd.f32 %v415, %v717
    %v719 = vpop.f32.mrb[0].mxu0
    %v720 = vpop.f32.mrb[0].mxu0
    %v721 = vadd.f32 %v420, %v720
    %v722 = vpop.f32.mrb[0].mxu0
    %723 = vmatprep.mubr.bf16.mxu0 %v535
    %724 = vmatmul.mubr.bf16.gmra.mrb[0].mxu0 %v534
    %v725 = vpop.f32.mrb[0].mxu0
    %v726 = vadd.f32 %v425, %v725
    %v727 = vpop.f32.mrb[0].mxu0
    %v728 = vpop.f32.mrb[0].mxu0
    %v729 = vadd.f32 %v430, %v728
    %v730 = vpop.f32.mrb[0].mxu0
    %731 = vmatprep.mubr.bf16.mxu0 %v537
    %732 = vmatmul.mubr.bf16.gmra.mrb[0].mxu0 %v536
    %v733 = vpop.f32.mrb[0].mxu0
    %v734 = vadd.f32 %v435, %v733
    %v735 = vpop.f32.mrb[0].mxu0
    %v736 = vpop.f32.mrb[0].mxu0
    %v737 = vadd.f32 %v440, %v736
    %v738 = vpop.f32.mrb[0].mxu0
    %739 = vmatprep.mubr.bf16.mxu0 %v539
    %740 = vmatmul.mubr.bf16.gmra.mrb[0].mxu0 %v538
    %v741 = vpop.f32.mrb[0].mxu0
    %v742 = vadd.f32 %v445, %v741
    %v743 = vpop.f32.mrb[0].mxu0
    %v744 = vpop.f32.mrb[0].mxu0
    %v745 = vadd.f32 %v450, %v744
    %v746 = vpop.f32.mrb[0].mxu0
    %747 = vmatprep.mubr.bf16.mxu0 %v541
    %748 = vmatmul.mubr.bf16.gmra.mrb[0].mxu0 %v540
    %v749 = vpop.f32.mrb[0].mxu0
    %v750 = vadd.f32 %v455, %v749
    %v751 = vpop.f32.mrb[0].mxu0
    %v752 = vpop.f32.mrb[0].mxu0
    %v753 = vadd.f32 %v460, %v752
    %v754 = vpop.f32.mrb[0].mxu0
    %755 = vmatprep.mubr.bf16.mxu0 %v543
    %756 = vmatmul.mubr.bf16.gmra.mrb[0].mxu0 %v542
    %v757 = vpop.f32.mrb[0].mxu0
    %v758 = vadd.f32 %v465, %v757
    %v759 = vpop.f32.mrb[0].mxu0
    %v760 = vpop.f32.mrb[0].mxu0
    %v761 = vadd.f32 %v470, %v760
    %v762 = vpop.f32.mrb[0].mxu0
    %763 = vmatprep.mubr.bf16.mxu0 %v545
    %764 = vmatmul.mubr.bf16.gmra.mrb[0].mxu0 %v544
    %v765 = vpop.f32.mrb[0].mxu0
    %v766 = vadd.f32 %v475, %v765
    %v767 = vpop.f32.mrb[0].mxu0
    %v768 = vpop.f32.mrb[0].mxu0
    %v769 = vadd.f32 %v480, %v768
    %v770 = vpop.f32.mrb[0].mxu0
    %771 = vdwg.mxu0
    %v772 = vmax.f32 %v597, 0.0
    %v773 = vmax.f32 %v599, 0.0
    %v774 = vmax.f32 %v710, 0.0
    %v775 = vmax.f32 %v601, 0.0
    %v776 = vmax.f32 %v603, 0.0
    %v777 = vmax.f32 %v713, 0.0
    %v778 = vmax.f32 %v607, 0.0
    %v779 = vmax.f32 %v609, 0.0
    %v780 = vmax.f32 %v718, 0.0
    %v781 = vmax.f32 %v611, 0.0
    %v782 = vmax.f32 %v613, 0.0
    %v783 = vmax.f32 %v721, 0.0
    %v784 = vmax.f32 %v617, 0.0
    %v785 = vmax.f32 %v619, 0.0
    %v786 = vmax.f32 %v726, 0.0
    %v787 = vmax.f32 %v621, 0.0
    %v788 = vmax.f32 %v623, 0.0
    %v789 = vmax.f32 %v729, 0.0
    %v790 = vmax.f32 %v627, 0.0
    %v791 = vmax.f32 %v629, 0.0
    %v792 = vmax.f32 %v734, 0.0
    %v793 = vmax.f32 %v631, 0.0
    %v794 = vmax.f32 %v633, 0.0
    %v795 = vmax.f32 %v737, 0.0
    %v796 = vmax.f32 %v637, 0.0
    %v797 = vmax.f32 %v639, 0.0
    %v798 = vmax.f32 %v742, 0.0
    %v799 = vmax.f32 %v641, 0.0
    %v800 = vmax.f32 %v643, 0.0
    %v801 = vmax.f32 %v745, 0.0
    %v802 = vmax.f32 %v647, 0.0
    %v803 = vmax.f32 %v649, 0.0
    %v804 = vmax.f32 %v750, 0.0
    %v805 = vmax.f32 %v651, 0.0
    %v806 = vmax.f32 %v653, 0.0
    %v807 = vmax.f32 %v753, 0.0
    %v808 = vmax.f32 %v657, 0.0
    %v809 = vmax.f32 %v659, 0.0
    %v810 = vmax.f32 %v758, 0.0
    %v811 = vmax.f32 %v661, 0.0
    %v812 = vmax.f32 %v663, 0.0
    %v813 = vmax.f32 %v761, 0.0
    %v814 = vmax.f32 %v667, 0.0
    %v815 = vmax.f32 %v669, 0.0
    %v816 = vmax.f32 %v766, 0.0
    %v817 = vmax.f32 %v671, 0.0
    %v818 = vmax.f32 %v673, 0.0
    %v819 = vmax.f32 %v769, 0.0
    %v820 = vpack.c.bf16 %v775, %v772
    %v821 = vpack.c.bf16 %v776, %v773
    %v822 = vpack.c.bf16 %v777, %v774
    %v823 = vpack.c.bf16 %v781, %v778
    %v824 = vpack.c.bf16 %v782, %v779
    %v825 = vpack.c.bf16 %v783, %v780
    %v826 = vpack.c.bf16 %v787, %v784
    %v827 = vpack.c.bf16 %v788, %v785
    %v828 = vpack.c.bf16 %v789, %v786
    %v829 = vpack.c.bf16 %v793, %v790
    %v830 = vpack.c.bf16 %v794, %v791
    %v831 = vpack.c.bf16 %v795, %v792
    %v832 = vpack.c.bf16 %v799, %v796
    %v833 = vpack.c.bf16 %v800, %v797
    %v834 = vpack.c.bf16 %v801, %v798
    %v835 = vpack.c.bf16 %v805, %v802
    %v836 = vpack.c.bf16 %v806, %v803
    %v837 = vpack.c.bf16 %v807, %v804
    %v838 = vpack.c.bf16 %v811, %v808
    %v839 = vpack.c.bf16 %v812, %v809
    %v840 = vpack.c.bf16 %v813, %v810
    %v841 = vpack.c.bf16 %v817, %v814
    %v842 = vpack.c.bf16 %v818, %v815
    %v843 = vpack.c.bf16 %v819, %v816
    %v844 = vld [vmem:[%s5] sm:$0xff]
    %v845 = vld [vmem:[%s5 + $0x8] sm:$0xf]
    %v846 = vld [vmem:[%s5 + $0xc] sm:$0xff]
    %v847 = vld [vmem:[%s5 + $0x14] sm:$0xf]
    %v848 = vld [vmem:[%s5 + $0x18] sm:$0xff]
    %v849 = vld [vmem:[%s5 + $0x20] sm:$0xf]
    %v850 = vld [vmem:[%s5 + $0x24] sm:$0xff]
    %v851 = vld [vmem:[%s5 + $0x2c] sm:$0xf]
    %v852 = vld [vmem:[%s5 + $0x30] sm:$0xff]
    %v853 = vld [vmem:[%s5 + $0x38] sm:$0xf]
    %v854 = vld [vmem:[%s5 + $0x3c] sm:$0xff]
    %v855 = vld [vmem:[%s5 + $0x44] sm:$0xf]
    %v856 = vld [vmem:[%s5 + $0x48] sm:$0xff]
    %v857 = vld [vmem:[%s5 + $0x50] sm:$0xf]
    %v858 = vld [vmem:[%s5 + $0x54] sm:$0xff]
    %v859 = vld [vmem:[%s5 + $0x5c] sm:$0xf]
    %v860 = vld [vmem:[%s5 + $0x60] sm:$0xff]
    %v861 = vld [vmem:[%s5 + $0x68] sm:$0xf]
    %v862 = vld [vmem:[%s5 + $0x6c] sm:$0xff]
    %v863 = vld [vmem:[%s5 + $0x74] sm:$0xf]
    %v864 = vld [vmem:[%s5 + $0x78] sm:$0xff]
    %v865 = vld [vmem:[%s5 + $0x80] sm:$0xf]
    %v866 = vld [vmem:[%s5 + $0x84] sm:$0xff]
    %v867 = vld [vmem:[%s5 + $0x8c] sm:$0xf]
    %v868 = vld [vmem:[%s5 + $0x90] sm:$0xff]
    %v869 = vld [vmem:[%s5 + $0x98] sm:$0xf]
    %v870 = vld [vmem:[%s5 + $0x9c] sm:$0xff]
    %v871 = vld [vmem:[%s5 + $0xa4] sm:$0xf]
    %v872 = vld [vmem:[%s5 + $0xa8] sm:$0xff]
    %v873 = vld [vmem:[%s5 + $0xb0] sm:$0xf]
    %v874 = vld [vmem:[%s5 + $0xb4] sm:$0xff]
    %v875 = vld [vmem:[%s5 + $0xbc] sm:$0xf]
    %v876 = vld [vmem:[%s6] sm:$0xff]
    %v877 = vld [vmem:[%s6 + $0x8] sm:$0xff]
    %v878 = vld [vmem:[%s6 + $0x10] sm:$0xff]
    %v879 = vld [vmem:[%s6 + $0x18] sm:$0xff]
    %v880 = vld [vmem:[%s6 + $0x20] sm:$0xff]
    %v881 = vld [vmem:[%s6 + $0x28] sm:$0xff]
    %v882 = vld [vmem:[%s6 + $0x30] sm:$0xff]
    %v883 = vld [vmem:[%s6 + $0x38] sm:$0xff]
    %v884 = vld [vmem:[%s6 + $0x40] sm:$0xff]
    %v885 = vld [vmem:[%s6 + $0x48] sm:$0xff]
    %v886 = vld [vmem:[%s6 + $0x50] sm:$0xff]
    %v887 = vld [vmem:[%s6 + $0x58] sm:$0xff]
    %v888 = vld [vmem:[%s6 + $0x60] sm:$0xff]
    %v889 = vld [vmem:[%s6 + $0x68] sm:$0xff]
    %v890 = vld [vmem:[%s6 + $0x70] sm:$0xff]
    %v891 = vld [vmem:[%s6 + $0x78] sm:$0xff]
    %893 = vset.pattern.permute.xlu0 0
    %894 = vperm.xlu0 %893, %v876
    %v895 = vpop.permute.xlu0 %894
    %898 = vset.pattern.permute.xlu0 0
    %899 = vperm.xlu0 %898, %v877
    %v900 = vpop.permute.xlu0 %899
    %903 = vset.pattern.permute.xlu0 0
    %904 = vperm.xlu0 %903, %v878
    %v905 = vpop.permute.xlu0 %904
    %908 = vset.pattern.permute.xlu0 0
    %909 = vperm.xlu0 %908, %v879
    %v910 = vpop.permute.xlu0 %909
    %913 = vset.pattern.permute.xlu0 0
    %914 = vperm.xlu0 %913, %v880
    %v915 = vpop.permute.xlu0 %914
    %918 = vset.pattern.permute.xlu0 0
    %919 = vperm.xlu0 %918, %v881
    %v920 = vpop.permute.xlu0 %919
    %923 = vset.pattern.permute.xlu0 0
    %924 = vperm.xlu0 %923, %v882
    %v925 = vpop.permute.xlu0 %924
    %928 = vset.pattern.permute.xlu0 0
    %929 = vperm.xlu0 %928, %v883
    %v930 = vpop.permute.xlu0 %929
    %933 = vset.pattern.permute.xlu0 0
    %934 = vperm.xlu0 %933, %v884
    %v935 = vpop.permute.xlu0 %934
    %938 = vset.pattern.permute.xlu0 0
    %939 = vperm.xlu0 %938, %v885
    %v940 = vpop.permute.xlu0 %939
    %943 = vset.pattern.permute.xlu0 0
    %944 = vperm.xlu0 %943, %v886
    %v945 = vpop.permute.xlu0 %944
    %948 = vset.pattern.permute.xlu0 0
    %949 = vperm.xlu0 %948, %v887
    %v950 = vpop.permute.xlu0 %949
    %953 = vset.pattern.permute.xlu0 0
    %954 = vperm.xlu0 %953, %v888
    %v955 = vpop.permute.xlu0 %954
    %958 = vset.pattern.permute.xlu0 0
    %959 = vperm.xlu0 %958, %v889
    %v960 = vpop.permute.xlu0 %959
    %963 = vset.pattern.permute.xlu0 0
    %964 = vperm.xlu0 %963, %v890
    %v965 = vpop.permute.xlu0 %964
    %968 = vset.pattern.permute.xlu0 0
    %969 = vperm.xlu0 %968, %v891
    %v970 = vpop.permute.xlu0 %969
    %v1004 = vunpack.c.l.b16 %v844
    %v1005 = vunpack.c.h.b16 %v844
    %v1006 = vunpack.c.l.b16 %v845
    %v1007 = vunpack.c.l.b16 %v846
    %v1008 = vunpack.c.h.b16 %v846
    %v1009 = vunpack.c.l.b16 %v847
    %v1010 = vunpack.c.l.b16 %v848
    %v1011 = vunpack.c.h.b16 %v848
    %v1012 = vunpack.c.l.b16 %v849
    %v1013 = vunpack.c.l.b16 %v850
    %v1014 = vunpack.c.h.b16 %v850
    %v1015 = vunpack.c.l.b16 %v851
    %v1016 = vunpack.c.l.b16 %v852
    %v1017 = vunpack.c.h.b16 %v852
    %v1018 = vunpack.c.l.b16 %v853
    %v1019 = vunpack.c.l.b16 %v854
    %v1020 = vunpack.c.h.b16 %v854
    %v1021 = vunpack.c.l.b16 %v855
    %v1022 = vunpack.c.l.b16 %v856
    %v1023 = vunpack.c.h.b16 %v856
    %v1024 = vunpack.c.l.b16 %v857
    %v1025 = vunpack.c.l.b16 %v858
    %v1026 = vunpack.c.h.b16 %v858
    %v1027 = vunpack.c.l.b16 %v859
    %v1028 = vunpack.c.l.b16 %v860
    %v1029 = vunpack.c.h.b16 %v860
    %v1030 = vunpack.c.l.b16 %v861
    %v1031 = vunpack.c.l.b16 %v862
    %v1032 = vunpack.c.h.b16 %v862
    %v1033 = vunpack.c.l.b16 %v863
    %v1034 = vunpack.c.l.b16 %v864
    %v1035 = vunpack.c.h.b16 %v864
    %v1036 = vunpack.c.l.b16 %v865
    %v1037 = vunpack.c.l.b16 %v866
    %v1038 = vunpack.c.h.b16 %v866
    %v1039 = vunpack.c.l.b16 %v867
    %v1040 = vunpack.c.l.b16 %v868
    %v1041 = vunpack.c.h.b16 %v868
    %v1042 = vunpack.c.l.b16 %v869
    %v1043 = vunpack.c.l.b16 %v870
    %v1044 = vunpack.c.h.b16 %v870
    %v1045 = vunpack.c.l.b16 %v871
    %v1046 = vunpack.c.l.b16 %v872
    %v1047 = vunpack.c.h.b16 %v872
    %v1048 = vunpack.c.l.b16 %v873
    %v1049 = vunpack.c.l.b16 %v874
    %v1050 = vunpack.c.h.b16 %v874
    %v1051 = vunpack.c.l.b16 %v875
    %v1052 = vpack.c.b16 %v1007, %v1004
    %v1053 = vpack.c.b16 %v1008, %v1005
    %v1054 = vpack.c.b16 %v1009, %v1006
    %v1055 = vpack.c.b16 %v1013, %v1010
    %v1056 = vpack.c.b16 %v1014, %v1011
    %v1057 = vpack.c.b16 %v1015, %v1012
    %v1058 = vpack.c.b16 %v1019, %v1016
    %v1059 = vpack.c.b16 %v1020, %v1017
    %v1060 = vpack.c.b16 %v1021, %v1018
    %v1061 = vpack.c.b16 %v1025, %v1022
    %v1062 = vpack.c.b16 %v1026, %v1023
    %v1063 = vpack.c.b16 %v1027, %v1024
    %v1064 = vpack.c.b16 %v1031, %v1028
    %v1065 = vpack.c.b16 %v1032, %v1029
    %v1066 = vpack.c.b16 %v1033, %v1030
    %v1067 = vpack.c.b16 %v1037, %v1034
    %v1068 = vpack.c.b16 %v1038, %v1035
    %v1069 = vpack.c.b16 %v1039, %v1036
    %v1070 = vpack.c.b16 %v1043, %v1040
    %v1071 = vpack.c.b16 %v1044, %v1041
    %v1072 = vpack.c.b16 %v1045, %v1042
    %v1073 = vpack.c.b16 %v1049, %v1046
    %v1074 = vpack.c.b16 %v1050, %v1047
    %v1075 = vpack.c.b16 %v1051, %v1048
    %1100 = vmatprep.subr.bf16.mxu0 0
    %1101 = vmatpush1.bf16.msra.mxu0 %v820
    %1102 = vmatprep.subr.bf16.mxu0 0
    %1103 = vmatpush1.bf16.msra.mxu0 %v823
    %1104 = vmatprep.subr.bf16.mxu0 0
    %1105 = vmatpush1.bf16.msra.mxu0 %v826
    %1106 = vmatprep.subr.bf16.mxu0 0
    %1107 = vmatpush1.bf16.msra.mxu0 %v829
    %1108 = vmatprep.subr.bf16.mxu0 0
    %1109 = vmatpush1.bf16.msra.mxu0 %v832
    %1110 = vmatprep.subr.bf16.mxu0 0
    %1111 = vmatpush1.bf16.msra.mxu0 %v835
    %1112 = vmatprep.subr.bf16.mxu0 0
    %1113 = vmatpush1.bf16.msra.mxu0 %v838
    %1114 = vmatprep.subr.bf16.mxu0 0
    %1115 = vmatpush1.bf16.msra.mxu0 %v841
    %1116 = vmatprep.subr.bf16.mxu0 0
    %1117 = vmatpush1.bf16.msra.mxu0 %v821
    %1118 = vmatprep.subr.bf16.mxu0 0
    %1119 = vmatpush1.bf16.msra.mxu0 %v824
    %1120 = vmatprep.subr.bf16.mxu0 0
    %1121 = vmatpush1.bf16.msra.mxu0 %v827
    %1122 = vmatprep.subr.bf16.mxu0 0
    %1123 = vmatpush1.bf16.msra.mxu0 %v830
    %1124 = vmatprep.subr.bf16.mxu0 0
    %1125 = vmatpush1.bf16.msra.mxu0 %v833
    %1126 = vmatprep.subr.bf16.mxu0 0
    %1127 = vmatpush1.bf16.msra.mxu0 %v836
    %1128 = vmatprep.subr.bf16.mxu0 0
    %1129 = vmatpush1.bf16.msra.mxu0 %v839
    %1130 = vmatprep.subr.bf16.mxu0 0
    %1131 = vmatpush1.bf16.msra.mxu0 %v842
    %1132 = vmatprep.mubr.bf16.mxu0 %v1053
    %1133 = vmatmul.mubr.bf16.gmra.mrb[0].mxu0 %v1052
    %v1134 = vpop.f32.mrb[0].mxu0
    %v1135 = vadd.f32 %v895, %v1134
    %v1136 = vpop.f32.mrb[0].mxu0
    %v1137 = vpop.f32.mrb[0].mxu0
    %v1138 = vadd.f32 %v900, %v1137
    %v1139 = vpop.f32.mrb[0].mxu0
    %1140 = vmatprep.mubr.bf16.mxu0 %v1056
    %1141 = vmatmul.mubr.bf16.gmra.mrb[0].mxu0 %v1055
    %v1142 = vpop.f32.mrb[0].mxu0
    %v1143 = vadd.f32 %v905, %v1142
    %v1144 = vpop.f32.mrb[0].mxu0
    %v1145 = vpop.f32.mrb[0].mxu0
    %v1146 = vadd.f32 %v910, %v1145
    %v1147 = vpop.f32.mrb[0].mxu0
    %1148 = vmatprep.mubr.bf16.mxu0 %v1059
    %1149 = vmatmul.mubr.bf16.gmra.mrb[0].mxu0 %v1058
    %v1150 = vpop.f32.mrb[0].mxu0
    %v1151 = vadd.f32 %v915, %v1150
    %v1152 = vpop.f32.mrb[0].mxu0
    %v1153 = vpop.f32.mrb[0].mxu0
    %v1154 = vadd.f32 %v920, %v1153
    %v1155 = vpop.f32.mrb[0].mxu0
    %1156 = vmatprep.mubr.bf16.mxu0 %v1062
    %1157 = vmatmul.mubr.bf16.gmra.mrb[0].mxu0 %v1061
    %v1158 = vpop.f32.mrb[0].mxu0
    %v1159 = vadd.f32 %v925, %v1158
    %v1160 = vpop.f32.mrb[0].mxu0
    %v1161 = vpop.f32.mrb[0].mxu0
    %v1162 = vadd.f32 %v930, %v1161
    %v1163 = vpop.f32.mrb[0].mxu0
    %1164 = vmatprep.mubr.bf16.mxu0 %v1065
    %1165 = vmatmul.mubr.bf16.gmra.mrb[0].mxu0 %v1064
    %v1166 = vpop.f32.mrb[0].mxu0
    %v1167 = vadd.f32 %v935, %v1166
    %v1168 = vpop.f32.mrb[0].mxu0
    %v1169 = vpop.f32.mrb[0].mxu0
    %v1170 = vadd.f32 %v940, %v1169
    %v1171 = vpop.f32.mrb[0].mxu0
    %1172 = vmatprep.mubr.bf16.mxu0 %v1068
    %1173 = vmatmul.mubr.bf16.gmra.mrb[0].mxu0 %v1067
    %v1174 = vpop.f32.mrb[0].mxu0
    %v1175 = vadd.f32 %v945, %v1174
    %v1176 = vpop.f32.mrb[0].mxu0
    %v1177 = vpop.f32.mrb[0].mxu0
    %v1178 = vadd.f32 %v950, %v1177
    %v1179 = vpop.f32.mrb[0].mxu0
    %1180 = vmatprep.mubr.bf16.mxu0 %v1071
    %1181 = vmatmul.mubr.bf16.gmra.mrb[0].mxu0 %v1070
    %v1182 = vpop.f32.mrb[0].mxu0
    %v1183 = vadd.f32 %v955, %v1182
    %v1184 = vpop.f32.mrb[0].mxu0
    %v1185 = vpop.f32.mrb[0].mxu0
    %v1186 = vadd.f32 %v960, %v1185
    %v1187 = vpop.f32.mrb[0].mxu0
    %1188 = vmatprep.mubr.bf16.mxu0 %v1074
    %1189 = vmatmul.mubr.bf16.gmra.mrb[0].mxu0 %v1073
    %v1190 = vpop.f32.mrb[0].mxu0
    %v1191 = vadd.f32 %v965, %v1190
    %v1192 = vpop.f32.mrb[0].mxu0
    %v1193 = vpop.f32.mrb[0].mxu0
    %v1194 = vadd.f32 %v970, %v1193
    %v1195 = vpop.f32.mrb[0].mxu0
    %1196 = vdwg.mxu0
    %1197 = vmatprep.subr.bf16.mxu0 0
    %1198 = vmatpush1.bf16.msra.mxu0 %v822
    %1199 = vmatprep.subr.bf16.mxu0 0
    %1200 = vmatpush1.bf16.msra.mxu0 %v825
    %1201 = vmatprep.subr.bf16.mxu0 0
    %1202 = vmatpush1.bf16.msra.mxu0 %v828
    %1203 = vmatprep.subr.bf16.mxu0 0
    %1204 = vmatpush1.bf16.msra.mxu0 %v831
    %1205 = vmatprep.subr.bf16.mxu0 0
    %1206 = vmatpush1.bf16.msra.mxu0 %v834
    %1207 = vmatprep.subr.bf16.mxu0 0
    %1208 = vmatpush1.bf16.msra.mxu0 %v837
    %1209 = vmatprep.subr.bf16.mxu0 0
    %1210 = vmatpush1.bf16.msra.mxu0 %v840
    %1211 = vmatprep.subr.bf16.mxu0 0
    %1212 = vmatpush1.bf16.msra.mxu0 %v843
    %1213 = vmatprep.subr.bf16.mxu0 0
    %1214 = vmatpush1.bf16.msra.mxu0 0
    %1215 = vmatprep.subr.bf16.mxu0 0
    %1216 = vmatpush1.bf16.msra.mxu0 0
    %1217 = vmatprep.subr.bf16.mxu0 0
    %1218 = vmatpush1.bf16.msra.mxu0 0
    %1219 = vmatprep.subr.bf16.mxu0 0
    %1220 = vmatpush1.bf16.msra.mxu0 0
    %1221 = vmatprep.subr.bf16.mxu0 0
    %1222 = vmatpush1.bf16.msra.mxu0 0
    %1223 = vmatprep.subr.bf16.mxu0 0
    %1224 = vmatpush1.bf16.msra.mxu0 0
    %1225 = vmatprep.subr.bf16.mxu0 0
    %1226 = vmatpush1.bf16.msra.mxu0 0
    %1227 = vmatprep.subr.bf16.mxu0 0
    %1228 = vmatpush1.bf16.msra.mxu0 0
    %1229 = vmatprep.mubr.bf16.mxu0 0
    %1230 = vmatmul.mubr.bf16.gmra.mrb[0].mxu0 %v1054
    %v1231 = vpop.f32.mrb[0].mxu0
    %v1232 = vadd.f32 %v1135, %v1231
    %v1233 = vpop.f32.mrb[0].mxu0
    %v1234 = vpop.f32.mrb[0].mxu0
    %v1235 = vadd.f32 %v1138, %v1234
    %v1236 = vpop.f32.mrb[0].mxu0
    %1237 = vmatprep.mubr.bf16.mxu0 0
    %1238 = vmatmul.mubr.bf16.gmra.mrb[0].mxu0 %v1057
    %v1239 = vpop.f32.mrb[0].mxu0
    %v1240 = vadd.f32 %v1143, %v1239
    %v1241 = vpop.f32.mrb[0].mxu0
    %v1242 = vpop.f32.mrb[0].mxu0
    %v1243 = vadd.f32 %v1146, %v1242
    %v1244 = vpop.f32.mrb[0].mxu0
    %1245 = vmatprep.mubr.bf16.mxu0 0
    %1246 = vmatmul.mubr.bf16.gmra.mrb[0].mxu0 %v1060
    %v1247 = vpop.f32.mrb[0].mxu0
    %v1248 = vadd.f32 %v1151, %v1247
    %v1249 = vpop.f32.mrb[0].mxu0
    %v1250 = vpop.f32.mrb[0].mxu0
    %v1251 = vadd.f32 %v1154, %v1250
    %v1252 = vpop.f32.mrb[0].mxu0
    %1253 = vmatprep.mubr.bf16.mxu0 0
    %1254 = vmatmul.mubr.bf16.gmra.mrb[0].mxu0 %v1063
    %v1255 = vpop.f32.mrb[0].mxu0
    %v1256 = vadd.f32 %v1159, %v1255
    %v1257 = vpop.f32.mrb[0].mxu0
    %v1258 = vpop.f32.mrb[0].mxu0
    %v1259 = vadd.f32 %v1162, %v1258
    %v1260 = vpop.f32.mrb[0].mxu0
    %1261 = vmatprep.mubr.bf16.mxu0 0
    %1262 = vmatmul.mubr.bf16.gmra.mrb[0].mxu0 %v1066
    %v1263 = vpop.f32.mrb[0].mxu0
    %v1264 = vadd.f32 %v1167, %v1263
    %v1265 = vpop.f32.mrb[0].mxu0
    %v1266 = vpop.f32.mrb[0].mxu0
    %v1267 = vadd.f32 %v1170, %v1266
    %v1268 = vpop.f32.mrb[0].mxu0
    %1269 = vmatprep.mubr.bf16.mxu0 0
    %1270 = vmatmul.mubr.bf16.gmra.mrb[0].mxu0 %v1069
    %v1271 = vpop.f32.mrb[0].mxu0
    %v1272 = vadd.f32 %v1175, %v1271
    %v1273 = vpop.f32.mrb[0].mxu0
    %v1274 = vpop.f32.mrb[0].mxu0
    %v1275 = vadd.f32 %v1178, %v1274
    %v1276 = vpop.f32.mrb[0].mxu0
    %1277 = vmatprep.mubr.bf16.mxu0 0
    %1278 = vmatmul.mubr.bf16.gmra.mrb[0].mxu0 %v1072
    %v1279 = vpop.f32.mrb[0].mxu0
    %v1280 = vadd.f32 %v1183, %v1279
    %v1281 = vpop.f32.mrb[0].mxu0
    %v1282 = vpop.f32.mrb[0].mxu0
    %v1283 = vadd.f32 %v1186, %v1282
    %v1284 = vpop.f32.mrb[0].mxu0
    %1285 = vmatprep.mubr.bf16.mxu0 0
    %1286 = vmatmul.mubr.bf16.gmra.mrb[0].mxu0 %v1075
    %v1287 = vpop.f32.mrb[0].mxu0
    %v1288 = vadd.f32 %v1191, %v1287
    %v1289 = vpop.f32.mrb[0].mxu0
    %v1290 = vpop.f32.mrb[0].mxu0
    %v1291 = vadd.f32 %v1194, %v1290
    %v1292 = vpop.f32.mrb[0].mxu0
    %1293 = vdwg.mxu0
    %v1294 = vmax.f32 %v1232, 0.0
    %v1295 = vmax.f32 %v1235, 0.0
    %v1296 = vmax.f32 %v1240, 0.0
    %v1297 = vmax.f32 %v1243, 0.0
    %v1298 = vmax.f32 %v1248, 0.0
    %v1299 = vmax.f32 %v1251, 0.0
    %v1300 = vmax.f32 %v1256, 0.0
    %v1301 = vmax.f32 %v1259, 0.0
    %v1302 = vmax.f32 %v1264, 0.0
    %v1303 = vmax.f32 %v1267, 0.0
    %v1304 = vmax.f32 %v1272, 0.0
    %v1305 = vmax.f32 %v1275, 0.0
    %v1306 = vmax.f32 %v1280, 0.0
    %v1307 = vmax.f32 %v1283, 0.0
    %v1308 = vmax.f32 %v1288, 0.0
    %v1309 = vmax.f32 %v1291, 0.0
    %v1310 = vpack.c.bf16 %v1295, %v1294
    %v1311 = vpack.c.bf16 %v1297, %v1296
    %v1312 = vpack.c.bf16 %v1299, %v1298
    %v1313 = vpack.c.bf16 %v1301, %v1300
    %v1314 = vpack.c.bf16 %v1303, %v1302
    %v1315 = vpack.c.bf16 %v1305, %v1304
    %v1316 = vpack.c.bf16 %v1307, %v1306
    %v1317 = vpack.c.bf16 %v1309, %v1308
    %v1318 = vld [vmem:[%s7] sm:$0xf]
    %v1319 = vld [vmem:[%s7 + $0x4] sm:$0xf]
    %v1320 = vld [vmem:[%s7 + $0x8] sm:$0xf]
    %v1321 = vld [vmem:[%s7 + $0xc] sm:$0xf]
    %v1322 = vld [vmem:[%s7 + $0x10] sm:$0xf]
    %v1323 = vld [vmem:[%s7 + $0x14] sm:$0xf]
    %v1324 = vld [vmem:[%s7 + $0x18] sm:$0xf]
    %v1325 = vld [vmem:[%s7 + $0x1c] sm:$0xf]
    %v1326 = vld [vmem:[%s7 + $0x20] sm:$0xf]
    %v1327 = vld [vmem:[%s7 + $0x24] sm:$0xf]
    %v1328 = vld [vmem:[%s7 + $0x28] sm:$0xf]
    %v1329 = vld [vmem:[%s7 + $0x2c] sm:$0xf]
    %v1330 = vld [vmem:[%s7 + $0x30] sm:$0xf]
    %v1331 = vld [vmem:[%s7 + $0x34] sm:$0xf]
    %v1332 = vld [vmem:[%s7 + $0x38] sm:$0xf]
    %v1333 = vld [vmem:[%s7 + $0x3c] sm:$0xf]
    %v1334 = vld [vmem:[%s7 + $0x40] sm:$0xf]
    %v1335 = vld [vmem:[%s7 + $0x44] sm:$0xf]
    %v1336 = vld [vmem:[%s7 + $0x48] sm:$0xf]
    %v1337 = vld [vmem:[%s7 + $0x4c] sm:$0xf]
    %v1338 = vld [vmem:[%s7 + $0x50] sm:$0xf]
    %v1339 = vld [vmem:[%s7 + $0x54] sm:$0xf]
    %v1340 = vld [vmem:[%s7 + $0x58] sm:$0xf]
    %v1341 = vld [vmem:[%s7 + $0x5c] sm:$0xf]
    %v1342 = vld [vmem:[%s7 + $0x60] sm:$0xf]
    %v1343 = vld [vmem:[%s7 + $0x64] sm:$0xf]
    %v1344 = vld [vmem:[%s7 + $0x68] sm:$0xf]
    %v1345 = vld [vmem:[%s7 + $0x6c] sm:$0xf]
    %v1346 = vld [vmem:[%s7 + $0x70] sm:$0xf]
    %v1347 = vld [vmem:[%s7 + $0x74] sm:$0xf]
    %v1348 = vld [vmem:[%s7 + $0x78] sm:$0xf]
    %v1349 = vld [vmem:[%s7 + $0x7c] sm:$0xf]
    %v1350 = vld [vmem:[%s8] sm:$0xff]
    %v1351 = vld [vmem:[%s8 + $0x8] sm:$0xff]
    %v1352 = vld [vmem:[%s8 + $0x10] sm:$0xff]
    %v1353 = vld [vmem:[%s8 + $0x18] sm:$0xff]
    %v1354 = vld [vmem:[%s8 + $0x20] sm:$0xff]
    %v1355 = vld [vmem:[%s8 + $0x28] sm:$0xff]
    %v1356 = vld [vmem:[%s8 + $0x30] sm:$0xff]
    %v1357 = vld [vmem:[%s8 + $0x38] sm:$0xff]
    %v1358 = vld [vmem:[%s8 + $0x40] sm:$0xff]
    %v1359 = vld [vmem:[%s8 + $0x48] sm:$0xff]
    %v1360 = vld [vmem:[%s8 + $0x50] sm:$0xff]
    %v1361 = vld [vmem:[%s8 + $0x58] sm:$0xff]
    %v1362 = vld [vmem:[%s8 + $0x60] sm:$0xff]
    %v1363 = vld [vmem:[%s8 + $0x68] sm:$0xff]
    %v1364 = vld [vmem:[%s8 + $0x70] sm:$0xff]
    %v1365 = vld [vmem:[%s8 + $0x78] sm:$0xff]
    %v1366 = vld [vmem:[%s8 + $0x80] sm:$0xff]
    %v1367 = vld [vmem:[%s8 + $0x88] sm:$0xff]
    %v1368 = vld [vmem:[%s8 + $0x90] sm:$0xff]
    %v1369 = vld [vmem:[%s8 + $0x98] sm:$0xff]
    %v1370 = vld [vmem:[%s8 + $0xa0] sm:$0xff]
    %v1371 = vld [vmem:[%s8 + $0xa8] sm:$0xff]
    %v1372 = vld [vmem:[%s8 + $0xb0] sm:$0xff]
    %v1373 = vld [vmem:[%s8 + $0xb8] sm:$0xff]
    %v1374 = vld [vmem:[%s8 + $0xc0] sm:$0xff]
    %v1375 = vld [vmem:[%s8 + $0xc8] sm:$0xff]
    %v1376 = vld [vmem:[%s8 + $0xd0] sm:$0xff]
    %v1377 = vld [vmem:[%s8 + $0xd8] sm:$0xff]
    %v1378 = vld [vmem:[%s8 + $0xe0] sm:$0xff]
    %v1379 = vld [vmem:[%s8 + $0xe8] sm:$0xff]
    %v1380 = vld [vmem:[%s8 + $0xf0] sm:$0xff]
    %v1381 = vld [vmem:[%s8 + $0xf8] sm:$0xff]
    %1383 = vset.pattern.permute.xlu0 0
    %1384 = vperm.xlu0 %1383, %v1350
    %v1385 = vpop.permute.xlu0 %1384
    %1388 = vset.pattern.permute.xlu0 0
    %1389 = vperm.xlu0 %1388, %v1351
    %v1390 = vpop.permute.xlu0 %1389
    %1393 = vset.pattern.permute.xlu0 0
    %1394 = vperm.xlu0 %1393, %v1352
    %v1395 = vpop.permute.xlu0 %1394
    %1398 = vset.pattern.permute.xlu0 0
    %1399 = vperm.xlu0 %1398, %v1353
    %v1400 = vpop.permute.xlu0 %1399
    %1403 = vset.pattern.permute.xlu0 0
    %1404 = vperm.xlu0 %1403, %v1354
    %v1405 = vpop.permute.xlu0 %1404
    %1408 = vset.pattern.permute.xlu0 0
    %1409 = vperm.xlu0 %1408, %v1355
    %v1410 = vpop.permute.xlu0 %1409
    %1413 = vset.pattern.permute.xlu0 0
    %1414 = vperm.xlu0 %1413, %v1356
    %v1415 = vpop.permute.xlu0 %1414
    %1418 = vset.pattern.permute.xlu0 0
    %1419 = vperm.xlu0 %1418, %v1357
    %v1420 = vpop.permute.xlu0 %1419
    %1423 = vset.pattern.permute.xlu0 0
    %1424 = vperm.xlu0 %1423, %v1358
    %v1425 = vpop.permute.xlu0 %1424
    %1428 = vset.pattern.permute.xlu0 0
    %1429 = vperm.xlu0 %1428, %v1359
    %v1430 = vpop.permute.xlu0 %1429
    %1433 = vset.pattern.permute.xlu0 0
    %1434 = vperm.xlu0 %1433, %v1360
    %v1435 = vpop.permute.xlu0 %1434
    %1438 = vset.pattern.permute.xlu0 0
    %1439 = vperm.xlu0 %1438, %v1361
    %v1440 = vpop.permute.xlu0 %1439
    %1443 = vset.pattern.permute.xlu0 0
    %1444 = vperm.xlu0 %1443, %v1362
    %v1445 = vpop.permute.xlu0 %1444
    %1448 = vset.pattern.permute.xlu0 0
    %1449 = vperm.xlu0 %1448, %v1363
    %v1450 = vpop.permute.xlu0 %1449
    %1453 = vset.pattern.permute.xlu0 0
    %1454 = vperm.xlu0 %1453, %v1364
    %v1455 = vpop.permute.xlu0 %1454
    %1458 = vset.pattern.permute.xlu0 0
    %1459 = vperm.xlu0 %1458, %v1365
    %v1460 = vpop.permute.xlu0 %1459
    %1463 = vset.pattern.permute.xlu0 0
    %1464 = vperm.xlu0 %1463, %v1366
    %v1465 = vpop.permute.xlu0 %1464
    %1468 = vset.pattern.permute.xlu0 0
    %1469 = vperm.xlu0 %1468, %v1367
    %v1470 = vpop.permute.xlu0 %1469
    %1473 = vset.pattern.permute.xlu0 0
    %1474 = vperm.xlu0 %1473, %v1368
    %v1475 = vpop.permute.xlu0 %1474
    %1478 = vset.pattern.permute.xlu0 0
    %1479 = vperm.xlu0 %1478, %v1369
    %v1480 = vpop.permute.xlu0 %1479
    %1483 = vset.pattern.permute.xlu0 0
    %1484 = vperm.xlu0 %1483, %v1370
    %v1485 = vpop.permute.xlu0 %1484
    %1488 = vset.pattern.permute.xlu0 0
    %1489 = vperm.xlu0 %1488, %v1371
    %v1490 = vpop.permute.xlu0 %1489
    %1493 = vset.pattern.permute.xlu0 0
    %1494 = vperm.xlu0 %1493, %v1372
    %v1495 = vpop.permute.xlu0 %1494
    %1498 = vset.pattern.permute.xlu0 0
    %1499 = vperm.xlu0 %1498, %v1373
    %v1500 = vpop.permute.xlu0 %1499
    %1503 = vset.pattern.permute.xlu0 0
    %1504 = vperm.xlu0 %1503, %v1374
    %v1505 = vpop.permute.xlu0 %1504
    %1508 = vset.pattern.permute.xlu0 0
    %1509 = vperm.xlu0 %1508, %v1375
    %v1510 = vpop.permute.xlu0 %1509
    %1513 = vset.pattern.permute.xlu0 0
    %1514 = vperm.xlu0 %1513, %v1376
    %v1515 = vpop.permute.xlu0 %1514
    %1518 = vset.pattern.permute.xlu0 0
    %1519 = vperm.xlu0 %1518, %v1377
    %v1520 = vpop.permute.xlu0 %1519
    %1523 = vset.pattern.permute.xlu0 0
    %1524 = vperm.xlu0 %1523, %v1378
    %v1525 = vpop.permute.xlu0 %1524
    %1528 = vset.pattern.permute.xlu0 0
    %1529 = vperm.xlu0 %1528, %v1379
    %v1530 = vpop.permute.xlu0 %1529
    %1533 = vset.pattern.permute.xlu0 0
    %1534 = vperm.xlu0 %1533, %v1380
    %v1535 = vpop.permute.xlu0 %1534
    %1538 = vset.pattern.permute.xlu0 0
    %1539 = vperm.xlu0 %1538, %v1381
    %v1540 = vpop.permute.xlu0 %1539
    %v1574 = vunpack.c.l.b16 %v1318
    %v1575 = vunpack.c.l.b16 %v1319
    %v1576 = vunpack.c.l.b16 %v1320
    %v1577 = vunpack.c.l.b16 %v1321
    %v1578 = vunpack.c.l.b16 %v1322
    %v1579 = vunpack.c.l.b16 %v1323
    %v1580 = vunpack.c.l.b16 %v1324
    %v1581 = vunpack.c.l.b16 %v1325
    %v1582 = vunpack.c.l.b16 %v1326
    %v1583 = vunpack.c.l.b16 %v1327
    %v1584 = vunpack.c.l.b16 %v1328
    %v1585 = vunpack.c.l.b16 %v1329
    %v1586 = vunpack.c.l.b16 %v1330
    %v1587 = vunpack.c.l.b16 %v1331
    %v1588 = vunpack.c.l.b16 %v1332
    %v1589 = vunpack.c.l.b16 %v1333
    %v1590 = vunpack.c.l.b16 %v1334
    %v1591 = vunpack.c.l.b16 %v1335
    %v1592 = vunpack.c.l.b16 %v1336
    %v1593 = vunpack.c.l.b16 %v1337
    %v1594 = vunpack.c.l.b16 %v1338
    %v1595 = vunpack.c.l.b16 %v1339
    %v1596 = vunpack.c.l.b16 %v1340
    %v1597 = vunpack.c.l.b16 %v1341
    %v1598 = vunpack.c.l.b16 %v1342
    %v1599 = vunpack.c.l.b16 %v1343
    %v1600 = vunpack.c.l.b16 %v1344
    %v1601 = vunpack.c.l.b16 %v1345
    %v1602 = vunpack.c.l.b16 %v1346
    %v1603 = vunpack.c.l.b16 %v1347
    %v1604 = vunpack.c.l.b16 %v1348
    %v1605 = vunpack.c.l.b16 %v1349
    %v1606 = vpack.c.b16 %v1575, %v1574
    %v1607 = vpack.c.b16 %v1577, %v1576
    %v1608 = vpack.c.b16 %v1579, %v1578
    %v1609 = vpack.c.b16 %v1581, %v1580
    %v1610 = vpack.c.b16 %v1583, %v1582
    %v1611 = vpack.c.b16 %v1585, %v1584
    %v1612 = vpack.c.b16 %v1587, %v1586
    %v1613 = vpack.c.b16 %v1589, %v1588
    %v1614 = vpack.c.b16 %v1591, %v1590
    %v1615 = vpack.c.b16 %v1593, %v1592
    %v1616 = vpack.c.b16 %v1595, %v1594
    %v1617 = vpack.c.b16 %v1597, %v1596
    %v1618 = vpack.c.b16 %v1599, %v1598
    %v1619 = vpack.c.b16 %v1601, %v1600
    %v1620 = vpack.c.b16 %v1603, %v1602
    %v1621 = vpack.c.b16 %v1605, %v1604
    %1638 = vmatprep.subr.bf16.mxu0 0
    %1639 = vmatpush1.bf16.msra.mxu0 %v1310
    %1640 = vmatprep.subr.bf16.mxu0 0
    %1641 = vmatpush1.bf16.msra.mxu0 %v1311
    %1642 = vmatprep.subr.bf16.mxu0 0
    %1643 = vmatpush1.bf16.msra.mxu0 %v1312
    %1644 = vmatprep.subr.bf16.mxu0 0
    %1645 = vmatpush1.bf16.msra.mxu0 %v1313
    %1646 = vmatprep.subr.bf16.mxu0 0
    %1647 = vmatpush1.bf16.msra.mxu0 %v1314
    %1648 = vmatprep.subr.bf16.mxu0 0
    %1649 = vmatpush1.bf16.msra.mxu0 %v1315
    %1650 = vmatprep.subr.bf16.mxu0 0
    %1651 = vmatpush1.bf16.msra.mxu0 %v1316
    %1652 = vmatprep.subr.bf16.mxu0 0
    %1653 = vmatpush1.bf16.msra.mxu0 %v1317
    %1654 = vmatprep.subr.bf16.mxu0 0
    %1655 = vmatpush1.bf16.msra.mxu0 0
    %1656 = vmatprep.subr.bf16.mxu0 0
    %1657 = vmatpush1.bf16.msra.mxu0 0
    %1658 = vmatprep.subr.bf16.mxu0 0
    %1659 = vmatpush1.bf16.msra.mxu0 0
    %1660 = vmatprep.subr.bf16.mxu0 0
    %1661 = vmatpush1.bf16.msra.mxu0 0
    %1662 = vmatprep.subr.bf16.mxu0 0
    %1663 = vmatpush1.bf16.msra.mxu0 0
    %1664 = vmatprep.subr.bf16.mxu0 0
    %1665 = vmatpush1.bf16.msra.mxu0 0
    %1666 = vmatprep.subr.bf16.mxu0 0
    %1667 = vmatpush1.bf16.msra.mxu0 0
    %1668 = vmatprep.subr.bf16.mxu0 0
    %1669 = vmatpush1.bf16.msra.mxu0 0
    %1670 = vmatprep.mubr.bf16.mxu0 0
    %1671 = vmatmul.mubr.bf16.gmra.mrb[0].mxu0 %v1606
    %v1672 = vpop.f32.mrb[0].mxu0
    %v1673 = vadd.f32 %v1385, %v1672
    %v1674 = vpop.f32.mrb[0].mxu0
    %v1675 = vpop.f32.mrb[0].mxu0
    %v1676 = vadd.f32 %v1390, %v1675
    %v1677 = vpop.f32.mrb[0].mxu0
    %1678 = vmatprep.mubr.bf16.mxu0 0
    %1679 = vmatmul.mubr.bf16.gmra.mrb[0].mxu0 %v1607
    %v1680 = vpop.f32.mrb[0].mxu0
    %v1681 = vadd.f32 %v1395, %v1680
    %v1682 = vpop.f32.mrb[0].mxu0
    %v1683 = vpop.f32.mrb[0].mxu0
    %v1684 = vadd.f32 %v1400, %v1683
    %v1685 = vpop.f32.mrb[0].mxu0
    %1686 = vmatprep.mubr.bf16.mxu0 0
    %1687 = vmatmul.mubr.bf16.gmra.mrb[0].mxu0 %v1608
    %v1688 = vpop.f32.mrb[0].mxu0
    %v1689 = vadd.f32 %v1405, %v1688
    %v1690 = vpop.f32.mrb[0].mxu0
    %v1691 = vpop.f32.mrb[0].mxu0
    %v1692 = vadd.f32 %v1410, %v1691
    %v1693 = vpop.f32.mrb[0].mxu0
    %1694 = vmatprep.mubr.bf16.mxu0 0
    %1695 = vmatmul.mubr.bf16.gmra.mrb[0].mxu0 %v1609
    %v1696 = vpop.f32.mrb[0].mxu0
    %v1697 = vadd.f32 %v1415, %v1696
    %v1698 = vpop.f32.mrb[0].mxu0
    %v1699 = vpop.f32.mrb[0].mxu0
    %v1700 = vadd.f32 %v1420, %v1699
    %v1701 = vpop.f32.mrb[0].mxu0
    %1702 = vmatprep.mubr.bf16.mxu0 0
    %1703 = vmatmul.mubr.bf16.gmra.mrb[0].mxu0 %v1610
    %v1704 = vpop.f32.mrb[0].mxu0
    %v1705 = vadd.f32 %v1425, %v1704
    %v1706 = vpop.f32.mrb[0].mxu0
    %v1707 = vpop.f32.mrb[0].mxu0
    %v1708 = vadd.f32 %v1430, %v1707
    %v1709 = vpop.f32.mrb[0].mxu0
    %1710 = vmatprep.mubr.bf16.mxu0 0
    %1711 = vmatmul.mubr.bf16.gmra.mrb[0].mxu0 %v1611
    %v1712 = vpop.f32.mrb[0].mxu0
    %v1713 = vadd.f32 %v1435, %v1712
    %v1714 = vpop.f32.mrb[0].mxu0
    %v1715 = vpop.f32.mrb[0].mxu0
    %v1716 = vadd.f32 %v1440, %v1715
    %v1717 = vpop.f32.mrb[0].mxu0
    %1718 = vmatprep.mubr.bf16.mxu0 0
    %1719 = vmatmul.mubr.bf16.gmra.mrb[0].mxu0 %v1612
    %v1720 = vpop.f32.mrb[0].mxu0
    %v1721 = vadd.f32 %v1445, %v1720
    %v1722 = vpop.f32.mrb[0].mxu0
    %v1723 = vpop.f32.mrb[0].mxu0
    %v1724 = vadd.f32 %v1450, %v1723
    %v1725 = vpop.f32.mrb[0].mxu0
    %1726 = vmatprep.mubr.bf16.mxu0 0
    %1727 = vmatmul.mubr.bf16.gmra.mrb[0].mxu0 %v1613
    %v1728 = vpop.f32.mrb[0].mxu0
    %v1729 = vadd.f32 %v1455, %v1728
    %v1730 = vpop.f32.mrb[0].mxu0
    %v1731 = vpop.f32.mrb[0].mxu0
    %v1732 = vadd.f32 %v1460, %v1731
    %v1733 = vpop.f32.mrb[0].mxu0
    %1734 = vmatprep.mubr.bf16.mxu0 0
    %1735 = vmatmul.mubr.bf16.gmra.mrb[0].mxu0 %v1614
    %v1736 = vpop.f32.mrb[0].mxu0
    %v1737 = vadd.f32 %v1465, %v1736
    %v1738 = vpop.f32.mrb[0].mxu0
    %v1739 = vpop.f32.mrb[0].mxu0
    %v1740 = vadd.f32 %v1470, %v1739
    %v1741 = vpop.f32.mrb[0].mxu0
    %1742 = vmatprep.mubr.bf16.mxu0 0
    %1743 = vmatmul.mubr.bf16.gmra.mrb[0].mxu0 %v1615
    %v1744 = vpop.f32.mrb[0].mxu0
    %v1745 = vadd.f32 %v1475, %v1744
    %v1746 = vpop.f32.mrb[0].mxu0
    %v1747 = vpop.f32.mrb[0].mxu0
    %v1748 = vadd.f32 %v1480, %v1747
    %v1749 = vpop.f32.mrb[0].mxu0
    %1750 = vmatprep.mubr.bf16.mxu0 0
    %1751 = vmatmul.mubr.bf16.gmra.mrb[0].mxu0 %v1616
    %v1752 = vpop.f32.mrb[0].mxu0
    %v1753 = vadd.f32 %v1485, %v1752
    %v1754 = vpop.f32.mrb[0].mxu0
    %v1755 = vpop.f32.mrb[0].mxu0
    %v1756 = vadd.f32 %v1490, %v1755
    %v1757 = vpop.f32.mrb[0].mxu0
    %1758 = vmatprep.mubr.bf16.mxu0 0
    %1759 = vmatmul.mubr.bf16.gmra.mrb[0].mxu0 %v1617
    %v1760 = vpop.f32.mrb[0].mxu0
    %v1761 = vadd.f32 %v1495, %v1760
    %v1762 = vpop.f32.mrb[0].mxu0
    %v1763 = vpop.f32.mrb[0].mxu0
    %v1764 = vadd.f32 %v1500, %v1763
    %v1765 = vpop.f32.mrb[0].mxu0
    %1766 = vmatprep.mubr.bf16.mxu0 0
    %1767 = vmatmul.mubr.bf16.gmra.mrb[0].mxu0 %v1618
    %v1768 = vpop.f32.mrb[0].mxu0
    %v1769 = vadd.f32 %v1505, %v1768
    %v1770 = vpop.f32.mrb[0].mxu0
    %v1771 = vpop.f32.mrb[0].mxu0
    %v1772 = vadd.f32 %v1510, %v1771
    %v1773 = vpop.f32.mrb[0].mxu0
    %1774 = vmatprep.mubr.bf16.mxu0 0
    %1775 = vmatmul.mubr.bf16.gmra.mrb[0].mxu0 %v1619
    %v1776 = vpop.f32.mrb[0].mxu0
    %v1777 = vadd.f32 %v1515, %v1776
    %v1778 = vpop.f32.mrb[0].mxu0
    %v1779 = vpop.f32.mrb[0].mxu0
    %v1780 = vadd.f32 %v1520, %v1779
    %v1781 = vpop.f32.mrb[0].mxu0
    %1782 = vmatprep.mubr.bf16.mxu0 0
    %1783 = vmatmul.mubr.bf16.gmra.mrb[0].mxu0 %v1620
    %v1784 = vpop.f32.mrb[0].mxu0
    %v1785 = vadd.f32 %v1525, %v1784
    %v1786 = vpop.f32.mrb[0].mxu0
    %v1787 = vpop.f32.mrb[0].mxu0
    %v1788 = vadd.f32 %v1530, %v1787
    %v1789 = vpop.f32.mrb[0].mxu0
    %1790 = vmatprep.mubr.bf16.mxu0 0
    %1791 = vmatmul.mubr.bf16.gmra.mrb[0].mxu0 %v1621
    %v1792 = vpop.f32.mrb[0].mxu0
    %v1793 = vadd.f32 %v1535, %v1792
    %v1794 = vpop.f32.mrb[0].mxu0
    %v1795 = vpop.f32.mrb[0].mxu0
    %v1796 = vadd.f32 %v1540, %v1795
    %v1797 = vpop.f32.mrb[0].mxu0
    %1798 = vdwg.mxu0
    %v1799 = vld [vmem:[%s10] sm:$0xff]
    %v1800 = vld [vmem:[%s10 + $0x8] sm:$0xff]
    %v1801 = vld [vmem:[%s10 + $0x10] sm:$0xff]
    %v1802 = vld [vmem:[%s10 + $0x18] sm:$0xff]
    %v1803 = vld [vmem:[%s10 + $0x20] sm:$0xff]
    %v1804 = vld [vmem:[%s10 + $0x28] sm:$0xff]
    %v1805 = vld [vmem:[%s10 + $0x30] sm:$0xff]
    %v1806 = vld [vmem:[%s10 + $0x38] sm:$0xff]
    %v1807 = vld [vmem:[%s10 + $0x40] sm:$0xff]
    %v1808 = vld [vmem:[%s10 + $0x48] sm:$0xff]
    %v1809 = vld [vmem:[%s10 + $0x50] sm:$0xff]
    %v1810 = vld [vmem:[%s10 + $0x58] sm:$0xff]
    %v1811 = vld [vmem:[%s10 + $0x60] sm:$0xff]
    %v1812 = vld [vmem:[%s10 + $0x68] sm:$0xff]
    %v1813 = vld [vmem:[%s10 + $0x70] sm:$0xff]
    %v1814 = vld [vmem:[%s10 + $0x78] sm:$0xff]
    %v1831 = vunpack.c.l.b16 %v1799
    %v1832 = vunpack.c.h.b16 %v1799
    %v1833 = vunpack.c.l.b16 %v1800
    %v1834 = vunpack.c.h.b16 %v1800
    %v1835 = vunpack.c.l.b16 %v1801
    %v1836 = vunpack.c.h.b16 %v1801
    %v1837 = vunpack.c.l.b16 %v1802
    %v1838 = vunpack.c.h.b16 %v1802
    %v1839 = vunpack.c.l.b16 %v1803
    %v1840 = vunpack.c.h.b16 %v1803
    %v1841 = vunpack.c.l.b16 %v1804
    %v1842 = vunpack.c.h.b16 %v1804
    %v1843 = vunpack.c.l.b16 %v1805
    %v1844 = vunpack.c.h.b16 %v1805
    %v1845 = vunpack.c.l.b16 %v1806
    %v1846 = vunpack.c.h.b16 %v1806
    %v1847 = vunpack.c.l.b16 %v1807
    %v1848 = vunpack.c.h.b16 %v1807
    %v1849 = vunpack.c.l.b16 %v1808
    %v1850 = vunpack.c.h.b16 %v1808
    %v1851 = vunpack.c.l.b16 %v1809
    %v1852 = vunpack.c.h.b16 %v1809
    %v1853 = vunpack.c.l.b16 %v1810
    %v1854 = vunpack.c.h.b16 %v1810
    %v1855 = vunpack.c.l.b16 %v1811
    %v1856 = vunpack.c.h.b16 %v1811
    %v1857 = vunpack.c.l.b16 %v1812
    %v1858 = vunpack.c.h.b16 %v1812
    %v1859 = vunpack.c.l.b16 %v1813
    %v1860 = vunpack.c.h.b16 %v1813
    %v1861 = vunpack.c.l.b16 %v1814
    %v1862 = vunpack.c.h.b16 %v1814
    %v1863 = vpack.c.b16 %v1833, %v1831
    %v1864 = vpack.c.b16 %v1834, %v1832
    %v1865 = vpack.c.b16 %v1837, %v1835
    %v1866 = vpack.c.b16 %v1838, %v1836
    %v1867 = vpack.c.b16 %v1841, %v1839
    %v1868 = vpack.c.b16 %v1842, %v1840
    %v1869 = vpack.c.b16 %v1845, %v1843
    %v1870 = vpack.c.b16 %v1846, %v1844
    %v1871 = vpack.c.b16 %v1849, %v1847
    %v1872 = vpack.c.b16 %v1850, %v1848
    %v1873 = vpack.c.b16 %v1853, %v1851
    %v1874 = vpack.c.b16 %v1854, %v1852
    %v1875 = vpack.c.b16 %v1857, %v1855
    %v1876 = vpack.c.b16 %v1858, %v1856
    %v1877 = vpack.c.b16 %v1861, %v1859
    %v1878 = vpack.c.b16 %v1862, %v1860
    %1895 = vmatprep.subr.bf16.mxu0 0
    %1896 = vmatpush1.bf16.msra.mxu0 %v97
    %1897 = vmatprep.subr.bf16.mxu0 0
    %1898 = vmatpush1.bf16.msra.mxu0 %v98
    %1899 = vmatprep.subr.bf16.mxu0 0
    %1900 = vmatpush1.bf16.msra.mxu0 %v99
    %1901 = vmatprep.subr.bf16.mxu0 0
    %1902 = vmatpush1.bf16.msra.mxu0 %v100
    %1903 = vmatprep.subr.bf16.mxu0 0
    %1904 = vmatpush1.bf16.msra.mxu0 %v101
    %1905 = vmatprep.subr.bf16.mxu0 0
    %1906 = vmatpush1.bf16.msra.mxu0 %v102
    %1907 = vmatprep.subr.bf16.mxu0 0
    %1908 = vmatpush1.bf16.msra.mxu0 %v103
    %1909 = vmatprep.subr.bf16.mxu0 0
    %1910 = vmatpush1.bf16.msra.mxu0 %v104
    %1911 = vmatprep.subr.bf16.mxu0 0
    %1912 = vmatpush1.bf16.msra.mxu0 %v105
    %1913 = vmatprep.subr.bf16.mxu0 0
    %1914 = vmatpush1.bf16.msra.mxu0 %v106
    %1915 = vmatprep.subr.bf16.mxu0 0
    %1916 = vmatpush1.bf16.msra.mxu0 %v107
    %1917 = vmatprep.subr.bf16.mxu0 0
    %1918 = vmatpush1.bf16.msra.mxu0 %v108
    %1919 = vmatprep.subr.bf16.mxu0 0
    %1920 = vmatpush1.bf16.msra.mxu0 %v109
    %1921 = vmatprep.subr.bf16.mxu0 0
    %1922 = vmatpush1.bf16.msra.mxu0 %v110
    %1923 = vmatprep.subr.bf16.mxu0 0
    %1924 = vmatpush1.bf16.msra.mxu0 %v111
    %1925 = vmatprep.subr.bf16.mxu0 0
    %1926 = vmatpush1.bf16.msra.mxu0 %v112
    %1927 = vmatprep.mubr.bf16.mxu0 %v1864
    %1928 = vmatmul.mubr.bf16.gmra.mrb[0].mxu0 %v1863
    %v1929 = vpop.f32.mrb[0].mxu0
    %v1930 = vadd.f32 0.0, %v1929
    %v1931 = vpop.f32.mrb[0].mxu0
    %v1932 = vpop.f32.mrb[0].mxu0
    %v1933 = vadd.f32 0.0, %v1932
    %v1934 = vpop.f32.mrb[0].mxu0
    %1935 = vmatprep.mubr.bf16.mxu0 %v1866
    %1936 = vmatmul.mubr.bf16.gmra.mrb[0].mxu0 %v1865
    %v1937 = vpop.f32.mrb[0].mxu0
    %v1938 = vadd.f32 0.0, %v1937
    %v1939 = vpop.f32.mrb[0].mxu0
    %v1940 = vpop.f32.mrb[0].mxu0
    %v1941 = vadd.f32 0.0, %v1940
    %v1942 = vpop.f32.mrb[0].mxu0
    %1943 = vmatprep.mubr.bf16.mxu0 %v1868
    %1944 = vmatmul.mubr.bf16.gmra.mrb[0].mxu0 %v1867
    %v1945 = vpop.f32.mrb[0].mxu0
    %v1946 = vadd.f32 0.0, %v1945
    %v1947 = vpop.f32.mrb[0].mxu0
    %v1948 = vpop.f32.mrb[0].mxu0
    %v1949 = vadd.f32 0.0, %v1948
    %v1950 = vpop.f32.mrb[0].mxu0
    %1951 = vmatprep.mubr.bf16.mxu0 %v1870
    %1952 = vmatmul.mubr.bf16.gmra.mrb[0].mxu0 %v1869
    %v1953 = vpop.f32.mrb[0].mxu0
    %v1954 = vadd.f32 0.0, %v1953
    %v1955 = vpop.f32.mrb[0].mxu0
    %v1956 = vpop.f32.mrb[0].mxu0
    %v1957 = vadd.f32 0.0, %v1956
    %v1958 = vpop.f32.mrb[0].mxu0
    %1959 = vmatprep.mubr.bf16.mxu0 %v1872
    %1960 = vmatmul.mubr.bf16.gmra.mrb[0].mxu0 %v1871
    %v1961 = vpop.f32.mrb[0].mxu0
    %v1962 = vadd.f32 0.0, %v1961
    %v1963 = vpop.f32.mrb[0].mxu0
    %v1964 = vpop.f32.mrb[0].mxu0
    %v1965 = vadd.f32 0.0, %v1964
    %v1966 = vpop.f32.mrb[0].mxu0
    %1967 = vmatprep.mubr.bf16.mxu0 %v1874
    %1968 = vmatmul.mubr.bf16.gmra.mrb[0].mxu0 %v1873
    %v1969 = vpop.f32.mrb[0].mxu0
    %v1970 = vadd.f32 0.0, %v1969
    %v1971 = vpop.f32.mrb[0].mxu0
    %v1972 = vpop.f32.mrb[0].mxu0
    %v1973 = vadd.f32 0.0, %v1972
    %v1974 = vpop.f32.mrb[0].mxu0
    %1975 = vmatprep.mubr.bf16.mxu0 %v1876
    %1976 = vmatmul.mubr.bf16.gmra.mrb[0].mxu0 %v1875
    %v1977 = vpop.f32.mrb[0].mxu0
    %v1978 = vadd.f32 0.0, %v1977
    %v1979 = vpop.f32.mrb[0].mxu0
    %v1980 = vpop.f32.mrb[0].mxu0
    %v1981 = vadd.f32 0.0, %v1980
    %v1982 = vpop.f32.mrb[0].mxu0
    %1983 = vmatprep.mubr.bf16.mxu0 %v1878
    %1984 = vmatmul.mubr.bf16.gmra.mrb[0].mxu0 %v1877
    %v1985 = vpop.f32.mrb[0].mxu0
    %v1986 = vadd.f32 0.0, %v1985
    %v1987 = vpop.f32.mrb[0].mxu0
    %v1988 = vpop.f32.mrb[0].mxu0
    %v1989 = vadd.f32 0.0, %v1988
    %v1990 = vpop.f32.mrb[0].mxu0
    %1991 = vdwg.mxu0
    %v1992 = vld [vmem:[%s1] sm:$0xf]
    %v1993 = vld [vmem:[%s1 + $0x4] sm:$0xf]
    %v1994 = vld [vmem:[%s1 + $0x8] sm:$0xf]
    %v1995 = vld [vmem:[%s1 + $0xc] sm:$0xf]
    %v1996 = vld [vmem:[%s1 + $0x10] sm:$0xf]
    %v1997 = vld [vmem:[%s1 + $0x14] sm:$0xf]
    %v1998 = vld [vmem:[%s1 + $0x18] sm:$0xf]
    %v1999 = vld [vmem:[%s1 + $0x1c] sm:$0xf]
    %v2000 = vld [vmem:[%s1 + $0x20] sm:$0xf]
    %v2001 = vld [vmem:[%s1 + $0x24] sm:$0xf]
    %v2002 = vld [vmem:[%s1 + $0x28] sm:$0xf]
    %v2003 = vld [vmem:[%s1 + $0x2c] sm:$0xf]
    %v2004 = vld [vmem:[%s1 + $0x30] sm:$0xf]
    %v2005 = vld [vmem:[%s1 + $0x34] sm:$0xf]
    %v2006 = vld [vmem:[%s1 + $0x38] sm:$0xf]
    %v2007 = vld [vmem:[%s1 + $0x3c] sm:$0xf]
    %v2008 = vld [vmem:[%s1 + $0x40] sm:$0xf]
    %v2009 = vld [vmem:[%s1 + $0x44] sm:$0xf]
    %v2010 = vld [vmem:[%s1 + $0x48] sm:$0xf]
    %v2011 = vld [vmem:[%s1 + $0x4c] sm:$0xf]
    %v2012 = vld [vmem:[%s1 + $0x50] sm:$0xf]
    %v2013 = vld [vmem:[%s1 + $0x54] sm:$0xf]
    %v2014 = vld [vmem:[%s1 + $0x58] sm:$0xf]
    %v2015 = vld [vmem:[%s1 + $0x5c] sm:$0xf]
    %v2016 = vld [vmem:[%s1 + $0x60] sm:$0xf]
    %v2017 = vld [vmem:[%s1 + $0x64] sm:$0xf]
    %v2018 = vld [vmem:[%s1 + $0x68] sm:$0xf]
    %v2019 = vld [vmem:[%s1 + $0x6c] sm:$0xf]
    %v2020 = vld [vmem:[%s1 + $0x70] sm:$0xf]
    %v2021 = vld [vmem:[%s1 + $0x74] sm:$0xf]
    %v2022 = vld [vmem:[%s1 + $0x78] sm:$0xf]
    %v2023 = vld [vmem:[%s1 + $0x7c] sm:$0xf]
    %s2024 = scalar_lea.vmem %s1, 128
    %v2025 = vld [vmem:[%s2024] sm:$0xf]
    %v2026 = vld [vmem:[%s2024 + $0x4] sm:$0xf]
    %v2027 = vld [vmem:[%s2024 + $0x8] sm:$0xf]
    %v2028 = vld [vmem:[%s2024 + $0xc] sm:$0xf]
    %v2029 = vld [vmem:[%s2024 + $0x10] sm:$0xf]
    %v2030 = vld [vmem:[%s2024 + $0x14] sm:$0xf]
    %v2031 = vld [vmem:[%s2024 + $0x18] sm:$0xf]
    %v2032 = vld [vmem:[%s2024 + $0x1c] sm:$0xf]
    %v2033 = vld [vmem:[%s2024 + $0x20] sm:$0xf]
    %v2034 = vld [vmem:[%s2024 + $0x24] sm:$0xf]
    %v2035 = vld [vmem:[%s2024 + $0x28] sm:$0xf]
    %v2036 = vld [vmem:[%s2024 + $0x2c] sm:$0xf]
    %v2037 = vld [vmem:[%s2024 + $0x30] sm:$0xf]
    %v2038 = vld [vmem:[%s2024 + $0x34] sm:$0xf]
    %v2039 = vld [vmem:[%s2024 + $0x38] sm:$0xf]
    %v2040 = vld [vmem:[%s2024 + $0x3c] sm:$0xf]
    %v2041 = vld [vmem:[%s2024 + $0x40] sm:$0xf]
    %v2042 = vld [vmem:[%s2024 + $0x44] sm:$0xf]
    %v2043 = vld [vmem:[%s2024 + $0x48] sm:$0xf]
    %v2044 = vld [vmem:[%s2024 + $0x4c] sm:$0xf]
    %v2045 = vld [vmem:[%s2024 + $0x50] sm:$0xf]
    %v2046 = vld [vmem:[%s2024 + $0x54] sm:$0xf]
    %v2047 = vld [vmem:[%s2024 + $0x58] sm:$0xf]
    %v2048 = vld [vmem:[%s2024 + $0x5c] sm:$0xf]
    %v2049 = vld [vmem:[%s2024 + $0x60] sm:$0xf]
    %v2050 = vld [vmem:[%s2024 + $0x64] sm:$0xf]
    %v2051 = vld [vmem:[%s2024 + $0x68] sm:$0xf]
    %v2052 = vld [vmem:[%s2024 + $0x6c] sm:$0xf]
    %v2053 = vld [vmem:[%s2024 + $0x70] sm:$0xf]
    %v2054 = vld [vmem:[%s2024 + $0x74] sm:$0xf]
    %v2055 = vld [vmem:[%s2024 + $0x78] sm:$0xf]
    %v2056 = vld [vmem:[%s2024 + $0x7c] sm:$0xf]
    %s2057 = scalar_lea.vmem %s1, 256
    %v2058 = vld [vmem:[%s2057] sm:$0xf]
    %v2059 = vld [vmem:[%s2057 + $0x4] sm:$0xf]
    %v2060 = vld [vmem:[%s2057 + $0x8] sm:$0xf]
    %v2061 = vld [vmem:[%s2057 + $0xc] sm:$0xf]
    %v2062 = vld [vmem:[%s2057 + $0x10] sm:$0xf]
    %v2063 = vld [vmem:[%s2057 + $0x14] sm:$0xf]
    %v2064 = vld [vmem:[%s2057 + $0x18] sm:$0xf]
    %v2065 = vld [vmem:[%s2057 + $0x1c] sm:$0xf]
    %v2066 = vld [vmem:[%s2057 + $0x20] sm:$0xf]
    %v2067 = vld [vmem:[%s2057 + $0x24] sm:$0xf]
    %v2068 = vld [vmem:[%s2057 + $0x28] sm:$0xf]
    %v2069 = vld [vmem:[%s2057 + $0x2c] sm:$0xf]
    %v2070 = vld [vmem:[%s2057 + $0x30] sm:$0xf]
    %v2071 = vld [vmem:[%s2057 + $0x34] sm:$0xf]
    %v2072 = vld [vmem:[%s2057 + $0x38] sm:$0xf]
    %v2073 = vld [vmem:[%s2057 + $0x3c] sm:$0xf]
    %v2074 = vld [vmem:[%s2057 + $0x40] sm:$0xf]
    %v2075 = vld [vmem:[%s2057 + $0x44] sm:$0xf]
    %v2076 = vld [vmem:[%s2057 + $0x48] sm:$0xf]
    %v2077 = vld [vmem:[%s2057 + $0x4c] sm:$0xf]
    %v2078 = vld [vmem:[%s2057 + $0x50] sm:$0xf]
    %v2079 = vld [vmem:[%s2057 + $0x54] sm:$0xf]
    %v2080 = vld [vmem:[%s2057 + $0x58] sm:$0xf]
    %v2081 = vld [vmem:[%s2057 + $0x5c] sm:$0xf]
    %v2082 = vld [vmem:[%s2057 + $0x60] sm:$0xf]
    %v2083 = vld [vmem:[%s2057 + $0x64] sm:$0xf]
    %v2084 = vld [vmem:[%s2057 + $0x68] sm:$0xf]
    %v2085 = vld [vmem:[%s2057 + $0x6c] sm:$0xf]
    %v2086 = vld [vmem:[%s2057 + $0x70] sm:$0xf]
    %v2087 = vld [vmem:[%s2057 + $0x74] sm:$0xf]
    %v2088 = vld [vmem:[%s2057 + $0x78] sm:$0xf]
    %v2089 = vld [vmem:[%s2057 + $0x7c] sm:$0xf]
    %v2122 = vunpack.c.l.b16 %v1992
    %v2123 = vunpack.c.l.b16 %v1993
    %v2124 = vunpack.c.l.b16 %v1994
    %v2125 = vunpack.c.l.b16 %v1995
    %v2126 = vunpack.c.l.b16 %v1996
    %v2127 = vunpack.c.l.b16 %v1997
    %v2128 = vunpack.c.l.b16 %v1998
    %v2129 = vunpack.c.l.b16 %v1999
    %v2130 = vunpack.c.l.b16 %v2000
    %v2131 = vunpack.c.l.b16 %v2001
    %v2132 = vunpack.c.l.b16 %v2002
    %v2133 = vunpack.c.l.b16 %v2003
    %v2134 = vunpack.c.l.b16 %v2004
    %v2135 = vunpack.c.l.b16 %v2005
    %v2136 = vunpack.c.l.b16 %v2006
    %v2137 = vunpack.c.l.b16 %v2007
    %v2138 = vunpack.c.l.b16 %v2008
    %v2139 = vunpack.c.l.b16 %v2009
    %v2140 = vunpack.c.l.b16 %v2010
    %v2141 = vunpack.c.l.b16 %v2011
    %v2142 = vunpack.c.l.b16 %v2012
    %v2143 = vunpack.c.l.b16 %v2013
    %v2144 = vunpack.c.l.b16 %v2014
    %v2145 = vunpack.c.l.b16 %v2015
    %v2146 = vunpack.c.l.b16 %v2016
    %v2147 = vunpack.c.l.b16 %v2017
    %v2148 = vunpack.c.l.b16 %v2018
    %v2149 = vunpack.c.l.b16 %v2019
    %v2150 = vunpack.c.l.b16 %v2020
    %v2151 = vunpack.c.l.b16 %v2021
    %v2152 = vunpack.c.l.b16 %v2022
    %v2153 = vunpack.c.l.b16 %v2023
    %v2154 = vpack.c.b16 %v2123, %v2122
    %v2155 = vpack.c.b16 %v2125, %v2124
    %v2156 = vpack.c.b16 %v2127, %v2126
    %v2157 = vpack.c.b16 %v2129, %v2128
    %v2158 = vpack.c.b16 %v2131, %v2130
    %v2159 = vpack.c.b16 %v2133, %v2132
    %v2160 = vpack.c.b16 %v2135, %v2134
    %v2161 = vpack.c.b16 %v2137, %v2136
    %v2162 = vpack.c.b16 %v2139, %v2138
    %v2163 = vpack.c.b16 %v2141, %v2140
    %v2164 = vpack.c.b16 %v2143, %v2142
    %v2165 = vpack.c.b16 %v2145, %v2144
    %v2166 = vpack.c.b16 %v2147, %v2146
    %v2167 = vpack.c.b16 %v2149, %v2148
    %v2168 = vpack.c.b16 %v2151, %v2150
    %v2169 = vpack.c.b16 %v2153, %v2152
    %v2218 = vunpack.c.l.b16 %v2025
    %v2219 = vunpack.c.l.b16 %v2026
    %v2220 = vunpack.c.l.b16 %v2027
    %v2221 = vunpack.c.l.b16 %v2028
    %v2222 = vunpack.c.l.b16 %v2029
    %v2223 = vunpack.c.l.b16 %v2030
    %v2224 = vunpack.c.l.b16 %v2031
    %v2225 = vunpack.c.l.b16 %v2032
    %v2226 = vunpack.c.l.b16 %v2033
    %v2227 = vunpack.c.l.b16 %v2034
    %v2228 = vunpack.c.l.b16 %v2035
    %v2229 = vunpack.c.l.b16 %v2036
    %v2230 = vunpack.c.l.b16 %v2037
    %v2231 = vunpack.c.l.b16 %v2038
    %v2232 = vunpack.c.l.b16 %v2039
    %v2233 = vunpack.c.l.b16 %v2040
    %v2234 = vunpack.c.l.b16 %v2041
    %v2235 = vunpack.c.l.b16 %v2042
    %v2236 = vunpack.c.l.b16 %v2043
    %v2237 = vunpack.c.l.b16 %v2044
    %v2238 = vunpack.c.l.b16 %v2045
    %v2239 = vunpack.c.l.b16 %v2046
    %v2240 = vunpack.c.l.b16 %v2047
    %v2241 = vunpack.c.l.b16 %v2048
    %v2242 = vunpack.c.l.b16 %v2049
    %v2243 = vunpack.c.l.b16 %v2050
    %v2244 = vunpack.c.l.b16 %v2051
    %v2245 = vunpack.c.l.b16 %v2052
    %v2246 = vunpack.c.l.b16 %v2053
    %v2247 = vunpack.c.l.b16 %v2054
    %v2248 = vunpack.c.l.b16 %v2055
    %v2249 = vunpack.c.l.b16 %v2056
    %v2250 = vpack.c.b16 %v2219, %v2218
    %v2251 = vpack.c.b16 %v2221, %v2220
    %v2252 = vpack.c.b16 %v2223, %v2222
    %v2253 = vpack.c.b16 %v2225, %v2224
    %v2254 = vpack.c.b16 %v2227, %v2226
    %v2255 = vpack.c.b16 %v2229, %v2228
    %v2256 = vpack.c.b16 %v2231, %v2230
    %v2257 = vpack.c.b16 %v2233, %v2232
    %v2258 = vpack.c.b16 %v2235, %v2234
    %v2259 = vpack.c.b16 %v2237, %v2236
    %v2260 = vpack.c.b16 %v2239, %v2238
    %v2261 = vpack.c.b16 %v2241, %v2240
    %v2262 = vpack.c.b16 %v2243, %v2242
    %v2263 = vpack.c.b16 %v2245, %v2244
    %v2264 = vpack.c.b16 %v2247, %v2246
    %v2265 = vpack.c.b16 %v2249, %v2248
    %v2314 = vunpack.c.l.b16 %v2058
    %v2315 = vunpack.c.l.b16 %v2059
    %v2316 = vunpack.c.l.b16 %v2060
    %v2317 = vunpack.c.l.b16 %v2061
    %v2318 = vunpack.c.l.b16 %v2062
    %v2319 = vunpack.c.l.b16 %v2063
    %v2320 = vunpack.c.l.b16 %v2064
    %v2321 = vunpack.c.l.b16 %v2065
    %v2322 = vunpack.c.l.b16 %v2066
    %v2323 = vunpack.c.l.b16 %v2067
    %v2324 = vunpack.c.l.b16 %v2068
    %v2325 = vunpack.c.l.b16 %v2069
    %v2326 = vunpack.c.l.b16 %v2070
    %v2327 = vunpack.c.l.b16 %v2071
    %v2328 = vunpack.c.l.b16 %v2072
    %v2329 = vunpack.c.l.b16 %v2073
    %v2330 = vunpack.c.l.b16 %v2074
    %v2331 = vunpack.c.l.b16 %v2075
    %v2332 = vunpack.c.l.b16 %v2076
    %v2333 = vunpack.c.l.b16 %v2077
    %v2334 = vunpack.c.l.b16 %v2078
    %v2335 = vunpack.c.l.b16 %v2079
    %v2336 = vunpack.c.l.b16 %v2080
    %v2337 = vunpack.c.l.b16 %v2081
    %v2338 = vunpack.c.l.b16 %v2082
    %v2339 = vunpack.c.l.b16 %v2083
    %v2340 = vunpack.c.l.b16 %v2084
    %v2341 = vunpack.c.l.b16 %v2085
    %v2342 = vunpack.c.l.b16 %v2086
    %v2343 = vunpack.c.l.b16 %v2087
    %v2344 = vunpack.c.l.b16 %v2088
    %v2345 = vunpack.c.l.b16 %v2089
    %v2346 = vpack.c.b16 %v2315, %v2314
    %v2347 = vpack.c.b16 %v2317, %v2316
    %v2348 = vpack.c.b16 %v2319, %v2318
    %v2349 = vpack.c.b16 %v2321, %v2320
    %v2350 = vpack.c.b16 %v2323, %v2322
    %v2351 = vpack.c.b16 %v2325, %v2324
    %v2352 = vpack.c.b16 %v2327, %v2326
    %v2353 = vpack.c.b16 %v2329, %v2328
    %v2354 = vpack.c.b16 %v2331, %v2330
    %v2355 = vpack.c.b16 %v2333, %v2332
    %v2356 = vpack.c.b16 %v2335, %v2334
    %v2357 = vpack.c.b16 %v2337, %v2336
    %v2358 = vpack.c.b16 %v2339, %v2338
    %v2359 = vpack.c.b16 %v2341, %v2340
    %v2360 = vpack.c.b16 %v2343, %v2342
    %v2361 = vpack.c.b16 %v2345, %v2344
    %v2378 = vld [vmem:[%s9] sm:$0xff]
    %v2379 = vld [vmem:[%s9 + $0x8] sm:$0xff]
    %v2380 = vld [vmem:[%s9 + $0x10] sm:$0xff]
    %v2381 = vld [vmem:[%s9 + $0x18] sm:$0xff]
    %v2382 = vld [vmem:[%s9 + $0x20] sm:$0xff]
    %v2383 = vld [vmem:[%s9 + $0x28] sm:$0xff]
    %v2384 = vld [vmem:[%s9 + $0x30] sm:$0xff]
    %v2385 = vld [vmem:[%s9 + $0x38] sm:$0xff]
    %v2386 = vld [vmem:[%s9 + $0x40] sm:$0xff]
    %v2387 = vld [vmem:[%s9 + $0x48] sm:$0xff]
    %v2388 = vld [vmem:[%s9 + $0x50] sm:$0xff]
    %v2389 = vld [vmem:[%s9 + $0x58] sm:$0xff]
    %v2390 = vld [vmem:[%s9 + $0x60] sm:$0xff]
    %v2391 = vld [vmem:[%s9 + $0x68] sm:$0xff]
    %v2392 = vld [vmem:[%s9 + $0x70] sm:$0xff]
    %v2393 = vld [vmem:[%s9 + $0x78] sm:$0xff]
    %v2410 = vunpack.c.l.b16 %v2378
    %v2411 = vunpack.c.h.b16 %v2378
    %v2412 = vunpack.c.l.b16 %v2379
    %v2413 = vunpack.c.h.b16 %v2379
    %v2414 = vunpack.c.l.b16 %v2380
    %v2415 = vunpack.c.h.b16 %v2380
    %v2416 = vunpack.c.l.b16 %v2381
    %v2417 = vunpack.c.h.b16 %v2381
    %v2418 = vunpack.c.l.b16 %v2382
    %v2419 = vunpack.c.h.b16 %v2382
    %v2420 = vunpack.c.l.b16 %v2383
    %v2421 = vunpack.c.h.b16 %v2383
    %v2422 = vunpack.c.l.b16 %v2384
    %v2423 = vunpack.c.h.b16 %v2384
    %v2424 = vunpack.c.l.b16 %v2385
    %v2425 = vunpack.c.h.b16 %v2385
    %v2426 = vunpack.c.l.b16 %v2386
    %v2427 = vunpack.c.h.b16 %v2386
    %v2428 = vunpack.c.l.b16 %v2387
    %v2429 = vunpack.c.h.b16 %v2387
    %v2430 = vunpack.c.l.b16 %v2388
    %v2431 = vunpack.c.h.b16 %v2388
    %v2432 = vunpack.c.l.b16 %v2389
    %v2433 = vunpack.c.h.b16 %v2389
    %v2434 = vunpack.c.l.b16 %v2390
    %v2435 = vunpack.c.h.b16 %v2390
    %v2436 = vunpack.c.l.b16 %v2391
    %v2437 = vunpack.c.h.b16 %v2391
    %v2438 = vunpack.c.l.b16 %v2392
    %v2439 = vunpack.c.h.b16 %v2392
    %v2440 = vunpack.c.l.b16 %v2393
    %v2441 = vunpack.c.h.b16 %v2393
    %v2442 = vpack.c.b16 %v2412, %v2410
    %v2443 = vpack.c.b16 %v2413, %v2411
    %v2444 = vpack.c.b16 %v2416, %v2414
    %v2445 = vpack.c.b16 %v2417, %v2415
    %v2446 = vpack.c.b16 %v2420, %v2418
    %v2447 = vpack.c.b16 %v2421, %v2419
    %v2448 = vpack.c.b16 %v2424, %v2422
    %v2449 = vpack.c.b16 %v2425, %v2423
    %v2450 = vpack.c.b16 %v2428, %v2426
    %v2451 = vpack.c.b16 %v2429, %v2427
    %v2452 = vpack.c.b16 %v2432, %v2430
    %v2453 = vpack.c.b16 %v2433, %v2431
    %v2454 = vpack.c.b16 %v2436, %v2434
    %v2455 = vpack.c.b16 %v2437, %v2435
    %v2456 = vpack.c.b16 %v2440, %v2438
    %v2457 = vpack.c.b16 %v2441, %v2439
    %2474 = vmatprep.subr.bf16.mxu0 %v2250
    %2475 = vmatpush1.bf16.msra.mxu0 %v2154
    %2476 = vmatprep.subr.bf16.mxu0 %v2251
    %2477 = vmatpush1.bf16.msra.mxu0 %v2155
    %2478 = vmatprep.subr.bf16.mxu0 %v2252
    %2479 = vmatpush1.bf16.msra.mxu0 %v2156
    %2480 = vmatprep.subr.bf16.mxu0 %v2253
    %2481 = vmatpush1.bf16.msra.mxu0 %v2157
    %2482 = vmatprep.subr.bf16.mxu0 %v2254
    %2483 = vmatpush1.bf16.msra.mxu0 %v2158
    %2484 = vmatprep.subr.bf16.mxu0 %v2255
    %2485 = vmatpush1.bf16.msra.mxu0 %v2159
    %2486 = vmatprep.subr.bf16.mxu0 %v2256
    %2487 = vmatpush1.bf16.msra.mxu0 %v2160
    %2488 = vmatprep.subr.bf16.mxu0 %v2257
    %2489 = vmatpush1.bf16.msra.mxu0 %v2161
    %2490 = vmatprep.subr.bf16.mxu0 %v2258
    %2491 = vmatpush1.bf16.msra.mxu0 %v2162
    %2492 = vmatprep.subr.bf16.mxu0 %v2259
    %2493 = vmatpush1.bf16.msra.mxu0 %v2163
    %2494 = vmatprep.subr.bf16.mxu0 %v2260
    %2495 = vmatpush1.bf16.msra.mxu0 %v2164
    %2496 = vmatprep.subr.bf16.mxu0 %v2261
    %2497 = vmatpush1.bf16.msra.mxu0 %v2165
    %2498 = vmatprep.subr.bf16.mxu0 %v2262
    %2499 = vmatpush1.bf16.msra.mxu0 %v2166
    %2500 = vmatprep.subr.bf16.mxu0 %v2263
    %2501 = vmatpush1.bf16.msra.mxu0 %v2167
    %2502 = vmatprep.subr.bf16.mxu0 %v2264
    %2503 = vmatpush1.bf16.msra.mxu0 %v2168
    %2504 = vmatprep.subr.bf16.mxu0 %v2265
    %2505 = vmatpush1.bf16.msra.mxu0 %v2169
    %2506 = vmatprep.mubr.bf16.mxu0 %v2443
    %2507 = vmatmul.mubr.bf16.gmra.mrb[0].mxu0 %v2442
    %v2508 = vpop.f32.mrb[0].mxu0
    %v2509 = vadd.f32 %v1930, %v2508
    %v2510 = vpop.f32.mrb[0].mxu0
    %v2511 = vadd.f32 %v1930, %v2510
    %v2512 = vpop.f32.mrb[0].mxu0
    %v2513 = vadd.f32 %v1933, %v2512
    %v2514 = vpop.f32.mrb[0].mxu0
    %v2515 = vadd.f32 %v1933, %v2514
    %2516 = vmatprep.mubr.bf16.mxu0 %v2445
    %2517 = vmatmul.mubr.bf16.gmra.mrb[0].mxu0 %v2444
    %v2518 = vpop.f32.mrb[0].mxu0
    %v2519 = vadd.f32 %v1938, %v2518
    %v2520 = vpop.f32.mrb[0].mxu0
    %v2521 = vadd.f32 %v1938, %v2520
    %v2522 = vpop.f32.mrb[0].mxu0
    %v2523 = vadd.f32 %v1941, %v2522
    %v2524 = vpop.f32.mrb[0].mxu0
    %v2525 = vadd.f32 %v1941, %v2524
    %2526 = vmatprep.mubr.bf16.mxu0 %v2447
    %2527 = vmatmul.mubr.bf16.gmra.mrb[0].mxu0 %v2446
    %v2528 = vpop.f32.mrb[0].mxu0
    %v2529 = vadd.f32 %v1946, %v2528
    %v2530 = vpop.f32.mrb[0].mxu0
    %v2531 = vadd.f32 %v1946, %v2530
    %v2532 = vpop.f32.mrb[0].mxu0
    %v2533 = vadd.f32 %v1949, %v2532
    %v2534 = vpop.f32.mrb[0].mxu0
    %v2535 = vadd.f32 %v1949, %v2534
    %2536 = vmatprep.mubr.bf16.mxu0 %v2449
    %2537 = vmatmul.mubr.bf16.gmra.mrb[0].mxu0 %v2448
    %v2538 = vpop.f32.mrb[0].mxu0
    %v2539 = vadd.f32 %v1954, %v2538
    %v2540 = vpop.f32.mrb[0].mxu0
    %v2541 = vadd.f32 %v1954, %v2540
    %v2542 = vpop.f32.mrb[0].mxu0
    %v2543 = vadd.f32 %v1957, %v2542
    %v2544 = vpop.f32.mrb[0].mxu0
    %v2545 = vadd.f32 %v1957, %v2544
    %2546 = vmatprep.mubr.bf16.mxu0 %v2451
    %2547 = vmatmul.mubr.bf16.gmra.mrb[0].mxu0 %v2450
    %v2548 = vpop.f32.mrb[0].mxu0
    %v2549 = vadd.f32 %v1962, %v2548
    %v2550 = vpop.f32.mrb[0].mxu0
    %v2551 = vadd.f32 %v1962, %v2550
    %v2552 = vpop.f32.mrb[0].mxu0
    %v2553 = vadd.f32 %v1965, %v2552
    %v2554 = vpop.f32.mrb[0].mxu0
    %v2555 = vadd.f32 %v1965, %v2554
    %2556 = vmatprep.mubr.bf16.mxu0 %v2453
    %2557 = vmatmul.mubr.bf16.gmra.mrb[0].mxu0 %v2452
    %v2558 = vpop.f32.mrb[0].mxu0
    %v2559 = vadd.f32 %v1970, %v2558
    %v2560 = vpop.f32.mrb[0].mxu0
    %v2561 = vadd.f32 %v1970, %v2560
    %v2562 = vpop.f32.mrb[0].mxu0
    %v2563 = vadd.f32 %v1973, %v2562
    %v2564 = vpop.f32.mrb[0].mxu0
    %v2565 = vadd.f32 %v1973, %v2564
    %2566 = vmatprep.mubr.bf16.mxu0 %v2455
    %2567 = vmatmul.mubr.bf16.gmra.mrb[0].mxu0 %v2454
    %v2568 = vpop.f32.mrb[0].mxu0
    %v2569 = vadd.f32 %v1978, %v2568
    %v2570 = vpop.f32.mrb[0].mxu0
    %v2571 = vadd.f32 %v1978, %v2570
    %v2572 = vpop.f32.mrb[0].mxu0
    %v2573 = vadd.f32 %v1981, %v2572
    %v2574 = vpop.f32.mrb[0].mxu0
    %v2575 = vadd.f32 %v1981, %v2574
    %2576 = vmatprep.mubr.bf16.mxu0 %v2457
    %2577 = vmatmul.mubr.bf16.gmra.mrb[0].mxu0 %v2456
    %v2578 = vpop.f32.mrb[0].mxu0
    %v2579 = vadd.f32 %v1986, %v2578
    %v2580 = vpop.f32.mrb[0].mxu0
    %v2581 = vadd.f32 %v1986, %v2580
    %v2582 = vpop.f32.mrb[0].mxu0
    %v2583 = vadd.f32 %v1989, %v2582
    %v2584 = vpop.f32.mrb[0].mxu0
    %v2585 = vadd.f32 %v1989, %v2584
    %2586 = vdwg.mxu0
    %2587 = vmatprep.subr.bf16.mxu0 0
    %2588 = vmatpush1.bf16.msra.mxu0 %v2346
    %2589 = vmatprep.subr.bf16.mxu0 0
    %2590 = vmatpush1.bf16.msra.mxu0 %v2347
    %2591 = vmatprep.subr.bf16.mxu0 0
    %2592 = vmatpush1.bf16.msra.mxu0 %v2348
    %2593 = vmatprep.subr.bf16.mxu0 0
    %2594 = vmatpush1.bf16.msra.mxu0 %v2349
    %2595 = vmatprep.subr.bf16.mxu0 0
    %2596 = vmatpush1.bf16.msra.mxu0 %v2350
    %2597 = vmatprep.subr.bf16.mxu0 0
    %2598 = vmatpush1.bf16.msra.mxu0 %v2351
    %2599 = vmatprep.subr.bf16.mxu0 0
    %2600 = vmatpush1.bf16.msra.mxu0 %v2352
    %2601 = vmatprep.subr.bf16.mxu0 0
    %2602 = vmatpush1.bf16.msra.mxu0 %v2353
    %2603 = vmatprep.subr.bf16.mxu0 0
    %2604 = vmatpush1.bf16.msra.mxu0 %v2354
    %2605 = vmatprep.subr.bf16.mxu0 0
    %2606 = vmatpush1.bf16.msra.mxu0 %v2355
    %2607 = vmatprep.subr.bf16.mxu0 0
    %2608 = vmatpush1.bf16.msra.mxu0 %v2356
    %2609 = vmatprep.subr.bf16.mxu0 0
    %2610 = vmatpush1.bf16.msra.mxu0 %v2357
    %2611 = vmatprep.subr.bf16.mxu0 0
    %2612 = vmatpush1.bf16.msra.mxu0 %v2358
    %2613 = vmatprep.subr.bf16.mxu0 0
    %2614 = vmatpush1.bf16.msra.mxu0 %v2359
    %2615 = vmatprep.subr.bf16.mxu0 0
    %2616 = vmatpush1.bf16.msra.mxu0 %v2360
    %2617 = vmatprep.subr.bf16.mxu0 0
    %2618 = vmatpush1.bf16.msra.mxu0 %v2361
    %2619 = vmatprep.mubr.bf16.mxu0 %v2443
    %2620 = vmatmul.mubr.bf16.gmra.mrb[0].mxu0 %v2442
    %v2621 = vpop.f32.mrb[0].mxu0
    %v2622 = vadd.f32 %v1930, %v2621
    %v2623 = vpop.f32.mrb[0].mxu0
    %v2624 = vpop.f32.mrb[0].mxu0
    %v2625 = vadd.f32 %v1933, %v2624
    %v2626 = vpop.f32.mrb[0].mxu0
    %2627 = vmatprep.mubr.bf16.mxu0 %v2445
    %2628 = vmatmul.mubr.bf16.gmra.mrb[0].mxu0 %v2444
    %v2629 = vpop.f32.mrb[0].mxu0
    %v2630 = vadd.f32 %v1938, %v2629
    %v2631 = vpop.f32.mrb[0].mxu0
    %v2632 = vpop.f32.mrb[0].mxu0
    %v2633 = vadd.f32 %v1941, %v2632
    %v2634 = vpop.f32.mrb[0].mxu0
    %2635 = vmatprep.mubr.bf16.mxu0 %v2447
    %2636 = vmatmul.mubr.bf16.gmra.mrb[0].mxu0 %v2446
    %v2637 = vpop.f32.mrb[0].mxu0
    %v2638 = vadd.f32 %v1946, %v2637
    %v2639 = vpop.f32.mrb[0].mxu0
    %v2640 = vpop.f32.mrb[0].mxu0
    %v2641 = vadd.f32 %v1949, %v2640
    %v2642 = vpop.f32.mrb[0].mxu0
    %2643 = vmatprep.mubr.bf16.mxu0 %v2449
    %2644 = vmatmul.mubr.bf16.gmra.mrb[0].mxu0 %v2448
    %v2645 = vpop.f32.mrb[0].mxu0
    %v2646 = vadd.f32 %v1954, %v2645
    %v2647 = vpop.f32.mrb[0].mxu0
    %v2648 = vpop.f32.mrb[0].mxu0
    %v2649 = vadd.f32 %v1957, %v2648
    %v2650 = vpop.f32.mrb[0].mxu0
    %2651 = vmatprep.mubr.bf16.mxu0 %v2451
    %2652 = vmatmul.mubr.bf16.gmra.mrb[0].mxu0 %v2450
    %v2653 = vpop.f32.mrb[0].mxu0
    %v2654 = vadd.f32 %v1962, %v2653
    %v2655 = vpop.f32.mrb[0].mxu0
    %v2656 = vpop.f32.mrb[0].mxu0
    %v2657 = vadd.f32 %v1965, %v2656
    %v2658 = vpop.f32.mrb[0].mxu0
    %2659 = vmatprep.mubr.bf16.mxu0 %v2453
    %2660 = vmatmul.mubr.bf16.gmra.mrb[0].mxu0 %v2452
    %v2661 = vpop.f32.mrb[0].mxu0
    %v2662 = vadd.f32 %v1970, %v2661
    %v2663 = vpop.f32.mrb[0].mxu0
    %v2664 = vpop.f32.mrb[0].mxu0
    %v2665 = vadd.f32 %v1973, %v2664
    %v2666 = vpop.f32.mrb[0].mxu0
    %2667 = vmatprep.mubr.bf16.mxu0 %v2455
    %2668 = vmatmul.mubr.bf16.gmra.mrb[0].mxu0 %v2454
    %v2669 = vpop.f32.mrb[0].mxu0
    %v2670 = vadd.f32 %v1978, %v2669
    %v2671 = vpop.f32.mrb[0].mxu0
    %v2672 = vpop.f32.mrb[0].mxu0
    %v2673 = vadd.f32 %v1981, %v2672
    %v2674 = vpop.f32.mrb[0].mxu0
    %2675 = vmatprep.mubr.bf16.mxu0 %v2457
    %2676 = vmatmul.mubr.bf16.gmra.mrb[0].mxu0 %v2456
    %v2677 = vpop.f32.mrb[0].mxu0
    %v2678 = vadd.f32 %v1986, %v2677
    %v2679 = vpop.f32.mrb[0].mxu0
    %v2680 = vpop.f32.mrb[0].mxu0
    %v2681 = vadd.f32 %v1989, %v2680
    %v2682 = vpop.f32.mrb[0].mxu0
    %2683 = vdwg.mxu0
    %v2684 = vld [vmem:[%s11] sm:$0xff]
    %v2685 = vld [vmem:[%s11 + $0x8] sm:$0xff]
    %v2686 = vld [vmem:[%s11 + $0x10] sm:$0xff]
    %v2687 = vld [vmem:[%s11 + $0x18] sm:$0xff]
    %v2688 = vld [vmem:[%s11 + $0x20] sm:$0xff]
    %v2689 = vld [vmem:[%s11 + $0x28] sm:$0xff]
    %v2690 = vld [vmem:[%s11 + $0x30] sm:$0xff]
    %v2691 = vld [vmem:[%s11 + $0x38] sm:$0xff]
    %v2692 = vld [vmem:[%s11 + $0x40] sm:$0xff]
    %v2693 = vld [vmem:[%s11 + $0x48] sm:$0xff]
    %v2694 = vld [vmem:[%s11 + $0x50] sm:$0xff]
    %v2695 = vld [vmem:[%s11 + $0x58] sm:$0xff]
    %v2696 = vld [vmem:[%s11 + $0x60] sm:$0xff]
    %v2697 = vld [vmem:[%s11 + $0x68] sm:$0xff]
    %v2698 = vld [vmem:[%s11 + $0x70] sm:$0xff]
    %v2699 = vld [vmem:[%s11 + $0x78] sm:$0xff]
    %2701 = vset.pattern.permute.xlu0 0
    %2702 = vperm.xlu0 %2701, %v2684
    %v2703 = vpop.permute.xlu0 %2702
    %2706 = vset.pattern.permute.xlu0 0
    %2707 = vperm.xlu0 %2706, %v2685
    %v2708 = vpop.permute.xlu0 %2707
    %2711 = vset.pattern.permute.xlu0 0
    %2712 = vperm.xlu0 %2711, %v2686
    %v2713 = vpop.permute.xlu0 %2712
    %2716 = vset.pattern.permute.xlu0 0
    %2717 = vperm.xlu0 %2716, %v2687
    %v2718 = vpop.permute.xlu0 %2717
    %2721 = vset.pattern.permute.xlu0 0
    %2722 = vperm.xlu0 %2721, %v2688
    %v2723 = vpop.permute.xlu0 %2722
    %2726 = vset.pattern.permute.xlu0 0
    %2727 = vperm.xlu0 %2726, %v2689
    %v2728 = vpop.permute.xlu0 %2727
    %2731 = vset.pattern.permute.xlu0 0
    %2732 = vperm.xlu0 %2731, %v2690
    %v2733 = vpop.permute.xlu0 %2732
    %2736 = vset.pattern.permute.xlu0 0
    %2737 = vperm.xlu0 %2736, %v2691
    %v2738 = vpop.permute.xlu0 %2737
    %2741 = vset.pattern.permute.xlu0 0
    %2742 = vperm.xlu0 %2741, %v2692
    %v2743 = vpop.permute.xlu0 %2742
    %2746 = vset.pattern.permute.xlu0 0
    %2747 = vperm.xlu0 %2746, %v2693
    %v2748 = vpop.permute.xlu0 %2747
    %2751 = vset.pattern.permute.xlu0 0
    %2752 = vperm.xlu0 %2751, %v2694
    %v2753 = vpop.permute.xlu0 %2752
    %2756 = vset.pattern.permute.xlu0 0
    %2757 = vperm.xlu0 %2756, %v2695
    %v2758 = vpop.permute.xlu0 %2757
    %2761 = vset.pattern.permute.xlu0 0
    %2762 = vperm.xlu0 %2761, %v2696
    %v2763 = vpop.permute.xlu0 %2762
    %2766 = vset.pattern.permute.xlu0 0
    %2767 = vperm.xlu0 %2766, %v2697
    %v2768 = vpop.permute.xlu0 %2767
    %2771 = vset.pattern.permute.xlu0 0
    %2772 = vperm.xlu0 %2771, %v2698
    %v2773 = vpop.permute.xlu0 %2772
    %2776 = vset.pattern.permute.xlu0 0
    %2777 = vperm.xlu0 %2776, %v2699
    %v2778 = vpop.permute.xlu0 %2777
    %v2780 = vadd.f32 %v2509, %v2703
    %v2781 = vadd.f32 %v2511, %v2703
    %v2782 = vadd.f32 %v2622, %v2703
    %v2783 = vadd.f32 %v2513, %v2708
    %v2784 = vadd.f32 %v2515, %v2708
    %v2785 = vadd.f32 %v2625, %v2708
    %v2786 = vadd.f32 %v2519, %v2713
    %v2787 = vadd.f32 %v2521, %v2713
    %v2788 = vadd.f32 %v2630, %v2713
    %v2789 = vadd.f32 %v2523, %v2718
    %v2790 = vadd.f32 %v2525, %v2718
    %v2791 = vadd.f32 %v2633, %v2718
    %v2792 = vadd.f32 %v2529, %v2723
    %v2793 = vadd.f32 %v2531, %v2723
    %v2794 = vadd.f32 %v2638, %v2723
    %v2795 = vadd.f32 %v2533, %v2728
    %v2796 = vadd.f32 %v2535, %v2728
    %v2797 = vadd.f32 %v2641, %v2728
    %v2798 = vadd.f32 %v2539, %v2733
    %v2799 = vadd.f32 %v2541, %v2733
    %v2800 = vadd.f32 %v2646, %v2733
    %v2801 = vadd.f32 %v2543, %v2738
    %v2802 = vadd.f32 %v2545, %v2738
    %v2803 = vadd.f32 %v2649, %v2738
    %v2804 = vadd.f32 %v2549, %v2743
    %v2805 = vadd.f32 %v2551, %v2743
    %v2806 = vadd.f32 %v2654, %v2743
    %v2807 = vadd.f32 %v2553, %v2748
    %v2808 = vadd.f32 %v2555, %v2748
    %v2809 = vadd.f32 %v2657, %v2748
    %v2810 = vadd.f32 %v2559, %v2753
    %v2811 = vadd.f32 %v2561, %v2753
    %v2812 = vadd.f32 %v2662, %v2753
    %v2813 = vadd.f32 %v2563, %v2758
    %v2814 = vadd.f32 %v2565, %v2758
    %v2815 = vadd.f32 %v2665, %v2758
    %v2816 = vadd.f32 %v2569, %v2763
    %v2817 = vadd.f32 %v2571, %v2763
    %v2818 = vadd.f32 %v2670, %v2763
    %v2819 = vadd.f32 %v2573, %v2768
    %v2820 = vadd.f32 %v2575, %v2768
    %v2821 = vadd.f32 %v2673, %v2768
    %v2822 = vadd.f32 %v2579, %v2773
    %v2823 = vadd.f32 %v2581, %v2773
    %v2824 = vadd.f32 %v2678, %v2773
    %v2825 = vadd.f32 %v2583, %v2778
    %v2826 = vadd.f32 %v2585, %v2778
    %v2827 = vadd.f32 %v2681, %v2778
    %v2828 = vmax.f32 %v2780, 0.0
    %v2829 = vmax.f32 %v2781, 0.0
    %v2830 = vmax.f32 %v2782, 0.0
    %v2831 = vmax.f32 %v2783, 0.0
    %v2832 = vmax.f32 %v2784, 0.0
    %v2833 = vmax.f32 %v2785, 0.0
    %v2834 = vmax.f32 %v2786, 0.0
    %v2835 = vmax.f32 %v2787, 0.0
    %v2836 = vmax.f32 %v2788, 0.0
    %v2837 = vmax.f32 %v2789, 0.0
    %v2838 = vmax.f32 %v2790, 0.0
    %v2839 = vmax.f32 %v2791, 0.0
    %v2840 = vmax.f32 %v2792, 0.0
    %v2841 = vmax.f32 %v2793, 0.0
    %v2842 = vmax.f32 %v2794, 0.0
    %v2843 = vmax.f32 %v2795, 0.0
    %v2844 = vmax.f32 %v2796, 0.0
    %v2845 = vmax.f32 %v2797, 0.0
    %v2846 = vmax.f32 %v2798, 0.0
    %v2847 = vmax.f32 %v2799, 0.0
    %v2848 = vmax.f32 %v2800, 0.0
    %v2849 = vmax.f32 %v2801, 0.0
    %v2850 = vmax.f32 %v2802, 0.0
    %v2851 = vmax.f32 %v2803, 0.0
    %v2852 = vmax.f32 %v2804, 0.0
    %v2853 = vmax.f32 %v2805, 0.0
    %v2854 = vmax.f32 %v2806, 0.0
    %v2855 = vmax.f32 %v2807, 0.0
    %v2856 = vmax.f32 %v2808, 0.0
    %v2857 = vmax.f32 %v2809, 0.0
    %v2858 = vmax.f32 %v2810, 0.0
    %v2859 = vmax.f32 %v2811, 0.0
    %v2860 = vmax.f32 %v2812, 0.0
    %v2861 = vmax.f32 %v2813, 0.0
    %v2862 = vmax.f32 %v2814, 0.0
    %v2863 = vmax.f32 %v2815, 0.0
    %v2864 = vmax.f32 %v2816, 0.0
    %v2865 = vmax.f32 %v2817, 0.0
    %v2866 = vmax.f32 %v2818, 0.0
    %v2867 = vmax.f32 %v2819, 0.0
    %v2868 = vmax.f32 %v2820, 0.0
    %v2869 = vmax.f32 %v2821, 0.0
    %v2870 = vmax.f32 %v2822, 0.0
    %v2871 = vmax.f32 %v2823, 0.0
    %v2872 = vmax.f32 %v2824, 0.0
    %v2873 = vmax.f32 %v2825, 0.0
    %v2874 = vmax.f32 %v2826, 0.0
    %v2875 = vmax.f32 %v2827, 0.0
    %v2876 = vpack.c.bf16 %v2831, %v2828
    %v2877 = vpack.c.bf16 %v2832, %v2829
    %v2878 = vpack.c.bf16 %v2833, %v2830
    %v2879 = vpack.c.bf16 %v2837, %v2834
    %v2880 = vpack.c.bf16 %v2838, %v2835
    %v2881 = vpack.c.bf16 %v2839, %v2836
    %v2882 = vpack.c.bf16 %v2843, %v2840
    %v2883 = vpack.c.bf16 %v2844, %v2841
    %v2884 = vpack.c.bf16 %v2845, %v2842
    %v2885 = vpack.c.bf16 %v2849, %v2846
    %v2886 = vpack.c.bf16 %v2850, %v2847
    %v2887 = vpack.c.bf16 %v2851, %v2848
    %v2888 = vpack.c.bf16 %v2855, %v2852
    %v2889 = vpack.c.bf16 %v2856, %v2853
    %v2890 = vpack.c.bf16 %v2857, %v2854
    %v2891 = vpack.c.bf16 %v2861, %v2858
    %v2892 = vpack.c.bf16 %v2862, %v2859
    %v2893 = vpack.c.bf16 %v2863, %v2860
    %v2894 = vpack.c.bf16 %v2867, %v2864
    %v2895 = vpack.c.bf16 %v2868, %v2865
    %v2896 = vpack.c.bf16 %v2869, %v2866
    %v2897 = vpack.c.bf16 %v2873, %v2870
    %v2898 = vpack.c.bf16 %v2874, %v2871
    %v2899 = vpack.c.bf16 %v2875, %v2872
    %v2900 = vld [vmem:[%s12] sm:$0xf]
    %v2901 = vld [vmem:[%s12 + $0x4] sm:$0xf]
    %v2902 = vld [vmem:[%s12 + $0x8] sm:$0xf]
    %v2903 = vld [vmem:[%s12 + $0xc] sm:$0xf]
    %v2904 = vld [vmem:[%s12 + $0x10] sm:$0xf]
    %v2905 = vld [vmem:[%s12 + $0x14] sm:$0xf]
    %v2906 = vld [vmem:[%s12 + $0x18] sm:$0xf]
    %v2907 = vld [vmem:[%s12 + $0x1c] sm:$0xf]
    %v2908 = vld [vmem:[%s12 + $0x20] sm:$0xf]
    %v2909 = vld [vmem:[%s12 + $0x24] sm:$0xf]
    %v2910 = vld [vmem:[%s12 + $0x28] sm:$0xf]
    %v2911 = vld [vmem:[%s12 + $0x2c] sm:$0xf]
    %v2912 = vld [vmem:[%s12 + $0x30] sm:$0xf]
    %v2913 = vld [vmem:[%s12 + $0x34] sm:$0xf]
    %v2914 = vld [vmem:[%s12 + $0x38] sm:$0xf]
    %v2915 = vld [vmem:[%s12 + $0x3c] sm:$0xf]
    %v2916 = vld [vmem:[%s13] sm:$0xff]
    %v2917 = vld [vmem:[%s13 + $0x8] sm:$0xff]
    %v2918 = vld [vmem:[%s13 + $0x10] sm:$0xff]
    %v2919 = vld [vmem:[%s13 + $0x18] sm:$0xff]
    %v2920 = vld [vmem:[%s13 + $0x20] sm:$0xff]
    %v2921 = vld [vmem:[%s13 + $0x28] sm:$0xff]
    %v2922 = vld [vmem:[%s13 + $0x30] sm:$0xff]
    %v2923 = vld [vmem:[%s13 + $0x38] sm:$0xff]
    %v2924 = vld [vmem:[%s13 + $0x40] sm:$0xff]
    %v2925 = vld [vmem:[%s13 + $0x48] sm:$0xff]
    %v2926 = vld [vmem:[%s13 + $0x50] sm:$0xff]
    %v2927 = vld [vmem:[%s13 + $0x58] sm:$0xff]
    %v2928 = vld [vmem:[%s13 + $0x60] sm:$0xff]
    %v2929 = vld [vmem:[%s13 + $0x68] sm:$0xff]
    %v2930 = vld [vmem:[%s13 + $0x70] sm:$0xff]
    %v2931 = vld [vmem:[%s13 + $0x78] sm:$0xff]
    %2933 = vset.pattern.permute.xlu0 0
    %2934 = vperm.xlu0 %2933, %v2916
    %v2935 = vpop.permute.xlu0 %2934
    %2938 = vset.pattern.permute.xlu0 0
    %2939 = vperm.xlu0 %2938, %v2917
    %v2940 = vpop.permute.xlu0 %2939
    %2943 = vset.pattern.permute.xlu0 0
    %2944 = vperm.xlu0 %2943, %v2918
    %v2945 = vpop.permute.xlu0 %2944
    %2948 = vset.pattern.permute.xlu0 0
    %2949 = vperm.xlu0 %2948, %v2919
    %v2950 = vpop.permute.xlu0 %2949
    %2953 = vset.pattern.permute.xlu0 0
    %2954 = vperm.xlu0 %2953, %v2920
    %v2955 = vpop.permute.xlu0 %2954
    %2958 = vset.pattern.permute.xlu0 0
    %2959 = vperm.xlu0 %2958, %v2921
    %v2960 = vpop.permute.xlu0 %2959
    %2963 = vset.pattern.permute.xlu0 0
    %2964 = vperm.xlu0 %2963, %v2922
    %v2965 = vpop.permute.xlu0 %2964
    %2968 = vset.pattern.permute.xlu0 0
    %2969 = vperm.xlu0 %2968, %v2923
    %v2970 = vpop.permute.xlu0 %2969
    %2973 = vset.pattern.permute.xlu0 0
    %2974 = vperm.xlu0 %2973, %v2924
    %v2975 = vpop.permute.xlu0 %2974
    %2978 = vset.pattern.permute.xlu0 0
    %2979 = vperm.xlu0 %2978, %v2925
    %v2980 = vpop.permute.xlu0 %2979
    %2983 = vset.pattern.permute.xlu0 0
    %2984 = vperm.xlu0 %2983, %v2926
    %v2985 = vpop.permute.xlu0 %2984
    %2988 = vset.pattern.permute.xlu0 0
    %2989 = vperm.xlu0 %2988, %v2927
    %v2990 = vpop.permute.xlu0 %2989
    %2993 = vset.pattern.permute.xlu0 0
    %2994 = vperm.xlu0 %2993, %v2928
    %v2995 = vpop.permute.xlu0 %2994
    %2998 = vset.pattern.permute.xlu0 0
    %2999 = vperm.xlu0 %2998, %v2929
    %v3000 = vpop.permute.xlu0 %2999
    %3003 = vset.pattern.permute.xlu0 0
    %3004 = vperm.xlu0 %3003, %v2930
    %v3005 = vpop.permute.xlu0 %3004
    %3008 = vset.pattern.permute.xlu0 0
    %3009 = vperm.xlu0 %3008, %v2931
    %v3010 = vpop.permute.xlu0 %3009
    %v3028 = vunpack.c.l.b16 %v2900
    %v3029 = vunpack.c.l.b16 %v2901
    %v3030 = vunpack.c.l.b16 %v2902
    %v3031 = vunpack.c.l.b16 %v2903
    %v3032 = vunpack.c.l.b16 %v2904
    %v3033 = vunpack.c.l.b16 %v2905
    %v3034 = vunpack.c.l.b16 %v2906
    %v3035 = vunpack.c.l.b16 %v2907
    %v3036 = vunpack.c.l.b16 %v2908
    %v3037 = vunpack.c.l.b16 %v2909
    %v3038 = vunpack.c.l.b16 %v2910
    %v3039 = vunpack.c.l.b16 %v2911
    %v3040 = vunpack.c.l.b16 %v2912
    %v3041 = vunpack.c.l.b16 %v2913
    %v3042 = vunpack.c.l.b16 %v2914
    %v3043 = vunpack.c.l.b16 %v2915
    %v3044 = vpack.c.b16 %v3029, %v3028
    %v3045 = vpack.c.b16 %v3031, %v3030
    %v3046 = vpack.c.b16 %v3033, %v3032
    %v3047 = vpack.c.b16 %v3035, %v3034
    %v3048 = vpack.c.b16 %v3037, %v3036
    %v3049 = vpack.c.b16 %v3039, %v3038
    %v3050 = vpack.c.b16 %v3041, %v3040
    %v3051 = vpack.c.b16 %v3043, %v3042
    %3060 = vmatprep.subr.bf16.mxu0 %v2877
    %3061 = vmatpush1.bf16.msra.mxu0 %v2876
    %3062 = vmatprep.subr.bf16.mxu0 %v2880
    %3063 = vmatpush1.bf16.msra.mxu0 %v2879
    %3064 = vmatprep.subr.bf16.mxu0 %v2883
    %3065 = vmatpush1.bf16.msra.mxu0 %v2882
    %3066 = vmatprep.subr.bf16.mxu0 %v2886
    %3067 = vmatpush1.bf16.msra.mxu0 %v2885
    %3068 = vmatprep.subr.bf16.mxu0 %v2889
    %3069 = vmatpush1.bf16.msra.mxu0 %v2888
    %3070 = vmatprep.subr.bf16.mxu0 %v2892
    %3071 = vmatpush1.bf16.msra.mxu0 %v2891
    %3072 = vmatprep.subr.bf16.mxu0 %v2895
    %3073 = vmatpush1.bf16.msra.mxu0 %v2894
    %3074 = vmatprep.subr.bf16.mxu0 %v2898
    %3075 = vmatpush1.bf16.msra.mxu0 %v2897
    %3076 = vmatprep.subr.bf16.mxu0 0
    %3077 = vmatpush1.bf16.msra.mxu0 0
    %3078 = vmatprep.subr.bf16.mxu0 0
    %3079 = vmatpush1.bf16.msra.mxu0 0
    %3080 = vmatprep.subr.bf16.mxu0 0
    %3081 = vmatpush1.bf16.msra.mxu0 0
    %3082 = vmatprep.subr.bf16.mxu0 0
    %3083 = vmatpush1.bf16.msra.mxu0 0
    %3084 = vmatprep.subr.bf16.mxu0 0
    %3085 = vmatpush1.bf16.msra.mxu0 0
    %3086 = vmatprep.subr.bf16.mxu0 0
    %3087 = vmatpush1.bf16.msra.mxu0 0
    %3088 = vmatprep.subr.bf16.mxu0 0
    %3089 = vmatpush1.bf16.msra.mxu0 0
    %3090 = vmatprep.subr.bf16.mxu0 0
    %3091 = vmatpush1.bf16.msra.mxu0 0
    %3092 = vmatprep.mubr.bf16.mxu0 0
    %3093 = vmatmul.mubr.bf16.gmra.mrb[0].mxu0 %v3044
    %v3094 = vpop.f32.mrb[0].mxu0
    %v3095 = vadd.f32 %v2935, %v3094
    %v3096 = vpop.f32.mrb[0].mxu0
    %v3097 = vadd.f32 %v2935, %v3096
    %v3098 = vpop.f32.mrb[0].mxu0
    %v3099 = vadd.f32 %v2940, %v3098
    %v3100 = vpop.f32.mrb[0].mxu0
    %v3101 = vadd.f32 %v2940, %v3100
    %3102 = vmatprep.mubr.bf16.mxu0 0
    %3103 = vmatmul.mubr.bf16.gmra.mrb[0].mxu0 %v3045
    %v3104 = vpop.f32.mrb[0].mxu0
    %v3105 = vadd.f32 %v2945, %v3104
    %v3106 = vpop.f32.mrb[0].mxu0
    %v3107 = vadd.f32 %v2945, %v3106
    %v3108 = vpop.f32.mrb[0].mxu0
    %v3109 = vadd.f32 %v2950, %v3108
    %v3110 = vpop.f32.mrb[0].mxu0
    %v3111 = vadd.f32 %v2950, %v3110
    %3112 = vmatprep.mubr.bf16.mxu0 0
    %3113 = vmatmul.mubr.bf16.gmra.mrb[0].mxu0 %v3046
    %v3114 = vpop.f32.mrb[0].mxu0
    %v3115 = vadd.f32 %v2955, %v3114
    %v3116 = vpop.f32.mrb[0].mxu0
    %v3117 = vadd.f32 %v2955, %v3116
    %v3118 = vpop.f32.mrb[0].mxu0
    %v3119 = vadd.f32 %v2960, %v3118
    %v3120 = vpop.f32.mrb[0].mxu0
    %v3121 = vadd.f32 %v2960, %v3120
    %3122 = vmatprep.mubr.bf16.mxu0 0
    %3123 = vmatmul.mubr.bf16.gmra.mrb[0].mxu0 %v3047
    %v3124 = vpop.f32.mrb[0].mxu0
    %v3125 = vadd.f32 %v2965, %v3124
    %v3126 = vpop.f32.mrb[0].mxu0
    %v3127 = vadd.f32 %v2965, %v3126
    %v3128 = vpop.f32.mrb[0].mxu0
    %v3129 = vadd.f32 %v2970, %v3128
    %v3130 = vpop.f32.mrb[0].mxu0
    %v3131 = vadd.f32 %v2970, %v3130
    %3132 = vmatprep.mubr.bf16.mxu0 0
    %3133 = vmatmul.mubr.bf16.gmra.mrb[0].mxu0 %v3048
    %v3134 = vpop.f32.mrb[0].mxu0
    %v3135 = vadd.f32 %v2975, %v3134
    %v3136 = vpop.f32.mrb[0].mxu0
    %v3137 = vadd.f32 %v2975, %v3136
    %v3138 = vpop.f32.mrb[0].mxu0
    %v3139 = vadd.f32 %v2980, %v3138
    %v3140 = vpop.f32.mrb[0].mxu0
    %v3141 = vadd.f32 %v2980, %v3140
    %3142 = vmatprep.mubr.bf16.mxu0 0
    %3143 = vmatmul.mubr.bf16.gmra.mrb[0].mxu0 %v3049
    %v3144 = vpop.f32.mrb[0].mxu0
    %v3145 = vadd.f32 %v2985, %v3144
    %v3146 = vpop.f32.mrb[0].mxu0
    %v3147 = vadd.f32 %v2985, %v3146
    %v3148 = vpop.f32.mrb[0].mxu0
    %v3149 = vadd.f32 %v2990, %v3148
    %v3150 = vpop.f32.mrb[0].mxu0
    %v3151 = vadd.f32 %v2990, %v3150
    %3152 = vmatprep.mubr.bf16.mxu0 0
    %3153 = vmatmul.mubr.bf16.gmra.mrb[0].mxu0 %v3050
    %v3154 = vpop.f32.mrb[0].mxu0
    %v3155 = vadd.f32 %v2995, %v3154
    %v3156 = vpop.f32.mrb[0].mxu0
    %v3157 = vadd.f32 %v2995, %v3156
    %v3158 = vpop.f32.mrb[0].mxu0
    %v3159 = vadd.f32 %v3000, %v3158
    %v3160 = vpop.f32.mrb[0].mxu0
    %v3161 = vadd.f32 %v3000, %v3160
    %3162 = vmatprep.mubr.bf16.mxu0 0
    %3163 = vmatmul.mubr.bf16.gmra.mrb[0].mxu0 %v3051
    %v3164 = vpop.f32.mrb[0].mxu0
    %v3165 = vadd.f32 %v3005, %v3164
    %v3166 = vpop.f32.mrb[0].mxu0
    %v3167 = vadd.f32 %v3005, %v3166
    %v3168 = vpop.f32.mrb[0].mxu0
    %v3169 = vadd.f32 %v3010, %v3168
    %v3170 = vpop.f32.mrb[0].mxu0
    %v3171 = vadd.f32 %v3010, %v3170
    %3172 = vdwg.mxu0
    %3173 = vmatprep.subr.bf16.mxu0 0
    %3174 = vmatpush1.bf16.msra.mxu0 %v2878
    %3175 = vmatprep.subr.bf16.mxu0 0
    %3176 = vmatpush1.bf16.msra.mxu0 %v2881
    %3177 = vmatprep.subr.bf16.mxu0 0
    %3178 = vmatpush1.bf16.msra.mxu0 %v2884
    %3179 = vmatprep.subr.bf16.mxu0 0
    %3180 = vmatpush1.bf16.msra.mxu0 %v2887
    %3181 = vmatprep.subr.bf16.mxu0 0
    %3182 = vmatpush1.bf16.msra.mxu0 %v2890
    %3183 = vmatprep.subr.bf16.mxu0 0
    %3184 = vmatpush1.bf16.msra.mxu0 %v2893
    %3185 = vmatprep.subr.bf16.mxu0 0
    %3186 = vmatpush1.bf16.msra.mxu0 %v2896
    %3187 = vmatprep.subr.bf16.mxu0 0
    %3188 = vmatpush1.bf16.msra.mxu0 %v2899
    %3189 = vmatprep.subr.bf16.mxu0 0
    %3190 = vmatpush1.bf16.msra.mxu0 0
    %3191 = vmatprep.subr.bf16.mxu0 0
    %3192 = vmatpush1.bf16.msra.mxu0 0
    %3193 = vmatprep.subr.bf16.mxu0 0
    %3194 = vmatpush1.bf16.msra.mxu0 0
    %3195 = vmatprep.subr.bf16.mxu0 0
    %3196 = vmatpush1.bf16.msra.mxu0 0
    %3197 = vmatprep.subr.bf16.mxu0 0
    %3198 = vmatpush1.bf16.msra.mxu0 0
    %3199 = vmatprep.subr.bf16.mxu0 0
    %3200 = vmatpush1.bf16.msra.mxu0 0
    %3201 = vmatprep.subr.bf16.mxu0 0
    %3202 = vmatpush1.bf16.msra.mxu0 0
    %3203 = vmatprep.subr.bf16.mxu0 0
    %3204 = vmatpush1.bf16.msra.mxu0 0
    %3205 = vmatprep.mubr.bf16.mxu0 0
    %3206 = vmatmul.mubr.bf16.gmra.mrb[0].mxu0 %v3044
    %v3207 = vpop.f32.mrb[0].mxu0
    %v3208 = vadd.f32 %v2935, %v3207
    %v3209 = vpop.f32.mrb[0].mxu0
    %v3210 = vpop.f32.mrb[0].mxu0
    %v3211 = vadd.f32 %v2940, %v3210
    %v3212 = vpop.f32.mrb[0].mxu0
    %3213 = vmatprep.mubr.bf16.mxu0 0
    %3214 = vmatmul.mubr.bf16.gmra.mrb[0].mxu0 %v3045
    %v3215 = vpop.f32.mrb[0].mxu0
    %v3216 = vadd.f32 %v2945, %v3215
    %v3217 = vpop.f32.mrb[0].mxu0
    %v3218 = vpop.f32.mrb[0].mxu0
    %v3219 = vadd.f32 %v2950, %v3218
    %v3220 = vpop.f32.mrb[0].mxu0
    %3221 = vmatprep.mubr.bf16.mxu0 0
    %3222 = vmatmul.mubr.bf16.gmra.mrb[0].mxu0 %v3046
    %v3223 = vpop.f32.mrb[0].mxu0
    %v3224 = vadd.f32 %v2955, %v3223
    %v3225 = vpop.f32.mrb[0].mxu0
    %v3226 = vpop.f32.mrb[0].mxu0
    %v3227 = vadd.f32 %v2960, %v3226
    %v3228 = vpop.f32.mrb[0].mxu0
    %3229 = vmatprep.mubr.bf16.mxu0 0
    %3230 = vmatmul.mubr.bf16.gmra.mrb[0].mxu0 %v3047
    %v3231 = vpop.f32.mrb[0].mxu0
    %v3232 = vadd.f32 %v2965, %v3231
    %v3233 = vpop.f32.mrb[0].mxu0
    %v3234 = vpop.f32.mrb[0].mxu0
    %v3235 = vadd.f32 %v2970, %v3234
    %v3236 = vpop.f32.mrb[0].mxu0
    %3237 = vmatprep.mubr.bf16.mxu0 0
    %3238 = vmatmul.mubr.bf16.gmra.mrb[0].mxu0 %v3048
    %v3239 = vpop.f32.mrb[0].mxu0
    %v3240 = vadd.f32 %v2975, %v3239
    %v3241 = vpop.f32.mrb[0].mxu0
    %v3242 = vpop.f32.mrb[0].mxu0
    %v3243 = vadd.f32 %v2980, %v3242
    %v3244 = vpop.f32.mrb[0].mxu0
    %3245 = vmatprep.mubr.bf16.mxu0 0
    %3246 = vmatmul.mubr.bf16.gmra.mrb[0].mxu0 %v3049
    %v3247 = vpop.f32.mrb[0].mxu0
    %v3248 = vadd.f32 %v2985, %v3247
    %v3249 = vpop.f32.mrb[0].mxu0
    %v3250 = vpop.f32.mrb[0].mxu0
    %v3251 = vadd.f32 %v2990, %v3250
    %v3252 = vpop.f32.mrb[0].mxu0
    %3253 = vmatprep.mubr.bf16.mxu0 0
    %3254 = vmatmul.mubr.bf16.gmra.mrb[0].mxu0 %v3050
    %v3255 = vpop.f32.mrb[0].mxu0
    %v3256 = vadd.f32 %v2995, %v3255
    %v3257 = vpop.f32.mrb[0].mxu0
    %v3258 = vpop.f32.mrb[0].mxu0
    %v3259 = vadd.f32 %v3000, %v3258
    %v3260 = vpop.f32.mrb[0].mxu0
    %3261 = vmatprep.mubr.bf16.mxu0 0
    %3262 = vmatmul.mubr.bf16.gmra.mrb[0].mxu0 %v3051
    %v3263 = vpop.f32.mrb[0].mxu0
    %v3264 = vadd.f32 %v3005, %v3263
    %v3265 = vpop.f32.mrb[0].mxu0
    %v3266 = vpop.f32.mrb[0].mxu0
    %v3267 = vadd.f32 %v3010, %v3266
    %v3268 = vpop.f32.mrb[0].mxu0
    %3269 = vdwg.mxu0
    %v3270 = vmax.f32 %v3095, 0.0
    %v3271 = vmax.f32 %v3097, 0.0
    %v3272 = vmax.f32 %v3208, 0.0
    %v3273 = vmax.f32 %v3099, 0.0
    %v3274 = vmax.f32 %v3101, 0.0
    %v3275 = vmax.f32 %v3211, 0.0
    %v3276 = vmax.f32 %v3105, 0.0
    %v3277 = vmax.f32 %v3107, 0.0
    %v3278 = vmax.f32 %v3216, 0.0
    %v3279 = vmax.f32 %v3109, 0.0
    %v3280 = vmax.f32 %v3111, 0.0
    %v3281 = vmax.f32 %v3219, 0.0
    %v3282 = vmax.f32 %v3115, 0.0
    %v3283 = vmax.f32 %v3117, 0.0
    %v3284 = vmax.f32 %v3224, 0.0
    %v3285 = vmax.f32 %v3119, 0.0
    %v3286 = vmax.f32 %v3121, 0.0
    %v3287 = vmax.f32 %v3227, 0.0
    %v3288 = vmax.f32 %v3125, 0.0
    %v3289 = vmax.f32 %v3127, 0.0
    %v3290 = vmax.f32 %v3232, 0.0
    %v3291 = vmax.f32 %v3129, 0.0
    %v3292 = vmax.f32 %v3131, 0.0
    %v3293 = vmax.f32 %v3235, 0.0
    %v3294 = vmax.f32 %v3135, 0.0
    %v3295 = vmax.f32 %v3137, 0.0
    %v3296 = vmax.f32 %v3240, 0.0
    %v3297 = vmax.f32 %v3139, 0.0
    %v3298 = vmax.f32 %v3141, 0.0
    %v3299 = vmax.f32 %v3243, 0.0
    %v3300 = vmax.f32 %v3145, 0.0
    %v3301 = vmax.f32 %v3147, 0.0
    %v3302 = vmax.f32 %v3248, 0.0
    %v3303 = vmax.f32 %v3149, 0.0
    %v3304 = vmax.f32 %v3151, 0.0
    %v3305 = vmax.f32 %v3251, 0.0
    %v3306 = vmax.f32 %v3155, 0.0
    %v3307 = vmax.f32 %v3157, 0.0
    %v3308 = vmax.f32 %v3256, 0.0
    %v3309 = vmax.f32 %v3159, 0.0
    %v3310 = vmax.f32 %v3161, 0.0
    %v3311 = vmax.f32 %v3259, 0.0
    %v3312 = vmax.f32 %v3165, 0.0
    %v3313 = vmax.f32 %v3167, 0.0
    %v3314 = vmax.f32 %v3264, 0.0
    %v3315 = vmax.f32 %v3169, 0.0
    %v3316 = vmax.f32 %v3171, 0.0
    %v3317 = vmax.f32 %v3267, 0.0
    %v3318 = vpack.c.bf16 %v3273, %v3270
    %v3319 = vpack.c.bf16 %v3274, %v3271
    %v3320 = vpack.c.bf16 %v3275, %v3272
    %v3321 = vpack.c.bf16 %v3279, %v3276
    %v3322 = vpack.c.bf16 %v3280, %v3277
    %v3323 = vpack.c.bf16 %v3281, %v3278
    %v3324 = vpack.c.bf16 %v3285, %v3282
    %v3325 = vpack.c.bf16 %v3286, %v3283
    %v3326 = vpack.c.bf16 %v3287, %v3284
    %v3327 = vpack.c.bf16 %v3291, %v3288
    %v3328 = vpack.c.bf16 %v3292, %v3289
    %v3329 = vpack.c.bf16 %v3293, %v3290
    %v3330 = vpack.c.bf16 %v3297, %v3294
    %v3331 = vpack.c.bf16 %v3298, %v3295
    %v3332 = vpack.c.bf16 %v3299, %v3296
    %v3333 = vpack.c.bf16 %v3303, %v3300
    %v3334 = vpack.c.bf16 %v3304, %v3301
    %v3335 = vpack.c.bf16 %v3305, %v3302
    %v3336 = vpack.c.bf16 %v3309, %v3306
    %v3337 = vpack.c.bf16 %v3310, %v3307
    %v3338 = vpack.c.bf16 %v3311, %v3308
    %v3339 = vpack.c.bf16 %v3315, %v3312
    %v3340 = vpack.c.bf16 %v3316, %v3313
    %v3341 = vpack.c.bf16 %v3317, %v3314
    %v3342 = vld [vmem:[%s14] sm:$0xf]
    %v3343 = vld [vmem:[%s14 + $0x4] sm:$0xf]
    %v3344 = vld [vmem:[%s14 + $0x8] sm:$0xf]
    %v3345 = vld [vmem:[%s14 + $0xc] sm:$0xf]
    %v3346 = vld [vmem:[%s14 + $0x10] sm:$0xf]
    %v3347 = vld [vmem:[%s14 + $0x14] sm:$0xf]
    %v3348 = vld [vmem:[%s14 + $0x18] sm:$0xf]
    %v3349 = vld [vmem:[%s14 + $0x1c] sm:$0xf]
    %v3350 = vld [vmem:[%s14 + $0x20] sm:$0xf]
    %v3351 = vld [vmem:[%s14 + $0x24] sm:$0xf]
    %v3352 = vld [vmem:[%s14 + $0x28] sm:$0xf]
    %v3353 = vld [vmem:[%s14 + $0x2c] sm:$0xf]
    %v3354 = vld [vmem:[%s14 + $0x30] sm:$0xf]
    %v3355 = vld [vmem:[%s14 + $0x34] sm:$0xf]
    %v3356 = vld [vmem:[%s14 + $0x38] sm:$0xf]
    %v3357 = vld [vmem:[%s14 + $0x3c] sm:$0xf]
    %v3358 = vld [vmem:[%s14 + $0x40] sm:$0xf]
    %v3359 = vld [vmem:[%s14 + $0x44] sm:$0xf]
    %v3360 = vld [vmem:[%s14 + $0x48] sm:$0xf]
    %v3361 = vld [vmem:[%s14 + $0x4c] sm:$0xf]
    %v3362 = vld [vmem:[%s14 + $0x50] sm:$0xf]
    %v3363 = vld [vmem:[%s14 + $0x54] sm:$0xf]
    %v3364 = vld [vmem:[%s14 + $0x58] sm:$0xf]
    %v3365 = vld [vmem:[%s14 + $0x5c] sm:$0xf]
    %v3366 = vld [vmem:[%s14 + $0x60] sm:$0xf]
    %v3367 = vld [vmem:[%s14 + $0x64] sm:$0xf]
    %v3368 = vld [vmem:[%s14 + $0x68] sm:$0xf]
    %v3369 = vld [vmem:[%s14 + $0x6c] sm:$0xf]
    %v3370 = vld [vmem:[%s14 + $0x70] sm:$0xf]
    %v3371 = vld [vmem:[%s14 + $0x74] sm:$0xf]
    %v3372 = vld [vmem:[%s14 + $0x78] sm:$0xf]
    %v3373 = vld [vmem:[%s14 + $0x7c] sm:$0xf]
    %v3374 = vld [vmem:[%s15] sm:$0xff]
    %v3375 = vld [vmem:[%s15 + $0x8] sm:$0xff]
    %v3376 = vld [vmem:[%s15 + $0x10] sm:$0xff]
    %v3377 = vld [vmem:[%s15 + $0x18] sm:$0xff]
    %v3378 = vld [vmem:[%s15 + $0x20] sm:$0xff]
    %v3379 = vld [vmem:[%s15 + $0x28] sm:$0xff]
    %v3380 = vld [vmem:[%s15 + $0x30] sm:$0xff]
    %v3381 = vld [vmem:[%s15 + $0x38] sm:$0xff]
    %v3382 = vld [vmem:[%s15 + $0x40] sm:$0xff]
    %v3383 = vld [vmem:[%s15 + $0x48] sm:$0xff]
    %v3384 = vld [vmem:[%s15 + $0x50] sm:$0xff]
    %v3385 = vld [vmem:[%s15 + $0x58] sm:$0xff]
    %v3386 = vld [vmem:[%s15 + $0x60] sm:$0xff]
    %v3387 = vld [vmem:[%s15 + $0x68] sm:$0xff]
    %v3388 = vld [vmem:[%s15 + $0x70] sm:$0xff]
    %v3389 = vld [vmem:[%s15 + $0x78] sm:$0xff]
    %v3390 = vld [vmem:[%s15 + $0x80] sm:$0xff]
    %v3391 = vld [vmem:[%s15 + $0x88] sm:$0xff]
    %v3392 = vld [vmem:[%s15 + $0x90] sm:$0xff]
    %v3393 = vld [vmem:[%s15 + $0x98] sm:$0xff]
    %v3394 = vld [vmem:[%s15 + $0xa0] sm:$0xff]
    %v3395 = vld [vmem:[%s15 + $0xa8] sm:$0xff]
    %v3396 = vld [vmem:[%s15 + $0xb0] sm:$0xff]
    %v3397 = vld [vmem:[%s15 + $0xb8] sm:$0xff]
    %v3398 = vld [vmem:[%s15 + $0xc0] sm:$0xff]
    %v3399 = vld [vmem:[%s15 + $0xc8] sm:$0xff]
    %v3400 = vld [vmem:[%s15 + $0xd0] sm:$0xff]
    %v3401 = vld [vmem:[%s15 + $0xd8] sm:$0xff]
    %v3402 = vld [vmem:[%s15 + $0xe0] sm:$0xff]
    %v3403 = vld [vmem:[%s15 + $0xe8] sm:$0xff]
    %v3404 = vld [vmem:[%s15 + $0xf0] sm:$0xff]
    %v3405 = vld [vmem:[%s15 + $0xf8] sm:$0xff]
    %3407 = vset.pattern.permute.xlu0 0
    %3408 = vperm.xlu0 %3407, %v3374
    %v3409 = vpop.permute.xlu0 %3408
    %3412 = vset.pattern.permute.xlu0 0
    %3413 = vperm.xlu0 %3412, %v3375
    %v3414 = vpop.permute.xlu0 %3413
    %3417 = vset.pattern.permute.xlu0 0
    %3418 = vperm.xlu0 %3417, %v3376
    %v3419 = vpop.permute.xlu0 %3418
    %3422 = vset.pattern.permute.xlu0 0
    %3423 = vperm.xlu0 %3422, %v3377
    %v3424 = vpop.permute.xlu0 %3423
    %3427 = vset.pattern.permute.xlu0 0
    %3428 = vperm.xlu0 %3427, %v3378
    %v3429 = vpop.permute.xlu0 %3428
    %3432 = vset.pattern.permute.xlu0 0
    %3433 = vperm.xlu0 %3432, %v3379
    %v3434 = vpop.permute.xlu0 %3433
    %3437 = vset.pattern.permute.xlu0 0
    %3438 = vperm.xlu0 %3437, %v3380
    %v3439 = vpop.permute.xlu0 %3438
    %3442 = vset.pattern.permute.xlu0 0
    %3443 = vperm.xlu0 %3442, %v3381
    %v3444 = vpop.permute.xlu0 %3443
    %3447 = vset.pattern.permute.xlu0 0
    %3448 = vperm.xlu0 %3447, %v3382
    %v3449 = vpop.permute.xlu0 %3448
    %3452 = vset.pattern.permute.xlu0 0
    %3453 = vperm.xlu0 %3452, %v3383
    %v3454 = vpop.permute.xlu0 %3453
    %3457 = vset.pattern.permute.xlu0 0
    %3458 = vperm.xlu0 %3457, %v3384
    %v3459 = vpop.permute.xlu0 %3458
    %3462 = vset.pattern.permute.xlu0 0
    %3463 = vperm.xlu0 %3462, %v3385
    %v3464 = vpop.permute.xlu0 %3463
    %3467 = vset.pattern.permute.xlu0 0
    %3468 = vperm.xlu0 %3467, %v3386
    %v3469 = vpop.permute.xlu0 %3468
    %3472 = vset.pattern.permute.xlu0 0
    %3473 = vperm.xlu0 %3472, %v3387
    %v3474 = vpop.permute.xlu0 %3473
    %3477 = vset.pattern.permute.xlu0 0
    %3478 = vperm.xlu0 %3477, %v3388
    %v3479 = vpop.permute.xlu0 %3478
    %3482 = vset.pattern.permute.xlu0 0
    %3483 = vperm.xlu0 %3482, %v3389
    %v3484 = vpop.permute.xlu0 %3483
    %3487 = vset.pattern.permute.xlu0 0
    %3488 = vperm.xlu0 %3487, %v3390
    %v3489 = vpop.permute.xlu0 %3488
    %3492 = vset.pattern.permute.xlu0 0
    %3493 = vperm.xlu0 %3492, %v3391
    %v3494 = vpop.permute.xlu0 %3493
    %3497 = vset.pattern.permute.xlu0 0
    %3498 = vperm.xlu0 %3497, %v3392
    %v3499 = vpop.permute.xlu0 %3498
    %3502 = vset.pattern.permute.xlu0 0
    %3503 = vperm.xlu0 %3502, %v3393
    %v3504 = vpop.permute.xlu0 %3503
    %3507 = vset.pattern.permute.xlu0 0
    %3508 = vperm.xlu0 %3507, %v3394
    %v3509 = vpop.permute.xlu0 %3508
    %3512 = vset.pattern.permute.xlu0 0
    %3513 = vperm.xlu0 %3512, %v3395
    %v3514 = vpop.permute.xlu0 %3513
    %3517 = vset.pattern.permute.xlu0 0
    %3518 = vperm.xlu0 %3517, %v3396
    %v3519 = vpop.permute.xlu0 %3518
    %3522 = vset.pattern.permute.xlu0 0
    %3523 = vperm.xlu0 %3522, %v3397
    %v3524 = vpop.permute.xlu0 %3523
    %3527 = vset.pattern.permute.xlu0 0
    %3528 = vperm.xlu0 %3527, %v3398
    %v3529 = vpop.permute.xlu0 %3528
    %3532 = vset.pattern.permute.xlu0 0
    %3533 = vperm.xlu0 %3532, %v3399
    %v3534 = vpop.permute.xlu0 %3533
    %3537 = vset.pattern.permute.xlu0 0
    %3538 = vperm.xlu0 %3537, %v3400
    %v3539 = vpop.permute.xlu0 %3538
    %3542 = vset.pattern.permute.xlu0 0
    %3543 = vperm.xlu0 %3542, %v3401
    %v3544 = vpop.permute.xlu0 %3543
    %3547 = vset.pattern.permute.xlu0 0
    %3548 = vperm.xlu0 %3547, %v3402
    %v3549 = vpop.permute.xlu0 %3548
    %3552 = vset.pattern.permute.xlu0 0
    %3553 = vperm.xlu0 %3552, %v3403
    %v3554 = vpop.permute.xlu0 %3553
    %3557 = vset.pattern.permute.xlu0 0
    %3558 = vperm.xlu0 %3557, %v3404
    %v3559 = vpop.permute.xlu0 %3558
    %3562 = vset.pattern.permute.xlu0 0
    %3563 = vperm.xlu0 %3562, %v3405
    %v3564 = vpop.permute.xlu0 %3563
    %v3598 = vunpack.c.l.b16 %v3342
    %v3599 = vunpack.c.l.b16 %v3343
    %v3600 = vunpack.c.l.b16 %v3344
    %v3601 = vunpack.c.l.b16 %v3345
    %v3602 = vunpack.c.l.b16 %v3346
    %v3603 = vunpack.c.l.b16 %v3347
    %v3604 = vunpack.c.l.b16 %v3348
    %v3605 = vunpack.c.l.b16 %v3349
    %v3606 = vunpack.c.l.b16 %v3350
    %v3607 = vunpack.c.l.b16 %v3351
    %v3608 = vunpack.c.l.b16 %v3352
    %v3609 = vunpack.c.l.b16 %v3353
    %v3610 = vunpack.c.l.b16 %v3354
    %v3611 = vunpack.c.l.b16 %v3355
    %v3612 = vunpack.c.l.b16 %v3356
    %v3613 = vunpack.c.l.b16 %v3357
    %v3614 = vunpack.c.l.b16 %v3358
    %v3615 = vunpack.c.l.b16 %v3359
    %v3616 = vunpack.c.l.b16 %v3360
    %v3617 = vunpack.c.l.b16 %v3361
    %v3618 = vunpack.c.l.b16 %v3362
    %v3619 = vunpack.c.l.b16 %v3363
    %v3620 = vunpack.c.l.b16 %v3364
    %v3621 = vunpack.c.l.b16 %v3365
    %v3622 = vunpack.c.l.b16 %v3366
    %v3623 = vunpack.c.l.b16 %v3367
    %v3624 = vunpack.c.l.b16 %v3368
    %v3625 = vunpack.c.l.b16 %v3369
    %v3626 = vunpack.c.l.b16 %v3370
    %v3627 = vunpack.c.l.b16 %v3371
    %v3628 = vunpack.c.l.b16 %v3372
    %v3629 = vunpack.c.l.b16 %v3373
    %v3630 = vpack.c.b16 %v3599, %v3598
    %v3631 = vpack.c.b16 %v3601, %v3600
    %v3632 = vpack.c.b16 %v3603, %v3602
    %v3633 = vpack.c.b16 %v3605, %v3604
    %v3634 = vpack.c.b16 %v3607, %v3606
    %v3635 = vpack.c.b16 %v3609, %v3608
    %v3636 = vpack.c.b16 %v3611, %v3610
    %v3637 = vpack.c.b16 %v3613, %v3612
    %v3638 = vpack.c.b16 %v3615, %v3614
    %v3639 = vpack.c.b16 %v3617, %v3616
    %v3640 = vpack.c.b16 %v3619, %v3618
    %v3641 = vpack.c.b16 %v3621, %v3620
    %v3642 = vpack.c.b16 %v3623, %v3622
    %v3643 = vpack.c.b16 %v3625, %v3624
    %v3644 = vpack.c.b16 %v3627, %v3626
    %v3645 = vpack.c.b16 %v3629, %v3628
    %3662 = vmatprep.subr.bf16.mxu0 %v3319
    %3663 = vmatpush1.bf16.msra.mxu0 %v3318
    %3664 = vmatprep.subr.bf16.mxu0 %v3322
    %3665 = vmatpush1.bf16.msra.mxu0 %v3321
    %3666 = vmatprep.subr.bf16.mxu0 %v3325
    %3667 = vmatpush1.bf16.msra.mxu0 %v3324
    %3668 = vmatprep.subr.bf16.mxu0 %v3328
    %3669 = vmatpush1.bf16.msra.mxu0 %v3327
    %3670 = vmatprep.subr.bf16.mxu0 %v3331
    %3671 = vmatpush1.bf16.msra.mxu0 %v3330
    %3672 = vmatprep.subr.bf16.mxu0 %v3334
    %3673 = vmatpush1.bf16.msra.mxu0 %v3333
    %3674 = vmatprep.subr.bf16.mxu0 %v3337
    %3675 = vmatpush1.bf16.msra.mxu0 %v3336
    %3676 = vmatprep.subr.bf16.mxu0 %v3340
    %3677 = vmatpush1.bf16.msra.mxu0 %v3339
    %3678 = vmatprep.subr.bf16.mxu0 0
    %3679 = vmatpush1.bf16.msra.mxu0 0
    %3680 = vmatprep.subr.bf16.mxu0 0
    %3681 = vmatpush1.bf16.msra.mxu0 0
    %3682 = vmatprep.subr.bf16.mxu0 0
    %3683 = vmatpush1.bf16.msra.mxu0 0
    %3684 = vmatprep.subr.bf16.mxu0 0
    %3685 = vmatpush1.bf16.msra.mxu0 0
    %3686 = vmatprep.subr.bf16.mxu0 0
    %3687 = vmatpush1.bf16.msra.mxu0 0
    %3688 = vmatprep.subr.bf16.mxu0 0
    %3689 = vmatpush1.bf16.msra.mxu0 0
    %3690 = vmatprep.subr.bf16.mxu0 0
    %3691 = vmatpush1.bf16.msra.mxu0 0
    %3692 = vmatprep.subr.bf16.mxu0 0
    %3693 = vmatpush1.bf16.msra.mxu0 0
    %3694 = vmatprep.mubr.bf16.mxu0 0
    %3695 = vmatmul.mubr.bf16.gmra.mrb[0].mxu0 %v3630
    %v3696 = vpop.f32.mrb[0].mxu0
    %v3697 = vadd.f32 %v3409, %v3696
    %v3698 = vpop.f32.mrb[0].mxu0
    %v3699 = vadd.f32 %v3409, %v3698
    %v3700 = vpop.f32.mrb[0].mxu0
    %v3701 = vadd.f32 %v3414, %v3700
    %v3702 = vpop.f32.mrb[0].mxu0
    %v3703 = vadd.f32 %v3414, %v3702
    %3704 = vmatprep.mubr.bf16.mxu0 0
    %3705 = vmatmul.mubr.bf16.gmra.mrb[0].mxu0 %v3631
    %v3706 = vpop.f32.mrb[0].mxu0
    %v3707 = vadd.f32 %v3419, %v3706
    %v3708 = vpop.f32.mrb[0].mxu0
    %v3709 = vadd.f32 %v3419, %v3708
    %v3710 = vpop.f32.mrb[0].mxu0
    %v3711 = vadd.f32 %v3424, %v3710
    %v3712 = vpop.f32.mrb[0].mxu0
    %v3713 = vadd.f32 %v3424, %v3712
    %3714 = vmatprep.mubr.bf16.mxu0 0
    %3715 = vmatmul.mubr.bf16.gmra.mrb[0].mxu0 %v3632
    %v3716 = vpop.f32.mrb[0].mxu0
    %v3717 = vadd.f32 %v3429, %v3716
    %v3718 = vpop.f32.mrb[0].mxu0
    %v3719 = vadd.f32 %v3429, %v3718
    %v3720 = vpop.f32.mrb[0].mxu0
    %v3721 = vadd.f32 %v3434, %v3720
    %v3722 = vpop.f32.mrb[0].mxu0
    %v3723 = vadd.f32 %v3434, %v3722
    %3724 = vmatprep.mubr.bf16.mxu0 0
    %3725 = vmatmul.mubr.bf16.gmra.mrb[0].mxu0 %v3633
    %v3726 = vpop.f32.mrb[0].mxu0
    %v3727 = vadd.f32 %v3439, %v3726
    %v3728 = vpop.f32.mrb[0].mxu0
    %v3729 = vadd.f32 %v3439, %v3728
    %v3730 = vpop.f32.mrb[0].mxu0
    %v3731 = vadd.f32 %v3444, %v3730
    %v3732 = vpop.f32.mrb[0].mxu0
    %v3733 = vadd.f32 %v3444, %v3732
    %3734 = vmatprep.mubr.bf16.mxu0 0
    %3735 = vmatmul.mubr.bf16.gmra.mrb[0].mxu0 %v3634
    %v3736 = vpop.f32.mrb[0].mxu0
    %v3737 = vadd.f32 %v3449, %v3736
    %v3738 = vpop.f32.mrb[0].mxu0
    %v3739 = vadd.f32 %v3449, %v3738
    %v3740 = vpop.f32.mrb[0].mxu0
    %v3741 = vadd.f32 %v3454, %v3740
    %v3742 = vpop.f32.mrb[0].mxu0
    %v3743 = vadd.f32 %v3454, %v3742
    %3744 = vmatprep.mubr.bf16.mxu0 0
    %3745 = vmatmul.mubr.bf16.gmra.mrb[0].mxu0 %v3635
    %v3746 = vpop.f32.mrb[0].mxu0
    %v3747 = vadd.f32 %v3459, %v3746
    %v3748 = vpop.f32.mrb[0].mxu0
    %v3749 = vadd.f32 %v3459, %v3748
    %v3750 = vpop.f32.mrb[0].mxu0
    %v3751 = vadd.f32 %v3464, %v3750
    %v3752 = vpop.f32.mrb[0].mxu0
    %v3753 = vadd.f32 %v3464, %v3752
    %3754 = vmatprep.mubr.bf16.mxu0 0
    %3755 = vmatmul.mubr.bf16.gmra.mrb[0].mxu0 %v3636
    %v3756 = vpop.f32.mrb[0].mxu0
    %v3757 = vadd.f32 %v3469, %v3756
    %v3758 = vpop.f32.mrb[0].mxu0
    %v3759 = vadd.f32 %v3469, %v3758
    %v3760 = vpop.f32.mrb[0].mxu0
    %v3761 = vadd.f32 %v3474, %v3760
    %v3762 = vpop.f32.mrb[0].mxu0
    %v3763 = vadd.f32 %v3474, %v3762
    %3764 = vmatprep.mubr.bf16.mxu0 0
    %3765 = vmatmul.mubr.bf16.gmra.mrb[0].mxu0 %v3637
    %v3766 = vpop.f32.mrb[0].mxu0
    %v3767 = vadd.f32 %v3479, %v3766
    %v3768 = vpop.f32.mrb[0].mxu0
    %v3769 = vadd.f32 %v3479, %v3768
    %v3770 = vpop.f32.mrb[0].mxu0
    %v3771 = vadd.f32 %v3484, %v3770
    %v3772 = vpop.f32.mrb[0].mxu0
    %v3773 = vadd.f32 %v3484, %v3772
    %3774 = vmatprep.mubr.bf16.mxu0 0
    %3775 = vmatmul.mubr.bf16.gmra.mrb[0].mxu0 %v3638
    %v3776 = vpop.f32.mrb[0].mxu0
    %v3777 = vadd.f32 %v3489, %v3776
    %v3778 = vpop.f32.mrb[0].mxu0
    %v3779 = vadd.f32 %v3489, %v3778
    %v3780 = vpop.f32.mrb[0].mxu0
    %v3781 = vadd.f32 %v3494, %v3780
    %v3782 = vpop.f32.mrb[0].mxu0
    %v3783 = vadd.f32 %v3494, %v3782
    %3784 = vmatprep.mubr.bf16.mxu0 0
    %3785 = vmatmul.mubr.bf16.gmra.mrb[0].mxu0 %v3639
    %v3786 = vpop.f32.mrb[0].mxu0
    %v3787 = vadd.f32 %v3499, %v3786
    %v3788 = vpop.f32.mrb[0].mxu0
    %v3789 = vadd.f32 %v3499, %v3788
    %v3790 = vpop.f32.mrb[0].mxu0
    %v3791 = vadd.f32 %v3504, %v3790
    %v3792 = vpop.f32.mrb[0].mxu0
    %v3793 = vadd.f32 %v3504, %v3792
    %3794 = vmatprep.mubr.bf16.mxu0 0
    %3795 = vmatmul.mubr.bf16.gmra.mrb[0].mxu0 %v3640
    %v3796 = vpop.f32.mrb[0].mxu0
    %v3797 = vadd.f32 %v3509, %v3796
    %v3798 = vpop.f32.mrb[0].mxu0
    %v3799 = vadd.f32 %v3509, %v3798
    %v3800 = vpop.f32.mrb[0].mxu0
    %v3801 = vadd.f32 %v3514, %v3800
    %v3802 = vpop.f32.mrb[0].mxu0
    %v3803 = vadd.f32 %v3514, %v3802
    %3804 = vmatprep.mubr.bf16.mxu0 0
    %3805 = vmatmul.mubr.bf16.gmra.mrb[0].mxu0 %v3641
    %v3806 = vpop.f32.mrb[0].mxu0
    %v3807 = vadd.f32 %v3519, %v3806
    %v3808 = vpop.f32.mrb[0].mxu0
    %v3809 = vadd.f32 %v3519, %v3808
    %v3810 = vpop.f32.mrb[0].mxu0
    %v3811 = vadd.f32 %v3524, %v3810
    %v3812 = vpop.f32.mrb[0].mxu0
    %v3813 = vadd.f32 %v3524, %v3812
    %3814 = vmatprep.mubr.bf16.mxu0 0
    %3815 = vmatmul.mubr.bf16.gmra.mrb[0].mxu0 %v3642
    %v3816 = vpop.f32.mrb[0].mxu0
    %v3817 = vadd.f32 %v3529, %v3816
    %v3818 = vpop.f32.mrb[0].mxu0
    %v3819 = vadd.f32 %v3529, %v3818
    %v3820 = vpop.f32.mrb[0].mxu0
    %v3821 = vadd.f32 %v3534, %v3820
    %v3822 = vpop.f32.mrb[0].mxu0
    %v3823 = vadd.f32 %v3534, %v3822
    %3824 = vmatprep.mubr.bf16.mxu0 0
    %3825 = vmatmul.mubr.bf16.gmra.mrb[0].mxu0 %v3643
    %v3826 = vpop.f32.mrb[0].mxu0
    %v3827 = vadd.f32 %v3539, %v3826
    %v3828 = vpop.f32.mrb[0].mxu0
    %v3829 = vadd.f32 %v3539, %v3828
    %v3830 = vpop.f32.mrb[0].mxu0
    %v3831 = vadd.f32 %v3544, %v3830
    %v3832 = vpop.f32.mrb[0].mxu0
    %v3833 = vadd.f32 %v3544, %v3832
    %3834 = vmatprep.mubr.bf16.mxu0 0
    %3835 = vmatmul.mubr.bf16.gmra.mrb[0].mxu0 %v3644
    %v3836 = vpop.f32.mrb[0].mxu0
    %v3837 = vadd.f32 %v3549, %v3836
    %v3838 = vpop.f32.mrb[0].mxu0
    %v3839 = vadd.f32 %v3549, %v3838
    %v3840 = vpop.f32.mrb[0].mxu0
    %v3841 = vadd.f32 %v3554, %v3840
    %v3842 = vpop.f32.mrb[0].mxu0
    %v3843 = vadd.f32 %v3554, %v3842
    %3844 = vmatprep.mubr.bf16.mxu0 0
    %3845 = vmatmul.mubr.bf16.gmra.mrb[0].mxu0 %v3645
    %v3846 = vpop.f32.mrb[0].mxu0
    %v3847 = vadd.f32 %v3559, %v3846
    %v3848 = vpop.f32.mrb[0].mxu0
    %v3849 = vadd.f32 %v3559, %v3848
    %v3850 = vpop.f32.mrb[0].mxu0
    %v3851 = vadd.f32 %v3564, %v3850
    %v3852 = vpop.f32.mrb[0].mxu0
    %v3853 = vadd.f32 %v3564, %v3852
    %3854 = vdwg.mxu0
    %3855 = vmatprep.subr.bf16.mxu0 0
    %3856 = vmatpush1.bf16.msra.mxu0 %v3320
    %3857 = vmatprep.subr.bf16.mxu0 0
    %3858 = vmatpush1.bf16.msra.mxu0 %v3323
    %3859 = vmatprep.subr.bf16.mxu0 0
    %3860 = vmatpush1.bf16.msra.mxu0 %v3326
    %3861 = vmatprep.subr.bf16.mxu0 0
    %3862 = vmatpush1.bf16.msra.mxu0 %v3329
    %3863 = vmatprep.subr.bf16.mxu0 0
    %3864 = vmatpush1.bf16.msra.mxu0 %v3332
    %3865 = vmatprep.subr.bf16.mxu0 0
    %3866 = vmatpush1.bf16.msra.mxu0 %v3335
    %3867 = vmatprep.subr.bf16.mxu0 0
    %3868 = vmatpush1.bf16.msra.mxu0 %v3338
    %3869 = vmatprep.subr.bf16.mxu0 0
    %3870 = vmatpush1.bf16.msra.mxu0 %v3341
    %3871 = vmatprep.subr.bf16.mxu0 0
    %3872 = vmatpush1.bf16.msra.mxu0 0
    %3873 = vmatprep.subr.bf16.mxu0 0
    %3874 = vmatpush1.bf16.msra.mxu0 0
    %3875 = vmatprep.subr.bf16.mxu0 0
    %3876 = vmatpush1.bf16.msra.mxu0 0
    %3877 = vmatprep.subr.bf16.mxu0 0
    %3878 = vmatpush1.bf16.msra.mxu0 0
    %3879 = vmatprep.subr.bf16.mxu0 0
    %3880 = vmatpush1.bf16.msra.mxu0 0
    %3881 = vmatprep.subr.bf16.mxu0 0
    %3882 = vmatpush1.bf16.msra.mxu0 0
    %3883 = vmatprep.subr.bf16.mxu0 0
    %3884 = vmatpush1.bf16.msra.mxu0 0
    %3885 = vmatprep.subr.bf16.mxu0 0
    %3886 = vmatpush1.bf16.msra.mxu0 0
    %3887 = vmatprep.mubr.bf16.mxu0 0
    %3888 = vmatmul.mubr.bf16.gmra.mrb[0].mxu0 %v3630
    %v3889 = vpop.f32.mrb[0].mxu0
    %v3890 = vadd.f32 %v3409, %v3889
    %v3891 = vpop.f32.mrb[0].mxu0
    %v3892 = vpop.f32.mrb[0].mxu0
    %v3893 = vadd.f32 %v3414, %v3892
    %v3894 = vpop.f32.mrb[0].mxu0
    %3895 = vmatprep.mubr.bf16.mxu0 0
    %3896 = vmatmul.mubr.bf16.gmra.mrb[0].mxu0 %v3631
    %v3897 = vpop.f32.mrb[0].mxu0
    %v3898 = vadd.f32 %v3419, %v3897
    %v3899 = vpop.f32.mrb[0].mxu0
    %v3900 = vpop.f32.mrb[0].mxu0
    %v3901 = vadd.f32 %v3424, %v3900
    %v3902 = vpop.f32.mrb[0].mxu0
    %3903 = vmatprep.mubr.bf16.mxu0 0
    %3904 = vmatmul.mubr.bf16.gmra.mrb[0].mxu0 %v3632
    %v3905 = vpop.f32.mrb[0].mxu0
    %v3906 = vadd.f32 %v3429, %v3905
    %v3907 = vpop.f32.mrb[0].mxu0
    %v3908 = vpop.f32.mrb[0].mxu0
    %v3909 = vadd.f32 %v3434, %v3908
    %v3910 = vpop.f32.mrb[0].mxu0
    %3911 = vmatprep.mubr.bf16.mxu0 0
    %3912 = vmatmul.mubr.bf16.gmra.mrb[0].mxu0 %v3633
    %v3913 = vpop.f32.mrb[0].mxu0
    %v3914 = vadd.f32 %v3439, %v3913
    %v3915 = vpop.f32.mrb[0].mxu0
    %v3916 = vpop.f32.mrb[0].mxu0
    %v3917 = vadd.f32 %v3444, %v3916
    %v3918 = vpop.f32.mrb[0].mxu0
    %3919 = vmatprep.mubr.bf16.mxu0 0
    %3920 = vmatmul.mubr.bf16.gmra.mrb[0].mxu0 %v3634
    %v3921 = vpop.f32.mrb[0].mxu0
    %v3922 = vadd.f32 %v3449, %v3921
    %v3923 = vpop.f32.mrb[0].mxu0
    %v3924 = vpop.f32.mrb[0].mxu0
    %v3925 = vadd.f32 %v3454, %v3924
    %v3926 = vpop.f32.mrb[0].mxu0
    %3927 = vmatprep.mubr.bf16.mxu0 0
    %3928 = vmatmul.mubr.bf16.gmra.mrb[0].mxu0 %v3635
    %v3929 = vpop.f32.mrb[0].mxu0
    %v3930 = vadd.f32 %v3459, %v3929
    %v3931 = vpop.f32.mrb[0].mxu0
    %v3932 = vpop.f32.mrb[0].mxu0
    %v3933 = vadd.f32 %v3464, %v3932
    %v3934 = vpop.f32.mrb[0].mxu0
    %3935 = vmatprep.mubr.bf16.mxu0 0
    %3936 = vmatmul.mubr.bf16.gmra.mrb[0].mxu0 %v3636
    %v3937 = vpop.f32.mrb[0].mxu0
    %v3938 = vadd.f32 %v3469, %v3937
    %v3939 = vpop.f32.mrb[0].mxu0
    %v3940 = vpop.f32.mrb[0].mxu0
    %v3941 = vadd.f32 %v3474, %v3940
    %v3942 = vpop.f32.mrb[0].mxu0
    %3943 = vmatprep.mubr.bf16.mxu0 0
    %3944 = vmatmul.mubr.bf16.gmra.mrb[0].mxu0 %v3637
    %v3945 = vpop.f32.mrb[0].mxu0
    %v3946 = vadd.f32 %v3479, %v3945
    %v3947 = vpop.f32.mrb[0].mxu0
    %v3948 = vpop.f32.mrb[0].mxu0
    %v3949 = vadd.f32 %v3484, %v3948
    %v3950 = vpop.f32.mrb[0].mxu0
    %3951 = vmatprep.mubr.bf16.mxu0 0
    %3952 = vmatmul.mubr.bf16.gmra.mrb[0].mxu0 %v3638
    %v3953 = vpop.f32.mrb[0].mxu0
    %v3954 = vadd.f32 %v3489, %v3953
    %v3955 = vpop.f32.mrb[0].mxu0
    %v3956 = vpop.f32.mrb[0].mxu0
    %v3957 = vadd.f32 %v3494, %v3956
    %v3958 = vpop.f32.mrb[0].mxu0
    %3959 = vmatprep.mubr.bf16.mxu0 0
    %3960 = vmatmul.mubr.bf16.gmra.mrb[0].mxu0 %v3639
    %v3961 = vpop.f32.mrb[0].mxu0
    %v3962 = vadd.f32 %v3499, %v3961
    %v3963 = vpop.f32.mrb[0].mxu0
    %v3964 = vpop.f32.mrb[0].mxu0
    %v3965 = vadd.f32 %v3504, %v3964
    %v3966 = vpop.f32.mrb[0].mxu0
    %3967 = vmatprep.mubr.bf16.mxu0 0
    %3968 = vmatmul.mubr.bf16.gmra.mrb[0].mxu0 %v3640
    %v3969 = vpop.f32.mrb[0].mxu0
    %v3970 = vadd.f32 %v3509, %v3969
    %v3971 = vpop.f32.mrb[0].mxu0
    %v3972 = vpop.f32.mrb[0].mxu0
    %v3973 = vadd.f32 %v3514, %v3972
    %v3974 = vpop.f32.mrb[0].mxu0
    %3975 = vmatprep.mubr.bf16.mxu0 0
    %3976 = vmatmul.mubr.bf16.gmra.mrb[0].mxu0 %v3641
    %v3977 = vpop.f32.mrb[0].mxu0
    %v3978 = vadd.f32 %v3519, %v3977
    %v3979 = vpop.f32.mrb[0].mxu0
    %v3980 = vpop.f32.mrb[0].mxu0
    %v3981 = vadd.f32 %v3524, %v3980
    %v3982 = vpop.f32.mrb[0].mxu0
    %3983 = vmatprep.mubr.bf16.mxu0 0
    %3984 = vmatmul.mubr.bf16.gmra.mrb[0].mxu0 %v3642
    %v3985 = vpop.f32.mrb[0].mxu0
    %v3986 = vadd.f32 %v3529, %v3985
    %v3987 = vpop.f32.mrb[0].mxu0
    %v3988 = vpop.f32.mrb[0].mxu0
    %v3989 = vadd.f32 %v3534, %v3988
    %v3990 = vpop.f32.mrb[0].mxu0
    %3991 = vmatprep.mubr.bf16.mxu0 0
    %3992 = vmatmul.mubr.bf16.gmra.mrb[0].mxu0 %v3643
    %v3993 = vpop.f32.mrb[0].mxu0
    %v3994 = vadd.f32 %v3539, %v3993
    %v3995 = vpop.f32.mrb[0].mxu0
    %v3996 = vpop.f32.mrb[0].mxu0
    %v3997 = vadd.f32 %v3544, %v3996
    %v3998 = vpop.f32.mrb[0].mxu0
    %3999 = vmatprep.mubr.bf16.mxu0 0
    %4000 = vmatmul.mubr.bf16.gmra.mrb[0].mxu0 %v3644
    %v4001 = vpop.f32.mrb[0].mxu0
    %v4002 = vadd.f32 %v3549, %v4001
    %v4003 = vpop.f32.mrb[0].mxu0
    %v4004 = vpop.f32.mrb[0].mxu0
    %v4005 = vadd.f32 %v3554, %v4004
    %v4006 = vpop.f32.mrb[0].mxu0
    %4007 = vmatprep.mubr.bf16.mxu0 0
    %4008 = vmatmul.mubr.bf16.gmra.mrb[0].mxu0 %v3645
    %v4009 = vpop.f32.mrb[0].mxu0
    %v4010 = vadd.f32 %v3559, %v4009
    %v4011 = vpop.f32.mrb[0].mxu0
    %v4012 = vpop.f32.mrb[0].mxu0
    %v4013 = vadd.f32 %v3564, %v4012
    %v4014 = vpop.f32.mrb[0].mxu0
    %4015 = vdwg.mxu0
    %v4016 = vmax.f32 %v3697, %v3699
    %v4017 = vmax.f32 %v3701, %v3703
    %v4018 = vmax.f32 %v3707, %v3709
    %v4019 = vmax.f32 %v3711, %v3713
    %v4020 = vmax.f32 %v3717, %v3719
    %v4021 = vmax.f32 %v3721, %v3723
    %v4022 = vmax.f32 %v3727, %v3729
    %v4023 = vmax.f32 %v3731, %v3733
    %v4024 = vmax.f32 %v3737, %v3739
    %v4025 = vmax.f32 %v3741, %v3743
    %v4026 = vmax.f32 %v3747, %v3749
    %v4027 = vmax.f32 %v3751, %v3753
    %v4028 = vmax.f32 %v3757, %v3759
    %v4029 = vmax.f32 %v3761, %v3763
    %v4030 = vmax.f32 %v3767, %v3769
    %v4031 = vmax.f32 %v3771, %v3773
    %v4032 = vmax.f32 %v3777, %v3779
    %v4033 = vmax.f32 %v3781, %v3783
    %v4034 = vmax.f32 %v3787, %v3789
    %v4035 = vmax.f32 %v3791, %v3793
    %v4036 = vmax.f32 %v3797, %v3799
    %v4037 = vmax.f32 %v3801, %v3803
    %v4038 = vmax.f32 %v3807, %v3809
    %v4039 = vmax.f32 %v3811, %v3813
    %v4040 = vmax.f32 %v3817, %v3819
    %v4041 = vmax.f32 %v3821, %v3823
    %v4042 = vmax.f32 %v3827, %v3829
    %v4043 = vmax.f32 %v3831, %v3833
    %v4044 = vmax.f32 %v3837, %v3839
    %v4045 = vmax.f32 %v3841, %v3843
    %v4046 = vmax.f32 %v3847, %v3849
    %v4047 = vmax.f32 %v3851, %v3853
    %v4048 = vmax.f32 %v4016, %v3890
    %v4049 = vmax.f32 %v4017, %v3893
    %v4050 = vmax.f32 %v4018, %v3898
    %v4051 = vmax.f32 %v4019, %v3901
    %v4052 = vmax.f32 %v4020, %v3906
    %v4053 = vmax.f32 %v4021, %v3909
    %v4054 = vmax.f32 %v4022, %v3914
    %v4055 = vmax.f32 %v4023, %v3917
    %v4056 = vmax.f32 %v4024, %v3922
    %v4057 = vmax.f32 %v4025, %v3925
    %v4058 = vmax.f32 %v4026, %v3930
    %v4059 = vmax.f32 %v4027, %v3933
    %v4060 = vmax.f32 %v4028, %v3938
    %v4061 = vmax.f32 %v4029, %v3941
    %v4062 = vmax.f32 %v4030, %v3946
    %v4063 = vmax.f32 %v4031, %v3949
    %v4064 = vmax.f32 %v4032, %v3954
    %v4065 = vmax.f32 %v4033, %v3957
    %v4066 = vmax.f32 %v4034, %v3962
    %v4067 = vmax.f32 %v4035, %v3965
    %v4068 = vmax.f32 %v4036, %v3970
    %v4069 = vmax.f32 %v4037, %v3973
    %v4070 = vmax.f32 %v4038, %v3978
    %v4071 = vmax.f32 %v4039, %v3981
    %v4072 = vmax.f32 %v4040, %v3986
    %v4073 = vmax.f32 %v4041, %v3989
    %v4074 = vmax.f32 %v4042, %v3994
    %v4075 = vmax.f32 %v4043, %v3997
    %v4076 = vmax.f32 %v4044, %v4002
    %v4077 = vmax.f32 %v4045, %v4005
    %v4078 = vmax.f32 %v4046, %v4010
    %v4079 = vmax.f32 %v4047, %v4013
    %v4080 = vadd.f32 %v1673, %v65
    %v4081 = vadd.f32 %v1676, %v66
    %v4082 = vadd.f32 %v1681, %v67
    %v4083 = vadd.f32 %v1684, %v68
    %v4084 = vadd.f32 %v1689, %v69
    %v4085 = vadd.f32 %v1692, %v70
    %v4086 = vadd.f32 %v1697, %v71
    %v4087 = vadd.f32 %v1700, %v72
    %v4088 = vadd.f32 %v1705, %v73
    %v4089 = vadd.f32 %v1708, %v74
    %v4090 = vadd.f32 %v1713, %v75
    %v4091 = vadd.f32 %v1716, %v76
    %v4092 = vadd.f32 %v1721, %v77
    %v4093 = vadd.f32 %v1724, %v78
    %v4094 = vadd.f32 %v1729, %v79
    %v4095 = vadd.f32 %v1732, %v80
    %v4096 = vadd.f32 %v1737, %v81
    %v4097 = vadd.f32 %v1740, %v82
    %v4098 = vadd.f32 %v1745, %v83
    %v4099 = vadd.f32 %v1748, %v84
    %v4100 = vadd.f32 %v1753, %v85
    %v4101 = vadd.f32 %v1756, %v86
    %v4102 = vadd.f32 %v1761, %v87
    %v4103 = vadd.f32 %v1764, %v88
    %v4104 = vadd.f32 %v1769, %v89
    %v4105 = vadd.f32 %v1772, %v90
    %v4106 = vadd.f32 %v1777, %v91
    %v4107 = vadd.f32 %v1780, %v92
    %v4108 = vadd.f32 %v1785, %v93
    %v4109 = vadd.f32 %v1788, %v94
    %v4110 = vadd.f32 %v1793, %v95
    %v4111 = vadd.f32 %v1796, %v96
    %v4112 = vadd.f32 %v4080, %v4048
    %v4113 = vadd.f32 %v4081, %v4049
    %v4114 = vadd.f32 %v4082, %v4050
    %v4115 = vadd.f32 %v4083, %v4051
    %v4116 = vadd.f32 %v4084, %v4052
    %v4117 = vadd.f32 %v4085, %v4053
    %v4118 = vadd.f32 %v4086, %v4054
    %v4119 = vadd.f32 %v4087, %v4055
    %v4120 = vadd.f32 %v4088, %v4056
    %v4121 = vadd.f32 %v4089, %v4057
    %v4122 = vadd.f32 %v4090, %v4058
    %v4123 = vadd.f32 %v4091, %v4059
    %v4124 = vadd.f32 %v4092, %v4060
    %v4125 = vadd.f32 %v4093, %v4061
    %v4126 = vadd.f32 %v4094, %v4062
    %v4127 = vadd.f32 %v4095, %v4063
    %v4128 = vadd.f32 %v4096, %v4064
    %v4129 = vadd.f32 %v4097, %v4065
    %v4130 = vadd.f32 %v4098, %v4066
    %v4131 = vadd.f32 %v4099, %v4067
    %v4132 = vadd.f32 %v4100, %v4068
    %v4133 = vadd.f32 %v4101, %v4069
    %v4134 = vadd.f32 %v4102, %v4070
    %v4135 = vadd.f32 %v4103, %v4071
    %v4136 = vadd.f32 %v4104, %v4072
    %v4137 = vadd.f32 %v4105, %v4073
    %v4138 = vadd.f32 %v4106, %v4074
    %v4139 = vadd.f32 %v4107, %v4075
    %v4140 = vadd.f32 %v4108, %v4076
    %v4141 = vadd.f32 %v4109, %v4077
    %v4142 = vadd.f32 %v4110, %v4078
    %v4143 = vadd.f32 %v4111, %v4079
    %v4144 = vmax.f32 %v4112, 0.0
    %v4145 = vmax.f32 %v4113, 0.0
    %v4146 = vmax.f32 %v4114, 0.0
    %v4147 = vmax.f32 %v4115, 0.0
    %v4148 = vmax.f32 %v4116, 0.0
    %v4149 = vmax.f32 %v4117, 0.0
    %v4150 = vmax.f32 %v4118, 0.0
    %v4151 = vmax.f32 %v4119, 0.0
    %v4152 = vmax.f32 %v4120, 0.0
    %v4153 = vmax.f32 %v4121, 0.0
    %v4154 = vmax.f32 %v4122, 0.0
    %v4155 = vmax.f32 %v4123, 0.0
    %v4156 = vmax.f32 %v4124, 0.0
    %v4157 = vmax.f32 %v4125, 0.0
    %v4158 = vmax.f32 %v4126, 0.0
    %v4159 = vmax.f32 %v4127, 0.0
    %v4160 = vmax.f32 %v4128, 0.0
    %v4161 = vmax.f32 %v4129, 0.0
    %v4162 = vmax.f32 %v4130, 0.0
    %v4163 = vmax.f32 %v4131, 0.0
    %v4164 = vmax.f32 %v4132, 0.0
    %v4165 = vmax.f32 %v4133, 0.0
    %v4166 = vmax.f32 %v4134, 0.0
    %v4167 = vmax.f32 %v4135, 0.0
    %v4168 = vmax.f32 %v4136, 0.0
    %v4169 = vmax.f32 %v4137, 0.0
    %v4170 = vmax.f32 %v4138, 0.0
    %v4171 = vmax.f32 %v4139, 0.0
    %v4172 = vmax.f32 %v4140, 0.0
    %v4173 = vmax.f32 %v4141, 0.0
    %v4174 = vmax.f32 %v4142, 0.0
    %v4175 = vmax.f32 %v4143, 0.0
    %4176 = vst [vmem:[%s18] sm:$0xff] %v4144
    %4177 = vst [vmem:[%s18 + $0x8] sm:$0xff] %v4145
    %4178 = vst [vmem:[%s18 + $0x10] sm:$0xff] %v4146
    %4179 = vst [vmem:[%s18 + $0x18] sm:$0xff] %v4147
    %4180 = vst [vmem:[%s18 + $0x20] sm:$0xff] %v4148
    %4181 = vst [vmem:[%s18 + $0x28] sm:$0xff] %v4149
    %4182 = vst [vmem:[%s18 + $0x30] sm:$0xff] %v4150
    %4183 = vst [vmem:[%s18 + $0x38] sm:$0xff] %v4151
    %4184 = vst [vmem:[%s18 + $0x40] sm:$0xff] %v4152
    %4185 = vst [vmem:[%s18 + $0x48] sm:$0xff] %v4153
    %4186 = vst [vmem:[%s18 + $0x50] sm:$0xff] %v4154
    %4187 = vst [vmem:[%s18 + $0x58] sm:$0xff] %v4155
    %4188 = vst [vmem:[%s18 + $0x60] sm:$0xff] %v4156
    %4189 = vst [vmem:[%s18 + $0x68] sm:$0xff] %v4157
    %4190 = vst [vmem:[%s18 + $0x70] sm:$0xff] %v4158
    %4191 = vst [vmem:[%s18 + $0x78] sm:$0xff] %v4159
    %4192 = vst [vmem:[%s18 + $0x80] sm:$0xff] %v4160
    %4193 = vst [vmem:[%s18 + $0x88] sm:$0xff] %v4161
    %4194 = vst [vmem:[%s18 + $0x90] sm:$0xff] %v4162
    %4195 = vst [vmem:[%s18 + $0x98] sm:$0xff] %v4163
    %4196 = vst [vmem:[%s18 + $0xa0] sm:$0xff] %v4164
    %4197 = vst [vmem:[%s18 + $0xa8] sm:$0xff] %v4165
    %4198 = vst [vmem:[%s18 + $0xb0] sm:$0xff] %v4166
    %4199 = vst [vmem:[%s18 + $0xb8] sm:$0xff] %v4167
    %4200 = vst [vmem:[%s18 + $0xc0] sm:$0xff] %v4168
    %4201 = vst [vmem:[%s18 + $0xc8] sm:$0xff] %v4169
    %4202 = vst [vmem:[%s18 + $0xd0] sm:$0xff] %v4170
    %4203 = vst [vmem:[%s18 + $0xd8] sm:$0xff] %v4171
    %4204 = vst [vmem:[%s18 + $0xe0] sm:$0xff] %v4172
    %4205 = vst [vmem:[%s18 + $0xe8] sm:$0xff] %v4173
    %4206 = vst [vmem:[%s18 + $0xf0] sm:$0xff] %v4174
    %4207 = vst [vmem:[%s18 + $0xf8] sm:$0xff] %v4175
    %v4208 = vld [vmem:[%s16] sm:$0x3]
    %v4209 = vld [vmem:[#allocation2] sm:$0x1]
    %4211 = vset.pattern.permute.xlu0 0
    %4212 = vperm.xlu0 %4211, %v4209
    %v4213 = vpop.permute.xlu0 %4212
    %v4215 = vlaneseq
    %v4216 = vshrl.u32 %v4215, 7
    %v4217 = vsub.s32 0, %v4216
    %v4218 = vrot.slane %v4213, %v4217
    %v4220 = vlaneseq
    %v4221 = vshrl.u32 %v4220, 7
    %v4222 = vsub.s32 0, %v4221
    %v4223 = vrot.slane %v4208, %v4222
    %v4224 = vlaneseq
    %v4225 = vshrl.u32 %v4224, 7
    %v4226 = vsub.s32 1, %v4225
    %v4227 = vrot.slane %v4208, %v4226
    %4230 = vmatprep.subr.mxu0 0.0
    %4231 = vmatpush1.msra.mxu0 %v4144
    %4232 = vmatprep.subr.mxu0 0.0
    %4233 = vmatpush1.msra.mxu0 %v4145
    %4234 = vmatprep.subr.mxu0 0.0
    %4235 = vmatpush1.msra.mxu0 %v4146
    %4236 = vmatprep.subr.mxu0 0.0
    %4237 = vmatpush1.msra.mxu0 %v4147
    %4238 = vmatprep.subr.mxu0 0.0
    %4239 = vmatpush1.msra.mxu0 %v4148
    %4240 = vmatprep.subr.mxu0 0.0
    %4241 = vmatpush1.msra.mxu0 %v4149
    %4242 = vmatprep.subr.mxu0 0.0
    %4243 = vmatpush1.msra.mxu0 %v4150
    %4244 = vmatprep.subr.mxu0 0.0
    %4245 = vmatpush1.msra.mxu0 %v4151
    %4246 = vmatprep.subr.mxu0 0.0
    %4247 = vmatpush1.msra.mxu0 %v4152
    %4248 = vmatprep.subr.mxu0 0.0
    %4249 = vmatpush1.msra.mxu0 %v4153
    %4250 = vmatprep.subr.mxu0 0.0
    %4251 = vmatpush1.msra.mxu0 %v4154
    %4252 = vmatprep.subr.mxu0 0.0
    %4253 = vmatpush1.msra.mxu0 %v4155
    %4254 = vmatprep.subr.mxu0 0.0
    %4255 = vmatpush1.msra.mxu0 %v4156
    %4256 = vmatprep.subr.mxu0 0.0
    %4257 = vmatpush1.msra.mxu0 %v4157
    %4258 = vmatprep.subr.mxu0 0.0
    %4259 = vmatpush1.msra.mxu0 %v4158
    %4260 = vmatprep.subr.mxu0 0.0
    %4261 = vmatpush1.msra.mxu0 %v4159
    %4262 = vmatprep.subr.mxu0 0.0
    %4263 = vmatpush1.msra.mxu0 %v4160
    %4264 = vmatprep.subr.mxu0 0.0
    %4265 = vmatpush1.msra.mxu0 %v4161
    %4266 = vmatprep.subr.mxu0 0.0
    %4267 = vmatpush1.msra.mxu0 %v4162
    %4268 = vmatprep.subr.mxu0 0.0
    %4269 = vmatpush1.msra.mxu0 %v4163
    %4270 = vmatprep.subr.mxu0 0.0
    %4271 = vmatpush1.msra.mxu0 %v4164
    %4272 = vmatprep.subr.mxu0 0.0
    %4273 = vmatpush1.msra.mxu0 %v4165
    %4274 = vmatprep.subr.mxu0 0.0
    %4275 = vmatpush1.msra.mxu0 %v4166
    %4276 = vmatprep.subr.mxu0 0.0
    %4277 = vmatpush1.msra.mxu0 %v4167
    %4278 = vmatprep.subr.mxu0 0.0
    %4279 = vmatpush1.msra.mxu0 %v4168
    %4280 = vmatprep.subr.mxu0 0.0
    %4281 = vmatpush1.msra.mxu0 %v4169
    %4282 = vmatprep.subr.mxu0 0.0
    %4283 = vmatpush1.msra.mxu0 %v4170
    %4284 = vmatprep.subr.mxu0 0.0
    %4285 = vmatpush1.msra.mxu0 %v4171
    %4286 = vmatprep.subr.mxu0 0.0
    %4287 = vmatpush1.msra.mxu0 %v4172
    %4288 = vmatprep.subr.mxu0 0.0
    %4289 = vmatpush1.msra.mxu0 %v4173
    %4290 = vmatprep.subr.mxu0 0.0
    %4291 = vmatpush1.msra.mxu0 %v4174
    %4292 = vmatprep.subr.mxu0 0.0
    %4293 = vmatpush1.msra.mxu0 %v4175
    %4294 = vmatprep.mubr.f32.mxu0 %v4227
    %4295 = vmatmul.mubr.f32.gmra.mrb[0].mxu0 %v4223
    %v4296 = vpop.f32.mrb[0].mxu0
    %v4297 = vadd.f32 %v4218, %v4296
    %v4298 = vpop.f32.mrb[0].mxu0
    %4299 = vdwg.mxu0
    %v4300 = vxor.u32 %v4297, 2147483648
    %v4301 = vmul.f32 %v4300, 1.442695
    %v4302 = vpow.pop %v4301
    %v4303 = vadd.f32 %v4302, 1.0
    %v4304 = vrcp.pop %v4303
    %v4305 = vmul.f32 1.0, %v4304
    %4306 = vst [vmem:[#allocation3] sm:$0x1] %v4305
    // Predicated region
    $region74: #{gtad_forward.7} parent=1 // pred_check
      _
    $region75: #{gtad_forward.7} parent=1 // pred_check_branch
      %4308 = sbr.rel (0) target = $region77
    $region76: #{gtad_forward.7} parent=1 // pred_region
      _
    $region77: #{gtad_forward.7} parent=1 // pred_fallthru
      _
    // Predicated region
    $region78: #{gtad_forward.7} parent=1 // pred_check
      _
    $region79: #{gtad_forward.7} parent=1 // pred_check_branch
      %4310 = sbr.rel (0) target = $region81
    $region80: #{gtad_forward.7} parent=1 // pred_region
      %s4312 = ssub.s32 16, 16
      %4313 = vsyncadd [#allocation4], %s4312
      %s4315 = sshll.u32 [#allocation3], 4
      %s4316 = int_to_ptr.vmem [resolvable:$true] %s4315
      %4318 = dma.vmem_to_hbm [thread:$0]  %s4316, 16, %s19, [#allocation4]
    $region81: #{gtad_forward.7} parent=1 // pred_fallthru
      _
    // Predicated region
    $region82: #{gtad_forward.7} parent=1 // pred_check
      _
    $region83: #{gtad_forward.7} parent=1 // pred_check_branch
      %4320 = sbr.rel (0) target = $region85
    $region84: #{gtad_forward.7} parent=1 // pred_region
      _
    $region85: #{gtad_forward.7} parent=1 // pred_fallthru
      _
    // Predicated region
    $region86: #{gtad_forward.7} parent=1 // pred_check
      _
    $region87: #{gtad_forward.7} parent=1 // pred_check_branch
      %4322 = sbr.rel (0) target = $region89
    $region88: #{gtad_forward.7} parent=1 // pred_region
      %4323 = dma.done [#allocation4], 16
    $region89: #{gtad_forward.7} parent=1 // pred_fallthru
      _
    %4324 = vsyncpa [#allocation4], 1

// kernel: squeeze.33
$region0: #{squeeze.33}
  %s0 = inlined_call_operand.vmem [shape: f32[3,128], index: 0, kind: input, shape index: {}]
  %s1 = inlined_call_operand.vmem [shape: f32[3,2,64], index: 1, kind: output, shape index: {}]
  $region1: #{squeeze.33} parent=0
    #allocation0 [shape = 'u8[12288]{0}', space=vmem, size = 0x3000, scoped, tag = 'scoped mem for output reshape']
    #allocation1 [shape = 'u8[4096]{0}', space=vmem, size = 0x1000, scoped, tag = 'scoped mem for input reshape']
    %s3 = sshllo.u32 0, 4
    %v4 = vld [vmem:[%s0] sm:%s3]
    %5 = vst [vmem:[#allocation1] sm:%s3] %v4
    %v6 = vld [vmem:[#allocation1] sm:$0x7]
    %vm7 = vcmask 523264
    %8 = vst.msk [vmem:[#allocation0] ss:$8 sm:$0x7] %vm7, %v6
    %v9 = vld [vmem:[#allocation1] sm:$0x7]
    %10 = vrot.lane.b32.xlu0 %v9, 64
    %v11 = vpop.permute.xlu0 %10
    %vm12 = vcmask 523264
    %s13 = scalar_lea.vmem [#allocation0], 1
    %14 = vst.msk [vmem:[%s13] ss:$8 sm:$0x7] %vm12, %v11
    %s16 = sshllo.u32 0, 2
    %v18 = vld [vmem:[#allocation0] sm:%s16]
    %s19 = sshllo.u32 0, 2
    %20 = vst [vmem:[%s1] sm:%s19] %v18
    %s21 = scalar_lea.vmem [#allocation0], 8
    %v22 = vld [vmem:[%s21] sm:%s16]
    %s23 = sshllo.u32 0, 2
    %s24 = scalar_lea.vmem %s1, 2
    %25 = vst [vmem:[%s24] sm:%s23] %v22
    %s26 = scalar_lea.vmem [#allocation0], 16
    %v27 = vld [vmem:[%s26] sm:%s16]
    %s28 = sshllo.u32 0, 2
    %s29 = smul.addr 2, 2
    %s30 = scalar_lea.vmem %s1, %s29
    %31 = vst [vmem:[%s30] sm:%s28] %v27

// kernel: gtad_forward.9
$region0: #{gtad_forward.9}
  #allocation0 [shape = 'u32[]', space=smem, size = 0x4, offset = 0x4, fixed_abs, tag = 'smem constant byte address 0x4 - core index']
  #allocation1 [shape = 'u32[144,128]{1,0:T(1,128)}', space=vmem, size = 0x12000, scoped, tag = 'internal scratch']
  %s0 = inlined_call_operand.vmem [shape: bf16[2,256,128], index: 0, kind: input, shape index: {}]
  %s1 = inlined_call_operand.vmem [shape: bf16[3,256,128], index: 1, kind: input, shape index: {}]
  %s2 = inlined_call_operand.vmem [shape: f32[256,128], index: 2, kind: input, shape index: {}]
  %s3 = inlined_call_operand.vmem [shape: bf16[3,128,256], index: 3, kind: input, shape index: {}]
  %s4 = inlined_call_operand.vmem [shape: f32[3,128,1], index: 4, kind: input, shape index: {}]
  %s5 = inlined_call_operand.vmem [shape: bf16[3,128,384], index: 5, kind: input, shape index: {}]
  %s6 = inlined_call_operand.vmem [shape: f32[3,128,1], index: 6, kind: input, shape index: {}]
  %s7 = inlined_call_operand.vmem [shape: bf16[3,256,128], index: 7, kind: input, shape index: {}]
  %s8 = inlined_call_operand.vmem [shape: f32[3,256,1], index: 8, kind: input, shape index: {}]
  %s9 = inlined_call_operand.vmem [shape: bf16[3,128,256], index: 9, kind: input, shape index: {}]
  %s10 = inlined_call_operand.vmem [shape: bf16[3,128,256], index: 10, kind: input, shape index: {}]
  %s11 = inlined_call_operand.vmem [shape: f32[3,128,1], index: 11, kind: input, shape index: {}]
  %s12 = inlined_call_operand.vmem [shape: bf16[3,128,128], index: 12, kind: input, shape index: {}]
  %s13 = inlined_call_operand.vmem [shape: f32[3,128,1], index: 13, kind: input, shape index: {}]
  %s14 = inlined_call_operand.vmem [shape: bf16[3,256,128], index: 14, kind: input, shape index: {}]
  %s15 = inlined_call_operand.vmem [shape: f32[3,256,1], index: 15, kind: input, shape index: {}]
  %s16 = inlined_call_operand.vmem [shape: f32[3,1,256], index: 16, kind: input, shape index: {}]
  %s17 = inlined_call_operand.vmem [shape: f32[3,1,1], index: 17, kind: input, shape index: {}]
  %s18 = inlined_call_operand.vmem [shape: f32[3,256,128], index: 18, kind: output, shape index: {0}]
  %s19 = inlined_call_operand.vmem [shape: f32[3,1,128], index: 19, kind: output, shape index: {1}]
  %20 = xla_tuple %s18, %s19
  %s21 = sld [smem:[#allocation0]]
  $region113: #{gtad_forward.9} parent=0
    _
  %s23 = ssub.s32 1, %s21
  %s24 = scalar_select 0, %s23, %s21
  loop: start=0, step=1, limit=5
  $region2: #{gtad_forward.9} parent=0 // loop_pre_header
    _
  $region3: #{gtad_forward.9} parent=0 // loop_header
    %s26 = sphi 0, %s30
    %p27 = scmp.ge.s32.totalorder %s26, 5
    %s33 = sphi 0, %s45
    %s34 = sphi 0, %s41
    %s35 = sphi 0, %s33
    %s36 = sphi 0, %s34
    %s37 = sphi 0, %s35
    %s38 = sphi 0, %s36
    %s48 = sphi 0, %s50
    %s51 = sphi 0, %s48
    %s52 = sphi 0, %s51
    %s68 = sphi 0, %s52
    %s74 = sphi 0, %s76
    %s77 = sphi 0, %s74
    %s78 = sphi 0, %s77
    %s94 = sphi 0, %s78
    %s100 = sphi 0, %s102
    %s103 = sphi 0, %s100
    %s104 = sphi 0, %s103
    %s120 = sphi 0, %s104
    %s126 = sphi 0, %s128
    %s129 = sphi 0, %s126
    %s130 = sphi 0, %s129
    %s146 = sphi 0, %s130
    %s152 = sphi 0, %s154
    %s155 = sphi 0, %s152
    %s156 = sphi 0, %s155
    %s172 = sphi 0, %s156
    %s178 = sphi 0, %s180
    %s181 = sphi 0, %s178
    %s182 = sphi 0, %s181
    %s198 = sphi 0, %s182
    %s204 = sphi 0, %s206
    %s207 = sphi 0, %s204
    %s208 = sphi 0, %s207
    %s224 = sphi 0, %s208
    %s230 = sphi 0, %s232
    %s233 = sphi 0, %s230
    %s234 = sphi 0, %s233
    %s250 = sphi 0, %s234
    %s256 = sphi 0, %s258
    %s259 = sphi 0, %s256
    %s260 = sphi 0, %s259
    %s276 = sphi 0, %s260
    %s282 = sphi 0, %s284
    %s285 = sphi 0, %s282
    %s286 = sphi 0, %s285
    %s302 = sphi 0, %s286
    %s308 = sphi 0, %s310
    %s311 = sphi 0, %s308
    %s312 = sphi 0, %s311
    %s328 = sphi 0, %s312
    %s334 = sphi 0, %s336
    %s337 = sphi 0, %s334
    %s338 = sphi 0, %s337
    %s354 = sphi 0, %s338
    %s360 = sphi 0, %s362
    %s363 = sphi 0, %s360
    %s364 = sphi 0, %s363
    %s380 = sphi 0, %s364
    %s386 = sphi 0, %s388
    %s389 = sphi 0, %s386
    %s390 = sphi 0, %s389
    %s406 = sphi 0, %s390
    %s412 = sphi 0, %s414
    %s415 = sphi 0, %s412
    %s416 = sphi 0, %s415
    %s432 = sphi 0, %s416
    %s438 = sphi 0, %s440
    %s441 = sphi 0, %s438
    %s442 = sphi 0, %s441
    %s458 = sphi 0, %s442
    %s464 = sphi 0, %s466
    %s467 = sphi 0, %s464
    %s468 = sphi 0, %s467
    %s484 = sphi 0, %s468
    %s490 = sphi 0, %s492
    %s493 = sphi 0, %s490
    %s494 = sphi 0, %s493
    %s510 = sphi 0, %s494
    %s518 = sphi 0, %s520
    %s521 = sphi 0, %s518
    %s522 = sphi 0, %s521
    %s538 = sphi 0, %s522
    %s546 = sphi 0, %s548
    %s549 = sphi 0, %s546
    %s550 = sphi 0, %s549
    %s566 = sphi 0, %s550
  $region4: #{gtad_forward.9} parent=0 // loop_header_branch
    %29 = sbr.rel (%p27) target = $region8
  $region5: #{gtad_forward.9} parent=0 // loop_body
    %s31 = ssub.s32 %s26, 1
    %s32 = ssub.s32 %s26, 2
    %s39 = sadd.s32 1, %s34
    %p40 = scmp.ge.s32.totalorder %s39, 3
    %s41 = scalar_select %p40, 0, %s39
    %s42 = sadd.s32 1, %s33
    %s43 = scalar_select %p40, %s42, %s33
    %p44 = scmp.ge.s32.totalorder %s43, 1
    %s45 = scalar_select %p44, 0, %s43
    %s46 = ssub.s32 %s33, %s45
    %p47 = scmp.eq.s32.totalorder %s46, 0
    %s49 = sadd.s32 %s48, 1
    %s50 = scalar_select %p47, %s48, %s49
    %p53 = pneg %p47
    %p54 = scmp.eq.s32.totalorder %s26, 2
    %p55 = por %p53, %p54
    %p56 = scmp.ne.s32.totalorder %s48, %s51
    %p57 = scmp.eq.s32.totalorder %s26, 0
    %p58 = por %p56, %p57
    %p59 = scmp.ne.s32.totalorder %s48, %s51
    %p60 = scmp.eq.s32.totalorder %s31, 2
    %p61 = por %p59, %p60
    %p62 = scmp.ne.s32.totalorder %s51, %s52
    %p63 = scmp.eq.s32.totalorder %s31, 0
    %p64 = por %p62, %p63
    %p65 = scmp.ne.s32.totalorder %s51, %s52
    %p66 = scmp.eq.s32.totalorder %s32, 2
    %p67 = por %p65, %p66
    %p69 = scmp.ne.s32.totalorder %s52, %s68
    %p70 = scmp.eq.s32.totalorder %s32, 0
    %p71 = por %p69, %p70
    %s72 = ssub.s32 %s33, %s45
    %p73 = scmp.eq.s32.totalorder %s72, 0
    %s75 = sadd.s32 %s74, 1
    %s76 = scalar_select %p73, %s74, %s75
    %p79 = pneg %p73
    %p80 = scmp.eq.s32.totalorder %s26, 2
    %p81 = por %p79, %p80
    %p82 = scmp.ne.s32.totalorder %s74, %s77
    %p83 = scmp.eq.s32.totalorder %s26, 0
    %p84 = por %p82, %p83
    %p85 = scmp.ne.s32.totalorder %s74, %s77
    %p86 = scmp.eq.s32.totalorder %s31, 2
    %p87 = por %p85, %p86
    %p88 = scmp.ne.s32.totalorder %s77, %s78
    %p89 = scmp.eq.s32.totalorder %s31, 0
    %p90 = por %p88, %p89
    %p91 = scmp.ne.s32.totalorder %s77, %s78
    %p92 = scmp.eq.s32.totalorder %s32, 2
    %p93 = por %p91, %p92
    %p95 = scmp.ne.s32.totalorder %s78, %s94
    %p96 = scmp.eq.s32.totalorder %s32, 0
    %p97 = por %p95, %p96
    %s98 = ssub.s32 %s33, %s45
    %p99 = scmp.eq.s32.totalorder %s98, 0
    %s101 = sadd.s32 %s100, 1
    %s102 = scalar_select %p99, %s100, %s101
    %p105 = pneg %p99
    %p106 = scmp.eq.s32.totalorder %s26, 2
    %p107 = por %p105, %p106
    %p108 = scmp.ne.s32.totalorder %s100, %s103
    %p109 = scmp.eq.s32.totalorder %s26, 0
    %p110 = por %p108, %p109
    %p111 = scmp.ne.s32.totalorder %s100, %s103
    %p112 = scmp.eq.s32.totalorder %s31, 2
    %p113 = por %p111, %p112
    %p114 = scmp.ne.s32.totalorder %s103, %s104
    %p115 = scmp.eq.s32.totalorder %s31, 0
    %p116 = por %p114, %p115
    %p117 = scmp.ne.s32.totalorder %s103, %s104
    %p118 = scmp.eq.s32.totalorder %s32, 2
    %p119 = por %p117, %p118
    %p121 = scmp.ne.s32.totalorder %s104, %s120
    %p122 = scmp.eq.s32.totalorder %s32, 0
    %p123 = por %p121, %p122
    %s124 = ssub.s32 %s34, %s41
    %p125 = scmp.eq.s32.totalorder %s124, 0
    %s127 = sadd.s32 %s126, 1
    %s128 = scalar_select %p125, %s126, %s127
    %p131 = pneg %p125
    %p132 = scmp.eq.s32.totalorder %s26, 2
    %p133 = por %p131, %p132
    %p134 = scmp.ne.s32.totalorder %s126, %s129
    %p135 = scmp.eq.s32.totalorder %s26, 0
    %p136 = por %p134, %p135
    %p137 = scmp.ne.s32.totalorder %s126, %s129
    %p138 = scmp.eq.s32.totalorder %s31, 2
    %p139 = por %p137, %p138
    %p140 = scmp.ne.s32.totalorder %s129, %s130
    %p141 = scmp.eq.s32.totalorder %s31, 0
    %p142 = por %p140, %p141
    %p143 = scmp.ne.s32.totalorder %s129, %s130
    %p144 = scmp.eq.s32.totalorder %s32, 2
    %p145 = por %p143, %p144
    %p147 = scmp.ne.s32.totalorder %s130, %s146
    %p148 = scmp.eq.s32.totalorder %s32, 0
    %p149 = por %p147, %p148
    %s150 = ssub.s32 %s34, %s41
    %p151 = scmp.eq.s32.totalorder %s150, 0
    %s153 = sadd.s32 %s152, 1
    %s154 = scalar_select %p151, %s152, %s153
    %p157 = pneg %p151
    %p158 = scmp.eq.s32.totalorder %s26, 2
    %p159 = por %p157, %p158
    %p160 = scmp.ne.s32.totalorder %s152, %s155
    %p161 = scmp.eq.s32.totalorder %s26, 0
    %p162 = por %p160, %p161
    %p163 = scmp.ne.s32.totalorder %s152, %s155
    %p164 = scmp.eq.s32.totalorder %s31, 2
    %p165 = por %p163, %p164
    %p166 = scmp.ne.s32.totalorder %s155, %s156
    %p167 = scmp.eq.s32.totalorder %s31, 0
    %p168 = por %p166, %p167
    %p169 = scmp.ne.s32.totalorder %s155, %s156
    %p170 = scmp.eq.s32.totalorder %s32, 2
    %p171 = por %p169, %p170
    %p173 = scmp.ne.s32.totalorder %s156, %s172
    %p174 = scmp.eq.s32.totalorder %s32, 0
    %p175 = por %p173, %p174
    %s176 = ssub.s32 %s34, %s41
    %p177 = scmp.eq.s32.totalorder %s176, 0
    %s179 = sadd.s32 %s178, 1
    %s180 = scalar_select %p177, %s178, %s179
    %p183 = pneg %p177
    %p184 = scmp.eq.s32.totalorder %s26, 2
    %p185 = por %p183, %p184
    %p186 = scmp.ne.s32.totalorder %s178, %s181
    %p187 = scmp.eq.s32.totalorder %s26, 0
    %p188 = por %p186, %p187
    %p189 = scmp.ne.s32.totalorder %s178, %s181
    %p190 = scmp.eq.s32.totalorder %s31, 2
    %p191 = por %p189, %p190
    %p192 = scmp.ne.s32.totalorder %s181, %s182
    %p193 = scmp.eq.s32.totalorder %s31, 0
    %p194 = por %p192, %p193
    %p195 = scmp.ne.s32.totalorder %s181, %s182
    %p196 = scmp.eq.s32.totalorder %s32, 2
    %p197 = por %p195, %p196
    %p199 = scmp.ne.s32.totalorder %s182, %s198
    %p200 = scmp.eq.s32.totalorder %s32, 0
    %p201 = por %p199, %p200
    %s202 = ssub.s32 %s34, %s41
    %p203 = scmp.eq.s32.totalorder %s202, 0
    %s205 = sadd.s32 %s204, 1
    %s206 = scalar_select %p203, %s204, %s205
    %p209 = pneg %p203
    %p210 = scmp.eq.s32.totalorder %s26, 2
    %p211 = por %p209, %p210
    %p212 = scmp.ne.s32.totalorder %s204, %s207
    %p213 = scmp.eq.s32.totalorder %s26, 0
    %p214 = por %p212, %p213
    %p215 = scmp.ne.s32.totalorder %s204, %s207
    %p216 = scmp.eq.s32.totalorder %s31, 2
    %p217 = por %p215, %p216
    %p218 = scmp.ne.s32.totalorder %s207, %s208
    %p219 = scmp.eq.s32.totalorder %s31, 0
    %p220 = por %p218, %p219
    %p221 = scmp.ne.s32.totalorder %s207, %s208
    %p222 = scmp.eq.s32.totalorder %s32, 2
    %p223 = por %p221, %p222
    %p225 = scmp.ne.s32.totalorder %s208, %s224
    %p226 = scmp.eq.s32.totalorder %s32, 0
    %p227 = por %p225, %p226
    %s228 = ssub.s32 %s34, %s41
    %p229 = scmp.eq.s32.totalorder %s228, 0
    %s231 = sadd.s32 %s230, 1
    %s232 = scalar_select %p229, %s230, %s231
    %p235 = pneg %p229
    %p236 = scmp.eq.s32.totalorder %s26, 2
    %p237 = por %p235, %p236
    %p238 = scmp.ne.s32.totalorder %s230, %s233
    %p239 = scmp.eq.s32.totalorder %s26, 0
    %p240 = por %p238, %p239
    %p241 = scmp.ne.s32.totalorder %s230, %s233
    %p242 = scmp.eq.s32.totalorder %s31, 2
    %p243 = por %p241, %p242
    %p244 = scmp.ne.s32.totalorder %s233, %s234
    %p245 = scmp.eq.s32.totalorder %s31, 0
    %p246 = por %p244, %p245
    %p247 = scmp.ne.s32.totalorder %s233, %s234
    %p248 = scmp.eq.s32.totalorder %s32, 2
    %p249 = por %p247, %p248
    %p251 = scmp.ne.s32.totalorder %s234, %s250
    %p252 = scmp.eq.s32.totalorder %s32, 0
    %p253 = por %p251, %p252
    %s254 = ssub.s32 %s34, %s41
    %p255 = scmp.eq.s32.totalorder %s254, 0
    %s257 = sadd.s32 %s256, 1
    %s258 = scalar_select %p255, %s256, %s257
    %p261 = pneg %p255
    %p262 = scmp.eq.s32.totalorder %s26, 2
    %p263 = por %p261, %p262
    %p264 = scmp.ne.s32.totalorder %s256, %s259
    %p265 = scmp.eq.s32.totalorder %s26, 0
    %p266 = por %p264, %p265
    %p267 = scmp.ne.s32.totalorder %s256, %s259
    %p268 = scmp.eq.s32.totalorder %s31, 2
    %p269 = por %p267, %p268
    %p270 = scmp.ne.s32.totalorder %s259, %s260
    %p271 = scmp.eq.s32.totalorder %s31, 0
    %p272 = por %p270, %p271
    %p273 = scmp.ne.s32.totalorder %s259, %s260
    %p274 = scmp.eq.s32.totalorder %s32, 2
    %p275 = por %p273, %p274
    %p277 = scmp.ne.s32.totalorder %s260, %s276
    %p278 = scmp.eq.s32.totalorder %s32, 0
    %p279 = por %p277, %p278
    %s280 = ssub.s32 %s34, %s41
    %p281 = scmp.eq.s32.totalorder %s280, 0
    %s283 = sadd.s32 %s282, 1
    %s284 = scalar_select %p281, %s282, %s283
    %p287 = pneg %p281
    %p288 = scmp.eq.s32.totalorder %s26, 2
    %p289 = por %p287, %p288
    %p290 = scmp.ne.s32.totalorder %s282, %s285
    %p291 = scmp.eq.s32.totalorder %s26, 0
    %p292 = por %p290, %p291
    %p293 = scmp.ne.s32.totalorder %s282, %s285
    %p294 = scmp.eq.s32.totalorder %s31, 2
    %p295 = por %p293, %p294
    %p296 = scmp.ne.s32.totalorder %s285, %s286
    %p297 = scmp.eq.s32.totalorder %s31, 0
    %p298 = por %p296, %p297
    %p299 = scmp.ne.s32.totalorder %s285, %s286
    %p300 = scmp.eq.s32.totalorder %s32, 2
    %p301 = por %p299, %p300
    %p303 = scmp.ne.s32.totalorder %s286, %s302
    %p304 = scmp.eq.s32.totalorder %s32, 0
    %p305 = por %p303, %p304
    %s306 = ssub.s32 %s34, %s41
    %p307 = scmp.eq.s32.totalorder %s306, 0
    %s309 = sadd.s32 %s308, 1
    %s310 = scalar_select %p307, %s308, %s309
    %p313 = pneg %p307
    %p314 = scmp.eq.s32.totalorder %s26, 2
    %p315 = por %p313, %p314
    %p316 = scmp.ne.s32.totalorder %s308, %s311
    %p317 = scmp.eq.s32.totalorder %s26, 0
    %p318 = por %p316, %p317
    %p319 = scmp.ne.s32.totalorder %s308, %s311
    %p320 = scmp.eq.s32.totalorder %s31, 2
    %p321 = por %p319, %p320
    %p322 = scmp.ne.s32.totalorder %s311, %s312
    %p323 = scmp.eq.s32.totalorder %s31, 0
    %p324 = por %p322, %p323
    %p325 = scmp.ne.s32.totalorder %s311, %s312
    %p326 = scmp.eq.s32.totalorder %s32, 2
    %p327 = por %p325, %p326
    %p329 = scmp.ne.s32.totalorder %s312, %s328
    %p330 = scmp.eq.s32.totalorder %s32, 0
    %p331 = por %p329, %p330
    %s332 = ssub.s32 %s34, %s41
    %p333 = scmp.eq.s32.totalorder %s332, 0
    %s335 = sadd.s32 %s334, 1
    %s336 = scalar_select %p333, %s334, %s335
    %p339 = pneg %p333
    %p340 = scmp.eq.s32.totalorder %s26, 2
    %p341 = por %p339, %p340
    %p342 = scmp.ne.s32.totalorder %s334, %s337
    %p343 = scmp.eq.s32.totalorder %s26, 0
    %p344 = por %p342, %p343
    %p345 = scmp.ne.s32.totalorder %s334, %s337
    %p346 = scmp.eq.s32.totalorder %s31, 2
    %p347 = por %p345, %p346
    %p348 = scmp.ne.s32.totalorder %s337, %s338
    %p349 = scmp.eq.s32.totalorder %s31, 0
    %p350 = por %p348, %p349
    %p351 = scmp.ne.s32.totalorder %s337, %s338
    %p352 = scmp.eq.s32.totalorder %s32, 2
    %p353 = por %p351, %p352
    %p355 = scmp.ne.s32.totalorder %s338, %s354
    %p356 = scmp.eq.s32.totalorder %s32, 0
    %p357 = por %p355, %p356
    %s358 = ssub.s32 %s34, %s41
    %p359 = scmp.eq.s32.totalorder %s358, 0
    %s361 = sadd.s32 %s360, 1
    %s362 = scalar_select %p359, %s360, %s361
    %p365 = pneg %p359
    %p366 = scmp.eq.s32.totalorder %s26, 2
    %p367 = por %p365, %p366
    %p368 = scmp.ne.s32.totalorder %s360, %s363
    %p369 = scmp.eq.s32.totalorder %s26, 0
    %p370 = por %p368, %p369
    %p371 = scmp.ne.s32.totalorder %s360, %s363
    %p372 = scmp.eq.s32.totalorder %s31, 2
    %p373 = por %p371, %p372
    %p374 = scmp.ne.s32.totalorder %s363, %s364
    %p375 = scmp.eq.s32.totalorder %s31, 0
    %p376 = por %p374, %p375
    %p377 = scmp.ne.s32.totalorder %s363, %s364
    %p378 = scmp.eq.s32.totalorder %s32, 2
    %p379 = por %p377, %p378
    %p381 = scmp.ne.s32.totalorder %s364, %s380
    %p382 = scmp.eq.s32.totalorder %s32, 0
    %p383 = por %p381, %p382
    %s384 = ssub.s32 %s34, %s41
    %p385 = scmp.eq.s32.totalorder %s384, 0
    %s387 = sadd.s32 %s386, 1
    %s388 = scalar_select %p385, %s386, %s387
    %p391 = pneg %p385
    %p392 = scmp.eq.s32.totalorder %s26, 2
    %p393 = por %p391, %p392
    %p394 = scmp.ne.s32.totalorder %s386, %s389
    %p395 = scmp.eq.s32.totalorder %s26, 0
    %p396 = por %p394, %p395
    %p397 = scmp.ne.s32.totalorder %s386, %s389
    %p398 = scmp.eq.s32.totalorder %s31, 2
    %p399 = por %p397, %p398
    %p400 = scmp.ne.s32.totalorder %s389, %s390
    %p401 = scmp.eq.s32.totalorder %s31, 0
    %p402 = por %p400, %p401
    %p403 = scmp.ne.s32.totalorder %s389, %s390
    %p404 = scmp.eq.s32.totalorder %s32, 2
    %p405 = por %p403, %p404
    %p407 = scmp.ne.s32.totalorder %s390, %s406
    %p408 = scmp.eq.s32.totalorder %s32, 0
    %p409 = por %p407, %p408
    %s410 = ssub.s32 %s34, %s41
    %p411 = scmp.eq.s32.totalorder %s410, 0
    %s413 = sadd.s32 %s412, 1
    %s414 = scalar_select %p411, %s412, %s413
    %p417 = pneg %p411
    %p418 = scmp.eq.s32.totalorder %s26, 2
    %p419 = por %p417, %p418
    %p420 = scmp.ne.s32.totalorder %s412, %s415
    %p421 = scmp.eq.s32.totalorder %s26, 0
    %p422 = por %p420, %p421
    %p423 = scmp.ne.s32.totalorder %s412, %s415
    %p424 = scmp.eq.s32.totalorder %s31, 2
    %p425 = por %p423, %p424
    %p426 = scmp.ne.s32.totalorder %s415, %s416
    %p427 = scmp.eq.s32.totalorder %s31, 0
    %p428 = por %p426, %p427
    %p429 = scmp.ne.s32.totalorder %s415, %s416
    %p430 = scmp.eq.s32.totalorder %s32, 2
    %p431 = por %p429, %p430
    %p433 = scmp.ne.s32.totalorder %s416, %s432
    %p434 = scmp.eq.s32.totalorder %s32, 0
    %p435 = por %p433, %p434
    %s436 = ssub.s32 %s34, %s41
    %p437 = scmp.eq.s32.totalorder %s436, 0
    %s439 = sadd.s32 %s438, 1
    %s440 = scalar_select %p437, %s438, %s439
    %p443 = pneg %p437
    %p444 = scmp.eq.s32.totalorder %s26, 2
    %p445 = por %p443, %p444
    %p446 = scmp.ne.s32.totalorder %s438, %s441
    %p447 = scmp.eq.s32.totalorder %s26, 0
    %p448 = por %p446, %p447
    %p449 = scmp.ne.s32.totalorder %s438, %s441
    %p450 = scmp.eq.s32.totalorder %s31, 2
    %p451 = por %p449, %p450
    %p452 = scmp.ne.s32.totalorder %s441, %s442
    %p453 = scmp.eq.s32.totalorder %s31, 0
    %p454 = por %p452, %p453
    %p455 = scmp.ne.s32.totalorder %s441, %s442
    %p456 = scmp.eq.s32.totalorder %s32, 2
    %p457 = por %p455, %p456
    %p459 = scmp.ne.s32.totalorder %s442, %s458
    %p460 = scmp.eq.s32.totalorder %s32, 0
    %p461 = por %p459, %p460
    %s462 = ssub.s32 %s34, %s41
    %p463 = scmp.eq.s32.totalorder %s462, 0
    %s465 = sadd.s32 %s464, 1
    %s466 = scalar_select %p463, %s464, %s465
    %p469 = pneg %p463
    %p470 = scmp.eq.s32.totalorder %s26, 2
    %p471 = por %p469, %p470
    %p472 = scmp.ne.s32.totalorder %s464, %s467
    %p473 = scmp.eq.s32.totalorder %s26, 0
    %p474 = por %p472, %p473
    %p475 = scmp.ne.s32.totalorder %s464, %s467
    %p476 = scmp.eq.s32.totalorder %s31, 2
    %p477 = por %p475, %p476
    %p478 = scmp.ne.s32.totalorder %s467, %s468
    %p479 = scmp.eq.s32.totalorder %s31, 0
    %p480 = por %p478, %p479
    %p481 = scmp.ne.s32.totalorder %s467, %s468
    %p482 = scmp.eq.s32.totalorder %s32, 2
    %p483 = por %p481, %p482
    %p485 = scmp.ne.s32.totalorder %s468, %s484
    %p486 = scmp.eq.s32.totalorder %s32, 0
    %p487 = por %p485, %p486
    %s488 = ssub.s32 %s34, %s41
    %p489 = scmp.eq.s32.totalorder %s488, 0
    %s491 = sadd.s32 %s490, 1
    %s492 = scalar_select %p489, %s490, %s491
    %p495 = pneg %p489
    %p496 = scmp.eq.s32.totalorder %s26, 2
    %p497 = por %p495, %p496
    %p498 = scmp.ne.s32.totalorder %s490, %s493
    %p499 = scmp.eq.s32.totalorder %s26, 0
    %p500 = por %p498, %p499
    %p501 = scmp.ne.s32.totalorder %s490, %s493
    %p502 = scmp.eq.s32.totalorder %s31, 2
    %p503 = por %p501, %p502
    %p504 = scmp.ne.s32.totalorder %s493, %s494
    %p505 = scmp.eq.s32.totalorder %s31, 0
    %p506 = por %p504, %p505
    %p507 = scmp.ne.s32.totalorder %s493, %s494
    %p508 = scmp.eq.s32.totalorder %s32, 2
    %p509 = por %p507, %p508
    %p511 = scmp.ne.s32.totalorder %s494, %s510
    %p512 = scmp.eq.s32.totalorder %s32, 0
    %p513 = por %p511, %p512
    %s514 = ssub.s32 %s34, %s41
    %s515 = ssub.s32 %s33, %s45
    %s516 = sor.u32 %s514, %s515
    %p517 = scmp.eq.s32.totalorder %s516, 0
    %s519 = sadd.s32 %s518, 1
    %s520 = scalar_select %p517, %s518, %s519
    %p523 = pneg %p517
    %p524 = scmp.eq.s32.totalorder %s26, 2
    %p525 = por %p523, %p524
    %p526 = scmp.ne.s32.totalorder %s518, %s521
    %p527 = scmp.eq.s32.totalorder %s26, 0
    %p528 = por %p526, %p527
    %p529 = scmp.ne.s32.totalorder %s518, %s521
    %p530 = scmp.eq.s32.totalorder %s31, 2
    %p531 = por %p529, %p530
    %p532 = scmp.ne.s32.totalorder %s521, %s522
    %p533 = scmp.eq.s32.totalorder %s31, 0
    %p534 = por %p532, %p533
    %p535 = scmp.ne.s32.totalorder %s521, %s522
    %p536 = scmp.eq.s32.totalorder %s32, 2
    %p537 = por %p535, %p536
    %p539 = scmp.ne.s32.totalorder %s522, %s538
    %p540 = scmp.eq.s32.totalorder %s32, 0
    %p541 = por %p539, %p540
    %s542 = ssub.s32 %s34, %s41
    %s543 = ssub.s32 %s33, %s45
    %s544 = sor.u32 %s542, %s543
    %p545 = scmp.eq.s32.totalorder %s544, 0
    %s547 = sadd.s32 %s546, 1
    %s548 = scalar_select %p545, %s546, %s547
    %p551 = pneg %p545
    %p552 = scmp.eq.s32.totalorder %s26, 2
    %p553 = por %p551, %p552
    %p554 = scmp.ne.s32.totalorder %s546, %s549
    %p555 = scmp.eq.s32.totalorder %s26, 0
    %p556 = por %p554, %p555
    %p557 = scmp.ne.s32.totalorder %s546, %s549
    %p558 = scmp.eq.s32.totalorder %s31, 2
    %p559 = por %p557, %p558
    %p560 = scmp.ne.s32.totalorder %s549, %s550
    %p561 = scmp.eq.s32.totalorder %s31, 0
    %p562 = por %p560, %p561
    %p563 = scmp.ne.s32.totalorder %s549, %s550
    %p564 = scmp.eq.s32.totalorder %s32, 2
    %p565 = por %p563, %p564
    %p567 = scmp.ne.s32.totalorder %s550, %s566
    %p568 = scmp.eq.s32.totalorder %s32, 0
    %p569 = por %p567, %p568
    %p570 = scmp.le.s32.totalorder 1, %s26
    %p571 = scmp.lt.s32.totalorder %s26, 4
    %p572 = pnand %p570, %p571
    %p573 = pneg %p572
    // Predicated region
    $region9: #{gtad_forward.9} parent=5 // pred_check
      _
    $region10: #{gtad_forward.9} parent=5 // pred_check_branch
      %575 = sbr.rel (%p572) target = $region12
    $region11: #{gtad_forward.9} parent=5 // pred_region
      %s576 = ssub.s32 %s26, 1
      // Predicated region
      $region13: #{gtad_forward.9} parent=11 // pred_check
        %p577 = pneg %p64
      $region14: #{gtad_forward.9} parent=11 // pred_check_branch
        %579 = sbr.rel (%p577) target = $region16
      $region15: #{gtad_forward.9} parent=11 // pred_region
        %p580 = scmp.lt.s32.totalorder %s35, 0
        %s581 = scalar_select %p580, %s35, 0
        %s582 = smul.addr %s581, 4
        %s583 = scalar_lea.vmem %s0, %s582
      $region16: #{gtad_forward.9} parent=11 // pred_fallthru
        _
      // Predicated region
      $region17: #{gtad_forward.9} parent=11 // pred_check
        %p584 = pneg %p90
      $region18: #{gtad_forward.9} parent=11 // pred_check_branch
        %586 = sbr.rel (%p584) target = $region20
      $region19: #{gtad_forward.9} parent=11 // pred_region
        %p587 = scmp.lt.s32.totalorder %s35, 0
        %s588 = scalar_select %p587, %s35, 0
        %s589 = smul.addr %s588, 4
        %s590 = scalar_lea.vmem %s1, %s589
      $region20: #{gtad_forward.9} parent=11 // pred_fallthru
        _
      // Predicated region
      $region21: #{gtad_forward.9} parent=11 // pred_check
        %p591 = pneg %p116
      $region22: #{gtad_forward.9} parent=11 // pred_check_branch
        %593 = sbr.rel (%p591) target = $region24
      $region23: #{gtad_forward.9} parent=11 // pred_region
        %p594 = scmp.lt.s32.totalorder %s35, 0
        %s595 = scalar_select %p594, %s35, 0
        %s596 = smul.addr %s595, 8
        %s597 = scalar_lea.vmem %s2, %s596
      $region24: #{gtad_forward.9} parent=11 // pred_fallthru
        _
    $region12: #{gtad_forward.9} parent=5 // pred_fallthru
      _
    %p598 = scmp.lt.s32.totalorder %s26, 3
    // Predicated region
    $region25: #{gtad_forward.9} parent=5 // pred_check
      %p599 = pneg %p598
    $region26: #{gtad_forward.9} parent=5 // pred_check_branch
      %601 = sbr.rel (%p599) target = $region28
    $region27: #{gtad_forward.9} parent=5 // pred_region
      // Predicated region
      $region29: #{gtad_forward.9} parent=27 // pred_check
        %p602 = pneg %p136
      $region30: #{gtad_forward.9} parent=27 // pred_check_branch
        %604 = sbr.rel (%p602) target = $region32
      $region31: #{gtad_forward.9} parent=27 // pred_region
        %p605 = scmp.lt.s32.totalorder %s34, 2
        %s606 = scalar_select %p605, %s34, 2
        %s607 = smul.addr %s606, 32
        %s608 = smul.addr %s607, 4
        %s609 = scalar_lea.vmem %s3, %s608
      $region32: #{gtad_forward.9} parent=27 // pred_fallthru
        _
      // Predicated region
      $region33: #{gtad_forward.9} parent=27 // pred_check
        %p610 = pneg %p162
      $region34: #{gtad_forward.9} parent=27 // pred_check_branch
        %612 = sbr.rel (%p610) target = $region36
      $region35: #{gtad_forward.9} parent=27 // pred_region
        %p613 = scmp.lt.s32.totalorder %s34, 2
        %s614 = scalar_select %p613, %s34, 2
        %s615 = smul.addr %s614, 16
        %s616 = smul.addr %s615, 8
        %s617 = scalar_lea.vmem %s4, %s616
      $region36: #{gtad_forward.9} parent=27 // pred_fallthru
        _
      // Predicated region
      $region37: #{gtad_forward.9} parent=27 // pred_check
        %p618 = pneg %p188
      $region38: #{gtad_forward.9} parent=27 // pred_check_branch
        %620 = sbr.rel (%p618) target = $region40
      $region39: #{gtad_forward.9} parent=27 // pred_region
        %p621 = scmp.lt.s32.totalorder %s34, 2
        %s622 = scalar_select %p621, %s34, 2
        %s623 = smul.addr %s622, 48
        %s624 = smul.addr %s623, 4
        %s625 = scalar_lea.vmem %s5, %s624
      $region40: #{gtad_forward.9} parent=27 // pred_fallthru
        _
      // Predicated region
      $region41: #{gtad_forward.9} parent=27 // pred_check
        %p626 = pneg %p214
      $region42: #{gtad_forward.9} parent=27 // pred_check_branch
        %628 = sbr.rel (%p626) target = $region44
      $region43: #{gtad_forward.9} parent=27 // pred_region
        %p629 = scmp.lt.s32.totalorder %s34, 2
        %s630 = scalar_select %p629, %s34, 2
        %s631 = smul.addr %s630, 16
        %s632 = smul.addr %s631, 8
        %s633 = scalar_lea.vmem %s6, %s632
      $region44: #{gtad_forward.9} parent=27 // pred_fallthru
        _
      // Predicated region
      $region45: #{gtad_forward.9} parent=27 // pred_check
        %p634 = pneg %p240
      $region46: #{gtad_forward.9} parent=27 // pred_check_branch
        %636 = sbr.rel (%p634) target = $region48
      $region47: #{gtad_forward.9} parent=27 // pred_region
        %p637 = scmp.lt.s32.totalorder %s34, 2
        %s638 = scalar_select %p637, %s34, 2
        %s639 = smul.addr %s638, 32
        %s640 = smul.addr %s639, 4
        %s641 = scalar_lea.vmem %s7, %s640
      $region48: #{gtad_forward.9} parent=27 // pred_fallthru
        _
      // Predicated region
      $region49: #{gtad_forward.9} parent=27 // pred_check
        %p642 = pneg %p266
      $region50: #{gtad_forward.9} parent=27 // pred_check_branch
        %644 = sbr.rel (%p642) target = $region52
      $region51: #{gtad_forward.9} parent=27 // pred_region
        %p645 = scmp.lt.s32.totalorder %s34, 2
        %s646 = scalar_select %p645, %s34, 2
        %s647 = smul.addr %s646, 32
        %s648 = smul.addr %s647, 8
        %s649 = scalar_lea.vmem %s8, %s648
      $region52: #{gtad_forward.9} parent=27 // pred_fallthru
        _
      // Predicated region
      $region53: #{gtad_forward.9} parent=27 // pred_check
        %p650 = pneg %p292
      $region54: #{gtad_forward.9} parent=27 // pred_check_branch
        %652 = sbr.rel (%p650) target = $region56
      $region55: #{gtad_forward.9} parent=27 // pred_region
        %p653 = scmp.lt.s32.totalorder %s34, 2
        %s654 = scalar_select %p653, %s34, 2
        %s655 = smul.addr %s654, 32
        %s656 = smul.addr %s655, 4
        %s657 = scalar_lea.vmem %s9, %s656
      $region56: #{gtad_forward.9} parent=27 // pred_fallthru
        _
      // Predicated region
      $region57: #{gtad_forward.9} parent=27 // pred_check
        %p658 = pneg %p318
      $region58: #{gtad_forward.9} parent=27 // pred_check_branch
        %660 = sbr.rel (%p658) target = $region60
      $region59: #{gtad_forward.9} parent=27 // pred_region
        %p661 = scmp.lt.s32.totalorder %s34, 2
        %s662 = scalar_select %p661, %s34, 2
        %s663 = smul.addr %s662, 32
        %s664 = smul.addr %s663, 4
        %s665 = scalar_lea.vmem %s10, %s664
      $region60: #{gtad_forward.9} parent=27 // pred_fallthru
        _
      // Predicated region
      $region61: #{gtad_forward.9} parent=27 // pred_check
        %p666 = pneg %p344
      $region62: #{gtad_forward.9} parent=27 // pred_check_branch
        %668 = sbr.rel (%p666) target = $region64
      $region63: #{gtad_forward.9} parent=27 // pred_region
        %p669 = scmp.lt.s32.totalorder %s34, 2
        %s670 = scalar_select %p669, %s34, 2
        %s671 = smul.addr %s670, 16
        %s672 = smul.addr %s671, 8
        %s673 = scalar_lea.vmem %s11, %s672
      $region64: #{gtad_forward.9} parent=27 // pred_fallthru
        _
      // Predicated region
      $region65: #{gtad_forward.9} parent=27 // pred_check
        %p674 = pneg %p370
      $region66: #{gtad_forward.9} parent=27 // pred_check_branch
        %676 = sbr.rel (%p674) target = $region68
      $region67: #{gtad_forward.9} parent=27 // pred_region
        %p677 = scmp.lt.s32.totalorder %s34, 2
        %s678 = scalar_select %p677, %s34, 2
        %s679 = smul.addr %s678, 16
        %s680 = smul.addr %s679, 4
        %s681 = scalar_lea.vmem %s12, %s680
      $region68: #{gtad_forward.9} parent=27 // pred_fallthru
        _
      // Predicated region
      $region69: #{gtad_forward.9} parent=27 // pred_check
        %p682 = pneg %p396
      $region70: #{gtad_forward.9} parent=27 // pred_check_branch
        %684 = sbr.rel (%p682) target = $region72
      $region71: #{gtad_forward.9} parent=27 // pred_region
        %p685 = scmp.lt.s32.totalorder %s34, 2
        %s686 = scalar_select %p685, %s34, 2
        %s687 = smul.addr %s686, 16
        %s688 = smul.addr %s687, 8
        %s689 = scalar_lea.vmem %s13, %s688
      $region72: #{gtad_forward.9} parent=27 // pred_fallthru
        _
      // Predicated region
      $region73: #{gtad_forward.9} parent=27 // pred_check
        %p690 = pneg %p422
      $region74: #{gtad_forward.9} parent=27 // pred_check_branch
        %692 = sbr.rel (%p690) target = $region76
      $region75: #{gtad_forward.9} parent=27 // pred_region
        %p693 = scmp.lt.s32.totalorder %s34, 2
        %s694 = scalar_select %p693, %s34, 2
        %s695 = smul.addr %s694, 32
        %s696 = smul.addr %s695, 4
        %s697 = scalar_lea.vmem %s14, %s696
      $region76: #{gtad_forward.9} parent=27 // pred_fallthru
        _
      // Predicated region
      $region77: #{gtad_forward.9} parent=27 // pred_check
        %p698 = pneg %p448
      $region78: #{gtad_forward.9} parent=27 // pred_check_branch
        %700 = sbr.rel (%p698) target = $region80
      $region79: #{gtad_forward.9} parent=27 // pred_region
        %p701 = scmp.lt.s32.totalorder %s34, 2
        %s702 = scalar_select %p701, %s34, 2
        %s703 = smul.addr %s702, 32
        %s704 = smul.addr %s703, 8
        %s705 = scalar_lea.vmem %s15, %s704
      $region80: #{gtad_forward.9} parent=27 // pred_fallthru
        _
      // Predicated region
      $region81: #{gtad_forward.9} parent=27 // pred_check
        %p706 = pneg %p474
      $region82: #{gtad_forward.9} parent=27 // pred_check_branch
        %708 = sbr.rel (%p706) target = $region84
      $region83: #{gtad_forward.9} parent=27 // pred_region
        %p709 = scmp.lt.s32.totalorder %s34, 2
        %s710 = scalar_select %p709, %s34, 2
        %s711 = smul.addr %s710, 2
        %s712 = scalar_lea.vmem %s16, %s711
      $region84: #{gtad_forward.9} parent=27 // pred_fallthru
        _
      // Predicated region
      $region85: #{gtad_forward.9} parent=27 // pred_check
        %p713 = pneg %p500
      $region86: #{gtad_forward.9} parent=27 // pred_check_branch
        %715 = sbr.rel (%p713) target = $region88
      $region87: #{gtad_forward.9} parent=27 // pred_region
        %p716 = scmp.lt.s32.totalorder %s34, 2
        %s717 = scalar_select %p716, %s34, 2
        %s718 = scalar_lea.vmem %s17, %s717
      $region88: #{gtad_forward.9} parent=27 // pred_fallthru
        _
    $region28: #{gtad_forward.9} parent=5 // pred_fallthru
      _
    %p719 = scmp.le.s32.totalorder 1, %s26
    %p720 = scmp.lt.s32.totalorder %s26, 4
    %p721 = pnand %p719, %p720
    %p722 = pneg %p721
    // Predicated region
    $region89: #{gtad_forward.9} parent=5 // pred_check
      _
    $region90: #{gtad_forward.9} parent=5 // pred_check_branch
      %724 = sbr.rel (%p721) target = $region92
    $region91: #{gtad_forward.9} parent=5 // pred_region
      %s725 = ssub.s32 %s26, 1
      %p726 = scmp.lt.s32.totalorder %s35, 0
      %s727 = scalar_select %p726, %s35, 0
      %s728 = smul.addr %s727, 4
      %s729 = scalar_lea.vmem %s0, %s728
      %p730 = pneg %p64
      %p731 = pneg %p61
      %p732 = scmp.lt.s32.totalorder %s35, 0
      %s733 = scalar_select %p732, %s35, 0
      %s734 = smul.addr %s733, 4
      %s735 = scalar_lea.vmem %s1, %s734
      %p736 = pneg %p90
      %p737 = pneg %p87
      %p738 = scmp.lt.s32.totalorder %s35, 0
      %s739 = scalar_select %p738, %s35, 0
      %s740 = smul.addr %s739, 8
      %s741 = scalar_lea.vmem %s2, %s740
      %p742 = pneg %p116
      %p743 = pneg %p113
      %p744 = scmp.lt.s32.totalorder %s36, 2
      %s745 = scalar_select %p744, %s36, 2
      %s746 = smul.addr %s745, 32
      %s747 = smul.addr %s746, 4
      %s748 = scalar_lea.vmem %s3, %s747
      %p749 = pneg %p142
      %p750 = pneg %p139
      %p751 = scmp.lt.s32.totalorder %s36, 2
      %s752 = scalar_select %p751, %s36, 2
      %s753 = smul.addr %s752, 16
      %s754 = smul.addr %s753, 8
      %s755 = scalar_lea.vmem %s4, %s754
      %p756 = pneg %p168
      %p757 = pneg %p165
      %p758 = scmp.lt.s32.totalorder %s36, 2
      %s759 = scalar_select %p758, %s36, 2
      %s760 = smul.addr %s759, 48
      %s761 = smul.addr %s760, 4
      %s762 = scalar_lea.vmem %s5, %s761
      %p763 = pneg %p194
      %p764 = pneg %p191
      %p765 = scmp.lt.s32.totalorder %s36, 2
      %s766 = scalar_select %p765, %s36, 2
      %s767 = smul.addr %s766, 16
      %s768 = smul.addr %s767, 8
      %s769 = scalar_lea.vmem %s6, %s768
      %p770 = pneg %p220
      %p771 = pneg %p217
      %p772 = scmp.lt.s32.totalorder %s36, 2
      %s773 = scalar_select %p772, %s36, 2
      %s774 = smul.addr %s773, 32
      %s775 = smul.addr %s774, 4
      %s776 = scalar_lea.vmem %s7, %s775
      %p777 = pneg %p246
      %p778 = pneg %p243
      %p779 = scmp.lt.s32.totalorder %s36, 2
      %s780 = scalar_select %p779, %s36, 2
      %s781 = smul.addr %s780, 32
      %s782 = smul.addr %s781, 8
      %s783 = scalar_lea.vmem %s8, %s782
      %p784 = pneg %p272
      %p785 = pneg %p269
      %p786 = scmp.lt.s32.totalorder %s36, 2
      %s787 = scalar_select %p786, %s36, 2
      %s788 = smul.addr %s787, 32
      %s789 = smul.addr %s788, 4
      %s790 = scalar_lea.vmem %s9, %s789
      %p791 = pneg %p298
      %p792 = pneg %p295
      %p793 = scmp.lt.s32.totalorder %s36, 2
      %s794 = scalar_select %p793, %s36, 2
      %s795 = smul.addr %s794, 32
      %s796 = smul.addr %s795, 4
      %s797 = scalar_lea.vmem %s10, %s796
      %p798 = pneg %p324
      %p799 = pneg %p321
      %p800 = scmp.lt.s32.totalorder %s36, 2
      %s801 = scalar_select %p800, %s36, 2
      %s802 = smul.addr %s801, 16
      %s803 = smul.addr %s802, 8
      %s804 = scalar_lea.vmem %s11, %s803
      %p805 = pneg %p350
      %p806 = pneg %p347
      %p807 = scmp.lt.s32.totalorder %s36, 2
      %s808 = scalar_select %p807, %s36, 2
      %s809 = smul.addr %s808, 16
      %s810 = smul.addr %s809, 4
      %s811 = scalar_lea.vmem %s12, %s810
      %p812 = pneg %p376
      %p813 = pneg %p373
      %p814 = scmp.lt.s32.totalorder %s36, 2
      %s815 = scalar_select %p814, %s36, 2
      %s816 = smul.addr %s815, 16
      %s817 = smul.addr %s816, 8
      %s818 = scalar_lea.vmem %s13, %s817
      %p819 = pneg %p402
      %p820 = pneg %p399
      %p821 = scmp.lt.s32.totalorder %s36, 2
      %s822 = scalar_select %p821, %s36, 2
      %s823 = smul.addr %s822, 32
      %s824 = smul.addr %s823, 4
      %s825 = scalar_lea.vmem %s14, %s824
      %p826 = pneg %p428
      %p827 = pneg %p425
      %p828 = scmp.lt.s32.totalorder %s36, 2
      %s829 = scalar_select %p828, %s36, 2
      %s830 = smul.addr %s829, 32
      %s831 = smul.addr %s830, 8
      %s832 = scalar_lea.vmem %s15, %s831
      %p833 = pneg %p454
      %p834 = pneg %p451
      %p835 = scmp.lt.s32.totalorder %s36, 2
      %s836 = scalar_select %p835, %s36, 2
      %s837 = smul.addr %s836, 2
      %s838 = scalar_lea.vmem %s16, %s837
      %p839 = pneg %p480
      %p840 = pneg %p477
      %p841 = scmp.lt.s32.totalorder %s36, 2
      %s842 = scalar_select %p841, %s36, 2
      %s843 = scalar_lea.vmem %s17, %s842
      %p844 = pneg %p506
      %p845 = pneg %p503
      %p846 = pneg %p534
      %p847 = pneg %p531
      %p848 = scmp.lt.s32.totalorder %s36, 2
      %s849 = scalar_select %p848, %s36, 2
      %p850 = scmp.lt.s32.totalorder %s35, 0
      %s851 = scalar_select %p850, %s35, 0
      %s852 = smul.addr %s849, 32
      %s853 = sadd.s32 %s851, %s852
      %s854 = smul.addr %s853, 8
      %s855 = scalar_lea.vmem %s18, %s854
      %p856 = pneg %p562
      %p857 = pneg %p559
      %p858 = scmp.lt.s32.totalorder %s36, 2
      %s859 = scalar_select %p858, %s36, 2
      %p860 = scmp.lt.s32.totalorder %s35, 0
      %s861 = scalar_select %p860, %s35, 0
      %s862 = sadd.s32 %s861, %s859
      %s863 = scalar_lea.vmem %s19, %s862
      %p864 = scmp.lt.s32.totalorder %s35, 0
      %s865 = scalar_select %p864, %s35, 0
      %s866 = smul.addr %s865, 4
      %s867 = scalar_lea.vmem %s0, %s866
      %p868 = scmp.lt.s32.totalorder %s35, 0
      %s869 = scalar_select %p868, %s35, 0
      %s870 = smul.addr %s869, 4
      %s871 = scalar_lea.vmem %s1, %s870
      %p872 = scmp.lt.s32.totalorder %s35, 0
      %s873 = scalar_select %p872, %s35, 0
      %s874 = smul.addr %s873, 8
      %s875 = scalar_lea.vmem %s2, %s874
      %p876 = scmp.lt.s32.totalorder %s36, 2
      %s877 = scalar_select %p876, %s36, 2
      %s878 = smul.addr %s877, 32
      %s879 = smul.addr %s878, 4
      %s880 = scalar_lea.vmem %s3, %s879
      %p881 = scmp.lt.s32.totalorder %s36, 2
      %s882 = scalar_select %p881, %s36, 2
      %s883 = smul.addr %s882, 16
      %s884 = smul.addr %s883, 8
      %s885 = scalar_lea.vmem %s4, %s884
      %p886 = scmp.lt.s32.totalorder %s36, 2
      %s887 = scalar_select %p886, %s36, 2
      %s888 = smul.addr %s887, 48
      %s889 = smul.addr %s888, 4
      %s890 = scalar_lea.vmem %s5, %s889
      %p891 = scmp.lt.s32.totalorder %s36, 2
      %s892 = scalar_select %p891, %s36, 2
      %s893 = smul.addr %s892, 16
      %s894 = smul.addr %s893, 8
      %s895 = scalar_lea.vmem %s6, %s894
      %p896 = scmp.lt.s32.totalorder %s36, 2
      %s897 = scalar_select %p896, %s36, 2
      %s898 = smul.addr %s897, 32
      %s899 = smul.addr %s898, 4
      %s900 = scalar_lea.vmem %s7, %s899
      %p901 = scmp.lt.s32.totalorder %s36, 2
      %s902 = scalar_select %p901, %s36, 2
      %s903 = smul.addr %s902, 32
      %s904 = smul.addr %s903, 8
      %s905 = scalar_lea.vmem %s8, %s904
      %p906 = scmp.lt.s32.totalorder %s36, 2
      %s907 = scalar_select %p906, %s36, 2
      %s908 = smul.addr %s907, 32
      %s909 = smul.addr %s908, 4
      %s910 = scalar_lea.vmem %s9, %s909
      %p911 = scmp.lt.s32.totalorder %s36, 2
      %s912 = scalar_select %p911, %s36, 2
      %s913 = smul.addr %s912, 32
      %s914 = smul.addr %s913, 4
      %s915 = scalar_lea.vmem %s10, %s914
      %p916 = scmp.lt.s32.totalorder %s36, 2
      %s917 = scalar_select %p916, %s36, 2
      %s918 = smul.addr %s917, 16
      %s919 = smul.addr %s918, 8
      %s920 = scalar_lea.vmem %s11, %s919
      %p921 = scmp.lt.s32.totalorder %s36, 2
      %s922 = scalar_select %p921, %s36, 2
      %s923 = smul.addr %s922, 16
      %s924 = smul.addr %s923, 4
      %s925 = scalar_lea.vmem %s12, %s924
      %p926 = scmp.lt.s32.totalorder %s36, 2
      %s927 = scalar_select %p926, %s36, 2
      %s928 = smul.addr %s927, 16
      %s929 = smul.addr %s928, 8
      %s930 = scalar_lea.vmem %s13, %s929
      %p931 = scmp.lt.s32.totalorder %s36, 2
      %s932 = scalar_select %p931, %s36, 2
      %s933 = smul.addr %s932, 32
      %s934 = smul.addr %s933, 4
      %s935 = scalar_lea.vmem %s14, %s934
      %p936 = scmp.lt.s32.totalorder %s36, 2
      %s937 = scalar_select %p936, %s36, 2
      %s938 = smul.addr %s937, 32
      %s939 = smul.addr %s938, 8
      %s940 = scalar_lea.vmem %s15, %s939
      %p941 = scmp.lt.s32.totalorder %s36, 2
      %s942 = scalar_select %p941, %s36, 2
      %s943 = smul.addr %s942, 2
      %s944 = scalar_lea.vmem %s16, %s943
      %p945 = scmp.lt.s32.totalorder %s36, 2
      %s946 = scalar_select %p945, %s36, 2
      %s947 = scalar_lea.vmem %s17, %s946
      %p948 = scmp.lt.s32.totalorder %s36, 2
      %s949 = scalar_select %p948, %s36, 2
      %p950 = scmp.lt.s32.totalorder %s35, 0
      %s951 = scalar_select %p950, %s35, 0
      %s952 = smul.addr %s949, 32
      %s953 = sadd.s32 %s951, %s952
      %s954 = smul.addr %s953, 8
      %s955 = scalar_lea.vmem %s18, %s954
      %p956 = scmp.lt.s32.totalorder %s36, 2
      %s957 = scalar_select %p956, %s36, 2
      %p958 = scmp.lt.s32.totalorder %s35, 0
      %s959 = scalar_select %p958, %s35, 0
      %s960 = sadd.s32 %s959, %s957
      %s961 = scalar_lea.vmem %s19, %s960
      %v963 = vld [vmem:[%s875] sm:$0xff]
      %v964 = vld [vmem:[%s875 + $0x8] sm:$0xff]
      %v965 = vld [vmem:[%s875 + $0x10] sm:$0xff]
      %v966 = vld [vmem:[%s875 + $0x18] sm:$0xff]
      %v967 = vld [vmem:[%s875 + $0x20] sm:$0xff]
      %v968 = vld [vmem:[%s875 + $0x28] sm:$0xff]
      %v969 = vld [vmem:[%s875 + $0x30] sm:$0xff]
      %v970 = vld [vmem:[%s875 + $0x38] sm:$0xff]
      %v971 = vld [vmem:[%s875 + $0x40] sm:$0xff]
      %v972 = vld [vmem:[%s875 + $0x48] sm:$0xff]
      %v973 = vld [vmem:[%s875 + $0x50] sm:$0xff]
      %v974 = vld [vmem:[%s875 + $0x58] sm:$0xff]
      %v975 = vld [vmem:[%s875 + $0x60] sm:$0xff]
      %v976 = vld [vmem:[%s875 + $0x68] sm:$0xff]
      %v977 = vld [vmem:[%s875 + $0x70] sm:$0xff]
      %v978 = vld [vmem:[%s875 + $0x78] sm:$0xff]
      %v979 = vld [vmem:[%s875 + $0x80] sm:$0xff]
      %v980 = vld [vmem:[%s875 + $0x88] sm:$0xff]
      %v981 = vld [vmem:[%s875 + $0x90] sm:$0xff]
      %v982 = vld [vmem:[%s875 + $0x98] sm:$0xff]
      %v983 = vld [vmem:[%s875 + $0xa0] sm:$0xff]
      %v984 = vld [vmem:[%s875 + $0xa8] sm:$0xff]
      %v985 = vld [vmem:[%s875 + $0xb0] sm:$0xff]
      %v986 = vld [vmem:[%s875 + $0xb8] sm:$0xff]
      %v987 = vld [vmem:[%s875 + $0xc0] sm:$0xff]
      %v988 = vld [vmem:[%s875 + $0xc8] sm:$0xff]
      %v989 = vld [vmem:[%s875 + $0xd0] sm:$0xff]
      %v990 = vld [vmem:[%s875 + $0xd8] sm:$0xff]
      %v991 = vld [vmem:[%s875 + $0xe0] sm:$0xff]
      %v992 = vld [vmem:[%s875 + $0xe8] sm:$0xff]
      %v993 = vld [vmem:[%s875 + $0xf0] sm:$0xff]
      %v994 = vld [vmem:[%s875 + $0xf8] sm:$0xff]
      %v995 = vpack.c.bf16 %v964, %v963
      %v996 = vpack.c.bf16 %v966, %v965
      %v997 = vpack.c.bf16 %v968, %v967
      %v998 = vpack.c.bf16 %v970, %v969
      %v999 = vpack.c.bf16 %v972, %v971
      %v1000 = vpack.c.bf16 %v974, %v973
      %v1001 = vpack.c.bf16 %v976, %v975
      %v1002 = vpack.c.bf16 %v978, %v977
      %v1003 = vpack.c.bf16 %v980, %v979
      %v1004 = vpack.c.bf16 %v982, %v981
      %v1005 = vpack.c.bf16 %v984, %v983
      %v1006 = vpack.c.bf16 %v986, %v985
      %v1007 = vpack.c.bf16 %v988, %v987
      %v1008 = vpack.c.bf16 %v990, %v989
      %v1009 = vpack.c.bf16 %v992, %v991
      %v1010 = vpack.c.bf16 %v994, %v993
      %v1011 = vld [vmem:[%s867] sm:$0xf]
      %v1012 = vld [vmem:[%s867 + $0x4] sm:$0xf]
      %v1013 = vld [vmem:[%s867 + $0x8] sm:$0xf]
      %v1014 = vld [vmem:[%s867 + $0xc] sm:$0xf]
      %v1015 = vld [vmem:[%s867 + $0x10] sm:$0xf]
      %v1016 = vld [vmem:[%s867 + $0x14] sm:$0xf]
      %v1017 = vld [vmem:[%s867 + $0x18] sm:$0xf]
      %v1018 = vld [vmem:[%s867 + $0x1c] sm:$0xf]
      %v1019 = vld [vmem:[%s867 + $0x20] sm:$0xf]
      %v1020 = vld [vmem:[%s867 + $0x24] sm:$0xf]
      %v1021 = vld [vmem:[%s867 + $0x28] sm:$0xf]
      %v1022 = vld [vmem:[%s867 + $0x2c] sm:$0xf]
      %v1023 = vld [vmem:[%s867 + $0x30] sm:$0xf]
      %v1024 = vld [vmem:[%s867 + $0x34] sm:$0xf]
      %v1025 = vld [vmem:[%s867 + $0x38] sm:$0xf]
      %v1026 = vld [vmem:[%s867 + $0x3c] sm:$0xf]
      %v1027 = vld [vmem:[%s867 + $0x40] sm:$0xf]
      %v1028 = vld [vmem:[%s867 + $0x44] sm:$0xf]
      %v1029 = vld [vmem:[%s867 + $0x48] sm:$0xf]
      %v1030 = vld [vmem:[%s867 + $0x4c] sm:$0xf]
      %v1031 = vld [vmem:[%s867 + $0x50] sm:$0xf]
      %v1032 = vld [vmem:[%s867 + $0x54] sm:$0xf]
      %v1033 = vld [vmem:[%s867 + $0x58] sm:$0xf]
      %v1034 = vld [vmem:[%s867 + $0x5c] sm:$0xf]
      %v1035 = vld [vmem:[%s867 + $0x60] sm:$0xf]
      %v1036 = vld [vmem:[%s867 + $0x64] sm:$0xf]
      %v1037 = vld [vmem:[%s867 + $0x68] sm:$0xf]
      %v1038 = vld [vmem:[%s867 + $0x6c] sm:$0xf]
      %v1039 = vld [vmem:[%s867 + $0x70] sm:$0xf]
      %v1040 = vld [vmem:[%s867 + $0x74] sm:$0xf]
      %v1041 = vld [vmem:[%s867 + $0x78] sm:$0xf]
      %v1042 = vld [vmem:[%s867 + $0x7c] sm:$0xf]
      %s1043 = scalar_lea.vmem %s867, 128
      %v1044 = vld [vmem:[%s1043] sm:$0xf]
      %v1045 = vld [vmem:[%s1043 + $0x4] sm:$0xf]
      %v1046 = vld [vmem:[%s1043 + $0x8] sm:$0xf]
      %v1047 = vld [vmem:[%s1043 + $0xc] sm:$0xf]
      %v1048 = vld [vmem:[%s1043 + $0x10] sm:$0xf]
      %v1049 = vld [vmem:[%s1043 + $0x14] sm:$0xf]
      %v1050 = vld [vmem:[%s1043 + $0x18] sm:$0xf]
      %v1051 = vld [vmem:[%s1043 + $0x1c] sm:$0xf]
      %v1052 = vld [vmem:[%s1043 + $0x20] sm:$0xf]
      %v1053 = vld [vmem:[%s1043 + $0x24] sm:$0xf]
      %v1054 = vld [vmem:[%s1043 + $0x28] sm:$0xf]
      %v1055 = vld [vmem:[%s1043 + $0x2c] sm:$0xf]
      %v1056 = vld [vmem:[%s1043 + $0x30] sm:$0xf]
      %v1057 = vld [vmem:[%s1043 + $0x34] sm:$0xf]
      %v1058 = vld [vmem:[%s1043 + $0x38] sm:$0xf]
      %v1059 = vld [vmem:[%s1043 + $0x3c] sm:$0xf]
      %v1060 = vld [vmem:[%s1043 + $0x40] sm:$0xf]
      %v1061 = vld [vmem:[%s1043 + $0x44] sm:$0xf]
      %v1062 = vld [vmem:[%s1043 + $0x48] sm:$0xf]
      %v1063 = vld [vmem:[%s1043 + $0x4c] sm:$0xf]
      %v1064 = vld [vmem:[%s1043 + $0x50] sm:$0xf]
      %v1065 = vld [vmem:[%s1043 + $0x54] sm:$0xf]
      %v1066 = vld [vmem:[%s1043 + $0x58] sm:$0xf]
      %v1067 = vld [vmem:[%s1043 + $0x5c] sm:$0xf]
      %v1068 = vld [vmem:[%s1043 + $0x60] sm:$0xf]
      %v1069 = vld [vmem:[%s1043 + $0x64] sm:$0xf]
      %v1070 = vld [vmem:[%s1043 + $0x68] sm:$0xf]
      %v1071 = vld [vmem:[%s1043 + $0x6c] sm:$0xf]
      %v1072 = vld [vmem:[%s1043 + $0x70] sm:$0xf]
      %v1073 = vld [vmem:[%s1043 + $0x74] sm:$0xf]
      %v1074 = vld [vmem:[%s1043 + $0x78] sm:$0xf]
      %v1075 = vld [vmem:[%s1043 + $0x7c] sm:$0xf]
      %v1108 = vunpack.c.l.b16 %v1011
      %v1109 = vunpack.c.l.b16 %v1012
      %v1110 = vunpack.c.l.b16 %v1013
      %v1111 = vunpack.c.l.b16 %v1014
      %v1112 = vunpack.c.l.b16 %v1015
      %v1113 = vunpack.c.l.b16 %v1016
      %v1114 = vunpack.c.l.b16 %v1017
      %v1115 = vunpack.c.l.b16 %v1018
      %v1116 = vunpack.c.l.b16 %v1019
      %v1117 = vunpack.c.l.b16 %v1020
      %v1118 = vunpack.c.l.b16 %v1021
      %v1119 = vunpack.c.l.b16 %v1022
      %v1120 = vunpack.c.l.b16 %v1023
      %v1121 = vunpack.c.l.b16 %v1024
      %v1122 = vunpack.c.l.b16 %v1025
      %v1123 = vunpack.c.l.b16 %v1026
      %v1124 = vunpack.c.l.b16 %v1027
      %v1125 = vunpack.c.l.b16 %v1028
      %v1126 = vunpack.c.l.b16 %v1029
      %v1127 = vunpack.c.l.b16 %v1030
      %v1128 = vunpack.c.l.b16 %v1031
      %v1129 = vunpack.c.l.b16 %v1032
      %v1130 = vunpack.c.l.b16 %v1033
      %v1131 = vunpack.c.l.b16 %v1034
      %v1132 = vunpack.c.l.b16 %v1035
      %v1133 = vunpack.c.l.b16 %v1036
      %v1134 = vunpack.c.l.b16 %v1037
      %v1135 = vunpack.c.l.b16 %v1038
      %v1136 = vunpack.c.l.b16 %v1039
      %v1137 = vunpack.c.l.b16 %v1040
      %v1138 = vunpack.c.l.b16 %v1041
      %v1139 = vunpack.c.l.b16 %v1042
      %v1140 = vpack.c.b16 %v1109, %v1108
      %v1141 = vpack.c.b16 %v1111, %v1110
      %v1142 = vpack.c.b16 %v1113, %v1112
      %v1143 = vpack.c.b16 %v1115, %v1114
      %v1144 = vpack.c.b16 %v1117, %v1116
      %v1145 = vpack.c.b16 %v1119, %v1118
      %v1146 = vpack.c.b16 %v1121, %v1120
      %v1147 = vpack.c.b16 %v1123, %v1122
      %v1148 = vpack.c.b16 %v1125, %v1124
      %v1149 = vpack.c.b16 %v1127, %v1126
      %v1150 = vpack.c.b16 %v1129, %v1128
      %v1151 = vpack.c.b16 %v1131, %v1130
      %v1152 = vpack.c.b16 %v1133, %v1132
      %v1153 = vpack.c.b16 %v1135, %v1134
      %v1154 = vpack.c.b16 %v1137, %v1136
      %v1155 = vpack.c.b16 %v1139, %v1138
      %v1204 = vunpack.c.l.b16 %v1044
      %v1205 = vunpack.c.l.b16 %v1045
      %v1206 = vunpack.c.l.b16 %v1046
      %v1207 = vunpack.c.l.b16 %v1047
      %v1208 = vunpack.c.l.b16 %v1048
      %v1209 = vunpack.c.l.b16 %v1049
      %v1210 = vunpack.c.l.b16 %v1050
      %v1211 = vunpack.c.l.b16 %v1051
      %v1212 = vunpack.c.l.b16 %v1052
      %v1213 = vunpack.c.l.b16 %v1053
      %v1214 = vunpack.c.l.b16 %v1054
      %v1215 = vunpack.c.l.b16 %v1055
      %v1216 = vunpack.c.l.b16 %v1056
      %v1217 = vunpack.c.l.b16 %v1057
      %v1218 = vunpack.c.l.b16 %v1058
      %v1219 = vunpack.c.l.b16 %v1059
      %v1220 = vunpack.c.l.b16 %v1060
      %v1221 = vunpack.c.l.b16 %v1061
      %v1222 = vunpack.c.l.b16 %v1062
      %v1223 = vunpack.c.l.b16 %v1063
      %v1224 = vunpack.c.l.b16 %v1064
      %v1225 = vunpack.c.l.b16 %v1065
      %v1226 = vunpack.c.l.b16 %v1066
      %v1227 = vunpack.c.l.b16 %v1067
      %v1228 = vunpack.c.l.b16 %v1068
      %v1229 = vunpack.c.l.b16 %v1069
      %v1230 = vunpack.c.l.b16 %v1070
      %v1231 = vunpack.c.l.b16 %v1071
      %v1232 = vunpack.c.l.b16 %v1072
      %v1233 = vunpack.c.l.b16 %v1073
      %v1234 = vunpack.c.l.b16 %v1074
      %v1235 = vunpack.c.l.b16 %v1075
      %v1236 = vpack.c.b16 %v1205, %v1204
      %v1237 = vpack.c.b16 %v1207, %v1206
      %v1238 = vpack.c.b16 %v1209, %v1208
      %v1239 = vpack.c.b16 %v1211, %v1210
      %v1240 = vpack.c.b16 %v1213, %v1212
      %v1241 = vpack.c.b16 %v1215, %v1214
      %v1242 = vpack.c.b16 %v1217, %v1216
      %v1243 = vpack.c.b16 %v1219, %v1218
      %v1244 = vpack.c.b16 %v1221, %v1220
      %v1245 = vpack.c.b16 %v1223, %v1222
      %v1246 = vpack.c.b16 %v1225, %v1224
      %v1247 = vpack.c.b16 %v1227, %v1226
      %v1248 = vpack.c.b16 %v1229, %v1228
      %v1249 = vpack.c.b16 %v1231, %v1230
      %v1250 = vpack.c.b16 %v1233, %v1232
      %v1251 = vpack.c.b16 %v1235, %v1234
      %v1268 = vld [vmem:[%s880] sm:$0xff]
      %v1269 = vld [vmem:[%s880 + $0x8] sm:$0xff]
      %v1270 = vld [vmem:[%s880 + $0x10] sm:$0xff]
      %v1271 = vld [vmem:[%s880 + $0x18] sm:$0xff]
      %v1272 = vld [vmem:[%s880 + $0x20] sm:$0xff]
      %v1273 = vld [vmem:[%s880 + $0x28] sm:$0xff]
      %v1274 = vld [vmem:[%s880 + $0x30] sm:$0xff]
      %v1275 = vld [vmem:[%s880 + $0x38] sm:$0xff]
      %v1276 = vld [vmem:[%s880 + $0x40] sm:$0xff]
      %v1277 = vld [vmem:[%s880 + $0x48] sm:$0xff]
      %v1278 = vld [vmem:[%s880 + $0x50] sm:$0xff]
      %v1279 = vld [vmem:[%s880 + $0x58] sm:$0xff]
      %v1280 = vld [vmem:[%s880 + $0x60] sm:$0xff]
      %v1281 = vld [vmem:[%s880 + $0x68] sm:$0xff]
      %v1282 = vld [vmem:[%s880 + $0x70] sm:$0xff]
      %v1283 = vld [vmem:[%s880 + $0x78] sm:$0xff]
      %v1284 = vld [vmem:[%s885] sm:$0xff]
      %v1285 = vld [vmem:[%s885 + $0x8] sm:$0xff]
      %v1286 = vld [vmem:[%s885 + $0x10] sm:$0xff]
      %v1287 = vld [vmem:[%s885 + $0x18] sm:$0xff]
      %v1288 = vld [vmem:[%s885 + $0x20] sm:$0xff]
      %v1289 = vld [vmem:[%s885 + $0x28] sm:$0xff]
      %v1290 = vld [vmem:[%s885 + $0x30] sm:$0xff]
      %v1291 = vld [vmem:[%s885 + $0x38] sm:$0xff]
      %v1292 = vld [vmem:[%s885 + $0x40] sm:$0xff]
      %v1293 = vld [vmem:[%s885 + $0x48] sm:$0xff]
      %v1294 = vld [vmem:[%s885 + $0x50] sm:$0xff]
      %v1295 = vld [vmem:[%s885 + $0x58] sm:$0xff]
      %v1296 = vld [vmem:[%s885 + $0x60] sm:$0xff]
      %v1297 = vld [vmem:[%s885 + $0x68] sm:$0xff]
      %v1298 = vld [vmem:[%s885 + $0x70] sm:$0xff]
      %v1299 = vld [vmem:[%s885 + $0x78] sm:$0xff]
      %1301 = vset.pattern.permute.xlu0 0
      %1302 = vperm.xlu0 %1301, %v1284
      %v1303 = vpop.permute.xlu0 %1302
      %1306 = vset.pattern.permute.xlu0 0
      %1307 = vperm.xlu0 %1306, %v1285
      %v1308 = vpop.permute.xlu0 %1307
      %1311 = vset.pattern.permute.xlu0 0
      %1312 = vperm.xlu0 %1311, %v1286
      %v1313 = vpop.permute.xlu0 %1312
      %1316 = vset.pattern.permute.xlu0 0
      %1317 = vperm.xlu0 %1316, %v1287
      %v1318 = vpop.permute.xlu0 %1317
      %1321 = vset.pattern.permute.xlu0 0
      %1322 = vperm.xlu0 %1321, %v1288
      %v1323 = vpop.permute.xlu0 %1322
      %1326 = vset.pattern.permute.xlu0 0
      %1327 = vperm.xlu0 %1326, %v1289
      %v1328 = vpop.permute.xlu0 %1327
      %1331 = vset.pattern.permute.xlu0 0
      %1332 = vperm.xlu0 %1331, %v1290
      %v1333 = vpop.permute.xlu0 %1332
      %1336 = vset.pattern.permute.xlu0 0
      %1337 = vperm.xlu0 %1336, %v1291
      %v1338 = vpop.permute.xlu0 %1337
      %1341 = vset.pattern.permute.xlu0 0
      %1342 = vperm.xlu0 %1341, %v1292
      %v1343 = vpop.permute.xlu0 %1342
      %1346 = vset.pattern.permute.xlu0 0
      %1347 = vperm.xlu0 %1346, %v1293
      %v1348 = vpop.permute.xlu0 %1347
      %1351 = vset.pattern.permute.xlu0 0
      %1352 = vperm.xlu0 %1351, %v1294
      %v1353 = vpop.permute.xlu0 %1352
      %1356 = vset.pattern.permute.xlu0 0
      %1357 = vperm.xlu0 %1356, %v1295
      %v1358 = vpop.permute.xlu0 %1357
      %1361 = vset.pattern.permute.xlu0 0
      %1362 = vperm.xlu0 %1361, %v1296
      %v1363 = vpop.permute.xlu0 %1362
      %1366 = vset.pattern.permute.xlu0 0
      %1367 = vperm.xlu0 %1366, %v1297
      %v1368 = vpop.permute.xlu0 %1367
      %1371 = vset.pattern.permute.xlu0 0
      %1372 = vperm.xlu0 %1371, %v1298
      %v1373 = vpop.permute.xlu0 %1372
      %1376 = vset.pattern.permute.xlu0 0
      %1377 = vperm.xlu0 %1376, %v1299
      %v1378 = vpop.permute.xlu0 %1377
      %v1396 = vunpack.c.l.b16 %v1268
      %v1397 = vunpack.c.h.b16 %v1268
      %v1398 = vunpack.c.l.b16 %v1269
      %v1399 = vunpack.c.h.b16 %v1269
      %v1400 = vunpack.c.l.b16 %v1270
      %v1401 = vunpack.c.h.b16 %v1270
      %v1402 = vunpack.c.l.b16 %v1271
      %v1403 = vunpack.c.h.b16 %v1271
      %v1404 = vunpack.c.l.b16 %v1272
      %v1405 = vunpack.c.h.b16 %v1272
      %v1406 = vunpack.c.l.b16 %v1273
      %v1407 = vunpack.c.h.b16 %v1273
      %v1408 = vunpack.c.l.b16 %v1274
      %v1409 = vunpack.c.h.b16 %v1274
      %v1410 = vunpack.c.l.b16 %v1275
      %v1411 = vunpack.c.h.b16 %v1275
      %v1412 = vunpack.c.l.b16 %v1276
      %v1413 = vunpack.c.h.b16 %v1276
      %v1414 = vunpack.c.l.b16 %v1277
      %v1415 = vunpack.c.h.b16 %v1277
      %v1416 = vunpack.c.l.b16 %v1278
      %v1417 = vunpack.c.h.b16 %v1278
      %v1418 = vunpack.c.l.b16 %v1279
      %v1419 = vunpack.c.h.b16 %v1279
      %v1420 = vunpack.c.l.b16 %v1280
      %v1421 = vunpack.c.h.b16 %v1280
      %v1422 = vunpack.c.l.b16 %v1281
      %v1423 = vunpack.c.h.b16 %v1281
      %v1424 = vunpack.c.l.b16 %v1282
      %v1425 = vunpack.c.h.b16 %v1282
      %v1426 = vunpack.c.l.b16 %v1283
      %v1427 = vunpack.c.h.b16 %v1283
      %v1428 = vpack.c.b16 %v1398, %v1396
      %v1429 = vpack.c.b16 %v1399, %v1397
      %v1430 = vpack.c.b16 %v1402, %v1400
      %v1431 = vpack.c.b16 %v1403, %v1401
      %v1432 = vpack.c.b16 %v1406, %v1404
      %v1433 = vpack.c.b16 %v1407, %v1405
      %v1434 = vpack.c.b16 %v1410, %v1408
      %v1435 = vpack.c.b16 %v1411, %v1409
      %v1436 = vpack.c.b16 %v1414, %v1412
      %v1437 = vpack.c.b16 %v1415, %v1413
      %v1438 = vpack.c.b16 %v1418, %v1416
      %v1439 = vpack.c.b16 %v1419, %v1417
      %v1440 = vpack.c.b16 %v1422, %v1420
      %v1441 = vpack.c.b16 %v1423, %v1421
      %v1442 = vpack.c.b16 %v1426, %v1424
      %v1443 = vpack.c.b16 %v1427, %v1425
      %1460 = vmatprep.subr.bf16.mxu0 %v995
      %1461 = vmatpush1.bf16.msra.mxu0 %v1140
      %1462 = vmatprep.subr.bf16.mxu0 %v996
      %1463 = vmatpush1.bf16.msra.mxu0 %v1141
      %1464 = vmatprep.subr.bf16.mxu0 %v997
      %1465 = vmatpush1.bf16.msra.mxu0 %v1142
      %1466 = vmatprep.subr.bf16.mxu0 %v998
      %1467 = vmatpush1.bf16.msra.mxu0 %v1143
      %1468 = vmatprep.subr.bf16.mxu0 %v999
      %1469 = vmatpush1.bf16.msra.mxu0 %v1144
      %1470 = vmatprep.subr.bf16.mxu0 %v1000
      %1471 = vmatpush1.bf16.msra.mxu0 %v1145
      %1472 = vmatprep.subr.bf16.mxu0 %v1001
      %1473 = vmatpush1.bf16.msra.mxu0 %v1146
      %1474 = vmatprep.subr.bf16.mxu0 %v1002
      %1475 = vmatpush1.bf16.msra.mxu0 %v1147
      %1476 = vmatprep.subr.bf16.mxu0 %v1003
      %1477 = vmatpush1.bf16.msra.mxu0 %v1148
      %1478 = vmatprep.subr.bf16.mxu0 %v1004
      %1479 = vmatpush1.bf16.msra.mxu0 %v1149
      %1480 = vmatprep.subr.bf16.mxu0 %v1005
      %1481 = vmatpush1.bf16.msra.mxu0 %v1150
      %1482 = vmatprep.subr.bf16.mxu0 %v1006
      %1483 = vmatpush1.bf16.msra.mxu0 %v1151
      %1484 = vmatprep.subr.bf16.mxu0 %v1007
      %1485 = vmatpush1.bf16.msra.mxu0 %v1152
      %1486 = vmatprep.subr.bf16.mxu0 %v1008
      %1487 = vmatpush1.bf16.msra.mxu0 %v1153
      %1488 = vmatprep.subr.bf16.mxu0 %v1009
      %1489 = vmatpush1.bf16.msra.mxu0 %v1154
      %1490 = vmatprep.subr.bf16.mxu0 %v1010
      %1491 = vmatpush1.bf16.msra.mxu0 %v1155
      %1492 = vmatprep.mubr.bf16.mxu0 %v1429
      %1493 = vmatmul.mubr.bf16.gmra.mrb[0].mxu0 %v1428
      %v1494 = vpop.f32.mrb[0].mxu0
      %v1495 = vadd.f32 %v1303, %v1494
      %v1496 = vpop.f32.mrb[0].mxu0
      %v1497 = vadd.f32 %v1303, %v1496
      %v1498 = vpop.f32.mrb[0].mxu0
      %v1499 = vadd.f32 %v1308, %v1498
      %v1500 = vpop.f32.mrb[0].mxu0
      %v1501 = vadd.f32 %v1308, %v1500
      %1502 = vmatprep.mubr.bf16.mxu0 %v1431
      %1503 = vmatmul.mubr.bf16.gmra.mrb[0].mxu0 %v1430
      %v1504 = vpop.f32.mrb[0].mxu0
      %v1505 = vadd.f32 %v1313, %v1504
      %v1506 = vpop.f32.mrb[0].mxu0
      %v1507 = vadd.f32 %v1313, %v1506
      %v1508 = vpop.f32.mrb[0].mxu0
      %v1509 = vadd.f32 %v1318, %v1508
      %v1510 = vpop.f32.mrb[0].mxu0
      %v1511 = vadd.f32 %v1318, %v1510
      %1512 = vmatprep.mubr.bf16.mxu0 %v1433
      %1513 = vmatmul.mubr.bf16.gmra.mrb[0].mxu0 %v1432
      %v1514 = vpop.f32.mrb[0].mxu0
      %v1515 = vadd.f32 %v1323, %v1514
      %v1516 = vpop.f32.mrb[0].mxu0
      %v1517 = vadd.f32 %v1323, %v1516
      %v1518 = vpop.f32.mrb[0].mxu0
      %v1519 = vadd.f32 %v1328, %v1518
      %v1520 = vpop.f32.mrb[0].mxu0
      %v1521 = vadd.f32 %v1328, %v1520
      %1522 = vmatprep.mubr.bf16.mxu0 %v1435
      %1523 = vmatmul.mubr.bf16.gmra.mrb[0].mxu0 %v1434
      %v1524 = vpop.f32.mrb[0].mxu0
      %v1525 = vadd.f32 %v1333, %v1524
      %v1526 = vpop.f32.mrb[0].mxu0
      %v1527 = vadd.f32 %v1333, %v1526
      %v1528 = vpop.f32.mrb[0].mxu0
      %v1529 = vadd.f32 %v1338, %v1528
      %v1530 = vpop.f32.mrb[0].mxu0
      %v1531 = vadd.f32 %v1338, %v1530
      %1532 = vmatprep.mubr.bf16.mxu0 %v1437
      %1533 = vmatmul.mubr.bf16.gmra.mrb[0].mxu0 %v1436
      %v1534 = vpop.f32.mrb[0].mxu0
      %v1535 = vadd.f32 %v1343, %v1534
      %v1536 = vpop.f32.mrb[0].mxu0
      %v1537 = vadd.f32 %v1343, %v1536
      %v1538 = vpop.f32.mrb[0].mxu0
      %v1539 = vadd.f32 %v1348, %v1538
      %v1540 = vpop.f32.mrb[0].mxu0
      %v1541 = vadd.f32 %v1348, %v1540
      %1542 = vmatprep.mubr.bf16.mxu0 %v1439
      %1543 = vmatmul.mubr.bf16.gmra.mrb[0].mxu0 %v1438
      %v1544 = vpop.f32.mrb[0].mxu0
      %v1545 = vadd.f32 %v1353, %v1544
      %v1546 = vpop.f32.mrb[0].mxu0
      %v1547 = vadd.f32 %v1353, %v1546
      %v1548 = vpop.f32.mrb[0].mxu0
      %v1549 = vadd.f32 %v1358, %v1548
      %v1550 = vpop.f32.mrb[0].mxu0
      %v1551 = vadd.f32 %v1358, %v1550
      %1552 = vmatprep.mubr.bf16.mxu0 %v1441
      %1553 = vmatmul.mubr.bf16.gmra.mrb[0].mxu0 %v1440
      %v1554 = vpop.f32.mrb[0].mxu0
      %v1555 = vadd.f32 %v1363, %v1554
      %v1556 = vpop.f32.mrb[0].mxu0
      %v1557 = vadd.f32 %v1363, %v1556
      %v1558 = vpop.f32.mrb[0].mxu0
      %v1559 = vadd.f32 %v1368, %v1558
      %v1560 = vpop.f32.mrb[0].mxu0
      %v1561 = vadd.f32 %v1368, %v1560
      %1562 = vmatprep.mubr.bf16.mxu0 %v1443
      %1563 = vmatmul.mubr.bf16.gmra.mrb[0].mxu0 %v1442
      %v1564 = vpop.f32.mrb[0].mxu0
      %v1565 = vadd.f32 %v1373, %v1564
      %v1566 = vpop.f32.mrb[0].mxu0
      %v1567 = vadd.f32 %v1373, %v1566
      %v1568 = vpop.f32.mrb[0].mxu0
      %v1569 = vadd.f32 %v1378, %v1568
      %v1570 = vpop.f32.mrb[0].mxu0
      %v1571 = vadd.f32 %v1378, %v1570
      %1572 = vdwg.mxu0
      %1573 = vmatprep.subr.bf16.mxu0 0
      %1574 = vmatpush1.bf16.msra.mxu0 %v1236
      %1575 = vmatprep.subr.bf16.mxu0 0
      %1576 = vmatpush1.bf16.msra.mxu0 %v1237
      %1577 = vmatprep.subr.bf16.mxu0 0
      %1578 = vmatpush1.bf16.msra.mxu0 %v1238
      %1579 = vmatprep.subr.bf16.mxu0 0
      %1580 = vmatpush1.bf16.msra.mxu0 %v1239
      %1581 = vmatprep.subr.bf16.mxu0 0
      %1582 = vmatpush1.bf16.msra.mxu0 %v1240
      %1583 = vmatprep.subr.bf16.mxu0 0
      %1584 = vmatpush1.bf16.msra.mxu0 %v1241
      %1585 = vmatprep.subr.bf16.mxu0 0
      %1586 = vmatpush1.bf16.msra.mxu0 %v1242
      %1587 = vmatprep.subr.bf16.mxu0 0
      %1588 = vmatpush1.bf16.msra.mxu0 %v1243
      %1589 = vmatprep.subr.bf16.mxu0 0
      %1590 = vmatpush1.bf16.msra.mxu0 %v1244
      %1591 = vmatprep.subr.bf16.mxu0 0
      %1592 = vmatpush1.bf16.msra.mxu0 %v1245
      %1593 = vmatprep.subr.bf16.mxu0 0
      %1594 = vmatpush1.bf16.msra.mxu0 %v1246
      %1595 = vmatprep.subr.bf16.mxu0 0
      %1596 = vmatpush1.bf16.msra.mxu0 %v1247
      %1597 = vmatprep.subr.bf16.mxu0 0
      %1598 = vmatpush1.bf16.msra.mxu0 %v1248
      %1599 = vmatprep.subr.bf16.mxu0 0
      %1600 = vmatpush1.bf16.msra.mxu0 %v1249
      %1601 = vmatprep.subr.bf16.mxu0 0
      %1602 = vmatpush1.bf16.msra.mxu0 %v1250
      %1603 = vmatprep.subr.bf16.mxu0 0
      %1604 = vmatpush1.bf16.msra.mxu0 %v1251
      %1605 = vmatprep.mubr.bf16.mxu0 %v1429
      %1606 = vmatmul.mubr.bf16.gmra.mrb[0].mxu0 %v1428
      %v1607 = vpop.f32.mrb[0].mxu0
      %v1608 = vadd.f32 %v1303, %v1607
      %v1609 = vpop.f32.mrb[0].mxu0
      %v1610 = vpop.f32.mrb[0].mxu0
      %v1611 = vadd.f32 %v1308, %v1610
      %v1612 = vpop.f32.mrb[0].mxu0
      %1613 = vmatprep.mubr.bf16.mxu0 %v1431
      %1614 = vmatmul.mubr.bf16.gmra.mrb[0].mxu0 %v1430
      %v1615 = vpop.f32.mrb[0].mxu0
      %v1616 = vadd.f32 %v1313, %v1615
      %v1617 = vpop.f32.mrb[0].mxu0
      %v1618 = vpop.f32.mrb[0].mxu0
      %v1619 = vadd.f32 %v1318, %v1618
      %v1620 = vpop.f32.mrb[0].mxu0
      %1621 = vmatprep.mubr.bf16.mxu0 %v1433
      %1622 = vmatmul.mubr.bf16.gmra.mrb[0].mxu0 %v1432
      %v1623 = vpop.f32.mrb[0].mxu0
      %v1624 = vadd.f32 %v1323, %v1623
      %v1625 = vpop.f32.mrb[0].mxu0
      %v1626 = vpop.f32.mrb[0].mxu0
      %v1627 = vadd.f32 %v1328, %v1626
      %v1628 = vpop.f32.mrb[0].mxu0
      %1629 = vmatprep.mubr.bf16.mxu0 %v1435
      %1630 = vmatmul.mubr.bf16.gmra.mrb[0].mxu0 %v1434
      %v1631 = vpop.f32.mrb[0].mxu0
      %v1632 = vadd.f32 %v1333, %v1631
      %v1633 = vpop.f32.mrb[0].mxu0
      %v1634 = vpop.f32.mrb[0].mxu0
      %v1635 = vadd.f32 %v1338, %v1634
      %v1636 = vpop.f32.mrb[0].mxu0
      %1637 = vmatprep.mubr.bf16.mxu0 %v1437
      %1638 = vmatmul.mubr.bf16.gmra.mrb[0].mxu0 %v1436
      %v1639 = vpop.f32.mrb[0].mxu0
      %v1640 = vadd.f32 %v1343, %v1639
      %v1641 = vpop.f32.mrb[0].mxu0
      %v1642 = vpop.f32.mrb[0].mxu0
      %v1643 = vadd.f32 %v1348, %v1642
      %v1644 = vpop.f32.mrb[0].mxu0
      %1645 = vmatprep.mubr.bf16.mxu0 %v1439
      %1646 = vmatmul.mubr.bf16.gmra.mrb[0].mxu0 %v1438
      %v1647 = vpop.f32.mrb[0].mxu0
      %v1648 = vadd.f32 %v1353, %v1647
      %v1649 = vpop.f32.mrb[0].mxu0
      %v1650 = vpop.f32.mrb[0].mxu0
      %v1651 = vadd.f32 %v1358, %v1650
      %v1652 = vpop.f32.mrb[0].mxu0
      %1653 = vmatprep.mubr.bf16.mxu0 %v1441
      %1654 = vmatmul.mubr.bf16.gmra.mrb[0].mxu0 %v1440
      %v1655 = vpop.f32.mrb[0].mxu0
      %v1656 = vadd.f32 %v1363, %v1655
      %v1657 = vpop.f32.mrb[0].mxu0
      %v1658 = vpop.f32.mrb[0].mxu0
      %v1659 = vadd.f32 %v1368, %v1658
      %v1660 = vpop.f32.mrb[0].mxu0
      %1661 = vmatprep.mubr.bf16.mxu0 %v1443
      %1662 = vmatmul.mubr.bf16.gmra.mrb[0].mxu0 %v1442
      %v1663 = vpop.f32.mrb[0].mxu0
      %v1664 = vadd.f32 %v1373, %v1663
      %v1665 = vpop.f32.mrb[0].mxu0
      %v1666 = vpop.f32.mrb[0].mxu0
      %v1667 = vadd.f32 %v1378, %v1666
      %v1668 = vpop.f32.mrb[0].mxu0
      %1669 = vdwg.mxu0
      %v1670 = vmax.f32 %v1495, 0.0
      %v1671 = vmax.f32 %v1497, 0.0
      %v1672 = vmax.f32 %v1608, 0.0
      %v1673 = vmax.f32 %v1499, 0.0
      %v1674 = vmax.f32 %v1501, 0.0
      %v1675 = vmax.f32 %v1611, 0.0
      %v1676 = vmax.f32 %v1505, 0.0
      %v1677 = vmax.f32 %v1507, 0.0
      %v1678 = vmax.f32 %v1616, 0.0
      %v1679 = vmax.f32 %v1509, 0.0
      %v1680 = vmax.f32 %v1511, 0.0
      %v1681 = vmax.f32 %v1619, 0.0
      %v1682 = vmax.f32 %v1515, 0.0
      %v1683 = vmax.f32 %v1517, 0.0
      %v1684 = vmax.f32 %v1624, 0.0
      %v1685 = vmax.f32 %v1519, 0.0
      %v1686 = vmax.f32 %v1521, 0.0
      %v1687 = vmax.f32 %v1627, 0.0
      %v1688 = vmax.f32 %v1525, 0.0
      %v1689 = vmax.f32 %v1527, 0.0
      %v1690 = vmax.f32 %v1632, 0.0
      %v1691 = vmax.f32 %v1529, 0.0
      %v1692 = vmax.f32 %v1531, 0.0
      %v1693 = vmax.f32 %v1635, 0.0
      %v1694 = vmax.f32 %v1535, 0.0
      %v1695 = vmax.f32 %v1537, 0.0
      %v1696 = vmax.f32 %v1640, 0.0
      %v1697 = vmax.f32 %v1539, 0.0
      %v1698 = vmax.f32 %v1541, 0.0
      %v1699 = vmax.f32 %v1643, 0.0
      %v1700 = vmax.f32 %v1545, 0.0
      %v1701 = vmax.f32 %v1547, 0.0
      %v1702 = vmax.f32 %v1648, 0.0
      %v1703 = vmax.f32 %v1549, 0.0
      %v1704 = vmax.f32 %v1551, 0.0
      %v1705 = vmax.f32 %v1651, 0.0
      %v1706 = vmax.f32 %v1555, 0.0
      %v1707 = vmax.f32 %v1557, 0.0
      %v1708 = vmax.f32 %v1656, 0.0
      %v1709 = vmax.f32 %v1559, 0.0
      %v1710 = vmax.f32 %v1561, 0.0
      %v1711 = vmax.f32 %v1659, 0.0
      %v1712 = vmax.f32 %v1565, 0.0
      %v1713 = vmax.f32 %v1567, 0.0
      %v1714 = vmax.f32 %v1664, 0.0
      %v1715 = vmax.f32 %v1569, 0.0
      %v1716 = vmax.f32 %v1571, 0.0
      %v1717 = vmax.f32 %v1667, 0.0
      %v1718 = vpack.c.bf16 %v1673, %v1670
      %v1719 = vpack.c.bf16 %v1674, %v1671
      %v1720 = vpack.c.bf16 %v1675, %v1672
      %v1721 = vpack.c.bf16 %v1679, %v1676
      %v1722 = vpack.c.bf16 %v1680, %v1677
      %v1723 = vpack.c.bf16 %v1681, %v1678
      %v1724 = vpack.c.bf16 %v1685, %v1682
      %v1725 = vpack.c.bf16 %v1686, %v1683
      %v1726 = vpack.c.bf16 %v1687, %v1684
      %v1727 = vpack.c.bf16 %v1691, %v1688
      %v1728 = vpack.c.bf16 %v1692, %v1689
      %v1729 = vpack.c.bf16 %v1693, %v1690
      %v1730 = vpack.c.bf16 %v1697, %v1694
      %v1731 = vpack.c.bf16 %v1698, %v1695
      %v1732 = vpack.c.bf16 %v1699, %v1696
      %v1733 = vpack.c.bf16 %v1703, %v1700
      %v1734 = vpack.c.bf16 %v1704, %v1701
      %v1735 = vpack.c.bf16 %v1705, %v1702
      %v1736 = vpack.c.bf16 %v1709, %v1706
      %v1737 = vpack.c.bf16 %v1710, %v1707
      %v1738 = vpack.c.bf16 %v1711, %v1708
      %v1739 = vpack.c.bf16 %v1715, %v1712
      %v1740 = vpack.c.bf16 %v1716, %v1713
      %v1741 = vpack.c.bf16 %v1717, %v1714
      %v1742 = vld [vmem:[%s890] sm:$0xff]
      %v1743 = vld [vmem:[%s890 + $0x8] sm:$0xf]
      %v1744 = vld [vmem:[%s890 + $0xc] sm:$0xff]
      %v1745 = vld [vmem:[%s890 + $0x14] sm:$0xf]
      %v1746 = vld [vmem:[%s890 + $0x18] sm:$0xff]
      %v1747 = vld [vmem:[%s890 + $0x20] sm:$0xf]
      %v1748 = vld [vmem:[%s890 + $0x24] sm:$0xff]
      %v1749 = vld [vmem:[%s890 + $0x2c] sm:$0xf]
      %v1750 = vld [vmem:[%s890 + $0x30] sm:$0xff]
      %v1751 = vld [vmem:[%s890 + $0x38] sm:$0xf]
      %v1752 = vld [vmem:[%s890 + $0x3c] sm:$0xff]
      %v1753 = vld [vmem:[%s890 + $0x44] sm:$0xf]
      %v1754 = vld [vmem:[%s890 + $0x48] sm:$0xff]
      %v1755 = vld [vmem:[%s890 + $0x50] sm:$0xf]
      %v1756 = vld [vmem:[%s890 + $0x54] sm:$0xff]
      %v1757 = vld [vmem:[%s890 + $0x5c] sm:$0xf]
      %v1758 = vld [vmem:[%s890 + $0x60] sm:$0xff]
      %v1759 = vld [vmem:[%s890 + $0x68] sm:$0xf]
      %v1760 = vld [vmem:[%s890 + $0x6c] sm:$0xff]
      %v1761 = vld [vmem:[%s890 + $0x74] sm:$0xf]
      %v1762 = vld [vmem:[%s890 + $0x78] sm:$0xff]
      %v1763 = vld [vmem:[%s890 + $0x80] sm:$0xf]
      %v1764 = vld [vmem:[%s890 + $0x84] sm:$0xff]
      %v1765 = vld [vmem:[%s890 + $0x8c] sm:$0xf]
      %v1766 = vld [vmem:[%s890 + $0x90] sm:$0xff]
      %v1767 = vld [vmem:[%s890 + $0x98] sm:$0xf]
      %v1768 = vld [vmem:[%s890 + $0x9c] sm:$0xff]
      %v1769 = vld [vmem:[%s890 + $0xa4] sm:$0xf]
      %v1770 = vld [vmem:[%s890 + $0xa8] sm:$0xff]
      %v1771 = vld [vmem:[%s890 + $0xb0] sm:$0xf]
      %v1772 = vld [vmem:[%s890 + $0xb4] sm:$0xff]
      %v1773 = vld [vmem:[%s890 + $0xbc] sm:$0xf]
      %v1774 = vld [vmem:[%s895] sm:$0xff]
      %v1775 = vld [vmem:[%s895 + $0x8] sm:$0xff]
      %v1776 = vld [vmem:[%s895 + $0x10] sm:$0xff]
      %v1777 = vld [vmem:[%s895 + $0x18] sm:$0xff]
      %v1778 = vld [vmem:[%s895 + $0x20] sm:$0xff]
      %v1779 = vld [vmem:[%s895 + $0x28] sm:$0xff]
      %v1780 = vld [vmem:[%s895 + $0x30] sm:$0xff]
      %v1781 = vld [vmem:[%s895 + $0x38] sm:$0xff]
      %v1782 = vld [vmem:[%s895 + $0x40] sm:$0xff]
      %v1783 = vld [vmem:[%s895 + $0x48] sm:$0xff]
      %v1784 = vld [vmem:[%s895 + $0x50] sm:$0xff]
      %v1785 = vld [vmem:[%s895 + $0x58] sm:$0xff]
      %v1786 = vld [vmem:[%s895 + $0x60] sm:$0xff]
      %v1787 = vld [vmem:[%s895 + $0x68] sm:$0xff]
      %v1788 = vld [vmem:[%s895 + $0x70] sm:$0xff]
      %v1789 = vld [vmem:[%s895 + $0x78] sm:$0xff]
      %1791 = vset.pattern.permute.xlu0 0
      %1792 = vperm.xlu0 %1791, %v1774
      %v1793 = vpop.permute.xlu0 %1792
      %1796 = vset.pattern.permute.xlu0 0
      %1797 = vperm.xlu0 %1796, %v1775
      %v1798 = vpop.permute.xlu0 %1797
      %1801 = vset.pattern.permute.xlu0 0
      %1802 = vperm.xlu0 %1801, %v1776
      %v1803 = vpop.permute.xlu0 %1802
      %1806 = vset.pattern.permute.xlu0 0
      %1807 = vperm.xlu0 %1806, %v1777
      %v1808 = vpop.permute.xlu0 %1807
      %1811 = vset.pattern.permute.xlu0 0
      %1812 = vperm.xlu0 %1811, %v1778
      %v1813 = vpop.permute.xlu0 %1812
      %1816 = vset.pattern.permute.xlu0 0
      %1817 = vperm.xlu0 %1816, %v1779
      %v1818 = vpop.permute.xlu0 %1817
      %1821 = vset.pattern.permute.xlu0 0
      %1822 = vperm.xlu0 %1821, %v1780
      %v1823 = vpop.permute.xlu0 %1822
      %1826 = vset.pattern.permute.xlu0 0
      %1827 = vperm.xlu0 %1826, %v1781
      %v1828 = vpop.permute.xlu0 %1827
      %1831 = vset.pattern.permute.xlu0 0
      %1832 = vperm.xlu0 %1831, %v1782
      %v1833 = vpop.permute.xlu0 %1832
      %1836 = vset.pattern.permute.xlu0 0
      %1837 = vperm.xlu0 %1836, %v1783
      %v1838 = vpop.permute.xlu0 %1837
      %1841 = vset.pattern.permute.xlu0 0
      %1842 = vperm.xlu0 %1841, %v1784
      %v1843 = vpop.permute.xlu0 %1842
      %1846 = vset.pattern.permute.xlu0 0
      %1847 = vperm.xlu0 %1846, %v1785
      %v1848 = vpop.permute.xlu0 %1847
      %1851 = vset.pattern.permute.xlu0 0
      %1852 = vperm.xlu0 %1851, %v1786
      %v1853 = vpop.permute.xlu0 %1852
      %1856 = vset.pattern.permute.xlu0 0
      %1857 = vperm.xlu0 %1856, %v1787
      %v1858 = vpop.permute.xlu0 %1857
      %1861 = vset.pattern.permute.xlu0 0
      %1862 = vperm.xlu0 %1861, %v1788
      %v1863 = vpop.permute.xlu0 %1862
      %1866 = vset.pattern.permute.xlu0 0
      %1867 = vperm.xlu0 %1866, %v1789
      %v1868 = vpop.permute.xlu0 %1867
      %v1902 = vunpack.c.l.b16 %v1742
      %v1903 = vunpack.c.h.b16 %v1742
      %v1904 = vunpack.c.l.b16 %v1743
      %v1905 = vunpack.c.l.b16 %v1744
      %v1906 = vunpack.c.h.b16 %v1744
      %v1907 = vunpack.c.l.b16 %v1745
      %v1908 = vunpack.c.l.b16 %v1746
      %v1909 = vunpack.c.h.b16 %v1746
      %v1910 = vunpack.c.l.b16 %v1747
      %v1911 = vunpack.c.l.b16 %v1748
      %v1912 = vunpack.c.h.b16 %v1748
      %v1913 = vunpack.c.l.b16 %v1749
      %v1914 = vunpack.c.l.b16 %v1750
      %v1915 = vunpack.c.h.b16 %v1750
      %v1916 = vunpack.c.l.b16 %v1751
      %v1917 = vunpack.c.l.b16 %v1752
      %v1918 = vunpack.c.h.b16 %v1752
      %v1919 = vunpack.c.l.b16 %v1753
      %v1920 = vunpack.c.l.b16 %v1754
      %v1921 = vunpack.c.h.b16 %v1754
      %v1922 = vunpack.c.l.b16 %v1755
      %v1923 = vunpack.c.l.b16 %v1756
      %v1924 = vunpack.c.h.b16 %v1756
      %v1925 = vunpack.c.l.b16 %v1757
      %v1926 = vunpack.c.l.b16 %v1758
      %v1927 = vunpack.c.h.b16 %v1758
      %v1928 = vunpack.c.l.b16 %v1759
      %v1929 = vunpack.c.l.b16 %v1760
      %v1930 = vunpack.c.h.b16 %v1760
      %v1931 = vunpack.c.l.b16 %v1761
      %v1932 = vunpack.c.l.b16 %v1762
      %v1933 = vunpack.c.h.b16 %v1762
      %v1934 = vunpack.c.l.b16 %v1763
      %v1935 = vunpack.c.l.b16 %v1764
      %v1936 = vunpack.c.h.b16 %v1764
      %v1937 = vunpack.c.l.b16 %v1765
      %v1938 = vunpack.c.l.b16 %v1766
      %v1939 = vunpack.c.h.b16 %v1766
      %v1940 = vunpack.c.l.b16 %v1767
      %v1941 = vunpack.c.l.b16 %v1768
      %v1942 = vunpack.c.h.b16 %v1768
      %v1943 = vunpack.c.l.b16 %v1769
      %v1944 = vunpack.c.l.b16 %v1770
      %v1945 = vunpack.c.h.b16 %v1770
      %v1946 = vunpack.c.l.b16 %v1771
      %v1947 = vunpack.c.l.b16 %v1772
      %v1948 = vunpack.c.h.b16 %v1772
      %v1949 = vunpack.c.l.b16 %v1773
      %v1950 = vpack.c.b16 %v1905, %v1902
      %v1951 = vpack.c.b16 %v1906, %v1903
      %v1952 = vpack.c.b16 %v1907, %v1904
      %v1953 = vpack.c.b16 %v1911, %v1908
      %v1954 = vpack.c.b16 %v1912, %v1909
      %v1955 = vpack.c.b16 %v1913, %v1910
      %v1956 = vpack.c.b16 %v1917, %v1914
      %v1957 = vpack.c.b16 %v1918, %v1915
      %v1958 = vpack.c.b16 %v1919, %v1916
      %v1959 = vpack.c.b16 %v1923, %v1920
      %v1960 = vpack.c.b16 %v1924, %v1921
      %v1961 = vpack.c.b16 %v1925, %v1922
      %v1962 = vpack.c.b16 %v1929, %v1926
      %v1963 = vpack.c.b16 %v1930, %v1927
      %v1964 = vpack.c.b16 %v1931, %v1928
      %v1965 = vpack.c.b16 %v1935, %v1932
      %v1966 = vpack.c.b16 %v1936, %v1933
      %v1967 = vpack.c.b16 %v1937, %v1934
      %v1968 = vpack.c.b16 %v1941, %v1938
      %v1969 = vpack.c.b16 %v1942, %v1939
      %v1970 = vpack.c.b16 %v1943, %v1940
      %v1971 = vpack.c.b16 %v1947, %v1944
      %v1972 = vpack.c.b16 %v1948, %v1945
      %v1973 = vpack.c.b16 %v1949, %v1946
      %1998 = vmatprep.subr.bf16.mxu0 0
      %1999 = vmatpush1.bf16.msra.mxu0 %v1718
      %2000 = vmatprep.subr.bf16.mxu0 0
      %2001 = vmatpush1.bf16.msra.mxu0 %v1721
      %2002 = vmatprep.subr.bf16.mxu0 0
      %2003 = vmatpush1.bf16.msra.mxu0 %v1724
      %2004 = vmatprep.subr.bf16.mxu0 0
      %2005 = vmatpush1.bf16.msra.mxu0 %v1727
      %2006 = vmatprep.subr.bf16.mxu0 0
      %2007 = vmatpush1.bf16.msra.mxu0 %v1730
      %2008 = vmatprep.subr.bf16.mxu0 0
      %2009 = vmatpush1.bf16.msra.mxu0 %v1733
      %2010 = vmatprep.subr.bf16.mxu0 0
      %2011 = vmatpush1.bf16.msra.mxu0 %v1736
      %2012 = vmatprep.subr.bf16.mxu0 0
      %2013 = vmatpush1.bf16.msra.mxu0 %v1739
      %2014 = vmatprep.subr.bf16.mxu0 0
      %2015 = vmatpush1.bf16.msra.mxu0 %v1719
      %2016 = vmatprep.subr.bf16.mxu0 0
      %2017 = vmatpush1.bf16.msra.mxu0 %v1722
      %2018 = vmatprep.subr.bf16.mxu0 0
      %2019 = vmatpush1.bf16.msra.mxu0 %v1725
      %2020 = vmatprep.subr.bf16.mxu0 0
      %2021 = vmatpush1.bf16.msra.mxu0 %v1728
      %2022 = vmatprep.subr.bf16.mxu0 0
      %2023 = vmatpush1.bf16.msra.mxu0 %v1731
      %2024 = vmatprep.subr.bf16.mxu0 0
      %2025 = vmatpush1.bf16.msra.mxu0 %v1734
      %2026 = vmatprep.subr.bf16.mxu0 0
      %2027 = vmatpush1.bf16.msra.mxu0 %v1737
      %2028 = vmatprep.subr.bf16.mxu0 0
      %2029 = vmatpush1.bf16.msra.mxu0 %v1740
      %2030 = vmatprep.mubr.bf16.mxu0 %v1951
      %2031 = vmatmul.mubr.bf16.gmra.mrb[0].mxu0 %v1950
      %v2032 = vpop.f32.mrb[0].mxu0
      %v2033 = vadd.f32 %v1793, %v2032
      %v2034 = vpop.f32.mrb[0].mxu0
      %v2035 = vpop.f32.mrb[0].mxu0
      %v2036 = vadd.f32 %v1798, %v2035
      %v2037 = vpop.f32.mrb[0].mxu0
      %2038 = vmatprep.mubr.bf16.mxu0 %v1954
      %2039 = vmatmul.mubr.bf16.gmra.mrb[0].mxu0 %v1953
      %v2040 = vpop.f32.mrb[0].mxu0
      %v2041 = vadd.f32 %v1803, %v2040
      %v2042 = vpop.f32.mrb[0].mxu0
      %v2043 = vpop.f32.mrb[0].mxu0
      %v2044 = vadd.f32 %v1808, %v2043
      %v2045 = vpop.f32.mrb[0].mxu0
      %2046 = vmatprep.mubr.bf16.mxu0 %v1957
      %2047 = vmatmul.mubr.bf16.gmra.mrb[0].mxu0 %v1956
      %v2048 = vpop.f32.mrb[0].mxu0
      %v2049 = vadd.f32 %v1813, %v2048
      %v2050 = vpop.f32.mrb[0].mxu0
      %v2051 = vpop.f32.mrb[0].mxu0
      %v2052 = vadd.f32 %v1818, %v2051
      %v2053 = vpop.f32.mrb[0].mxu0
      %2054 = vmatprep.mubr.bf16.mxu0 %v1960
      %2055 = vmatmul.mubr.bf16.gmra.mrb[0].mxu0 %v1959
      %v2056 = vpop.f32.mrb[0].mxu0
      %v2057 = vadd.f32 %v1823, %v2056
      %v2058 = vpop.f32.mrb[0].mxu0
      %v2059 = vpop.f32.mrb[0].mxu0
      %v2060 = vadd.f32 %v1828, %v2059
      %v2061 = vpop.f32.mrb[0].mxu0
      %2062 = vmatprep.mubr.bf16.mxu0 %v1963
      %2063 = vmatmul.mubr.bf16.gmra.mrb[0].mxu0 %v1962
      %v2064 = vpop.f32.mrb[0].mxu0
      %v2065 = vadd.f32 %v1833, %v2064
      %v2066 = vpop.f32.mrb[0].mxu0
      %v2067 = vpop.f32.mrb[0].mxu0
      %v2068 = vadd.f32 %v1838, %v2067
      %v2069 = vpop.f32.mrb[0].mxu0
      %2070 = vmatprep.mubr.bf16.mxu0 %v1966
      %2071 = vmatmul.mubr.bf16.gmra.mrb[0].mxu0 %v1965
      %v2072 = vpop.f32.mrb[0].mxu0
      %v2073 = vadd.f32 %v1843, %v2072
      %v2074 = vpop.f32.mrb[0].mxu0
      %v2075 = vpop.f32.mrb[0].mxu0
      %v2076 = vadd.f32 %v1848, %v2075
      %v2077 = vpop.f32.mrb[0].mxu0
      %2078 = vmatprep.mubr.bf16.mxu0 %v1969
      %2079 = vmatmul.mubr.bf16.gmra.mrb[0].mxu0 %v1968
      %v2080 = vpop.f32.mrb[0].mxu0
      %v2081 = vadd.f32 %v1853, %v2080
      %v2082 = vpop.f32.mrb[0].mxu0
      %v2083 = vpop.f32.mrb[0].mxu0
      %v2084 = vadd.f32 %v1858, %v2083
      %v2085 = vpop.f32.mrb[0].mxu0
      %2086 = vmatprep.mubr.bf16.mxu0 %v1972
      %2087 = vmatmul.mubr.bf16.gmra.mrb[0].mxu0 %v1971
      %v2088 = vpop.f32.mrb[0].mxu0
      %v2089 = vadd.f32 %v1863, %v2088
      %v2090 = vpop.f32.mrb[0].mxu0
      %v2091 = vpop.f32.mrb[0].mxu0
      %v2092 = vadd.f32 %v1868, %v2091
      %v2093 = vpop.f32.mrb[0].mxu0
      %2094 = vdwg.mxu0
      %2095 = vmatprep.subr.bf16.mxu0 0
      %2096 = vmatpush1.bf16.msra.mxu0 %v1720
      %2097 = vmatprep.subr.bf16.mxu0 0
      %2098 = vmatpush1.bf16.msra.mxu0 %v1723
      %2099 = vmatprep.subr.bf16.mxu0 0
      %2100 = vmatpush1.bf16.msra.mxu0 %v1726
      %2101 = vmatprep.subr.bf16.mxu0 0
      %2102 = vmatpush1.bf16.msra.mxu0 %v1729
      %2103 = vmatprep.subr.bf16.mxu0 0
      %2104 = vmatpush1.bf16.msra.mxu0 %v1732
      %2105 = vmatprep.subr.bf16.mxu0 0
      %2106 = vmatpush1.bf16.msra.mxu0 %v1735
      %2107 = vmatprep.subr.bf16.mxu0 0
      %2108 = vmatpush1.bf16.msra.mxu0 %v1738
      %2109 = vmatprep.subr.bf16.mxu0 0
      %2110 = vmatpush1.bf16.msra.mxu0 %v1741
      %2111 = vmatprep.subr.bf16.mxu0 0
      %2112 = vmatpush1.bf16.msra.mxu0 0
      %2113 = vmatprep.subr.bf16.mxu0 0
      %2114 = vmatpush1.bf16.msra.mxu0 0
      %2115 = vmatprep.subr.bf16.mxu0 0
      %2116 = vmatpush1.bf16.msra.mxu0 0
      %2117 = vmatprep.subr.bf16.mxu0 0
      %2118 = vmatpush1.bf16.msra.mxu0 0
      %2119 = vmatprep.subr.bf16.mxu0 0
      %2120 = vmatpush1.bf16.msra.mxu0 0
      %2121 = vmatprep.subr.bf16.mxu0 0
      %2122 = vmatpush1.bf16.msra.mxu0 0
      %2123 = vmatprep.subr.bf16.mxu0 0
      %2124 = vmatpush1.bf16.msra.mxu0 0
      %2125 = vmatprep.subr.bf16.mxu0 0
      %2126 = vmatpush1.bf16.msra.mxu0 0
      %2127 = vmatprep.mubr.bf16.mxu0 0
      %2128 = vmatmul.mubr.bf16.gmra.mrb[0].mxu0 %v1952
      %v2129 = vpop.f32.mrb[0].mxu0
      %v2130 = vadd.f32 %v2033, %v2129
      %v2131 = vpop.f32.mrb[0].mxu0
      %v2132 = vpop.f32.mrb[0].mxu0
      %v2133 = vadd.f32 %v2036, %v2132
      %v2134 = vpop.f32.mrb[0].mxu0
      %2135 = vmatprep.mubr.bf16.mxu0 0
      %2136 = vmatmul.mubr.bf16.gmra.mrb[0].mxu0 %v1955
      %v2137 = vpop.f32.mrb[0].mxu0
      %v2138 = vadd.f32 %v2041, %v2137
      %v2139 = vpop.f32.mrb[0].mxu0
      %v2140 = vpop.f32.mrb[0].mxu0
      %v2141 = vadd.f32 %v2044, %v2140
      %v2142 = vpop.f32.mrb[0].mxu0
      %2143 = vmatprep.mubr.bf16.mxu0 0
      %2144 = vmatmul.mubr.bf16.gmra.mrb[0].mxu0 %v1958
      %v2145 = vpop.f32.mrb[0].mxu0
      %v2146 = vadd.f32 %v2049, %v2145
      %v2147 = vpop.f32.mrb[0].mxu0
      %v2148 = vpop.f32.mrb[0].mxu0
      %v2149 = vadd.f32 %v2052, %v2148
      %v2150 = vpop.f32.mrb[0].mxu0
      %2151 = vmatprep.mubr.bf16.mxu0 0
      %2152 = vmatmul.mubr.bf16.gmra.mrb[0].mxu0 %v1961
      %v2153 = vpop.f32.mrb[0].mxu0
      %v2154 = vadd.f32 %v2057, %v2153
      %v2155 = vpop.f32.mrb[0].mxu0
      %v2156 = vpop.f32.mrb[0].mxu0
      %v2157 = vadd.f32 %v2060, %v2156
      %v2158 = vpop.f32.mrb[0].mxu0
      %2159 = vmatprep.mubr.bf16.mxu0 0
      %2160 = vmatmul.mubr.bf16.gmra.mrb[0].mxu0 %v1964
      %v2161 = vpop.f32.mrb[0].mxu0
      %v2162 = vadd.f32 %v2065, %v2161
      %v2163 = vpop.f32.mrb[0].mxu0
      %v2164 = vpop.f32.mrb[0].mxu0
      %v2165 = vadd.f32 %v2068, %v2164
      %v2166 = vpop.f32.mrb[0].mxu0
      %2167 = vmatprep.mubr.bf16.mxu0 0
      %2168 = vmatmul.mubr.bf16.gmra.mrb[0].mxu0 %v1967
      %v2169 = vpop.f32.mrb[0].mxu0
      %v2170 = vadd.f32 %v2073, %v2169
      %v2171 = vpop.f32.mrb[0].mxu0
      %v2172 = vpop.f32.mrb[0].mxu0
      %v2173 = vadd.f32 %v2076, %v2172
      %v2174 = vpop.f32.mrb[0].mxu0
      %2175 = vmatprep.mubr.bf16.mxu0 0
      %2176 = vmatmul.mubr.bf16.gmra.mrb[0].mxu0 %v1970
      %v2177 = vpop.f32.mrb[0].mxu0
      %v2178 = vadd.f32 %v2081, %v2177
      %v2179 = vpop.f32.mrb[0].mxu0
      %v2180 = vpop.f32.mrb[0].mxu0
      %v2181 = vadd.f32 %v2084, %v2180
      %v2182 = vpop.f32.mrb[0].mxu0
      %2183 = vmatprep.mubr.bf16.mxu0 0
      %2184 = vmatmul.mubr.bf16.gmra.mrb[0].mxu0 %v1973
      %v2185 = vpop.f32.mrb[0].mxu0
      %v2186 = vadd.f32 %v2089, %v2185
      %v2187 = vpop.f32.mrb[0].mxu0
      %v2188 = vpop.f32.mrb[0].mxu0
      %v2189 = vadd.f32 %v2092, %v2188
      %v2190 = vpop.f32.mrb[0].mxu0
      %2191 = vdwg.mxu0
      %v2192 = vmax.f32 %v2130, 0.0
      %v2193 = vmax.f32 %v2133, 0.0
      %v2194 = vmax.f32 %v2138, 0.0
      %v2195 = vmax.f32 %v2141, 0.0
      %v2196 = vmax.f32 %v2146, 0.0
      %v2197 = vmax.f32 %v2149, 0.0
      %v2198 = vmax.f32 %v2154, 0.0
      %v2199 = vmax.f32 %v2157, 0.0
      %v2200 = vmax.f32 %v2162, 0.0
      %v2201 = vmax.f32 %v2165, 0.0
      %v2202 = vmax.f32 %v2170, 0.0
      %v2203 = vmax.f32 %v2173, 0.0
      %v2204 = vmax.f32 %v2178, 0.0
      %v2205 = vmax.f32 %v2181, 0.0
      %v2206 = vmax.f32 %v2186, 0.0
      %v2207 = vmax.f32 %v2189, 0.0
      %v2208 = vpack.c.bf16 %v2193, %v2192
      %v2209 = vpack.c.bf16 %v2195, %v2194
      %v2210 = vpack.c.bf16 %v2197, %v2196
      %v2211 = vpack.c.bf16 %v2199, %v2198
      %v2212 = vpack.c.bf16 %v2201, %v2200
      %v2213 = vpack.c.bf16 %v2203, %v2202
      %v2214 = vpack.c.bf16 %v2205, %v2204
      %v2215 = vpack.c.bf16 %v2207, %v2206
      %v2216 = vld [vmem:[%s900] sm:$0xf]
      %v2217 = vld [vmem:[%s900 + $0x4] sm:$0xf]
      %v2218 = vld [vmem:[%s900 + $0x8] sm:$0xf]
      %v2219 = vld [vmem:[%s900 + $0xc] sm:$0xf]
      %v2220 = vld [vmem:[%s900 + $0x10] sm:$0xf]
      %v2221 = vld [vmem:[%s900 + $0x14] sm:$0xf]
      %v2222 = vld [vmem:[%s900 + $0x18] sm:$0xf]
      %v2223 = vld [vmem:[%s900 + $0x1c] sm:$0xf]
      %v2224 = vld [vmem:[%s900 + $0x20] sm:$0xf]
      %v2225 = vld [vmem:[%s900 + $0x24] sm:$0xf]
      %v2226 = vld [vmem:[%s900 + $0x28] sm:$0xf]
      %v2227 = vld [vmem:[%s900 + $0x2c] sm:$0xf]
      %v2228 = vld [vmem:[%s900 + $0x30] sm:$0xf]
      %v2229 = vld [vmem:[%s900 + $0x34] sm:$0xf]
      %v2230 = vld [vmem:[%s900 + $0x38] sm:$0xf]
      %v2231 = vld [vmem:[%s900 + $0x3c] sm:$0xf]
      %v2232 = vld [vmem:[%s900 + $0x40] sm:$0xf]
      %v2233 = vld [vmem:[%s900 + $0x44] sm:$0xf]
      %v2234 = vld [vmem:[%s900 + $0x48] sm:$0xf]
      %v2235 = vld [vmem:[%s900 + $0x4c] sm:$0xf]
      %v2236 = vld [vmem:[%s900 + $0x50] sm:$0xf]
      %v2237 = vld [vmem:[%s900 + $0x54] sm:$0xf]
      %v2238 = vld [vmem:[%s900 + $0x58] sm:$0xf]
      %v2239 = vld [vmem:[%s900 + $0x5c] sm:$0xf]
      %v2240 = vld [vmem:[%s900 + $0x60] sm:$0xf]
      %v2241 = vld [vmem:[%s900 + $0x64] sm:$0xf]
      %v2242 = vld [vmem:[%s900 + $0x68] sm:$0xf]
      %v2243 = vld [vmem:[%s900 + $0x6c] sm:$0xf]
      %v2244 = vld [vmem:[%s900 + $0x70] sm:$0xf]
      %v2245 = vld [vmem:[%s900 + $0x74] sm:$0xf]
      %v2246 = vld [vmem:[%s900 + $0x78] sm:$0xf]
      %v2247 = vld [vmem:[%s900 + $0x7c] sm:$0xf]
      %v2248 = vld [vmem:[%s905] sm:$0xff]
      %v2249 = vld [vmem:[%s905 + $0x8] sm:$0xff]
      %v2250 = vld [vmem:[%s905 + $0x10] sm:$0xff]
      %v2251 = vld [vmem:[%s905 + $0x18] sm:$0xff]
      %v2252 = vld [vmem:[%s905 + $0x20] sm:$0xff]
      %v2253 = vld [vmem:[%s905 + $0x28] sm:$0xff]
      %v2254 = vld [vmem:[%s905 + $0x30] sm:$0xff]
      %v2255 = vld [vmem:[%s905 + $0x38] sm:$0xff]
      %v2256 = vld [vmem:[%s905 + $0x40] sm:$0xff]
      %v2257 = vld [vmem:[%s905 + $0x48] sm:$0xff]
      %v2258 = vld [vmem:[%s905 + $0x50] sm:$0xff]
      %v2259 = vld [vmem:[%s905 + $0x58] sm:$0xff]
      %v2260 = vld [vmem:[%s905 + $0x60] sm:$0xff]
      %v2261 = vld [vmem:[%s905 + $0x68] sm:$0xff]
      %v2262 = vld [vmem:[%s905 + $0x70] sm:$0xff]
      %v2263 = vld [vmem:[%s905 + $0x78] sm:$0xff]
      %v2264 = vld [vmem:[%s905 + $0x80] sm:$0xff]
      %v2265 = vld [vmem:[%s905 + $0x88] sm:$0xff]
      %v2266 = vld [vmem:[%s905 + $0x90] sm:$0xff]
      %v2267 = vld [vmem:[%s905 + $0x98] sm:$0xff]
      %v2268 = vld [vmem:[%s905 + $0xa0] sm:$0xff]
      %v2269 = vld [vmem:[%s905 + $0xa8] sm:$0xff]
      %v2270 = vld [vmem:[%s905 + $0xb0] sm:$0xff]
      %v2271 = vld [vmem:[%s905 + $0xb8] sm:$0xff]
      %v2272 = vld [vmem:[%s905 + $0xc0] sm:$0xff]
      %v2273 = vld [vmem:[%s905 + $0xc8] sm:$0xff]
      %v2274 = vld [vmem:[%s905 + $0xd0] sm:$0xff]
      %v2275 = vld [vmem:[%s905 + $0xd8] sm:$0xff]
      %v2276 = vld [vmem:[%s905 + $0xe0] sm:$0xff]
      %v2277 = vld [vmem:[%s905 + $0xe8] sm:$0xff]
      %v2278 = vld [vmem:[%s905 + $0xf0] sm:$0xff]
      %v2279 = vld [vmem:[%s905 + $0xf8] sm:$0xff]
      %2281 = vset.pattern.permute.xlu0 0
      %2282 = vperm.xlu0 %2281, %v2248
      %v2283 = vpop.permute.xlu0 %2282
      %2286 = vset.pattern.permute.xlu0 0
      %2287 = vperm.xlu0 %2286, %v2249
      %v2288 = vpop.permute.xlu0 %2287
      %2291 = vset.pattern.permute.xlu0 0
      %2292 = vperm.xlu0 %2291, %v2250
      %v2293 = vpop.permute.xlu0 %2292
      %2296 = vset.pattern.permute.xlu0 0
      %2297 = vperm.xlu0 %2296, %v2251
      %v2298 = vpop.permute.xlu0 %2297
      %2301 = vset.pattern.permute.xlu0 0
      %2302 = vperm.xlu0 %2301, %v2252
      %v2303 = vpop.permute.xlu0 %2302
      %2306 = vset.pattern.permute.xlu0 0
      %2307 = vperm.xlu0 %2306, %v2253
      %v2308 = vpop.permute.xlu0 %2307
      %2311 = vset.pattern.permute.xlu0 0
      %2312 = vperm.xlu0 %2311, %v2254
      %v2313 = vpop.permute.xlu0 %2312
      %2316 = vset.pattern.permute.xlu0 0
      %2317 = vperm.xlu0 %2316, %v2255
      %v2318 = vpop.permute.xlu0 %2317
      %2321 = vset.pattern.permute.xlu0 0
      %2322 = vperm.xlu0 %2321, %v2256
      %v2323 = vpop.permute.xlu0 %2322
      %2326 = vset.pattern.permute.xlu0 0
      %2327 = vperm.xlu0 %2326, %v2257
      %v2328 = vpop.permute.xlu0 %2327
      %2331 = vset.pattern.permute.xlu0 0
      %2332 = vperm.xlu0 %2331, %v2258
      %v2333 = vpop.permute.xlu0 %2332
      %2336 = vset.pattern.permute.xlu0 0
      %2337 = vperm.xlu0 %2336, %v2259
      %v2338 = vpop.permute.xlu0 %2337
      %2341 = vset.pattern.permute.xlu0 0
      %2342 = vperm.xlu0 %2341, %v2260
      %v2343 = vpop.permute.xlu0 %2342
      %2346 = vset.pattern.permute.xlu0 0
      %2347 = vperm.xlu0 %2346, %v2261
      %v2348 = vpop.permute.xlu0 %2347
      %2351 = vset.pattern.permute.xlu0 0
      %2352 = vperm.xlu0 %2351, %v2262
      %v2353 = vpop.permute.xlu0 %2352
      %2356 = vset.pattern.permute.xlu0 0
      %2357 = vperm.xlu0 %2356, %v2263
      %v2358 = vpop.permute.xlu0 %2357
      %2361 = vset.pattern.permute.xlu0 0
      %2362 = vperm.xlu0 %2361, %v2264
      %v2363 = vpop.permute.xlu0 %2362
      %2366 = vset.pattern.permute.xlu0 0
      %2367 = vperm.xlu0 %2366, %v2265
      %v2368 = vpop.permute.xlu0 %2367
      %2371 = vset.pattern.permute.xlu0 0
      %2372 = vperm.xlu0 %2371, %v2266
      %v2373 = vpop.permute.xlu0 %2372
      %2376 = vset.pattern.permute.xlu0 0
      %2377 = vperm.xlu0 %2376, %v2267
      %v2378 = vpop.permute.xlu0 %2377
      %2381 = vset.pattern.permute.xlu0 0
      %2382 = vperm.xlu0 %2381, %v2268
      %v2383 = vpop.permute.xlu0 %2382
      %2386 = vset.pattern.permute.xlu0 0
      %2387 = vperm.xlu0 %2386, %v2269
      %v2388 = vpop.permute.xlu0 %2387
      %2391 = vset.pattern.permute.xlu0 0
      %2392 = vperm.xlu0 %2391, %v2270
      %v2393 = vpop.permute.xlu0 %2392
      %2396 = vset.pattern.permute.xlu0 0
      %2397 = vperm.xlu0 %2396, %v2271
      %v2398 = vpop.permute.xlu0 %2397
      %2401 = vset.pattern.permute.xlu0 0
      %2402 = vperm.xlu0 %2401, %v2272
      %v2403 = vpop.permute.xlu0 %2402
      %2406 = vset.pattern.permute.xlu0 0
      %2407 = vperm.xlu0 %2406, %v2273
      %v2408 = vpop.permute.xlu0 %2407
      %2411 = vset.pattern.permute.xlu0 0
      %2412 = vperm.xlu0 %2411, %v2274
      %v2413 = vpop.permute.xlu0 %2412
      %2416 = vset.pattern.permute.xlu0 0
      %2417 = vperm.xlu0 %2416, %v2275
      %v2418 = vpop.permute.xlu0 %2417
      %2421 = vset.pattern.permute.xlu0 0
      %2422 = vperm.xlu0 %2421, %v2276
      %v2423 = vpop.permute.xlu0 %2422
      %2426 = vset.pattern.permute.xlu0 0
      %2427 = vperm.xlu0 %2426, %v2277
      %v2428 = vpop.permute.xlu0 %2427
      %2431 = vset.pattern.permute.xlu0 0
      %2432 = vperm.xlu0 %2431, %v2278
      %v2433 = vpop.permute.xlu0 %2432
      %2436 = vset.pattern.permute.xlu0 0
      %2437 = vperm.xlu0 %2436, %v2279
      %v2438 = vpop.permute.xlu0 %2437
      %v2472 = vunpack.c.l.b16 %v2216
      %v2473 = vunpack.c.l.b16 %v2217
      %v2474 = vunpack.c.l.b16 %v2218
      %v2475 = vunpack.c.l.b16 %v2219
      %v2476 = vunpack.c.l.b16 %v2220
      %v2477 = vunpack.c.l.b16 %v2221
      %v2478 = vunpack.c.l.b16 %v2222
      %v2479 = vunpack.c.l.b16 %v2223
      %v2480 = vunpack.c.l.b16 %v2224
      %v2481 = vunpack.c.l.b16 %v2225
      %v2482 = vunpack.c.l.b16 %v2226
      %v2483 = vunpack.c.l.b16 %v2227
      %v2484 = vunpack.c.l.b16 %v2228
      %v2485 = vunpack.c.l.b16 %v2229
      %v2486 = vunpack.c.l.b16 %v2230
      %v2487 = vunpack.c.l.b16 %v2231
      %v2488 = vunpack.c.l.b16 %v2232
      %v2489 = vunpack.c.l.b16 %v2233
      %v2490 = vunpack.c.l.b16 %v2234
      %v2491 = vunpack.c.l.b16 %v2235
      %v2492 = vunpack.c.l.b16 %v2236
      %v2493 = vunpack.c.l.b16 %v2237
      %v2494 = vunpack.c.l.b16 %v2238
      %v2495 = vunpack.c.l.b16 %v2239
      %v2496 = vunpack.c.l.b16 %v2240
      %v2497 = vunpack.c.l.b16 %v2241
      %v2498 = vunpack.c.l.b16 %v2242
      %v2499 = vunpack.c.l.b16 %v2243
      %v2500 = vunpack.c.l.b16 %v2244
      %v2501 = vunpack.c.l.b16 %v2245
      %v2502 = vunpack.c.l.b16 %v2246
      %v2503 = vunpack.c.l.b16 %v2247
      %v2504 = vpack.c.b16 %v2473, %v2472
      %v2505 = vpack.c.b16 %v2475, %v2474
      %v2506 = vpack.c.b16 %v2477, %v2476
      %v2507 = vpack.c.b16 %v2479, %v2478
      %v2508 = vpack.c.b16 %v2481, %v2480
      %v2509 = vpack.c.b16 %v2483, %v2482
      %v2510 = vpack.c.b16 %v2485, %v2484
      %v2511 = vpack.c.b16 %v2487, %v2486
      %v2512 = vpack.c.b16 %v2489, %v2488
      %v2513 = vpack.c.b16 %v2491, %v2490
      %v2514 = vpack.c.b16 %v2493, %v2492
      %v2515 = vpack.c.b16 %v2495, %v2494
      %v2516 = vpack.c.b16 %v2497, %v2496
      %v2517 = vpack.c.b16 %v2499, %v2498
      %v2518 = vpack.c.b16 %v2501, %v2500
      %v2519 = vpack.c.b16 %v2503, %v2502
      %2536 = vmatprep.subr.bf16.mxu0 0
      %2537 = vmatpush1.bf16.msra.mxu0 %v2208
      %2538 = vmatprep.subr.bf16.mxu0 0
      %2539 = vmatpush1.bf16.msra.mxu0 %v2209
      %2540 = vmatprep.subr.bf16.mxu0 0
      %2541 = vmatpush1.bf16.msra.mxu0 %v2210
      %2542 = vmatprep.subr.bf16.mxu0 0
      %2543 = vmatpush1.bf16.msra.mxu0 %v2211
      %2544 = vmatprep.subr.bf16.mxu0 0
      %2545 = vmatpush1.bf16.msra.mxu0 %v2212
      %2546 = vmatprep.subr.bf16.mxu0 0
      %2547 = vmatpush1.bf16.msra.mxu0 %v2213
      %2548 = vmatprep.subr.bf16.mxu0 0
      %2549 = vmatpush1.bf16.msra.mxu0 %v2214
      %2550 = vmatprep.subr.bf16.mxu0 0
      %2551 = vmatpush1.bf16.msra.mxu0 %v2215
      %2552 = vmatprep.subr.bf16.mxu0 0
      %2553 = vmatpush1.bf16.msra.mxu0 0
      %2554 = vmatprep.subr.bf16.mxu0 0
      %2555 = vmatpush1.bf16.msra.mxu0 0
      %2556 = vmatprep.subr.bf16.mxu0 0
      %2557 = vmatpush1.bf16.msra.mxu0 0
      %2558 = vmatprep.subr.bf16.mxu0 0
      %2559 = vmatpush1.bf16.msra.mxu0 0
      %2560 = vmatprep.subr.bf16.mxu0 0
      %2561 = vmatpush1.bf16.msra.mxu0 0
      %2562 = vmatprep.subr.bf16.mxu0 0
      %2563 = vmatpush1.bf16.msra.mxu0 0
      %2564 = vmatprep.subr.bf16.mxu0 0
      %2565 = vmatpush1.bf16.msra.mxu0 0
      %2566 = vmatprep.subr.bf16.mxu0 0
      %2567 = vmatpush1.bf16.msra.mxu0 0
      %2568 = vmatprep.mubr.bf16.mxu0 0
      %2569 = vmatmul.mubr.bf16.gmra.mrb[0].mxu0 %v2504
      %v2570 = vpop.f32.mrb[0].mxu0
      %v2571 = vadd.f32 %v2283, %v2570
      %v2572 = vpop.f32.mrb[0].mxu0
      %v2573 = vpop.f32.mrb[0].mxu0
      %v2574 = vadd.f32 %v2288, %v2573
      %v2575 = vpop.f32.mrb[0].mxu0
      %2576 = vmatprep.mubr.bf16.mxu0 0
      %2577 = vmatmul.mubr.bf16.gmra.mrb[0].mxu0 %v2505
      %v2578 = vpop.f32.mrb[0].mxu0
      %v2579 = vadd.f32 %v2293, %v2578
      %v2580 = vpop.f32.mrb[0].mxu0
      %v2581 = vpop.f32.mrb[0].mxu0
      %v2582 = vadd.f32 %v2298, %v2581
      %v2583 = vpop.f32.mrb[0].mxu0
      %2584 = vmatprep.mubr.bf16.mxu0 0
      %2585 = vmatmul.mubr.bf16.gmra.mrb[0].mxu0 %v2506
      %v2586 = vpop.f32.mrb[0].mxu0
      %v2587 = vadd.f32 %v2303, %v2586
      %v2588 = vpop.f32.mrb[0].mxu0
      %v2589 = vpop.f32.mrb[0].mxu0
      %v2590 = vadd.f32 %v2308, %v2589
      %v2591 = vpop.f32.mrb[0].mxu0
      %2592 = vmatprep.mubr.bf16.mxu0 0
      %2593 = vmatmul.mubr.bf16.gmra.mrb[0].mxu0 %v2507
      %v2594 = vpop.f32.mrb[0].mxu0
      %v2595 = vadd.f32 %v2313, %v2594
      %v2596 = vpop.f32.mrb[0].mxu0
      %v2597 = vpop.f32.mrb[0].mxu0
      %v2598 = vadd.f32 %v2318, %v2597
      %v2599 = vpop.f32.mrb[0].mxu0
      %2600 = vmatprep.mubr.bf16.mxu0 0
      %2601 = vmatmul.mubr.bf16.gmra.mrb[0].mxu0 %v2508
      %v2602 = vpop.f32.mrb[0].mxu0
      %v2603 = vadd.f32 %v2323, %v2602
      %v2604 = vpop.f32.mrb[0].mxu0
      %v2605 = vpop.f32.mrb[0].mxu0
      %v2606 = vadd.f32 %v2328, %v2605
      %v2607 = vpop.f32.mrb[0].mxu0
      %2608 = vmatprep.mubr.bf16.mxu0 0
      %2609 = vmatmul.mubr.bf16.gmra.mrb[0].mxu0 %v2509
      %v2610 = vpop.f32.mrb[0].mxu0
      %v2611 = vadd.f32 %v2333, %v2610
      %v2612 = vpop.f32.mrb[0].mxu0
      %v2613 = vpop.f32.mrb[0].mxu0
      %v2614 = vadd.f32 %v2338, %v2613
      %v2615 = vpop.f32.mrb[0].mxu0
      %2616 = vmatprep.mubr.bf16.mxu0 0
      %2617 = vmatmul.mubr.bf16.gmra.mrb[0].mxu0 %v2510
      %v2618 = vpop.f32.mrb[0].mxu0
      %v2619 = vadd.f32 %v2343, %v2618
      %v2620 = vpop.f32.mrb[0].mxu0
      %v2621 = vpop.f32.mrb[0].mxu0
      %v2622 = vadd.f32 %v2348, %v2621
      %v2623 = vpop.f32.mrb[0].mxu0
      %2624 = vmatprep.mubr.bf16.mxu0 0
      %2625 = vmatmul.mubr.bf16.gmra.mrb[0].mxu0 %v2511
      %v2626 = vpop.f32.mrb[0].mxu0
      %v2627 = vadd.f32 %v2353, %v2626
      %v2628 = vpop.f32.mrb[0].mxu0
      %v2629 = vpop.f32.mrb[0].mxu0
      %v2630 = vadd.f32 %v2358, %v2629
      %v2631 = vpop.f32.mrb[0].mxu0
      %2632 = vmatprep.mubr.bf16.mxu0 0
      %2633 = vmatmul.mubr.bf16.gmra.mrb[0].mxu0 %v2512
      %v2634 = vpop.f32.mrb[0].mxu0
      %v2635 = vadd.f32 %v2363, %v2634
      %v2636 = vpop.f32.mrb[0].mxu0
      %v2637 = vpop.f32.mrb[0].mxu0
      %v2638 = vadd.f32 %v2368, %v2637
      %v2639 = vpop.f32.mrb[0].mxu0
      %2640 = vmatprep.mubr.bf16.mxu0 0
      %2641 = vmatmul.mubr.bf16.gmra.mrb[0].mxu0 %v2513
      %v2642 = vpop.f32.mrb[0].mxu0
      %v2643 = vadd.f32 %v2373, %v2642
      %v2644 = vpop.f32.mrb[0].mxu0
      %v2645 = vpop.f32.mrb[0].mxu0
      %v2646 = vadd.f32 %v2378, %v2645
      %v2647 = vpop.f32.mrb[0].mxu0
      %2648 = vmatprep.mubr.bf16.mxu0 0
      %2649 = vmatmul.mubr.bf16.gmra.mrb[0].mxu0 %v2514
      %v2650 = vpop.f32.mrb[0].mxu0
      %v2651 = vadd.f32 %v2383, %v2650
      %v2652 = vpop.f32.mrb[0].mxu0
      %v2653 = vpop.f32.mrb[0].mxu0
      %v2654 = vadd.f32 %v2388, %v2653
      %v2655 = vpop.f32.mrb[0].mxu0
      %2656 = vmatprep.mubr.bf16.mxu0 0
      %2657 = vmatmul.mubr.bf16.gmra.mrb[0].mxu0 %v2515
      %v2658 = vpop.f32.mrb[0].mxu0
      %v2659 = vadd.f32 %v2393, %v2658
      %v2660 = vpop.f32.mrb[0].mxu0
      %v2661 = vpop.f32.mrb[0].mxu0
      %v2662 = vadd.f32 %v2398, %v2661
      %v2663 = vpop.f32.mrb[0].mxu0
      %2664 = vmatprep.mubr.bf16.mxu0 0
      %2665 = vmatmul.mubr.bf16.gmra.mrb[0].mxu0 %v2516
      %v2666 = vpop.f32.mrb[0].mxu0
      %v2667 = vadd.f32 %v2403, %v2666
      %v2668 = vpop.f32.mrb[0].mxu0
      %v2669 = vpop.f32.mrb[0].mxu0
      %v2670 = vadd.f32 %v2408, %v2669
      %v2671 = vpop.f32.mrb[0].mxu0
      %2672 = vmatprep.mubr.bf16.mxu0 0
      %2673 = vmatmul.mubr.bf16.gmra.mrb[0].mxu0 %v2517
      %v2674 = vpop.f32.mrb[0].mxu0
      %v2675 = vadd.f32 %v2413, %v2674
      %v2676 = vpop.f32.mrb[0].mxu0
      %v2677 = vpop.f32.mrb[0].mxu0
      %v2678 = vadd.f32 %v2418, %v2677
      %v2679 = vpop.f32.mrb[0].mxu0
      %2680 = vmatprep.mubr.bf16.mxu0 0
      %2681 = vmatmul.mubr.bf16.gmra.mrb[0].mxu0 %v2518
      %v2682 = vpop.f32.mrb[0].mxu0
      %v2683 = vadd.f32 %v2423, %v2682
      %v2684 = vpop.f32.mrb[0].mxu0
      %v2685 = vpop.f32.mrb[0].mxu0
      %v2686 = vadd.f32 %v2428, %v2685
      %v2687 = vpop.f32.mrb[0].mxu0
      %2688 = vmatprep.mubr.bf16.mxu0 0
      %2689 = vmatmul.mubr.bf16.gmra.mrb[0].mxu0 %v2519
      %v2690 = vpop.f32.mrb[0].mxu0
      %v2691 = vadd.f32 %v2433, %v2690
      %v2692 = vpop.f32.mrb[0].mxu0
      %v2693 = vpop.f32.mrb[0].mxu0
      %v2694 = vadd.f32 %v2438, %v2693
      %v2695 = vpop.f32.mrb[0].mxu0
      %2696 = vdwg.mxu0
      %v2697 = vld [vmem:[%s915] sm:$0xff]
      %v2698 = vld [vmem:[%s915 + $0x8] sm:$0xff]
      %v2699 = vld [vmem:[%s915 + $0x10] sm:$0xff]
      %v2700 = vld [vmem:[%s915 + $0x18] sm:$0xff]
      %v2701 = vld [vmem:[%s915 + $0x20] sm:$0xff]
      %v2702 = vld [vmem:[%s915 + $0x28] sm:$0xff]
      %v2703 = vld [vmem:[%s915 + $0x30] sm:$0xff]
      %v2704 = vld [vmem:[%s915 + $0x38] sm:$0xff]
      %v2705 = vld [vmem:[%s915 + $0x40] sm:$0xff]
      %v2706 = vld [vmem:[%s915 + $0x48] sm:$0xff]
      %v2707 = vld [vmem:[%s915 + $0x50] sm:$0xff]
      %v2708 = vld [vmem:[%s915 + $0x58] sm:$0xff]
      %v2709 = vld [vmem:[%s915 + $0x60] sm:$0xff]
      %v2710 = vld [vmem:[%s915 + $0x68] sm:$0xff]
      %v2711 = vld [vmem:[%s915 + $0x70] sm:$0xff]
      %v2712 = vld [vmem:[%s915 + $0x78] sm:$0xff]
      %v2729 = vunpack.c.l.b16 %v2697
      %v2730 = vunpack.c.h.b16 %v2697
      %v2731 = vunpack.c.l.b16 %v2698
      %v2732 = vunpack.c.h.b16 %v2698
      %v2733 = vunpack.c.l.b16 %v2699
      %v2734 = vunpack.c.h.b16 %v2699
      %v2735 = vunpack.c.l.b16 %v2700
      %v2736 = vunpack.c.h.b16 %v2700
      %v2737 = vunpack.c.l.b16 %v2701
      %v2738 = vunpack.c.h.b16 %v2701
      %v2739 = vunpack.c.l.b16 %v2702
      %v2740 = vunpack.c.h.b16 %v2702
      %v2741 = vunpack.c.l.b16 %v2703
      %v2742 = vunpack.c.h.b16 %v2703
      %v2743 = vunpack.c.l.b16 %v2704
      %v2744 = vunpack.c.h.b16 %v2704
      %v2745 = vunpack.c.l.b16 %v2705
      %v2746 = vunpack.c.h.b16 %v2705
      %v2747 = vunpack.c.l.b16 %v2706
      %v2748 = vunpack.c.h.b16 %v2706
      %v2749 = vunpack.c.l.b16 %v2707
      %v2750 = vunpack.c.h.b16 %v2707
      %v2751 = vunpack.c.l.b16 %v2708
      %v2752 = vunpack.c.h.b16 %v2708
      %v2753 = vunpack.c.l.b16 %v2709
      %v2754 = vunpack.c.h.b16 %v2709
      %v2755 = vunpack.c.l.b16 %v2710
      %v2756 = vunpack.c.h.b16 %v2710
      %v2757 = vunpack.c.l.b16 %v2711
      %v2758 = vunpack.c.h.b16 %v2711
      %v2759 = vunpack.c.l.b16 %v2712
      %v2760 = vunpack.c.h.b16 %v2712
      %v2761 = vpack.c.b16 %v2731, %v2729
      %v2762 = vpack.c.b16 %v2732, %v2730
      %v2763 = vpack.c.b16 %v2735, %v2733
      %v2764 = vpack.c.b16 %v2736, %v2734
      %v2765 = vpack.c.b16 %v2739, %v2737
      %v2766 = vpack.c.b16 %v2740, %v2738
      %v2767 = vpack.c.b16 %v2743, %v2741
      %v2768 = vpack.c.b16 %v2744, %v2742
      %v2769 = vpack.c.b16 %v2747, %v2745
      %v2770 = vpack.c.b16 %v2748, %v2746
      %v2771 = vpack.c.b16 %v2751, %v2749
      %v2772 = vpack.c.b16 %v2752, %v2750
      %v2773 = vpack.c.b16 %v2755, %v2753
      %v2774 = vpack.c.b16 %v2756, %v2754
      %v2775 = vpack.c.b16 %v2759, %v2757
      %v2776 = vpack.c.b16 %v2760, %v2758
      %2793 = vmatprep.subr.bf16.mxu0 0
      %2794 = vmatpush1.bf16.msra.mxu0 %v995
      %2795 = vmatprep.subr.bf16.mxu0 0
      %2796 = vmatpush1.bf16.msra.mxu0 %v996
      %2797 = vmatprep.subr.bf16.mxu0 0
      %2798 = vmatpush1.bf16.msra.mxu0 %v997
      %2799 = vmatprep.subr.bf16.mxu0 0
      %2800 = vmatpush1.bf16.msra.mxu0 %v998
      %2801 = vmatprep.subr.bf16.mxu0 0
      %2802 = vmatpush1.bf16.msra.mxu0 %v999
      %2803 = vmatprep.subr.bf16.mxu0 0
      %2804 = vmatpush1.bf16.msra.mxu0 %v1000
      %2805 = vmatprep.subr.bf16.mxu0 0
      %2806 = vmatpush1.bf16.msra.mxu0 %v1001
      %2807 = vmatprep.subr.bf16.mxu0 0
      %2808 = vmatpush1.bf16.msra.mxu0 %v1002
      %2809 = vmatprep.subr.bf16.mxu0 0
      %2810 = vmatpush1.bf16.msra.mxu0 %v1003
      %2811 = vmatprep.subr.bf16.mxu0 0
      %2812 = vmatpush1.bf16.msra.mxu0 %v1004
      %2813 = vmatprep.subr.bf16.mxu0 0
      %2814 = vmatpush1.bf16.msra.mxu0 %v1005
      %2815 = vmatprep.subr.bf16.mxu0 0
      %2816 = vmatpush1.bf16.msra.mxu0 %v1006
      %2817 = vmatprep.subr.bf16.mxu0 0
      %2818 = vmatpush1.bf16.msra.mxu0 %v1007
      %2819 = vmatprep.subr.bf16.mxu0 0
      %2820 = vmatpush1.bf16.msra.mxu0 %v1008
      %2821 = vmatprep.subr.bf16.mxu0 0
      %2822 = vmatpush1.bf16.msra.mxu0 %v1009
      %2823 = vmatprep.subr.bf16.mxu0 0
      %2824 = vmatpush1.bf16.msra.mxu0 %v1010
      %2825 = vmatprep.mubr.bf16.mxu0 %v2762
      %2826 = vmatmul.mubr.bf16.gmra.mrb[0].mxu0 %v2761
      %v2827 = vpop.f32.mrb[0].mxu0
      %v2828 = vadd.f32 0.0, %v2827
      %v2829 = vpop.f32.mrb[0].mxu0
      %v2830 = vpop.f32.mrb[0].mxu0
      %v2831 = vadd.f32 0.0, %v2830
      %v2832 = vpop.f32.mrb[0].mxu0
      %2833 = vmatprep.mubr.bf16.mxu0 %v2764
      %2834 = vmatmul.mubr.bf16.gmra.mrb[0].mxu0 %v2763
      %v2835 = vpop.f32.mrb[0].mxu0
      %v2836 = vadd.f32 0.0, %v2835
      %v2837 = vpop.f32.mrb[0].mxu0
      %v2838 = vpop.f32.mrb[0].mxu0
      %v2839 = vadd.f32 0.0, %v2838
      %v2840 = vpop.f32.mrb[0].mxu0
      %2841 = vmatprep.mubr.bf16.mxu0 %v2766
      %2842 = vmatmul.mubr.bf16.gmra.mrb[0].mxu0 %v2765
      %v2843 = vpop.f32.mrb[0].mxu0
      %v2844 = vadd.f32 0.0, %v2843
      %v2845 = vpop.f32.mrb[0].mxu0
      %v2846 = vpop.f32.mrb[0].mxu0
      %v2847 = vadd.f32 0.0, %v2846
      %v2848 = vpop.f32.mrb[0].mxu0
      %2849 = vmatprep.mubr.bf16.mxu0 %v2768
      %2850 = vmatmul.mubr.bf16.gmra.mrb[0].mxu0 %v2767
      %v2851 = vpop.f32.mrb[0].mxu0
      %v2852 = vadd.f32 0.0, %v2851
      %v2853 = vpop.f32.mrb[0].mxu0
      %v2854 = vpop.f32.mrb[0].mxu0
      %v2855 = vadd.f32 0.0, %v2854
      %v2856 = vpop.f32.mrb[0].mxu0
      %2857 = vmatprep.mubr.bf16.mxu0 %v2770
      %2858 = vmatmul.mubr.bf16.gmra.mrb[0].mxu0 %v2769
      %v2859 = vpop.f32.mrb[0].mxu0
      %v2860 = vadd.f32 0.0, %v2859
      %v2861 = vpop.f32.mrb[0].mxu0
      %v2862 = vpop.f32.mrb[0].mxu0
      %v2863 = vadd.f32 0.0, %v2862
      %v2864 = vpop.f32.mrb[0].mxu0
      %2865 = vmatprep.mubr.bf16.mxu0 %v2772
      %2866 = vmatmul.mubr.bf16.gmra.mrb[0].mxu0 %v2771
      %v2867 = vpop.f32.mrb[0].mxu0
      %v2868 = vadd.f32 0.0, %v2867
      %v2869 = vpop.f32.mrb[0].mxu0
      %v2870 = vpop.f32.mrb[0].mxu0
      %v2871 = vadd.f32 0.0, %v2870
      %v2872 = vpop.f32.mrb[0].mxu0
      %2873 = vmatprep.mubr.bf16.mxu0 %v2774
      %2874 = vmatmul.mubr.bf16.gmra.mrb[0].mxu0 %v2773
      %v2875 = vpop.f32.mrb[0].mxu0
      %v2876 = vadd.f32 0.0, %v2875
      %v2877 = vpop.f32.mrb[0].mxu0
      %v2878 = vpop.f32.mrb[0].mxu0
      %v2879 = vadd.f32 0.0, %v2878
      %v2880 = vpop.f32.mrb[0].mxu0
      %2881 = vmatprep.mubr.bf16.mxu0 %v2776
      %2882 = vmatmul.mubr.bf16.gmra.mrb[0].mxu0 %v2775
      %v2883 = vpop.f32.mrb[0].mxu0
      %v2884 = vadd.f32 0.0, %v2883
      %v2885 = vpop.f32.mrb[0].mxu0
      %v2886 = vpop.f32.mrb[0].mxu0
      %v2887 = vadd.f32 0.0, %v2886
      %v2888 = vpop.f32.mrb[0].mxu0
      %2889 = vdwg.mxu0
      %v2890 = vld [vmem:[%s871] sm:$0xf]
      %v2891 = vld [vmem:[%s871 + $0x4] sm:$0xf]
      %v2892 = vld [vmem:[%s871 + $0x8] sm:$0xf]
      %v2893 = vld [vmem:[%s871 + $0xc] sm:$0xf]
      %v2894 = vld [vmem:[%s871 + $0x10] sm:$0xf]
      %v2895 = vld [vmem:[%s871 + $0x14] sm:$0xf]
      %v2896 = vld [vmem:[%s871 + $0x18] sm:$0xf]
      %v2897 = vld [vmem:[%s871 + $0x1c] sm:$0xf]
      %v2898 = vld [vmem:[%s871 + $0x20] sm:$0xf]
      %v2899 = vld [vmem:[%s871 + $0x24] sm:$0xf]
      %v2900 = vld [vmem:[%s871 + $0x28] sm:$0xf]
      %v2901 = vld [vmem:[%s871 + $0x2c] sm:$0xf]
      %v2902 = vld [vmem:[%s871 + $0x30] sm:$0xf]
      %v2903 = vld [vmem:[%s871 + $0x34] sm:$0xf]
      %v2904 = vld [vmem:[%s871 + $0x38] sm:$0xf]
      %v2905 = vld [vmem:[%s871 + $0x3c] sm:$0xf]
      %v2906 = vld [vmem:[%s871 + $0x40] sm:$0xf]
      %v2907 = vld [vmem:[%s871 + $0x44] sm:$0xf]
      %v2908 = vld [vmem:[%s871 + $0x48] sm:$0xf]
      %v2909 = vld [vmem:[%s871 + $0x4c] sm:$0xf]
      %v2910 = vld [vmem:[%s871 + $0x50] sm:$0xf]
      %v2911 = vld [vmem:[%s871 + $0x54] sm:$0xf]
      %v2912 = vld [vmem:[%s871 + $0x58] sm:$0xf]
      %v2913 = vld [vmem:[%s871 + $0x5c] sm:$0xf]
      %v2914 = vld [vmem:[%s871 + $0x60] sm:$0xf]
      %v2915 = vld [vmem:[%s871 + $0x64] sm:$0xf]
      %v2916 = vld [vmem:[%s871 + $0x68] sm:$0xf]
      %v2917 = vld [vmem:[%s871 + $0x6c] sm:$0xf]
      %v2918 = vld [vmem:[%s871 + $0x70] sm:$0xf]
      %v2919 = vld [vmem:[%s871 + $0x74] sm:$0xf]
      %v2920 = vld [vmem:[%s871 + $0x78] sm:$0xf]
      %v2921 = vld [vmem:[%s871 + $0x7c] sm:$0xf]
      %s2922 = scalar_lea.vmem %s871, 128
      %v2923 = vld [vmem:[%s2922] sm:$0xf]
      %v2924 = vld [vmem:[%s2922 + $0x4] sm:$0xf]
      %v2925 = vld [vmem:[%s2922 + $0x8] sm:$0xf]
      %v2926 = vld [vmem:[%s2922 + $0xc] sm:$0xf]
      %v2927 = vld [vmem:[%s2922 + $0x10] sm:$0xf]
      %v2928 = vld [vmem:[%s2922 + $0x14] sm:$0xf]
      %v2929 = vld [vmem:[%s2922 + $0x18] sm:$0xf]
      %v2930 = vld [vmem:[%s2922 + $0x1c] sm:$0xf]
      %v2931 = vld [vmem:[%s2922 + $0x20] sm:$0xf]
      %v2932 = vld [vmem:[%s2922 + $0x24] sm:$0xf]
      %v2933 = vld [vmem:[%s2922 + $0x28] sm:$0xf]
      %v2934 = vld [vmem:[%s2922 + $0x2c] sm:$0xf]
      %v2935 = vld [vmem:[%s2922 + $0x30] sm:$0xf]
      %v2936 = vld [vmem:[%s2922 + $0x34] sm:$0xf]
      %v2937 = vld [vmem:[%s2922 + $0x38] sm:$0xf]
      %v2938 = vld [vmem:[%s2922 + $0x3c] sm:$0xf]
      %v2939 = vld [vmem:[%s2922 + $0x40] sm:$0xf]
      %v2940 = vld [vmem:[%s2922 + $0x44] sm:$0xf]
      %v2941 = vld [vmem:[%s2922 + $0x48] sm:$0xf]
      %v2942 = vld [vmem:[%s2922 + $0x4c] sm:$0xf]
      %v2943 = vld [vmem:[%s2922 + $0x50] sm:$0xf]
      %v2944 = vld [vmem:[%s2922 + $0x54] sm:$0xf]
      %v2945 = vld [vmem:[%s2922 + $0x58] sm:$0xf]
      %v2946 = vld [vmem:[%s2922 + $0x5c] sm:$0xf]
      %v2947 = vld [vmem:[%s2922 + $0x60] sm:$0xf]
      %v2948 = vld [vmem:[%s2922 + $0x64] sm:$0xf]
      %v2949 = vld [vmem:[%s2922 + $0x68] sm:$0xf]
      %v2950 = vld [vmem:[%s2922 + $0x6c] sm:$0xf]
      %v2951 = vld [vmem:[%s2922 + $0x70] sm:$0xf]
      %v2952 = vld [vmem:[%s2922 + $0x74] sm:$0xf]
      %v2953 = vld [vmem:[%s2922 + $0x78] sm:$0xf]
      %v2954 = vld [vmem:[%s2922 + $0x7c] sm:$0xf]
      %s2955 = scalar_lea.vmem %s871, 256
      %v2956 = vld [vmem:[%s2955] sm:$0xf]
      %v2957 = vld [vmem:[%s2955 + $0x4] sm:$0xf]
      %v2958 = vld [vmem:[%s2955 + $0x8] sm:$0xf]
      %v2959 = vld [vmem:[%s2955 + $0xc] sm:$0xf]
      %v2960 = vld [vmem:[%s2955 + $0x10] sm:$0xf]
      %v2961 = vld [vmem:[%s2955 + $0x14] sm:$0xf]
      %v2962 = vld [vmem:[%s2955 + $0x18] sm:$0xf]
      %v2963 = vld [vmem:[%s2955 + $0x1c] sm:$0xf]
      %v2964 = vld [vmem:[%s2955 + $0x20] sm:$0xf]
      %v2965 = vld [vmem:[%s2955 + $0x24] sm:$0xf]
      %v2966 = vld [vmem:[%s2955 + $0x28] sm:$0xf]
      %v2967 = vld [vmem:[%s2955 + $0x2c] sm:$0xf]
      %v2968 = vld [vmem:[%s2955 + $0x30] sm:$0xf]
      %v2969 = vld [vmem:[%s2955 + $0x34] sm:$0xf]
      %v2970 = vld [vmem:[%s2955 + $0x38] sm:$0xf]
      %v2971 = vld [vmem:[%s2955 + $0x3c] sm:$0xf]
      %v2972 = vld [vmem:[%s2955 + $0x40] sm:$0xf]
      %v2973 = vld [vmem:[%s2955 + $0x44] sm:$0xf]
      %v2974 = vld [vmem:[%s2955 + $0x48] sm:$0xf]
      %v2975 = vld [vmem:[%s2955 + $0x4c] sm:$0xf]
      %v2976 = vld [vmem:[%s2955 + $0x50] sm:$0xf]
      %v2977 = vld [vmem:[%s2955 + $0x54] sm:$0xf]
      %v2978 = vld [vmem:[%s2955 + $0x58] sm:$0xf]
      %v2979 = vld [vmem:[%s2955 + $0x5c] sm:$0xf]
      %v2980 = vld [vmem:[%s2955 + $0x60] sm:$0xf]
      %v2981 = vld [vmem:[%s2955 + $0x64] sm:$0xf]
      %v2982 = vld [vmem:[%s2955 + $0x68] sm:$0xf]
      %v2983 = vld [vmem:[%s2955 + $0x6c] sm:$0xf]
      %v2984 = vld [vmem:[%s2955 + $0x70] sm:$0xf]
      %v2985 = vld [vmem:[%s2955 + $0x74] sm:$0xf]
      %v2986 = vld [vmem:[%s2955 + $0x78] sm:$0xf]
      %v2987 = vld [vmem:[%s2955 + $0x7c] sm:$0xf]
      %v3020 = vunpack.c.l.b16 %v2890
      %v3021 = vunpack.c.l.b16 %v2891
      %v3022 = vunpack.c.l.b16 %v2892
      %v3023 = vunpack.c.l.b16 %v2893
      %v3024 = vunpack.c.l.b16 %v2894
      %v3025 = vunpack.c.l.b16 %v2895
      %v3026 = vunpack.c.l.b16 %v2896
      %v3027 = vunpack.c.l.b16 %v2897
      %v3028 = vunpack.c.l.b16 %v2898
      %v3029 = vunpack.c.l.b16 %v2899
      %v3030 = vunpack.c.l.b16 %v2900
      %v3031 = vunpack.c.l.b16 %v2901
      %v3032 = vunpack.c.l.b16 %v2902
      %v3033 = vunpack.c.l.b16 %v2903
      %v3034 = vunpack.c.l.b16 %v2904
      %v3035 = vunpack.c.l.b16 %v2905
      %v3036 = vunpack.c.l.b16 %v2906
      %v3037 = vunpack.c.l.b16 %v2907
      %v3038 = vunpack.c.l.b16 %v2908
      %v3039 = vunpack.c.l.b16 %v2909
      %v3040 = vunpack.c.l.b16 %v2910
      %v3041 = vunpack.c.l.b16 %v2911
      %v3042 = vunpack.c.l.b16 %v2912
      %v3043 = vunpack.c.l.b16 %v2913
      %v3044 = vunpack.c.l.b16 %v2914
      %v3045 = vunpack.c.l.b16 %v2915
      %v3046 = vunpack.c.l.b16 %v2916
      %v3047 = vunpack.c.l.b16 %v2917
      %v3048 = vunpack.c.l.b16 %v2918
      %v3049 = vunpack.c.l.b16 %v2919
      %v3050 = vunpack.c.l.b16 %v2920
      %v3051 = vunpack.c.l.b16 %v2921
      %v3052 = vpack.c.b16 %v3021, %v3020
      %v3053 = vpack.c.b16 %v3023, %v3022
      %v3054 = vpack.c.b16 %v3025, %v3024
      %v3055 = vpack.c.b16 %v3027, %v3026
      %v3056 = vpack.c.b16 %v3029, %v3028
      %v3057 = vpack.c.b16 %v3031, %v3030
      %v3058 = vpack.c.b16 %v3033, %v3032
      %v3059 = vpack.c.b16 %v3035, %v3034
      %v3060 = vpack.c.b16 %v3037, %v3036
      %v3061 = vpack.c.b16 %v3039, %v3038
      %v3062 = vpack.c.b16 %v3041, %v3040
      %v3063 = vpack.c.b16 %v3043, %v3042
      %v3064 = vpack.c.b16 %v3045, %v3044
      %v3065 = vpack.c.b16 %v3047, %v3046
      %v3066 = vpack.c.b16 %v3049, %v3048
      %v3067 = vpack.c.b16 %v3051, %v3050
      %v3116 = vunpack.c.l.b16 %v2923
      %v3117 = vunpack.c.l.b16 %v2924
      %v3118 = vunpack.c.l.b16 %v2925
      %v3119 = vunpack.c.l.b16 %v2926
      %v3120 = vunpack.c.l.b16 %v2927
      %v3121 = vunpack.c.l.b16 %v2928
      %v3122 = vunpack.c.l.b16 %v2929
      %v3123 = vunpack.c.l.b16 %v2930
      %v3124 = vunpack.c.l.b16 %v2931
      %v3125 = vunpack.c.l.b16 %v2932
      %v3126 = vunpack.c.l.b16 %v2933
      %v3127 = vunpack.c.l.b16 %v2934
      %v3128 = vunpack.c.l.b16 %v2935
      %v3129 = vunpack.c.l.b16 %v2936
      %v3130 = vunpack.c.l.b16 %v2937
      %v3131 = vunpack.c.l.b16 %v2938
      %v3132 = vunpack.c.l.b16 %v2939
      %v3133 = vunpack.c.l.b16 %v2940
      %v3134 = vunpack.c.l.b16 %v2941
      %v3135 = vunpack.c.l.b16 %v2942
      %v3136 = vunpack.c.l.b16 %v2943
      %v3137 = vunpack.c.l.b16 %v2944
      %v3138 = vunpack.c.l.b16 %v2945
      %v3139 = vunpack.c.l.b16 %v2946
      %v3140 = vunpack.c.l.b16 %v2947
      %v3141 = vunpack.c.l.b16 %v2948
      %v3142 = vunpack.c.l.b16 %v2949
      %v3143 = vunpack.c.l.b16 %v2950
      %v3144 = vunpack.c.l.b16 %v2951
      %v3145 = vunpack.c.l.b16 %v2952
      %v3146 = vunpack.c.l.b16 %v2953
      %v3147 = vunpack.c.l.b16 %v2954
      %v3148 = vpack.c.b16 %v3117, %v3116
      %v3149 = vpack.c.b16 %v3119, %v3118
      %v3150 = vpack.c.b16 %v3121, %v3120
      %v3151 = vpack.c.b16 %v3123, %v3122
      %v3152 = vpack.c.b16 %v3125, %v3124
      %v3153 = vpack.c.b16 %v3127, %v3126
      %v3154 = vpack.c.b16 %v3129, %v3128
      %v3155 = vpack.c.b16 %v3131, %v3130
      %v3156 = vpack.c.b16 %v3133, %v3132
      %v3157 = vpack.c.b16 %v3135, %v3134
      %v3158 = vpack.c.b16 %v3137, %v3136
      %v3159 = vpack.c.b16 %v3139, %v3138
      %v3160 = vpack.c.b16 %v3141, %v3140
      %v3161 = vpack.c.b16 %v3143, %v3142
      %v3162 = vpack.c.b16 %v3145, %v3144
      %v3163 = vpack.c.b16 %v3147, %v3146
      %v3212 = vunpack.c.l.b16 %v2956
      %v3213 = vunpack.c.l.b16 %v2957
      %v3214 = vunpack.c.l.b16 %v2958
      %v3215 = vunpack.c.l.b16 %v2959
      %v3216 = vunpack.c.l.b16 %v2960
      %v3217 = vunpack.c.l.b16 %v2961
      %v3218 = vunpack.c.l.b16 %v2962
      %v3219 = vunpack.c.l.b16 %v2963
      %v3220 = vunpack.c.l.b16 %v2964
      %v3221 = vunpack.c.l.b16 %v2965
      %v3222 = vunpack.c.l.b16 %v2966
      %v3223 = vunpack.c.l.b16 %v2967
      %v3224 = vunpack.c.l.b16 %v2968
      %v3225 = vunpack.c.l.b16 %v2969
      %v3226 = vunpack.c.l.b16 %v2970
      %v3227 = vunpack.c.l.b16 %v2971
      %v3228 = vunpack.c.l.b16 %v2972
      %v3229 = vunpack.c.l.b16 %v2973
      %v3230 = vunpack.c.l.b16 %v2974
      %v3231 = vunpack.c.l.b16 %v2975
      %v3232 = vunpack.c.l.b16 %v2976
      %v3233 = vunpack.c.l.b16 %v2977
      %v3234 = vunpack.c.l.b16 %v2978
      %v3235 = vunpack.c.l.b16 %v2979
      %v3236 = vunpack.c.l.b16 %v2980
      %v3237 = vunpack.c.l.b16 %v2981
      %v3238 = vunpack.c.l.b16 %v2982
      %v3239 = vunpack.c.l.b16 %v2983
      %v3240 = vunpack.c.l.b16 %v2984
      %v3241 = vunpack.c.l.b16 %v2985
      %v3242 = vunpack.c.l.b16 %v2986
      %v3243 = vunpack.c.l.b16 %v2987
      %v3244 = vpack.c.b16 %v3213, %v3212
      %v3245 = vpack.c.b16 %v3215, %v3214
      %v3246 = vpack.c.b16 %v3217, %v3216
      %v3247 = vpack.c.b16 %v3219, %v3218
      %v3248 = vpack.c.b16 %v3221, %v3220
      %v3249 = vpack.c.b16 %v3223, %v3222
      %v3250 = vpack.c.b16 %v3225, %v3224
      %v3251 = vpack.c.b16 %v3227, %v3226
      %v3252 = vpack.c.b16 %v3229, %v3228
      %v3253 = vpack.c.b16 %v3231, %v3230
      %v3254 = vpack.c.b16 %v3233, %v3232
      %v3255 = vpack.c.b16 %v3235, %v3234
      %v3256 = vpack.c.b16 %v3237, %v3236
      %v3257 = vpack.c.b16 %v3239, %v3238
      %v3258 = vpack.c.b16 %v3241, %v3240
      %v3259 = vpack.c.b16 %v3243, %v3242
      %v3276 = vld [vmem:[%s910] sm:$0xff]
      %v3277 = vld [vmem:[%s910 + $0x8] sm:$0xff]
      %v3278 = vld [vmem:[%s910 + $0x10] sm:$0xff]
      %v3279 = vld [vmem:[%s910 + $0x18] sm:$0xff]
      %v3280 = vld [vmem:[%s910 + $0x20] sm:$0xff]
      %v3281 = vld [vmem:[%s910 + $0x28] sm:$0xff]
      %v3282 = vld [vmem:[%s910 + $0x30] sm:$0xff]
      %v3283 = vld [vmem:[%s910 + $0x38] sm:$0xff]
      %v3284 = vld [vmem:[%s910 + $0x40] sm:$0xff]
      %v3285 = vld [vmem:[%s910 + $0x48] sm:$0xff]
      %v3286 = vld [vmem:[%s910 + $0x50] sm:$0xff]
      %v3287 = vld [vmem:[%s910 + $0x58] sm:$0xff]
      %v3288 = vld [vmem:[%s910 + $0x60] sm:$0xff]
      %v3289 = vld [vmem:[%s910 + $0x68] sm:$0xff]
      %v3290 = vld [vmem:[%s910 + $0x70] sm:$0xff]
      %v3291 = vld [vmem:[%s910 + $0x78] sm:$0xff]
      %v3308 = vunpack.c.l.b16 %v3276
      %v3309 = vunpack.c.h.b16 %v3276
      %v3310 = vunpack.c.l.b16 %v3277
      %v3311 = vunpack.c.h.b16 %v3277
      %v3312 = vunpack.c.l.b16 %v3278
      %v3313 = vunpack.c.h.b16 %v3278
      %v3314 = vunpack.c.l.b16 %v3279
      %v3315 = vunpack.c.h.b16 %v3279
      %v3316 = vunpack.c.l.b16 %v3280
      %v3317 = vunpack.c.h.b16 %v3280
      %v3318 = vunpack.c.l.b16 %v3281
      %v3319 = vunpack.c.h.b16 %v3281
      %v3320 = vunpack.c.l.b16 %v3282
      %v3321 = vunpack.c.h.b16 %v3282
      %v3322 = vunpack.c.l.b16 %v3283
      %v3323 = vunpack.c.h.b16 %v3283
      %v3324 = vunpack.c.l.b16 %v3284
      %v3325 = vunpack.c.h.b16 %v3284
      %v3326 = vunpack.c.l.b16 %v3285
      %v3327 = vunpack.c.h.b16 %v3285
      %v3328 = vunpack.c.l.b16 %v3286
      %v3329 = vunpack.c.h.b16 %v3286
      %v3330 = vunpack.c.l.b16 %v3287
      %v3331 = vunpack.c.h.b16 %v3287
      %v3332 = vunpack.c.l.b16 %v3288
      %v3333 = vunpack.c.h.b16 %v3288
      %v3334 = vunpack.c.l.b16 %v3289
      %v3335 = vunpack.c.h.b16 %v3289
      %v3336 = vunpack.c.l.b16 %v3290
      %v3337 = vunpack.c.h.b16 %v3290
      %v3338 = vunpack.c.l.b16 %v3291
      %v3339 = vunpack.c.h.b16 %v3291
      %v3340 = vpack.c.b16 %v3310, %v3308
      %v3341 = vpack.c.b16 %v3311, %v3309
      %v3342 = vpack.c.b16 %v3314, %v3312
      %v3343 = vpack.c.b16 %v3315, %v3313
      %v3344 = vpack.c.b16 %v3318, %v3316
      %v3345 = vpack.c.b16 %v3319, %v3317
      %v3346 = vpack.c.b16 %v3322, %v3320
      %v3347 = vpack.c.b16 %v3323, %v3321
      %v3348 = vpack.c.b16 %v3326, %v3324
      %v3349 = vpack.c.b16 %v3327, %v3325
      %v3350 = vpack.c.b16 %v3330, %v3328
      %v3351 = vpack.c.b16 %v3331, %v3329
      %v3352 = vpack.c.b16 %v3334, %v3332
      %v3353 = vpack.c.b16 %v3335, %v3333
      %v3354 = vpack.c.b16 %v3338, %v3336
      %v3355 = vpack.c.b16 %v3339, %v3337
      %3372 = vmatprep.subr.bf16.mxu0 %v3148
      %3373 = vmatpush1.bf16.msra.mxu0 %v3052
      %3374 = vmatprep.subr.bf16.mxu0 %v3149
      %3375 = vmatpush1.bf16.msra.mxu0 %v3053
      %3376 = vmatprep.subr.bf16.mxu0 %v3150
      %3377 = vmatpush1.bf16.msra.mxu0 %v3054
      %3378 = vmatprep.subr.bf16.mxu0 %v3151
      %3379 = vmatpush1.bf16.msra.mxu0 %v3055
      %3380 = vmatprep.subr.bf16.mxu0 %v3152
      %3381 = vmatpush1.bf16.msra.mxu0 %v3056
      %3382 = vmatprep.subr.bf16.mxu0 %v3153
      %3383 = vmatpush1.bf16.msra.mxu0 %v3057
      %3384 = vmatprep.subr.bf16.mxu0 %v3154
      %3385 = vmatpush1.bf16.msra.mxu0 %v3058
      %3386 = vmatprep.subr.bf16.mxu0 %v3155
      %3387 = vmatpush1.bf16.msra.mxu0 %v3059
      %3388 = vmatprep.subr.bf16.mxu0 %v3156
      %3389 = vmatpush1.bf16.msra.mxu0 %v3060
      %3390 = vmatprep.subr.bf16.mxu0 %v3157
      %3391 = vmatpush1.bf16.msra.mxu0 %v3061
      %3392 = vmatprep.subr.bf16.mxu0 %v3158
      %3393 = vmatpush1.bf16.msra.mxu0 %v3062
      %3394 = vmatprep.subr.bf16.mxu0 %v3159
      %3395 = vmatpush1.bf16.msra.mxu0 %v3063
      %3396 = vmatprep.subr.bf16.mxu0 %v3160
      %3397 = vmatpush1.bf16.msra.mxu0 %v3064
      %3398 = vmatprep.subr.bf16.mxu0 %v3161
      %3399 = vmatpush1.bf16.msra.mxu0 %v3065
      %3400 = vmatprep.subr.bf16.mxu0 %v3162
      %3401 = vmatpush1.bf16.msra.mxu0 %v3066
      %3402 = vmatprep.subr.bf16.mxu0 %v3163
      %3403 = vmatpush1.bf16.msra.mxu0 %v3067
      %3404 = vmatprep.mubr.bf16.mxu0 %v3341
      %3405 = vmatmul.mubr.bf16.gmra.mrb[0].mxu0 %v3340
      %v3406 = vpop.f32.mrb[0].mxu0
      %v3407 = vadd.f32 %v2828, %v3406
      %v3408 = vpop.f32.mrb[0].mxu0
      %v3409 = vadd.f32 %v2828, %v3408
      %v3410 = vpop.f32.mrb[0].mxu0
      %v3411 = vadd.f32 %v2831, %v3410
      %v3412 = vpop.f32.mrb[0].mxu0
      %v3413 = vadd.f32 %v2831, %v3412
      %3414 = vmatprep.mubr.bf16.mxu0 %v3343
      %3415 = vmatmul.mubr.bf16.gmra.mrb[0].mxu0 %v3342
      %v3416 = vpop.f32.mrb[0].mxu0
      %v3417 = vadd.f32 %v2836, %v3416
      %v3418 = vpop.f32.mrb[0].mxu0
      %v3419 = vadd.f32 %v2836, %v3418
      %v3420 = vpop.f32.mrb[0].mxu0
      %v3421 = vadd.f32 %v2839, %v3420
      %v3422 = vpop.f32.mrb[0].mxu0
      %v3423 = vadd.f32 %v2839, %v3422
      %3424 = vmatprep.mubr.bf16.mxu0 %v3345
      %3425 = vmatmul.mubr.bf16.gmra.mrb[0].mxu0 %v3344
      %v3426 = vpop.f32.mrb[0].mxu0
      %v3427 = vadd.f32 %v2844, %v3426
      %v3428 = vpop.f32.mrb[0].mxu0
      %v3429 = vadd.f32 %v2844, %v3428
      %v3430 = vpop.f32.mrb[0].mxu0
      %v3431 = vadd.f32 %v2847, %v3430
      %v3432 = vpop.f32.mrb[0].mxu0
      %v3433 = vadd.f32 %v2847, %v3432
      %3434 = vmatprep.mubr.bf16.mxu0 %v3347
      %3435 = vmatmul.mubr.bf16.gmra.mrb[0].mxu0 %v3346
      %v3436 = vpop.f32.mrb[0].mxu0
      %v3437 = vadd.f32 %v2852, %v3436
      %v3438 = vpop.f32.mrb[0].mxu0
      %v3439 = vadd.f32 %v2852, %v3438
      %v3440 = vpop.f32.mrb[0].mxu0
      %v3441 = vadd.f32 %v2855, %v3440
      %v3442 = vpop.f32.mrb[0].mxu0
      %v3443 = vadd.f32 %v2855, %v3442
      %3444 = vmatprep.mubr.bf16.mxu0 %v3349
      %3445 = vmatmul.mubr.bf16.gmra.mrb[0].mxu0 %v3348
      %v3446 = vpop.f32.mrb[0].mxu0
      %v3447 = vadd.f32 %v2860, %v3446
      %v3448 = vpop.f32.mrb[0].mxu0
      %v3449 = vadd.f32 %v2860, %v3448
      %v3450 = vpop.f32.mrb[0].mxu0
      %v3451 = vadd.f32 %v2863, %v3450
      %v3452 = vpop.f32.mrb[0].mxu0
      %v3453 = vadd.f32 %v2863, %v3452
      %3454 = vmatprep.mubr.bf16.mxu0 %v3351
      %3455 = vmatmul.mubr.bf16.gmra.mrb[0].mxu0 %v3350
      %v3456 = vpop.f32.mrb[0].mxu0
      %v3457 = vadd.f32 %v2868, %v3456
      %v3458 = vpop.f32.mrb[0].mxu0
      %v3459 = vadd.f32 %v2868, %v3458
      %v3460 = vpop.f32.mrb[0].mxu0
      %v3461 = vadd.f32 %v2871, %v3460
      %v3462 = vpop.f32.mrb[0].mxu0
      %v3463 = vadd.f32 %v2871, %v3462
      %3464 = vmatprep.mubr.bf16.mxu0 %v3353
      %3465 = vmatmul.mubr.bf16.gmra.mrb[0].mxu0 %v3352
      %v3466 = vpop.f32.mrb[0].mxu0
      %v3467 = vadd.f32 %v2876, %v3466
      %v3468 = vpop.f32.mrb[0].mxu0
      %v3469 = vadd.f32 %v2876, %v3468
      %v3470 = vpop.f32.mrb[0].mxu0
      %v3471 = vadd.f32 %v2879, %v3470
      %v3472 = vpop.f32.mrb[0].mxu0
      %v3473 = vadd.f32 %v2879, %v3472
      %3474 = vmatprep.mubr.bf16.mxu0 %v3355
      %3475 = vmatmul.mubr.bf16.gmra.mrb[0].mxu0 %v3354
      %v3476 = vpop.f32.mrb[0].mxu0
      %v3477 = vadd.f32 %v2884, %v3476
      %v3478 = vpop.f32.mrb[0].mxu0
      %v3479 = vadd.f32 %v2884, %v3478
      %v3480 = vpop.f32.mrb[0].mxu0
      %v3481 = vadd.f32 %v2887, %v3480
      %v3482 = vpop.f32.mrb[0].mxu0
      %v3483 = vadd.f32 %v2887, %v3482
      %3484 = vdwg.mxu0
      %3485 = vmatprep.subr.bf16.mxu0 0
      %3486 = vmatpush1.bf16.msra.mxu0 %v3244
      %3487 = vmatprep.subr.bf16.mxu0 0
      %3488 = vmatpush1.bf16.msra.mxu0 %v3245
      %3489 = vmatprep.subr.bf16.mxu0 0
      %3490 = vmatpush1.bf16.msra.mxu0 %v3246
      %3491 = vmatprep.subr.bf16.mxu0 0
      %3492 = vmatpush1.bf16.msra.mxu0 %v3247
      %3493 = vmatprep.subr.bf16.mxu0 0
      %3494 = vmatpush1.bf16.msra.mxu0 %v3248
      %3495 = vmatprep.subr.bf16.mxu0 0
      %3496 = vmatpush1.bf16.msra.mxu0 %v3249
      %3497 = vmatprep.subr.bf16.mxu0 0
      %3498 = vmatpush1.bf16.msra.mxu0 %v3250
      %3499 = vmatprep.subr.bf16.mxu0 0
      %3500 = vmatpush1.bf16.msra.mxu0 %v3251
      %3501 = vmatprep.subr.bf16.mxu0 0
      %3502 = vmatpush1.bf16.msra.mxu0 %v3252
      %3503 = vmatprep.subr.bf16.mxu0 0
      %3504 = vmatpush1.bf16.msra.mxu0 %v3253
      %3505 = vmatprep.subr.bf16.mxu0 0
      %3506 = vmatpush1.bf16.msra.mxu0 %v3254
      %3507 = vmatprep.subr.bf16.mxu0 0
      %3508 = vmatpush1.bf16.msra.mxu0 %v3255
      %3509 = vmatprep.subr.bf16.mxu0 0
      %3510 = vmatpush1.bf16.msra.mxu0 %v3256
      %3511 = vmatprep.subr.bf16.mxu0 0
      %3512 = vmatpush1.bf16.msra.mxu0 %v3257
      %3513 = vmatprep.subr.bf16.mxu0 0
      %3514 = vmatpush1.bf16.msra.mxu0 %v3258
      %3515 = vmatprep.subr.bf16.mxu0 0
      %3516 = vmatpush1.bf16.msra.mxu0 %v3259
      %3517 = vmatprep.mubr.bf16.mxu0 %v3341
      %3518 = vmatmul.mubr.bf16.gmra.mrb[0].mxu0 %v3340
      %v3519 = vpop.f32.mrb[0].mxu0
      %v3520 = vadd.f32 %v2828, %v3519
      %v3521 = vpop.f32.mrb[0].mxu0
      %v3522 = vpop.f32.mrb[0].mxu0
      %v3523 = vadd.f32 %v2831, %v3522
      %v3524 = vpop.f32.mrb[0].mxu0
      %3525 = vmatprep.mubr.bf16.mxu0 %v3343
      %3526 = vmatmul.mubr.bf16.gmra.mrb[0].mxu0 %v3342
      %v3527 = vpop.f32.mrb[0].mxu0
      %v3528 = vadd.f32 %v2836, %v3527
      %v3529 = vpop.f32.mrb[0].mxu0
      %v3530 = vpop.f32.mrb[0].mxu0
      %v3531 = vadd.f32 %v2839, %v3530
      %v3532 = vpop.f32.mrb[0].mxu0
      %3533 = vmatprep.mubr.bf16.mxu0 %v3345
      %3534 = vmatmul.mubr.bf16.gmra.mrb[0].mxu0 %v3344
      %v3535 = vpop.f32.mrb[0].mxu0
      %v3536 = vadd.f32 %v2844, %v3535
      %v3537 = vpop.f32.mrb[0].mxu0
      %v3538 = vpop.f32.mrb[0].mxu0
      %v3539 = vadd.f32 %v2847, %v3538
      %v3540 = vpop.f32.mrb[0].mxu0
      %3541 = vmatprep.mubr.bf16.mxu0 %v3347
      %3542 = vmatmul.mubr.bf16.gmra.mrb[0].mxu0 %v3346
      %v3543 = vpop.f32.mrb[0].mxu0
      %v3544 = vadd.f32 %v2852, %v3543
      %v3545 = vpop.f32.mrb[0].mxu0
      %v3546 = vpop.f32.mrb[0].mxu0
      %v3547 = vadd.f32 %v2855, %v3546
      %v3548 = vpop.f32.mrb[0].mxu0
      %3549 = vmatprep.mubr.bf16.mxu0 %v3349
      %3550 = vmatmul.mubr.bf16.gmra.mrb[0].mxu0 %v3348
      %v3551 = vpop.f32.mrb[0].mxu0
      %v3552 = vadd.f32 %v2860, %v3551
      %v3553 = vpop.f32.mrb[0].mxu0
      %v3554 = vpop.f32.mrb[0].mxu0
      %v3555 = vadd.f32 %v2863, %v3554
      %v3556 = vpop.f32.mrb[0].mxu0
      %3557 = vmatprep.mubr.bf16.mxu0 %v3351
      %3558 = vmatmul.mubr.bf16.gmra.mrb[0].mxu0 %v3350
      %v3559 = vpop.f32.mrb[0].mxu0
      %v3560 = vadd.f32 %v2868, %v3559
      %v3561 = vpop.f32.mrb[0].mxu0
      %v3562 = vpop.f32.mrb[0].mxu0
      %v3563 = vadd.f32 %v2871, %v3562
      %v3564 = vpop.f32.mrb[0].mxu0
      %3565 = vmatprep.mubr.bf16.mxu0 %v3353
      %3566 = vmatmul.mubr.bf16.gmra.mrb[0].mxu0 %v3352
      %v3567 = vpop.f32.mrb[0].mxu0
      %v3568 = vadd.f32 %v2876, %v3567
      %v3569 = vpop.f32.mrb[0].mxu0
      %v3570 = vpop.f32.mrb[0].mxu0
      %v3571 = vadd.f32 %v2879, %v3570
      %v3572 = vpop.f32.mrb[0].mxu0
      %3573 = vmatprep.mubr.bf16.mxu0 %v3355
      %3574 = vmatmul.mubr.bf16.gmra.mrb[0].mxu0 %v3354
      %v3575 = vpop.f32.mrb[0].mxu0
      %v3576 = vadd.f32 %v2884, %v3575
      %v3577 = vpop.f32.mrb[0].mxu0
      %v3578 = vpop.f32.mrb[0].mxu0
      %v3579 = vadd.f32 %v2887, %v3578
      %v3580 = vpop.f32.mrb[0].mxu0
      %3581 = vdwg.mxu0
      %v3582 = vld [vmem:[%s920] sm:$0xff]
      %v3583 = vld [vmem:[%s920 + $0x8] sm:$0xff]
      %v3584 = vld [vmem:[%s920 + $0x10] sm:$0xff]
      %v3585 = vld [vmem:[%s920 + $0x18] sm:$0xff]
      %v3586 = vld [vmem:[%s920 + $0x20] sm:$0xff]
      %v3587 = vld [vmem:[%s920 + $0x28] sm:$0xff]
      %v3588 = vld [vmem:[%s920 + $0x30] sm:$0xff]
      %v3589 = vld [vmem:[%s920 + $0x38] sm:$0xff]
      %v3590 = vld [vmem:[%s920 + $0x40] sm:$0xff]
      %v3591 = vld [vmem:[%s920 + $0x48] sm:$0xff]
      %v3592 = vld [vmem:[%s920 + $0x50] sm:$0xff]
      %v3593 = vld [vmem:[%s920 + $0x58] sm:$0xff]
      %v3594 = vld [vmem:[%s920 + $0x60] sm:$0xff]
      %v3595 = vld [vmem:[%s920 + $0x68] sm:$0xff]
      %v3596 = vld [vmem:[%s920 + $0x70] sm:$0xff]
      %v3597 = vld [vmem:[%s920 + $0x78] sm:$0xff]
      %3599 = vset.pattern.permute.xlu0 0
      %3600 = vperm.xlu0 %3599, %v3582
      %v3601 = vpop.permute.xlu0 %3600
      %3604 = vset.pattern.permute.xlu0 0
      %3605 = vperm.xlu0 %3604, %v3583
      %v3606 = vpop.permute.xlu0 %3605
      %3609 = vset.pattern.permute.xlu0 0
      %3610 = vperm.xlu0 %3609, %v3584
      %v3611 = vpop.permute.xlu0 %3610
      %3614 = vset.pattern.permute.xlu0 0
      %3615 = vperm.xlu0 %3614, %v3585
      %v3616 = vpop.permute.xlu0 %3615
      %3619 = vset.pattern.permute.xlu0 0
      %3620 = vperm.xlu0 %3619, %v3586
      %v3621 = vpop.permute.xlu0 %3620
      %3624 = vset.pattern.permute.xlu0 0
      %3625 = vperm.xlu0 %3624, %v3587
      %v3626 = vpop.permute.xlu0 %3625
      %3629 = vset.pattern.permute.xlu0 0
      %3630 = vperm.xlu0 %3629, %v3588
      %v3631 = vpop.permute.xlu0 %3630
      %3634 = vset.pattern.permute.xlu0 0
      %3635 = vperm.xlu0 %3634, %v3589
      %v3636 = vpop.permute.xlu0 %3635
      %3639 = vset.pattern.permute.xlu0 0
      %3640 = vperm.xlu0 %3639, %v3590
      %v3641 = vpop.permute.xlu0 %3640
      %3644 = vset.pattern.permute.xlu0 0
      %3645 = vperm.xlu0 %3644, %v3591
      %v3646 = vpop.permute.xlu0 %3645
      %3649 = vset.pattern.permute.xlu0 0
      %3650 = vperm.xlu0 %3649, %v3592
      %v3651 = vpop.permute.xlu0 %3650
      %3654 = vset.pattern.permute.xlu0 0
      %3655 = vperm.xlu0 %3654, %v3593
      %v3656 = vpop.permute.xlu0 %3655
      %3659 = vset.pattern.permute.xlu0 0
      %3660 = vperm.xlu0 %3659, %v3594
      %v3661 = vpop.permute.xlu0 %3660
      %3664 = vset.pattern.permute.xlu0 0
      %3665 = vperm.xlu0 %3664, %v3595
      %v3666 = vpop.permute.xlu0 %3665
      %3669 = vset.pattern.permute.xlu0 0
      %3670 = vperm.xlu0 %3669, %v3596
      %v3671 = vpop.permute.xlu0 %3670
      %3674 = vset.pattern.permute.xlu0 0
      %3675 = vperm.xlu0 %3674, %v3597
      %v3676 = vpop.permute.xlu0 %3675
      %v3678 = vadd.f32 %v3407, %v3601
      %v3679 = vadd.f32 %v3409, %v3601
      %v3680 = vadd.f32 %v3520, %v3601
      %v3681 = vadd.f32 %v3411, %v3606
      %v3682 = vadd.f32 %v3413, %v3606
      %v3683 = vadd.f32 %v3523, %v3606
      %v3684 = vadd.f32 %v3417, %v3611
      %v3685 = vadd.f32 %v3419, %v3611
      %v3686 = vadd.f32 %v3528, %v3611
      %v3687 = vadd.f32 %v3421, %v3616
      %v3688 = vadd.f32 %v3423, %v3616
      %v3689 = vadd.f32 %v3531, %v3616
      %v3690 = vadd.f32 %v3427, %v3621
      %v3691 = vadd.f32 %v3429, %v3621
      %v3692 = vadd.f32 %v3536, %v3621
      %v3693 = vadd.f32 %v3431, %v3626
      %v3694 = vadd.f32 %v3433, %v3626
      %v3695 = vadd.f32 %v3539, %v3626
      %v3696 = vadd.f32 %v3437, %v3631
      %v3697 = vadd.f32 %v3439, %v3631
      %v3698 = vadd.f32 %v3544, %v3631
      %v3699 = vadd.f32 %v3441, %v3636
      %v3700 = vadd.f32 %v3443, %v3636
      %v3701 = vadd.f32 %v3547, %v3636
      %v3702 = vadd.f32 %v3447, %v3641
      %v3703 = vadd.f32 %v3449, %v3641
      %v3704 = vadd.f32 %v3552, %v3641
      %v3705 = vadd.f32 %v3451, %v3646
      %v3706 = vadd.f32 %v3453, %v3646
      %v3707 = vadd.f32 %v3555, %v3646
      %v3708 = vadd.f32 %v3457, %v3651
      %v3709 = vadd.f32 %v3459, %v3651
      %v3710 = vadd.f32 %v3560, %v3651
      %v3711 = vadd.f32 %v3461, %v3656
      %v3712 = vadd.f32 %v3463, %v3656
      %v3713 = vadd.f32 %v3563, %v3656
      %v3714 = vadd.f32 %v3467, %v3661
      %v3715 = vadd.f32 %v3469, %v3661
      %v3716 = vadd.f32 %v3568, %v3661
      %v3717 = vadd.f32 %v3471, %v3666
      %v3718 = vadd.f32 %v3473, %v3666
      %v3719 = vadd.f32 %v3571, %v3666
      %v3720 = vadd.f32 %v3477, %v3671
      %v3721 = vadd.f32 %v3479, %v3671
      %v3722 = vadd.f32 %v3576, %v3671
      %v3723 = vadd.f32 %v3481, %v3676
      %v3724 = vadd.f32 %v3483, %v3676
      %v3725 = vadd.f32 %v3579, %v3676
      %v3726 = vmax.f32 %v3678, 0.0
      %v3727 = vmax.f32 %v3679, 0.0
      %v3728 = vmax.f32 %v3680, 0.0
      %v3729 = vmax.f32 %v3681, 0.0
      %v3730 = vmax.f32 %v3682, 0.0
      %v3731 = vmax.f32 %v3683, 0.0
      %v3732 = vmax.f32 %v3684, 0.0
      %v3733 = vmax.f32 %v3685, 0.0
      %v3734 = vmax.f32 %v3686, 0.0
      %v3735 = vmax.f32 %v3687, 0.0
      %v3736 = vmax.f32 %v3688, 0.0
      %v3737 = vmax.f32 %v3689, 0.0
      %v3738 = vmax.f32 %v3690, 0.0
      %v3739 = vmax.f32 %v3691, 0.0
      %v3740 = vmax.f32 %v3692, 0.0
      %v3741 = vmax.f32 %v3693, 0.0
      %v3742 = vmax.f32 %v3694, 0.0
      %v3743 = vmax.f32 %v3695, 0.0
      %v3744 = vmax.f32 %v3696, 0.0
      %v3745 = vmax.f32 %v3697, 0.0
      %v3746 = vmax.f32 %v3698, 0.0
      %v3747 = vmax.f32 %v3699, 0.0
      %v3748 = vmax.f32 %v3700, 0.0
      %v3749 = vmax.f32 %v3701, 0.0
      %v3750 = vmax.f32 %v3702, 0.0
      %v3751 = vmax.f32 %v3703, 0.0
      %v3752 = vmax.f32 %v3704, 0.0
      %v3753 = vmax.f32 %v3705, 0.0
      %v3754 = vmax.f32 %v3706, 0.0
      %v3755 = vmax.f32 %v3707, 0.0
      %v3756 = vmax.f32 %v3708, 0.0
      %v3757 = vmax.f32 %v3709, 0.0
      %v3758 = vmax.f32 %v3710, 0.0
      %v3759 = vmax.f32 %v3711, 0.0
      %v3760 = vmax.f32 %v3712, 0.0
      %v3761 = vmax.f32 %v3713, 0.0
      %v3762 = vmax.f32 %v3714, 0.0
      %v3763 = vmax.f32 %v3715, 0.0
      %v3764 = vmax.f32 %v3716, 0.0
      %v3765 = vmax.f32 %v3717, 0.0
      %v3766 = vmax.f32 %v3718, 0.0
      %v3767 = vmax.f32 %v3719, 0.0
      %v3768 = vmax.f32 %v3720, 0.0
      %v3769 = vmax.f32 %v3721, 0.0
      %v3770 = vmax.f32 %v3722, 0.0
      %v3771 = vmax.f32 %v3723, 0.0
      %v3772 = vmax.f32 %v3724, 0.0
      %v3773 = vmax.f32 %v3725, 0.0
      %v3774 = vpack.c.bf16 %v3729, %v3726
      %v3775 = vpack.c.bf16 %v3730, %v3727
      %v3776 = vpack.c.bf16 %v3731, %v3728
      %v3777 = vpack.c.bf16 %v3735, %v3732
      %v3778 = vpack.c.bf16 %v3736, %v3733
      %v3779 = vpack.c.bf16 %v3737, %v3734
      %v3780 = vpack.c.bf16 %v3741, %v3738
      %v3781 = vpack.c.bf16 %v3742, %v3739
      %v3782 = vpack.c.bf16 %v3743, %v3740
      %v3783 = vpack.c.bf16 %v3747, %v3744
      %v3784 = vpack.c.bf16 %v3748, %v3745
      %v3785 = vpack.c.bf16 %v3749, %v3746
      %v3786 = vpack.c.bf16 %v3753, %v3750
      %v3787 = vpack.c.bf16 %v3754, %v3751
      %v3788 = vpack.c.bf16 %v3755, %v3752
      %v3789 = vpack.c.bf16 %v3759, %v3756
      %v3790 = vpack.c.bf16 %v3760, %v3757
      %v3791 = vpack.c.bf16 %v3761, %v3758
      %v3792 = vpack.c.bf16 %v3765, %v3762
      %v3793 = vpack.c.bf16 %v3766, %v3763
      %v3794 = vpack.c.bf16 %v3767, %v3764
      %v3795 = vpack.c.bf16 %v3771, %v3768
      %v3796 = vpack.c.bf16 %v3772, %v3769
      %v3797 = vpack.c.bf16 %v3773, %v3770
      %v3798 = vld [vmem:[%s925] sm:$0xf]
      %v3799 = vld [vmem:[%s925 + $0x4] sm:$0xf]
      %v3800 = vld [vmem:[%s925 + $0x8] sm:$0xf]
      %v3801 = vld [vmem:[%s925 + $0xc] sm:$0xf]
      %v3802 = vld [vmem:[%s925 + $0x10] sm:$0xf]
      %v3803 = vld [vmem:[%s925 + $0x14] sm:$0xf]
      %v3804 = vld [vmem:[%s925 + $0x18] sm:$0xf]
      %v3805 = vld [vmem:[%s925 + $0x1c] sm:$0xf]
      %v3806 = vld [vmem:[%s925 + $0x20] sm:$0xf]
      %v3807 = vld [vmem:[%s925 + $0x24] sm:$0xf]
      %v3808 = vld [vmem:[%s925 + $0x28] sm:$0xf]
      %v3809 = vld [vmem:[%s925 + $0x2c] sm:$0xf]
      %v3810 = vld [vmem:[%s925 + $0x30] sm:$0xf]
      %v3811 = vld [vmem:[%s925 + $0x34] sm:$0xf]
      %v3812 = vld [vmem:[%s925 + $0x38] sm:$0xf]
      %v3813 = vld [vmem:[%s925 + $0x3c] sm:$0xf]
      %v3814 = vld [vmem:[%s930] sm:$0xff]
      %v3815 = vld [vmem:[%s930 + $0x8] sm:$0xff]
      %v3816 = vld [vmem:[%s930 + $0x10] sm:$0xff]
      %v3817 = vld [vmem:[%s930 + $0x18] sm:$0xff]
      %v3818 = vld [vmem:[%s930 + $0x20] sm:$0xff]
      %v3819 = vld [vmem:[%s930 + $0x28] sm:$0xff]
      %v3820 = vld [vmem:[%s930 + $0x30] sm:$0xff]
      %v3821 = vld [vmem:[%s930 + $0x38] sm:$0xff]
      %v3822 = vld [vmem:[%s930 + $0x40] sm:$0xff]
      %v3823 = vld [vmem:[%s930 + $0x48] sm:$0xff]
      %v3824 = vld [vmem:[%s930 + $0x50] sm:$0xff]
      %v3825 = vld [vmem:[%s930 + $0x58] sm:$0xff]
      %v3826 = vld [vmem:[%s930 + $0x60] sm:$0xff]
      %v3827 = vld [vmem:[%s930 + $0x68] sm:$0xff]
      %v3828 = vld [vmem:[%s930 + $0x70] sm:$0xff]
      %v3829 = vld [vmem:[%s930 + $0x78] sm:$0xff]
      %3831 = vset.pattern.permute.xlu0 0
      %3832 = vperm.xlu0 %3831, %v3814
      %v3833 = vpop.permute.xlu0 %3832
      %3836 = vset.pattern.permute.xlu0 0
      %3837 = vperm.xlu0 %3836, %v3815
      %v3838 = vpop.permute.xlu0 %3837
      %3841 = vset.pattern.permute.xlu0 0
      %3842 = vperm.xlu0 %3841, %v3816
      %v3843 = vpop.permute.xlu0 %3842
      %3846 = vset.pattern.permute.xlu0 0
      %3847 = vperm.xlu0 %3846, %v3817
      %v3848 = vpop.permute.xlu0 %3847
      %3851 = vset.pattern.permute.xlu0 0
      %3852 = vperm.xlu0 %3851, %v3818
      %v3853 = vpop.permute.xlu0 %3852
      %3856 = vset.pattern.permute.xlu0 0
      %3857 = vperm.xlu0 %3856, %v3819
      %v3858 = vpop.permute.xlu0 %3857
      %3861 = vset.pattern.permute.xlu0 0
      %3862 = vperm.xlu0 %3861, %v3820
      %v3863 = vpop.permute.xlu0 %3862
      %3866 = vset.pattern.permute.xlu0 0
      %3867 = vperm.xlu0 %3866, %v3821
      %v3868 = vpop.permute.xlu0 %3867
      %3871 = vset.pattern.permute.xlu0 0
      %3872 = vperm.xlu0 %3871, %v3822
      %v3873 = vpop.permute.xlu0 %3872
      %3876 = vset.pattern.permute.xlu0 0
      %3877 = vperm.xlu0 %3876, %v3823
      %v3878 = vpop.permute.xlu0 %3877
      %3881 = vset.pattern.permute.xlu0 0
      %3882 = vperm.xlu0 %3881, %v3824
      %v3883 = vpop.permute.xlu0 %3882
      %3886 = vset.pattern.permute.xlu0 0
      %3887 = vperm.xlu0 %3886, %v3825
      %v3888 = vpop.permute.xlu0 %3887
      %3891 = vset.pattern.permute.xlu0 0
      %3892 = vperm.xlu0 %3891, %v3826
      %v3893 = vpop.permute.xlu0 %3892
      %3896 = vset.pattern.permute.xlu0 0
      %3897 = vperm.xlu0 %3896, %v3827
      %v3898 = vpop.permute.xlu0 %3897
      %3901 = vset.pattern.permute.xlu0 0
      %3902 = vperm.xlu0 %3901, %v3828
      %v3903 = vpop.permute.xlu0 %3902
      %3906 = vset.pattern.permute.xlu0 0
      %3907 = vperm.xlu0 %3906, %v3829
      %v3908 = vpop.permute.xlu0 %3907
      %v3926 = vunpack.c.l.b16 %v3798
      %v3927 = vunpack.c.l.b16 %v3799
      %v3928 = vunpack.c.l.b16 %v3800
      %v3929 = vunpack.c.l.b16 %v3801
      %v3930 = vunpack.c.l.b16 %v3802
      %v3931 = vunpack.c.l.b16 %v3803
      %v3932 = vunpack.c.l.b16 %v3804
      %v3933 = vunpack.c.l.b16 %v3805
      %v3934 = vunpack.c.l.b16 %v3806
      %v3935 = vunpack.c.l.b16 %v3807
      %v3936 = vunpack.c.l.b16 %v3808
      %v3937 = vunpack.c.l.b16 %v3809
      %v3938 = vunpack.c.l.b16 %v3810
      %v3939 = vunpack.c.l.b16 %v3811
      %v3940 = vunpack.c.l.b16 %v3812
      %v3941 = vunpack.c.l.b16 %v3813
      %v3942 = vpack.c.b16 %v3927, %v3926
      %v3943 = vpack.c.b16 %v3929, %v3928
      %v3944 = vpack.c.b16 %v3931, %v3930
      %v3945 = vpack.c.b16 %v3933, %v3932
      %v3946 = vpack.c.b16 %v3935, %v3934
      %v3947 = vpack.c.b16 %v3937, %v3936
      %v3948 = vpack.c.b16 %v3939, %v3938
      %v3949 = vpack.c.b16 %v3941, %v3940
      %3958 = vmatprep.subr.bf16.mxu0 %v3775
      %3959 = vmatpush1.bf16.msra.mxu0 %v3774
      %3960 = vmatprep.subr.bf16.mxu0 %v3778
      %3961 = vmatpush1.bf16.msra.mxu0 %v3777
      %3962 = vmatprep.subr.bf16.mxu0 %v3781
      %3963 = vmatpush1.bf16.msra.mxu0 %v3780
      %3964 = vmatprep.subr.bf16.mxu0 %v3784
      %3965 = vmatpush1.bf16.msra.mxu0 %v3783
      %3966 = vmatprep.subr.bf16.mxu0 %v3787
      %3967 = vmatpush1.bf16.msra.mxu0 %v3786
      %3968 = vmatprep.subr.bf16.mxu0 %v3790
      %3969 = vmatpush1.bf16.msra.mxu0 %v3789
      %3970 = vmatprep.subr.bf16.mxu0 %v3793
      %3971 = vmatpush1.bf16.msra.mxu0 %v3792
      %3972 = vmatprep.subr.bf16.mxu0 %v3796
      %3973 = vmatpush1.bf16.msra.mxu0 %v3795
      %3974 = vmatprep.subr.bf16.mxu0 0
      %3975 = vmatpush1.bf16.msra.mxu0 0
      %3976 = vmatprep.subr.bf16.mxu0 0
      %3977 = vmatpush1.bf16.msra.mxu0 0
      %3978 = vmatprep.subr.bf16.mxu0 0
      %3979 = vmatpush1.bf16.msra.mxu0 0
      %3980 = vmatprep.subr.bf16.mxu0 0
      %3981 = vmatpush1.bf16.msra.mxu0 0
      %3982 = vmatprep.subr.bf16.mxu0 0
      %3983 = vmatpush1.bf16.msra.mxu0 0
      %3984 = vmatprep.subr.bf16.mxu0 0
      %3985 = vmatpush1.bf16.msra.mxu0 0
      %3986 = vmatprep.subr.bf16.mxu0 0
      %3987 = vmatpush1.bf16.msra.mxu0 0
      %3988 = vmatprep.subr.bf16.mxu0 0
      %3989 = vmatpush1.bf16.msra.mxu0 0
      %3990 = vmatprep.mubr.bf16.mxu0 0
      %3991 = vmatmul.mubr.bf16.gmra.mrb[0].mxu0 %v3942
      %v3992 = vpop.f32.mrb[0].mxu0
      %v3993 = vadd.f32 %v3833, %v3992
      %v3994 = vpop.f32.mrb[0].mxu0
      %v3995 = vadd.f32 %v3833, %v3994
      %v3996 = vpop.f32.mrb[0].mxu0
      %v3997 = vadd.f32 %v3838, %v3996
      %v3998 = vpop.f32.mrb[0].mxu0
      %v3999 = vadd.f32 %v3838, %v3998
      %4000 = vmatprep.mubr.bf16.mxu0 0
      %4001 = vmatmul.mubr.bf16.gmra.mrb[0].mxu0 %v3943
      %v4002 = vpop.f32.mrb[0].mxu0
      %v4003 = vadd.f32 %v3843, %v4002
      %v4004 = vpop.f32.mrb[0].mxu0
      %v4005 = vadd.f32 %v3843, %v4004
      %v4006 = vpop.f32.mrb[0].mxu0
      %v4007 = vadd.f32 %v3848, %v4006
      %v4008 = vpop.f32.mrb[0].mxu0
      %v4009 = vadd.f32 %v3848, %v4008
      %4010 = vmatprep.mubr.bf16.mxu0 0
      %4011 = vmatmul.mubr.bf16.gmra.mrb[0].mxu0 %v3944
      %v4012 = vpop.f32.mrb[0].mxu0
      %v4013 = vadd.f32 %v3853, %v4012
      %v4014 = vpop.f32.mrb[0].mxu0
      %v4015 = vadd.f32 %v3853, %v4014
      %v4016 = vpop.f32.mrb[0].mxu0
      %v4017 = vadd.f32 %v3858, %v4016
      %v4018 = vpop.f32.mrb[0].mxu0
      %v4019 = vadd.f32 %v3858, %v4018
      %4020 = vmatprep.mubr.bf16.mxu0 0
      %4021 = vmatmul.mubr.bf16.gmra.mrb[0].mxu0 %v3945
      %v4022 = vpop.f32.mrb[0].mxu0
      %v4023 = vadd.f32 %v3863, %v4022
      %v4024 = vpop.f32.mrb[0].mxu0
      %v4025 = vadd.f32 %v3863, %v4024
      %v4026 = vpop.f32.mrb[0].mxu0
      %v4027 = vadd.f32 %v3868, %v4026
      %v4028 = vpop.f32.mrb[0].mxu0
      %v4029 = vadd.f32 %v3868, %v4028
      %4030 = vmatprep.mubr.bf16.mxu0 0
      %4031 = vmatmul.mubr.bf16.gmra.mrb[0].mxu0 %v3946
      %v4032 = vpop.f32.mrb[0].mxu0
      %v4033 = vadd.f32 %v3873, %v4032
      %v4034 = vpop.f32.mrb[0].mxu0
      %v4035 = vadd.f32 %v3873, %v4034
      %v4036 = vpop.f32.mrb[0].mxu0
      %v4037 = vadd.f32 %v3878, %v4036
      %v4038 = vpop.f32.mrb[0].mxu0
      %v4039 = vadd.f32 %v3878, %v4038
      %4040 = vmatprep.mubr.bf16.mxu0 0
      %4041 = vmatmul.mubr.bf16.gmra.mrb[0].mxu0 %v3947
      %v4042 = vpop.f32.mrb[0].mxu0
      %v4043 = vadd.f32 %v3883, %v4042
      %v4044 = vpop.f32.mrb[0].mxu0
      %v4045 = vadd.f32 %v3883, %v4044
      %v4046 = vpop.f32.mrb[0].mxu0
      %v4047 = vadd.f32 %v3888, %v4046
      %v4048 = vpop.f32.mrb[0].mxu0
      %v4049 = vadd.f32 %v3888, %v4048
      %4050 = vmatprep.mubr.bf16.mxu0 0
      %4051 = vmatmul.mubr.bf16.gmra.mrb[0].mxu0 %v3948
      %v4052 = vpop.f32.mrb[0].mxu0
      %v4053 = vadd.f32 %v3893, %v4052
      %v4054 = vpop.f32.mrb[0].mxu0
      %v4055 = vadd.f32 %v3893, %v4054
      %v4056 = vpop.f32.mrb[0].mxu0
      %v4057 = vadd.f32 %v3898, %v4056
      %v4058 = vpop.f32.mrb[0].mxu0
      %v4059 = vadd.f32 %v3898, %v4058
      %4060 = vmatprep.mubr.bf16.mxu0 0
      %4061 = vmatmul.mubr.bf16.gmra.mrb[0].mxu0 %v3949
      %v4062 = vpop.f32.mrb[0].mxu0
      %v4063 = vadd.f32 %v3903, %v4062
      %v4064 = vpop.f32.mrb[0].mxu0
      %v4065 = vadd.f32 %v3903, %v4064
      %v4066 = vpop.f32.mrb[0].mxu0
      %v4067 = vadd.f32 %v3908, %v4066
      %v4068 = vpop.f32.mrb[0].mxu0
      %v4069 = vadd.f32 %v3908, %v4068
      %4070 = vdwg.mxu0
      %4071 = vmatprep.subr.bf16.mxu0 0
      %4072 = vmatpush1.bf16.msra.mxu0 %v3776
      %4073 = vmatprep.subr.bf16.mxu0 0
      %4074 = vmatpush1.bf16.msra.mxu0 %v3779
      %4075 = vmatprep.subr.bf16.mxu0 0
      %4076 = vmatpush1.bf16.msra.mxu0 %v3782
      %4077 = vmatprep.subr.bf16.mxu0 0
      %4078 = vmatpush1.bf16.msra.mxu0 %v3785
      %4079 = vmatprep.subr.bf16.mxu0 0
      %4080 = vmatpush1.bf16.msra.mxu0 %v3788
      %4081 = vmatprep.subr.bf16.mxu0 0
      %4082 = vmatpush1.bf16.msra.mxu0 %v3791
      %4083 = vmatprep.subr.bf16.mxu0 0
      %4084 = vmatpush1.bf16.msra.mxu0 %v3794
      %4085 = vmatprep.subr.bf16.mxu0 0
      %4086 = vmatpush1.bf16.msra.mxu0 %v3797
      %4087 = vmatprep.subr.bf16.mxu0 0
      %4088 = vmatpush1.bf16.msra.mxu0 0
      %4089 = vmatprep.subr.bf16.mxu0 0
      %4090 = vmatpush1.bf16.msra.mxu0 0
      %4091 = vmatprep.subr.bf16.mxu0 0
      %4092 = vmatpush1.bf16.msra.mxu0 0
      %4093 = vmatprep.subr.bf16.mxu0 0
      %4094 = vmatpush1.bf16.msra.mxu0 0
      %4095 = vmatprep.subr.bf16.mxu0 0
      %4096 = vmatpush1.bf16.msra.mxu0 0
      %4097 = vmatprep.subr.bf16.mxu0 0
      %4098 = vmatpush1.bf16.msra.mxu0 0
      %4099 = vmatprep.subr.bf16.mxu0 0
      %4100 = vmatpush1.bf16.msra.mxu0 0
      %4101 = vmatprep.subr.bf16.mxu0 0
      %4102 = vmatpush1.bf16.msra.mxu0 0
      %4103 = vmatprep.mubr.bf16.mxu0 0
      %4104 = vmatmul.mubr.bf16.gmra.mrb[0].mxu0 %v3942
      %v4105 = vpop.f32.mrb[0].mxu0
      %v4106 = vadd.f32 %v3833, %v4105
      %v4107 = vpop.f32.mrb[0].mxu0
      %v4108 = vpop.f32.mrb[0].mxu0
      %v4109 = vadd.f32 %v3838, %v4108
      %v4110 = vpop.f32.mrb[0].mxu0
      %4111 = vmatprep.mubr.bf16.mxu0 0
      %4112 = vmatmul.mubr.bf16.gmra.mrb[0].mxu0 %v3943
      %v4113 = vpop.f32.mrb[0].mxu0
      %v4114 = vadd.f32 %v3843, %v4113
      %v4115 = vpop.f32.mrb[0].mxu0
      %v4116 = vpop.f32.mrb[0].mxu0
      %v4117 = vadd.f32 %v3848, %v4116
      %v4118 = vpop.f32.mrb[0].mxu0
      %4119 = vmatprep.mubr.bf16.mxu0 0
      %4120 = vmatmul.mubr.bf16.gmra.mrb[0].mxu0 %v3944
      %v4121 = vpop.f32.mrb[0].mxu0
      %v4122 = vadd.f32 %v3853, %v4121
      %v4123 = vpop.f32.mrb[0].mxu0
      %v4124 = vpop.f32.mrb[0].mxu0
      %v4125 = vadd.f32 %v3858, %v4124
      %v4126 = vpop.f32.mrb[0].mxu0
      %4127 = vmatprep.mubr.bf16.mxu0 0
      %4128 = vmatmul.mubr.bf16.gmra.mrb[0].mxu0 %v3945
      %v4129 = vpop.f32.mrb[0].mxu0
      %v4130 = vadd.f32 %v3863, %v4129
      %v4131 = vpop.f32.mrb[0].mxu0
      %v4132 = vpop.f32.mrb[0].mxu0
      %v4133 = vadd.f32 %v3868, %v4132
      %v4134 = vpop.f32.mrb[0].mxu0
      %4135 = vmatprep.mubr.bf16.mxu0 0
      %4136 = vmatmul.mubr.bf16.gmra.mrb[0].mxu0 %v3946
      %v4137 = vpop.f32.mrb[0].mxu0
      %v4138 = vadd.f32 %v3873, %v4137
      %v4139 = vpop.f32.mrb[0].mxu0
      %v4140 = vpop.f32.mrb[0].mxu0
      %v4141 = vadd.f32 %v3878, %v4140
      %v4142 = vpop.f32.mrb[0].mxu0
      %4143 = vmatprep.mubr.bf16.mxu0 0
      %4144 = vmatmul.mubr.bf16.gmra.mrb[0].mxu0 %v3947
      %v4145 = vpop.f32.mrb[0].mxu0
      %v4146 = vadd.f32 %v3883, %v4145
      %v4147 = vpop.f32.mrb[0].mxu0
      %v4148 = vpop.f32.mrb[0].mxu0
      %v4149 = vadd.f32 %v3888, %v4148
      %v4150 = vpop.f32.mrb[0].mxu0
      %4151 = vmatprep.mubr.bf16.mxu0 0
      %4152 = vmatmul.mubr.bf16.gmra.mrb[0].mxu0 %v3948
      %v4153 = vpop.f32.mrb[0].mxu0
      %v4154 = vadd.f32 %v3893, %v4153
      %v4155 = vpop.f32.mrb[0].mxu0
      %v4156 = vpop.f32.mrb[0].mxu0
      %v4157 = vadd.f32 %v3898, %v4156
      %v4158 = vpop.f32.mrb[0].mxu0
      %4159 = vmatprep.mubr.bf16.mxu0 0
      %4160 = vmatmul.mubr.bf16.gmra.mrb[0].mxu0 %v3949
      %v4161 = vpop.f32.mrb[0].mxu0
      %v4162 = vadd.f32 %v3903, %v4161
      %v4163 = vpop.f32.mrb[0].mxu0
      %v4164 = vpop.f32.mrb[0].mxu0
      %v4165 = vadd.f32 %v3908, %v4164
      %v4166 = vpop.f32.mrb[0].mxu0
      %4167 = vdwg.mxu0
      %v4168 = vmax.f32 %v3993, 0.0
      %v4169 = vmax.f32 %v3995, 0.0
      %v4170 = vmax.f32 %v4106, 0.0
      %v4171 = vmax.f32 %v3997, 0.0
      %v4172 = vmax.f32 %v3999, 0.0
      %v4173 = vmax.f32 %v4109, 0.0
      %v4174 = vmax.f32 %v4003, 0.0
      %v4175 = vmax.f32 %v4005, 0.0
      %v4176 = vmax.f32 %v4114, 0.0
      %v4177 = vmax.f32 %v4007, 0.0
      %v4178 = vmax.f32 %v4009, 0.0
      %v4179 = vmax.f32 %v4117, 0.0
      %v4180 = vmax.f32 %v4013, 0.0
      %v4181 = vmax.f32 %v4015, 0.0
      %v4182 = vmax.f32 %v4122, 0.0
      %v4183 = vmax.f32 %v4017, 0.0
      %v4184 = vmax.f32 %v4019, 0.0
      %v4185 = vmax.f32 %v4125, 0.0
      %v4186 = vmax.f32 %v4023, 0.0
      %v4187 = vmax.f32 %v4025, 0.0
      %v4188 = vmax.f32 %v4130, 0.0
      %v4189 = vmax.f32 %v4027, 0.0
      %v4190 = vmax.f32 %v4029, 0.0
      %v4191 = vmax.f32 %v4133, 0.0
      %v4192 = vmax.f32 %v4033, 0.0
      %v4193 = vmax.f32 %v4035, 0.0
      %v4194 = vmax.f32 %v4138, 0.0
      %v4195 = vmax.f32 %v4037, 0.0
      %v4196 = vmax.f32 %v4039, 0.0
      %v4197 = vmax.f32 %v4141, 0.0
      %v4198 = vmax.f32 %v4043, 0.0
      %v4199 = vmax.f32 %v4045, 0.0
      %v4200 = vmax.f32 %v4146, 0.0
      %v4201 = vmax.f32 %v4047, 0.0
      %v4202 = vmax.f32 %v4049, 0.0
      %v4203 = vmax.f32 %v4149, 0.0
      %v4204 = vmax.f32 %v4053, 0.0
      %v4205 = vmax.f32 %v4055, 0.0
      %v4206 = vmax.f32 %v4154, 0.0
      %v4207 = vmax.f32 %v4057, 0.0
      %v4208 = vmax.f32 %v4059, 0.0
      %v4209 = vmax.f32 %v4157, 0.0
      %v4210 = vmax.f32 %v4063, 0.0
      %v4211 = vmax.f32 %v4065, 0.0
      %v4212 = vmax.f32 %v4162, 0.0
      %v4213 = vmax.f32 %v4067, 0.0
      %v4214 = vmax.f32 %v4069, 0.0
      %v4215 = vmax.f32 %v4165, 0.0
      %v4216 = vpack.c.bf16 %v4171, %v4168
      %v4217 = vpack.c.bf16 %v4172, %v4169
      %v4218 = vpack.c.bf16 %v4173, %v4170
      %v4219 = vpack.c.bf16 %v4177, %v4174
      %v4220 = vpack.c.bf16 %v4178, %v4175
      %v4221 = vpack.c.bf16 %v4179, %v4176
      %v4222 = vpack.c.bf16 %v4183, %v4180
      %v4223 = vpack.c.bf16 %v4184, %v4181
      %v4224 = vpack.c.bf16 %v4185, %v4182
      %v4225 = vpack.c.bf16 %v4189, %v4186
      %v4226 = vpack.c.bf16 %v4190, %v4187
      %v4227 = vpack.c.bf16 %v4191, %v4188
      %v4228 = vpack.c.bf16 %v4195, %v4192
      %v4229 = vpack.c.bf16 %v4196, %v4193
      %v4230 = vpack.c.bf16 %v4197, %v4194
      %v4231 = vpack.c.bf16 %v4201, %v4198
      %v4232 = vpack.c.bf16 %v4202, %v4199
      %v4233 = vpack.c.bf16 %v4203, %v4200
      %v4234 = vpack.c.bf16 %v4207, %v4204
      %v4235 = vpack.c.bf16 %v4208, %v4205
      %v4236 = vpack.c.bf16 %v4209, %v4206
      %v4237 = vpack.c.bf16 %v4213, %v4210
      %v4238 = vpack.c.bf16 %v4214, %v4211
      %v4239 = vpack.c.bf16 %v4215, %v4212
      %v4240 = vld [vmem:[%s935] sm:$0xf]
      %v4241 = vld [vmem:[%s935 + $0x4] sm:$0xf]
      %v4242 = vld [vmem:[%s935 + $0x8] sm:$0xf]
      %v4243 = vld [vmem:[%s935 + $0xc] sm:$0xf]
      %v4244 = vld [vmem:[%s935 + $0x10] sm:$0xf]
      %v4245 = vld [vmem:[%s935 + $0x14] sm:$0xf]
      %v4246 = vld [vmem:[%s935 + $0x18] sm:$0xf]
      %v4247 = vld [vmem:[%s935 + $0x1c] sm:$0xf]
      %v4248 = vld [vmem:[%s935 + $0x20] sm:$0xf]
      %v4249 = vld [vmem:[%s935 + $0x24] sm:$0xf]
      %v4250 = vld [vmem:[%s935 + $0x28] sm:$0xf]
      %v4251 = vld [vmem:[%s935 + $0x2c] sm:$0xf]
      %v4252 = vld [vmem:[%s935 + $0x30] sm:$0xf]
      %v4253 = vld [vmem:[%s935 + $0x34] sm:$0xf]
      %v4254 = vld [vmem:[%s935 + $0x38] sm:$0xf]
      %v4255 = vld [vmem:[%s935 + $0x3c] sm:$0xf]
      %v4256 = vld [vmem:[%s935 + $0x40] sm:$0xf]
      %v4257 = vld [vmem:[%s935 + $0x44] sm:$0xf]
      %v4258 = vld [vmem:[%s935 + $0x48] sm:$0xf]
      %v4259 = vld [vmem:[%s935 + $0x4c] sm:$0xf]
      %v4260 = vld [vmem:[%s935 + $0x50] sm:$0xf]
      %v4261 = vld [vmem:[%s935 + $0x54] sm:$0xf]
      %v4262 = vld [vmem:[%s935 + $0x58] sm:$0xf]
      %v4263 = vld [vmem:[%s935 + $0x5c] sm:$0xf]
      %v4264 = vld [vmem:[%s935 + $0x60] sm:$0xf]
      %v4265 = vld [vmem:[%s935 + $0x64] sm:$0xf]
      %v4266 = vld [vmem:[%s935 + $0x68] sm:$0xf]
      %v4267 = vld [vmem:[%s935 + $0x6c] sm:$0xf]
      %v4268 = vld [vmem:[%s935 + $0x70] sm:$0xf]
      %v4269 = vld [vmem:[%s935 + $0x74] sm:$0xf]
      %v4270 = vld [vmem:[%s935 + $0x78] sm:$0xf]
      %v4271 = vld [vmem:[%s935 + $0x7c] sm:$0xf]
      %v4272 = vld [vmem:[%s940] sm:$0xff]
      %v4273 = vld [vmem:[%s940 + $0x8] sm:$0xff]
      %v4274 = vld [vmem:[%s940 + $0x10] sm:$0xff]
      %v4275 = vld [vmem:[%s940 + $0x18] sm:$0xff]
      %v4276 = vld [vmem:[%s940 + $0x20] sm:$0xff]
      %v4277 = vld [vmem:[%s940 + $0x28] sm:$0xff]
      %v4278 = vld [vmem:[%s940 + $0x30] sm:$0xff]
      %v4279 = vld [vmem:[%s940 + $0x38] sm:$0xff]
      %v4280 = vld [vmem:[%s940 + $0x40] sm:$0xff]
      %v4281 = vld [vmem:[%s940 + $0x48] sm:$0xff]
      %v4282 = vld [vmem:[%s940 + $0x50] sm:$0xff]
      %v4283 = vld [vmem:[%s940 + $0x58] sm:$0xff]
      %v4284 = vld [vmem:[%s940 + $0x60] sm:$0xff]
      %v4285 = vld [vmem:[%s940 + $0x68] sm:$0xff]
      %v4286 = vld [vmem:[%s940 + $0x70] sm:$0xff]
      %v4287 = vld [vmem:[%s940 + $0x78] sm:$0xff]
      %v4288 = vld [vmem:[%s940 + $0x80] sm:$0xff]
      %v4289 = vld [vmem:[%s940 + $0x88] sm:$0xff]
      %v4290 = vld [vmem:[%s940 + $0x90] sm:$0xff]
      %v4291 = vld [vmem:[%s940 + $0x98] sm:$0xff]
      %v4292 = vld [vmem:[%s940 + $0xa0] sm:$0xff]
      %v4293 = vld [vmem:[%s940 + $0xa8] sm:$0xff]
      %v4294 = vld [vmem:[%s940 + $0xb0] sm:$0xff]
      %v4295 = vld [vmem:[%s940 + $0xb8] sm:$0xff]
      %v4296 = vld [vmem:[%s940 + $0xc0] sm:$0xff]
      %v4297 = vld [vmem:[%s940 + $0xc8] sm:$0xff]
      %v4298 = vld [vmem:[%s940 + $0xd0] sm:$0xff]
      %v4299 = vld [vmem:[%s940 + $0xd8] sm:$0xff]
      %v4300 = vld [vmem:[%s940 + $0xe0] sm:$0xff]
      %v4301 = vld [vmem:[%s940 + $0xe8] sm:$0xff]
      %v4302 = vld [vmem:[%s940 + $0xf0] sm:$0xff]
      %v4303 = vld [vmem:[%s940 + $0xf8] sm:$0xff]
      %4305 = vset.pattern.permute.xlu0 0
      %4306 = vperm.xlu0 %4305, %v4272
      %v4307 = vpop.permute.xlu0 %4306
      %4310 = vset.pattern.permute.xlu0 0
      %4311 = vperm.xlu0 %4310, %v4273
      %v4312 = vpop.permute.xlu0 %4311
      %4315 = vset.pattern.permute.xlu0 0
      %4316 = vperm.xlu0 %4315, %v4274
      %v4317 = vpop.permute.xlu0 %4316
      %4320 = vset.pattern.permute.xlu0 0
      %4321 = vperm.xlu0 %4320, %v4275
      %v4322 = vpop.permute.xlu0 %4321
      %4325 = vset.pattern.permute.xlu0 0
      %4326 = vperm.xlu0 %4325, %v4276
      %v4327 = vpop.permute.xlu0 %4326
      %4330 = vset.pattern.permute.xlu0 0
      %4331 = vperm.xlu0 %4330, %v4277
      %v4332 = vpop.permute.xlu0 %4331
      %4335 = vset.pattern.permute.xlu0 0
      %4336 = vperm.xlu0 %4335, %v4278
      %v4337 = vpop.permute.xlu0 %4336
      %4340 = vset.pattern.permute.xlu0 0
      %4341 = vperm.xlu0 %4340, %v4279
      %v4342 = vpop.permute.xlu0 %4341
      %4345 = vset.pattern.permute.xlu0 0
      %4346 = vperm.xlu0 %4345, %v4280
      %v4347 = vpop.permute.xlu0 %4346
      %4350 = vset.pattern.permute.xlu0 0
      %4351 = vperm.xlu0 %4350, %v4281
      %v4352 = vpop.permute.xlu0 %4351
      %4355 = vset.pattern.permute.xlu0 0
      %4356 = vperm.xlu0 %4355, %v4282
      %v4357 = vpop.permute.xlu0 %4356
      %4360 = vset.pattern.permute.xlu0 0
      %4361 = vperm.xlu0 %4360, %v4283
      %v4362 = vpop.permute.xlu0 %4361
      %4365 = vset.pattern.permute.xlu0 0
      %4366 = vperm.xlu0 %4365, %v4284
      %v4367 = vpop.permute.xlu0 %4366
      %4370 = vset.pattern.permute.xlu0 0
      %4371 = vperm.xlu0 %4370, %v4285
      %v4372 = vpop.permute.xlu0 %4371
      %4375 = vset.pattern.permute.xlu0 0
      %4376 = vperm.xlu0 %4375, %v4286
      %v4377 = vpop.permute.xlu0 %4376
      %4380 = vset.pattern.permute.xlu0 0
      %4381 = vperm.xlu0 %4380, %v4287
      %v4382 = vpop.permute.xlu0 %4381
      %4385 = vset.pattern.permute.xlu0 0
      %4386 = vperm.xlu0 %4385, %v4288
      %v4387 = vpop.permute.xlu0 %4386
      %4390 = vset.pattern.permute.xlu0 0
      %4391 = vperm.xlu0 %4390, %v4289
      %v4392 = vpop.permute.xlu0 %4391
      %4395 = vset.pattern.permute.xlu0 0
      %4396 = vperm.xlu0 %4395, %v4290
      %v4397 = vpop.permute.xlu0 %4396
      %4400 = vset.pattern.permute.xlu0 0
      %4401 = vperm.xlu0 %4400, %v4291
      %v4402 = vpop.permute.xlu0 %4401
      %4405 = vset.pattern.permute.xlu0 0
      %4406 = vperm.xlu0 %4405, %v4292
      %v4407 = vpop.permute.xlu0 %4406
      %4410 = vset.pattern.permute.xlu0 0
      %4411 = vperm.xlu0 %4410, %v4293
      %v4412 = vpop.permute.xlu0 %4411
      %4415 = vset.pattern.permute.xlu0 0
      %4416 = vperm.xlu0 %4415, %v4294
      %v4417 = vpop.permute.xlu0 %4416
      %4420 = vset.pattern.permute.xlu0 0
      %4421 = vperm.xlu0 %4420, %v4295
      %v4422 = vpop.permute.xlu0 %4421
      %4425 = vset.pattern.permute.xlu0 0
      %4426 = vperm.xlu0 %4425, %v4296
      %v4427 = vpop.permute.xlu0 %4426
      %4430 = vset.pattern.permute.xlu0 0
      %4431 = vperm.xlu0 %4430, %v4297
      %v4432 = vpop.permute.xlu0 %4431
      %4435 = vset.pattern.permute.xlu0 0
      %4436 = vperm.xlu0 %4435, %v4298
      %v4437 = vpop.permute.xlu0 %4436
      %4440 = vset.pattern.permute.xlu0 0
      %4441 = vperm.xlu0 %4440, %v4299
      %v4442 = vpop.permute.xlu0 %4441
      %4445 = vset.pattern.permute.xlu0 0
      %4446 = vperm.xlu0 %4445, %v4300
      %v4447 = vpop.permute.xlu0 %4446
      %4450 = vset.pattern.permute.xlu0 0
      %4451 = vperm.xlu0 %4450, %v4301
      %v4452 = vpop.permute.xlu0 %4451
      %4455 = vset.pattern.permute.xlu0 0
      %4456 = vperm.xlu0 %4455, %v4302
      %v4457 = vpop.permute.xlu0 %4456
      %4460 = vset.pattern.permute.xlu0 0
      %4461 = vperm.xlu0 %4460, %v4303
      %v4462 = vpop.permute.xlu0 %4461
      %v4496 = vunpack.c.l.b16 %v4240
      %v4497 = vunpack.c.l.b16 %v4241
      %v4498 = vunpack.c.l.b16 %v4242
      %v4499 = vunpack.c.l.b16 %v4243
      %v4500 = vunpack.c.l.b16 %v4244
      %v4501 = vunpack.c.l.b16 %v4245
      %v4502 = vunpack.c.l.b16 %v4246
      %v4503 = vunpack.c.l.b16 %v4247
      %v4504 = vunpack.c.l.b16 %v4248
      %v4505 = vunpack.c.l.b16 %v4249
      %v4506 = vunpack.c.l.b16 %v4250
      %v4507 = vunpack.c.l.b16 %v4251
      %v4508 = vunpack.c.l.b16 %v4252
      %v4509 = vunpack.c.l.b16 %v4253
      %v4510 = vunpack.c.l.b16 %v4254
      %v4511 = vunpack.c.l.b16 %v4255
      %v4512 = vunpack.c.l.b16 %v4256
      %v4513 = vunpack.c.l.b16 %v4257
      %v4514 = vunpack.c.l.b16 %v4258
      %v4515 = vunpack.c.l.b16 %v4259
      %v4516 = vunpack.c.l.b16 %v4260
      %v4517 = vunpack.c.l.b16 %v4261
      %v4518 = vunpack.c.l.b16 %v4262
      %v4519 = vunpack.c.l.b16 %v4263
      %v4520 = vunpack.c.l.b16 %v4264
      %v4521 = vunpack.c.l.b16 %v4265
      %v4522 = vunpack.c.l.b16 %v4266
      %v4523 = vunpack.c.l.b16 %v4267
      %v4524 = vunpack.c.l.b16 %v4268
      %v4525 = vunpack.c.l.b16 %v4269
      %v4526 = vunpack.c.l.b16 %v4270
      %v4527 = vunpack.c.l.b16 %v4271
      %v4528 = vpack.c.b16 %v4497, %v4496
      %v4529 = vpack.c.b16 %v4499, %v4498
      %v4530 = vpack.c.b16 %v4501, %v4500
      %v4531 = vpack.c.b16 %v4503, %v4502
      %v4532 = vpack.c.b16 %v4505, %v4504
      %v4533 = vpack.c.b16 %v4507, %v4506
      %v4534 = vpack.c.b16 %v4509, %v4508
      %v4535 = vpack.c.b16 %v4511, %v4510
      %v4536 = vpack.c.b16 %v4513, %v4512
      %v4537 = vpack.c.b16 %v4515, %v4514
      %v4538 = vpack.c.b16 %v4517, %v4516
      %v4539 = vpack.c.b16 %v4519, %v4518
      %v4540 = vpack.c.b16 %v4521, %v4520
      %v4541 = vpack.c.b16 %v4523, %v4522
      %v4542 = vpack.c.b16 %v4525, %v4524
      %v4543 = vpack.c.b16 %v4527, %v4526
      %4560 = vmatprep.subr.bf16.mxu0 %v4217
      %4561 = vmatpush1.bf16.msra.mxu0 %v4216
      %4562 = vmatprep.subr.bf16.mxu0 %v4220
      %4563 = vmatpush1.bf16.msra.mxu0 %v4219
      %4564 = vmatprep.subr.bf16.mxu0 %v4223
      %4565 = vmatpush1.bf16.msra.mxu0 %v4222
      %4566 = vmatprep.subr.bf16.mxu0 %v4226
      %4567 = vmatpush1.bf16.msra.mxu0 %v4225
      %4568 = vmatprep.subr.bf16.mxu0 %v4229
      %4569 = vmatpush1.bf16.msra.mxu0 %v4228
      %4570 = vmatprep.subr.bf16.mxu0 %v4232
      %4571 = vmatpush1.bf16.msra.mxu0 %v4231
      %4572 = vmatprep.subr.bf16.mxu0 %v4235
      %4573 = vmatpush1.bf16.msra.mxu0 %v4234
      %4574 = vmatprep.subr.bf16.mxu0 %v4238
      %4575 = vmatpush1.bf16.msra.mxu0 %v4237
      %4576 = vmatprep.subr.bf16.mxu0 0
      %4577 = vmatpush1.bf16.msra.mxu0 0
      %4578 = vmatprep.subr.bf16.mxu0 0
      %4579 = vmatpush1.bf16.msra.mxu0 0
      %4580 = vmatprep.subr.bf16.mxu0 0
      %4581 = vmatpush1.bf16.msra.mxu0 0
      %4582 = vmatprep.subr.bf16.mxu0 0
      %4583 = vmatpush1.bf16.msra.mxu0 0
      %4584 = vmatprep.subr.bf16.mxu0 0
      %4585 = vmatpush1.bf16.msra.mxu0 0
      %4586 = vmatprep.subr.bf16.mxu0 0
      %4587 = vmatpush1.bf16.msra.mxu0 0
      %4588 = vmatprep.subr.bf16.mxu0 0
      %4589 = vmatpush1.bf16.msra.mxu0 0
      %4590 = vmatprep.subr.bf16.mxu0 0
      %4591 = vmatpush1.bf16.msra.mxu0 0
      %4592 = vmatprep.mubr.bf16.mxu0 0
      %4593 = vmatmul.mubr.bf16.gmra.mrb[0].mxu0 %v4528
      %v4594 = vpop.f32.mrb[0].mxu0
      %v4595 = vadd.f32 %v4307, %v4594
      %v4596 = vpop.f32.mrb[0].mxu0
      %v4597 = vadd.f32 %v4307, %v4596
      %v4598 = vpop.f32.mrb[0].mxu0
      %v4599 = vadd.f32 %v4312, %v4598
      %v4600 = vpop.f32.mrb[0].mxu0
      %v4601 = vadd.f32 %v4312, %v4600
      %4602 = vmatprep.mubr.bf16.mxu0 0
      %4603 = vmatmul.mubr.bf16.gmra.mrb[0].mxu0 %v4529
      %v4604 = vpop.f32.mrb[0].mxu0
      %v4605 = vadd.f32 %v4317, %v4604
      %v4606 = vpop.f32.mrb[0].mxu0
      %v4607 = vadd.f32 %v4317, %v4606
      %v4608 = vpop.f32.mrb[0].mxu0
      %v4609 = vadd.f32 %v4322, %v4608
      %v4610 = vpop.f32.mrb[0].mxu0
      %v4611 = vadd.f32 %v4322, %v4610
      %4612 = vmatprep.mubr.bf16.mxu0 0
      %4613 = vmatmul.mubr.bf16.gmra.mrb[0].mxu0 %v4530
      %v4614 = vpop.f32.mrb[0].mxu0
      %v4615 = vadd.f32 %v4327, %v4614
      %v4616 = vpop.f32.mrb[0].mxu0
      %v4617 = vadd.f32 %v4327, %v4616
      %v4618 = vpop.f32.mrb[0].mxu0
      %v4619 = vadd.f32 %v4332, %v4618
      %v4620 = vpop.f32.mrb[0].mxu0
      %v4621 = vadd.f32 %v4332, %v4620
      %4622 = vmatprep.mubr.bf16.mxu0 0
      %4623 = vmatmul.mubr.bf16.gmra.mrb[0].mxu0 %v4531
      %v4624 = vpop.f32.mrb[0].mxu0
      %v4625 = vadd.f32 %v4337, %v4624
      %v4626 = vpop.f32.mrb[0].mxu0
      %v4627 = vadd.f32 %v4337, %v4626
      %v4628 = vpop.f32.mrb[0].mxu0
      %v4629 = vadd.f32 %v4342, %v4628
      %v4630 = vpop.f32.mrb[0].mxu0
      %v4631 = vadd.f32 %v4342, %v4630
      %4632 = vmatprep.mubr.bf16.mxu0 0
      %4633 = vmatmul.mubr.bf16.gmra.mrb[0].mxu0 %v4532
      %v4634 = vpop.f32.mrb[0].mxu0
      %v4635 = vadd.f32 %v4347, %v4634
      %v4636 = vpop.f32.mrb[0].mxu0
      %v4637 = vadd.f32 %v4347, %v4636
      %v4638 = vpop.f32.mrb[0].mxu0
      %v4639 = vadd.f32 %v4352, %v4638
      %v4640 = vpop.f32.mrb[0].mxu0
      %v4641 = vadd.f32 %v4352, %v4640
      %4642 = vmatprep.mubr.bf16.mxu0 0
      %4643 = vmatmul.mubr.bf16.gmra.mrb[0].mxu0 %v4533
      %v4644 = vpop.f32.mrb[0].mxu0
      %v4645 = vadd.f32 %v4357, %v4644
      %v4646 = vpop.f32.mrb[0].mxu0
      %v4647 = vadd.f32 %v4357, %v4646
      %v4648 = vpop.f32.mrb[0].mxu0
      %v4649 = vadd.f32 %v4362, %v4648
      %v4650 = vpop.f32.mrb[0].mxu0
      %v4651 = vadd.f32 %v4362, %v4650
      %4652 = vmatprep.mubr.bf16.mxu0 0
      %4653 = vmatmul.mubr.bf16.gmra.mrb[0].mxu0 %v4534
      %v4654 = vpop.f32.mrb[0].mxu0
      %v4655 = vadd.f32 %v4367, %v4654
      %v4656 = vpop.f32.mrb[0].mxu0
      %v4657 = vadd.f32 %v4367, %v4656
      %v4658 = vpop.f32.mrb[0].mxu0
      %v4659 = vadd.f32 %v4372, %v4658
      %v4660 = vpop.f32.mrb[0].mxu0
      %v4661 = vadd.f32 %v4372, %v4660
      %4662 = vmatprep.mubr.bf16.mxu0 0
      %4663 = vmatmul.mubr.bf16.gmra.mrb[0].mxu0 %v4535
      %v4664 = vpop.f32.mrb[0].mxu0
      %v4665 = vadd.f32 %v4377, %v4664
      %v4666 = vpop.f32.mrb[0].mxu0
      %v4667 = vadd.f32 %v4377, %v4666
      %v4668 = vpop.f32.mrb[0].mxu0
      %v4669 = vadd.f32 %v4382, %v4668
      %v4670 = vpop.f32.mrb[0].mxu0
      %v4671 = vadd.f32 %v4382, %v4670
      %4672 = vmatprep.mubr.bf16.mxu0 0
      %4673 = vmatmul.mubr.bf16.gmra.mrb[0].mxu0 %v4536
      %v4674 = vpop.f32.mrb[0].mxu0
      %v4675 = vadd.f32 %v4387, %v4674
      %v4676 = vpop.f32.mrb[0].mxu0
      %v4677 = vadd.f32 %v4387, %v4676
      %v4678 = vpop.f32.mrb[0].mxu0
      %v4679 = vadd.f32 %v4392, %v4678
      %v4680 = vpop.f32.mrb[0].mxu0
      %v4681 = vadd.f32 %v4392, %v4680
      %4682 = vmatprep.mubr.bf16.mxu0 0
      %4683 = vmatmul.mubr.bf16.gmra.mrb[0].mxu0 %v4537
      %v4684 = vpop.f32.mrb[0].mxu0
      %v4685 = vadd.f32 %v4397, %v4684
      %v4686 = vpop.f32.mrb[0].mxu0
      %v4687 = vadd.f32 %v4397, %v4686
      %v4688 = vpop.f32.mrb[0].mxu0
      %v4689 = vadd.f32 %v4402, %v4688
      %v4690 = vpop.f32.mrb[0].mxu0
      %v4691 = vadd.f32 %v4402, %v4690
      %4692 = vmatprep.mubr.bf16.mxu0 0
      %4693 = vmatmul.mubr.bf16.gmra.mrb[0].mxu0 %v4538
      %v4694 = vpop.f32.mrb[0].mxu0
      %v4695 = vadd.f32 %v4407, %v4694
      %v4696 = vpop.f32.mrb[0].mxu0
      %v4697 = vadd.f32 %v4407, %v4696
      %v4698 = vpop.f32.mrb[0].mxu0
      %v4699 = vadd.f32 %v4412, %v4698
      %v4700 = vpop.f32.mrb[0].mxu0
      %v4701 = vadd.f32 %v4412, %v4700
      %4702 = vmatprep.mubr.bf16.mxu0 0
      %4703 = vmatmul.mubr.bf16.gmra.mrb[0].mxu0 %v4539
      %v4704 = vpop.f32.mrb[0].mxu0
      %v4705 = vadd.f32 %v4417, %v4704
      %v4706 = vpop.f32.mrb[0].mxu0
      %v4707 = vadd.f32 %v4417, %v4706
      %v4708 = vpop.f32.mrb[0].mxu0
      %v4709 = vadd.f32 %v4422, %v4708
      %v4710 = vpop.f32.mrb[0].mxu0
      %v4711 = vadd.f32 %v4422, %v4710
      %4712 = vmatprep.mubr.bf16.mxu0 0
      %4713 = vmatmul.mubr.bf16.gmra.mrb[0].mxu0 %v4540
      %v4714 = vpop.f32.mrb[0].mxu0
      %v4715 = vadd.f32 %v4427, %v4714
      %v4716 = vpop.f32.mrb[0].mxu0
      %v4717 = vadd.f32 %v4427, %v4716
      %v4718 = vpop.f32.mrb[0].mxu0
      %v4719 = vadd.f32 %v4432, %v4718
      %v4720 = vpop.f32.mrb[0].mxu0
      %v4721 = vadd.f32 %v4432, %v4720
      %4722 = vmatprep.mubr.bf16.mxu0 0
      %4723 = vmatmul.mubr.bf16.gmra.mrb[0].mxu0 %v4541
      %v4724 = vpop.f32.mrb[0].mxu0
      %v4725 = vadd.f32 %v4437, %v4724
      %v4726 = vpop.f32.mrb[0].mxu0
      %v4727 = vadd.f32 %v4437, %v4726
      %v4728 = vpop.f32.mrb[0].mxu0
      %v4729 = vadd.f32 %v4442, %v4728
      %v4730 = vpop.f32.mrb[0].mxu0
      %v4731 = vadd.f32 %v4442, %v4730
      %4732 = vmatprep.mubr.bf16.mxu0 0
      %4733 = vmatmul.mubr.bf16.gmra.mrb[0].mxu0 %v4542
      %v4734 = vpop.f32.mrb[0].mxu0
      %v4735 = vadd.f32 %v4447, %v4734
      %v4736 = vpop.f32.mrb[0].mxu0
      %v4737 = vadd.f32 %v4447, %v4736
      %v4738 = vpop.f32.mrb[0].mxu0
      %v4739 = vadd.f32 %v4452, %v4738
      %v4740 = vpop.f32.mrb[0].mxu0
      %v4741 = vadd.f32 %v4452, %v4740
      %4742 = vmatprep.mubr.bf16.mxu0 0
      %4743 = vmatmul.mubr.bf16.gmra.mrb[0].mxu0 %v4543
      %v4744 = vpop.f32.mrb[0].mxu0
      %v4745 = vadd.f32 %v4457, %v4744
      %v4746 = vpop.f32.mrb[0].mxu0
      %v4747 = vadd.f32 %v4457, %v4746
      %v4748 = vpop.f32.mrb[0].mxu0
      %v4749 = vadd.f32 %v4462, %v4748
      %v4750 = vpop.f32.mrb[0].mxu0
      %v4751 = vadd.f32 %v4462, %v4750
      %4752 = vdwg.mxu0
      %4753 = vmatprep.subr.bf16.mxu0 0
      %4754 = vmatpush1.bf16.msra.mxu0 %v4218
      %4755 = vmatprep.subr.bf16.mxu0 0
      %4756 = vmatpush1.bf16.msra.mxu0 %v4221
      %4757 = vmatprep.subr.bf16.mxu0 0
      %4758 = vmatpush1.bf16.msra.mxu0 %v4224
      %4759 = vmatprep.subr.bf16.mxu0 0
      %4760 = vmatpush1.bf16.msra.mxu0 %v4227
      %4761 = vmatprep.subr.bf16.mxu0 0
      %4762 = vmatpush1.bf16.msra.mxu0 %v4230
      %4763 = vmatprep.subr.bf16.mxu0 0
      %4764 = vmatpush1.bf16.msra.mxu0 %v4233
      %4765 = vmatprep.subr.bf16.mxu0 0
      %4766 = vmatpush1.bf16.msra.mxu0 %v4236
      %4767 = vmatprep.subr.bf16.mxu0 0
      %4768 = vmatpush1.bf16.msra.mxu0 %v4239
      %4769 = vmatprep.subr.bf16.mxu0 0
      %4770 = vmatpush1.bf16.msra.mxu0 0
      %4771 = vmatprep.subr.bf16.mxu0 0
      %4772 = vmatpush1.bf16.msra.mxu0 0
      %4773 = vmatprep.subr.bf16.mxu0 0
      %4774 = vmatpush1.bf16.msra.mxu0 0
      %4775 = vmatprep.subr.bf16.mxu0 0
      %4776 = vmatpush1.bf16.msra.mxu0 0
      %4777 = vmatprep.subr.bf16.mxu0 0
      %4778 = vmatpush1.bf16.msra.mxu0 0
      %4779 = vmatprep.subr.bf16.mxu0 0
      %4780 = vmatpush1.bf16.msra.mxu0 0
      %4781 = vmatprep.subr.bf16.mxu0 0
      %4782 = vmatpush1.bf16.msra.mxu0 0
      %4783 = vmatprep.subr.bf16.mxu0 0
      %4784 = vmatpush1.bf16.msra.mxu0 0
      %4785 = vmatprep.mubr.bf16.mxu0 0
      %4786 = vmatmul.mubr.bf16.gmra.mrb[0].mxu0 %v4528
      %v4787 = vpop.f32.mrb[0].mxu0
      %v4788 = vadd.f32 %v4307, %v4787
      %v4789 = vpop.f32.mrb[0].mxu0
      %v4790 = vpop.f32.mrb[0].mxu0
      %v4791 = vadd.f32 %v4312, %v4790
      %v4792 = vpop.f32.mrb[0].mxu0
      %4793 = vmatprep.mubr.bf16.mxu0 0
      %4794 = vmatmul.mubr.bf16.gmra.mrb[0].mxu0 %v4529
      %v4795 = vpop.f32.mrb[0].mxu0
      %v4796 = vadd.f32 %v4317, %v4795
      %v4797 = vpop.f32.mrb[0].mxu0
      %v4798 = vpop.f32.mrb[0].mxu0
      %v4799 = vadd.f32 %v4322, %v4798
      %v4800 = vpop.f32.mrb[0].mxu0
      %4801 = vmatprep.mubr.bf16.mxu0 0
      %4802 = vmatmul.mubr.bf16.gmra.mrb[0].mxu0 %v4530
      %v4803 = vpop.f32.mrb[0].mxu0
      %v4804 = vadd.f32 %v4327, %v4803
      %v4805 = vpop.f32.mrb[0].mxu0
      %v4806 = vpop.f32.mrb[0].mxu0
      %v4807 = vadd.f32 %v4332, %v4806
      %v4808 = vpop.f32.mrb[0].mxu0
      %4809 = vmatprep.mubr.bf16.mxu0 0
      %4810 = vmatmul.mubr.bf16.gmra.mrb[0].mxu0 %v4531
      %v4811 = vpop.f32.mrb[0].mxu0
      %v4812 = vadd.f32 %v4337, %v4811
      %v4813 = vpop.f32.mrb[0].mxu0
      %v4814 = vpop.f32.mrb[0].mxu0
      %v4815 = vadd.f32 %v4342, %v4814
      %v4816 = vpop.f32.mrb[0].mxu0
      %4817 = vmatprep.mubr.bf16.mxu0 0
      %4818 = vmatmul.mubr.bf16.gmra.mrb[0].mxu0 %v4532
      %v4819 = vpop.f32.mrb[0].mxu0
      %v4820 = vadd.f32 %v4347, %v4819
      %v4821 = vpop.f32.mrb[0].mxu0
      %v4822 = vpop.f32.mrb[0].mxu0
      %v4823 = vadd.f32 %v4352, %v4822
      %v4824 = vpop.f32.mrb[0].mxu0
      %4825 = vmatprep.mubr.bf16.mxu0 0
      %4826 = vmatmul.mubr.bf16.gmra.mrb[0].mxu0 %v4533
      %v4827 = vpop.f32.mrb[0].mxu0
      %v4828 = vadd.f32 %v4357, %v4827
      %v4829 = vpop.f32.mrb[0].mxu0
      %v4830 = vpop.f32.mrb[0].mxu0
      %v4831 = vadd.f32 %v4362, %v4830
      %v4832 = vpop.f32.mrb[0].mxu0
      %4833 = vmatprep.mubr.bf16.mxu0 0
      %4834 = vmatmul.mubr.bf16.gmra.mrb[0].mxu0 %v4534
      %v4835 = vpop.f32.mrb[0].mxu0
      %v4836 = vadd.f32 %v4367, %v4835
      %v4837 = vpop.f32.mrb[0].mxu0
      %v4838 = vpop.f32.mrb[0].mxu0
      %v4839 = vadd.f32 %v4372, %v4838
      %v4840 = vpop.f32.mrb[0].mxu0
      %4841 = vmatprep.mubr.bf16.mxu0 0
      %4842 = vmatmul.mubr.bf16.gmra.mrb[0].mxu0 %v4535
      %v4843 = vpop.f32.mrb[0].mxu0
      %v4844 = vadd.f32 %v4377, %v4843
      %v4845 = vpop.f32.mrb[0].mxu0
      %v4846 = vpop.f32.mrb[0].mxu0
      %v4847 = vadd.f32 %v4382, %v4846
      %v4848 = vpop.f32.mrb[0].mxu0
      %4849 = vmatprep.mubr.bf16.mxu0 0
      %4850 = vmatmul.mubr.bf16.gmra.mrb[0].mxu0 %v4536
      %v4851 = vpop.f32.mrb[0].mxu0
      %v4852 = vadd.f32 %v4387, %v4851
      %v4853 = vpop.f32.mrb[0].mxu0
      %v4854 = vpop.f32.mrb[0].mxu0
      %v4855 = vadd.f32 %v4392, %v4854
      %v4856 = vpop.f32.mrb[0].mxu0
      %4857 = vmatprep.mubr.bf16.mxu0 0
      %4858 = vmatmul.mubr.bf16.gmra.mrb[0].mxu0 %v4537
      %v4859 = vpop.f32.mrb[0].mxu0
      %v4860 = vadd.f32 %v4397, %v4859
      %v4861 = vpop.f32.mrb[0].mxu0
      %v4862 = vpop.f32.mrb[0].mxu0
      %v4863 = vadd.f32 %v4402, %v4862
      %v4864 = vpop.f32.mrb[0].mxu0
      %4865 = vmatprep.mubr.bf16.mxu0 0
      %4866 = vmatmul.mubr.bf16.gmra.mrb[0].mxu0 %v4538
      %v4867 = vpop.f32.mrb[0].mxu0
      %v4868 = vadd.f32 %v4407, %v4867
      %v4869 = vpop.f32.mrb[0].mxu0
      %v4870 = vpop.f32.mrb[0].mxu0
      %v4871 = vadd.f32 %v4412, %v4870
      %v4872 = vpop.f32.mrb[0].mxu0
      %4873 = vmatprep.mubr.bf16.mxu0 0
      %4874 = vmatmul.mubr.bf16.gmra.mrb[0].mxu0 %v4539
      %v4875 = vpop.f32.mrb[0].mxu0
      %v4876 = vadd.f32 %v4417, %v4875
      %v4877 = vpop.f32.mrb[0].mxu0
      %v4878 = vpop.f32.mrb[0].mxu0
      %v4879 = vadd.f32 %v4422, %v4878
      %v4880 = vpop.f32.mrb[0].mxu0
      %4881 = vmatprep.mubr.bf16.mxu0 0
      %4882 = vmatmul.mubr.bf16.gmra.mrb[0].mxu0 %v4540
      %v4883 = vpop.f32.mrb[0].mxu0
      %v4884 = vadd.f32 %v4427, %v4883
      %v4885 = vpop.f32.mrb[0].mxu0
      %v4886 = vpop.f32.mrb[0].mxu0
      %v4887 = vadd.f32 %v4432, %v4886
      %v4888 = vpop.f32.mrb[0].mxu0
      %4889 = vmatprep.mubr.bf16.mxu0 0
      %4890 = vmatmul.mubr.bf16.gmra.mrb[0].mxu0 %v4541
      %v4891 = vpop.f32.mrb[0].mxu0
      %v4892 = vadd.f32 %v4437, %v4891
      %v4893 = vpop.f32.mrb[0].mxu0
      %v4894 = vpop.f32.mrb[0].mxu0
      %v4895 = vadd.f32 %v4442, %v4894
      %v4896 = vpop.f32.mrb[0].mxu0
      %4897 = vmatprep.mubr.bf16.mxu0 0
      %4898 = vmatmul.mubr.bf16.gmra.mrb[0].mxu0 %v4542
      %v4899 = vpop.f32.mrb[0].mxu0
      %v4900 = vadd.f32 %v4447, %v4899
      %v4901 = vpop.f32.mrb[0].mxu0
      %v4902 = vpop.f32.mrb[0].mxu0
      %v4903 = vadd.f32 %v4452, %v4902
      %v4904 = vpop.f32.mrb[0].mxu0
      %4905 = vmatprep.mubr.bf16.mxu0 0
      %4906 = vmatmul.mubr.bf16.gmra.mrb[0].mxu0 %v4543
      %v4907 = vpop.f32.mrb[0].mxu0
      %v4908 = vadd.f32 %v4457, %v4907
      %v4909 = vpop.f32.mrb[0].mxu0
      %v4910 = vpop.f32.mrb[0].mxu0
      %v4911 = vadd.f32 %v4462, %v4910
      %v4912 = vpop.f32.mrb[0].mxu0
      %4913 = vdwg.mxu0
      %v4914 = vmax.f32 %v4595, %v4597
      %v4915 = vmax.f32 %v4599, %v4601
      %v4916 = vmax.f32 %v4605, %v4607
      %v4917 = vmax.f32 %v4609, %v4611
      %v4918 = vmax.f32 %v4615, %v4617
      %v4919 = vmax.f32 %v4619, %v4621
      %v4920 = vmax.f32 %v4625, %v4627
      %v4921 = vmax.f32 %v4629, %v4631
      %v4922 = vmax.f32 %v4635, %v4637
      %v4923 = vmax.f32 %v4639, %v4641
      %v4924 = vmax.f32 %v4645, %v4647
      %v4925 = vmax.f32 %v4649, %v4651
      %v4926 = vmax.f32 %v4655, %v4657
      %v4927 = vmax.f32 %v4659, %v4661
      %v4928 = vmax.f32 %v4665, %v4667
      %v4929 = vmax.f32 %v4669, %v4671
      %v4930 = vmax.f32 %v4675, %v4677
      %v4931 = vmax.f32 %v4679, %v4681
      %v4932 = vmax.f32 %v4685, %v4687
      %v4933 = vmax.f32 %v4689, %v4691
      %v4934 = vmax.f32 %v4695, %v4697
      %v4935 = vmax.f32 %v4699, %v4701
      %v4936 = vmax.f32 %v4705, %v4707
      %v4937 = vmax.f32 %v4709, %v4711
      %v4938 = vmax.f32 %v4715, %v4717
      %v4939 = vmax.f32 %v4719, %v4721
      %v4940 = vmax.f32 %v4725, %v4727
      %v4941 = vmax.f32 %v4729, %v4731
      %v4942 = vmax.f32 %v4735, %v4737
      %v4943 = vmax.f32 %v4739, %v4741
      %v4944 = vmax.f32 %v4745, %v4747
      %v4945 = vmax.f32 %v4749, %v4751
      %v4946 = vmax.f32 %v4914, %v4788
      %v4947 = vmax.f32 %v4915, %v4791
      %v4948 = vmax.f32 %v4916, %v4796
      %v4949 = vmax.f32 %v4917, %v4799
      %v4950 = vmax.f32 %v4918, %v4804
      %v4951 = vmax.f32 %v4919, %v4807
      %v4952 = vmax.f32 %v4920, %v4812
      %v4953 = vmax.f32 %v4921, %v4815
      %v4954 = vmax.f32 %v4922, %v4820
      %v4955 = vmax.f32 %v4923, %v4823
      %v4956 = vmax.f32 %v4924, %v4828
      %v4957 = vmax.f32 %v4925, %v4831
      %v4958 = vmax.f32 %v4926, %v4836
      %v4959 = vmax.f32 %v4927, %v4839
      %v4960 = vmax.f32 %v4928, %v4844
      %v4961 = vmax.f32 %v4929, %v4847
      %v4962 = vmax.f32 %v4930, %v4852
      %v4963 = vmax.f32 %v4931, %v4855
      %v4964 = vmax.f32 %v4932, %v4860
      %v4965 = vmax.f32 %v4933, %v4863
      %v4966 = vmax.f32 %v4934, %v4868
      %v4967 = vmax.f32 %v4935, %v4871
      %v4968 = vmax.f32 %v4936, %v4876
      %v4969 = vmax.f32 %v4937, %v4879
      %v4970 = vmax.f32 %v4938, %v4884
      %v4971 = vmax.f32 %v4939, %v4887
      %v4972 = vmax.f32 %v4940, %v4892
      %v4973 = vmax.f32 %v4941, %v4895
      %v4974 = vmax.f32 %v4942, %v4900
      %v4975 = vmax.f32 %v4943, %v4903
      %v4976 = vmax.f32 %v4944, %v4908
      %v4977 = vmax.f32 %v4945, %v4911
      %v4978 = vadd.f32 %v2571, %v963
      %v4979 = vadd.f32 %v2574, %v964
      %v4980 = vadd.f32 %v2579, %v965
      %v4981 = vadd.f32 %v2582, %v966
      %v4982 = vadd.f32 %v2587, %v967
      %v4983 = vadd.f32 %v2590, %v968
      %v4984 = vadd.f32 %v2595, %v969
      %v4985 = vadd.f32 %v2598, %v970
      %v4986 = vadd.f32 %v2603, %v971
      %v4987 = vadd.f32 %v2606, %v972
      %v4988 = vadd.f32 %v2611, %v973
      %v4989 = vadd.f32 %v2614, %v974
      %v4990 = vadd.f32 %v2619, %v975
      %v4991 = vadd.f32 %v2622, %v976
      %v4992 = vadd.f32 %v2627, %v977
      %v4993 = vadd.f32 %v2630, %v978
      %v4994 = vadd.f32 %v2635, %v979
      %v4995 = vadd.f32 %v2638, %v980
      %v4996 = vadd.f32 %v2643, %v981
      %v4997 = vadd.f32 %v2646, %v982
      %v4998 = vadd.f32 %v2651, %v983
      %v4999 = vadd.f32 %v2654, %v984
      %v5000 = vadd.f32 %v2659, %v985
      %v5001 = vadd.f32 %v2662, %v986
      %v5002 = vadd.f32 %v2667, %v987
      %v5003 = vadd.f32 %v2670, %v988
      %v5004 = vadd.f32 %v2675, %v989
      %v5005 = vadd.f32 %v2678, %v990
      %v5006 = vadd.f32 %v2683, %v991
      %v5007 = vadd.f32 %v2686, %v992
      %v5008 = vadd.f32 %v2691, %v993
      %v5009 = vadd.f32 %v2694, %v994
      %v5010 = vadd.f32 %v4978, %v4946
      %v5011 = vadd.f32 %v4979, %v4947
      %v5012 = vadd.f32 %v4980, %v4948
      %v5013 = vadd.f32 %v4981, %v4949
      %v5014 = vadd.f32 %v4982, %v4950
      %v5015 = vadd.f32 %v4983, %v4951
      %v5016 = vadd.f32 %v4984, %v4952
      %v5017 = vadd.f32 %v4985, %v4953
      %v5018 = vadd.f32 %v4986, %v4954
      %v5019 = vadd.f32 %v4987, %v4955
      %v5020 = vadd.f32 %v4988, %v4956
      %v5021 = vadd.f32 %v4989, %v4957
      %v5022 = vadd.f32 %v4990, %v4958
      %v5023 = vadd.f32 %v4991, %v4959
      %v5024 = vadd.f32 %v4992, %v4960
      %v5025 = vadd.f32 %v4993, %v4961
      %v5026 = vadd.f32 %v4994, %v4962
      %v5027 = vadd.f32 %v4995, %v4963
      %v5028 = vadd.f32 %v4996, %v4964
      %v5029 = vadd.f32 %v4997, %v4965
      %v5030 = vadd.f32 %v4998, %v4966
      %v5031 = vadd.f32 %v4999, %v4967
      %v5032 = vadd.f32 %v5000, %v4968
      %v5033 = vadd.f32 %v5001, %v4969
      %v5034 = vadd.f32 %v5002, %v4970
      %v5035 = vadd.f32 %v5003, %v4971
      %v5036 = vadd.f32 %v5004, %v4972
      %v5037 = vadd.f32 %v5005, %v4973
      %v5038 = vadd.f32 %v5006, %v4974
      %v5039 = vadd.f32 %v5007, %v4975
      %v5040 = vadd.f32 %v5008, %v4976
      %v5041 = vadd.f32 %v5009, %v4977
      %v5042 = vmax.f32 %v5010, 0.0
      %v5043 = vmax.f32 %v5011, 0.0
      %v5044 = vmax.f32 %v5012, 0.0
      %v5045 = vmax.f32 %v5013, 0.0
      %v5046 = vmax.f32 %v5014, 0.0
      %v5047 = vmax.f32 %v5015, 0.0
      %v5048 = vmax.f32 %v5016, 0.0
      %v5049 = vmax.f32 %v5017, 0.0
      %v5050 = vmax.f32 %v5018, 0.0
      %v5051 = vmax.f32 %v5019, 0.0
      %v5052 = vmax.f32 %v5020, 0.0
      %v5053 = vmax.f32 %v5021, 0.0
      %v5054 = vmax.f32 %v5022, 0.0
      %v5055 = vmax.f32 %v5023, 0.0
      %v5056 = vmax.f32 %v5024, 0.0
      %v5057 = vmax.f32 %v5025, 0.0
      %v5058 = vmax.f32 %v5026, 0.0
      %v5059 = vmax.f32 %v5027, 0.0
      %v5060 = vmax.f32 %v5028, 0.0
      %v5061 = vmax.f32 %v5029, 0.0
      %v5062 = vmax.f32 %v5030, 0.0
      %v5063 = vmax.f32 %v5031, 0.0
      %v5064 = vmax.f32 %v5032, 0.0
      %v5065 = vmax.f32 %v5033, 0.0
      %v5066 = vmax.f32 %v5034, 0.0
      %v5067 = vmax.f32 %v5035, 0.0
      %v5068 = vmax.f32 %v5036, 0.0
      %v5069 = vmax.f32 %v5037, 0.0
      %v5070 = vmax.f32 %v5038, 0.0
      %v5071 = vmax.f32 %v5039, 0.0
      %v5072 = vmax.f32 %v5040, 0.0
      %v5073 = vmax.f32 %v5041, 0.0
      %5074 = vst [vmem:[%s955] sm:$0xff] %v5042
      %5075 = vst [vmem:[%s955 + $0x8] sm:$0xff] %v5043
      %5076 = vst [vmem:[%s955 + $0x10] sm:$0xff] %v5044
      %5077 = vst [vmem:[%s955 + $0x18] sm:$0xff] %v5045
      %5078 = vst [vmem:[%s955 + $0x20] sm:$0xff] %v5046
      %5079 = vst [vmem:[%s955 + $0x28] sm:$0xff] %v5047
      %5080 = vst [vmem:[%s955 + $0x30] sm:$0xff] %v5048
      %5081 = vst [vmem:[%s955 + $0x38] sm:$0xff] %v5049
      %5082 = vst [vmem:[%s955 + $0x40] sm:$0xff] %v5050
      %5083 = vst [vmem:[%s955 + $0x48] sm:$0xff] %v5051
      %5084 = vst [vmem:[%s955 + $0x50] sm:$0xff] %v5052
      %5085 = vst [vmem:[%s955 + $0x58] sm:$0xff] %v5053
      %5086 = vst [vmem:[%s955 + $0x60] sm:$0xff] %v5054
      %5087 = vst [vmem:[%s955 + $0x68] sm:$0xff] %v5055
      %5088 = vst [vmem:[%s955 + $0x70] sm:$0xff] %v5056
      %5089 = vst [vmem:[%s955 + $0x78] sm:$0xff] %v5057
      %5090 = vst [vmem:[%s955 + $0x80] sm:$0xff] %v5058
      %5091 = vst [vmem:[%s955 + $0x88] sm:$0xff] %v5059
      %5092 = vst [vmem:[%s955 + $0x90] sm:$0xff] %v5060
      %5093 = vst [vmem:[%s955 + $0x98] sm:$0xff] %v5061
      %5094 = vst [vmem:[%s955 + $0xa0] sm:$0xff] %v5062
      %5095 = vst [vmem:[%s955 + $0xa8] sm:$0xff] %v5063
      %5096 = vst [vmem:[%s955 + $0xb0] sm:$0xff] %v5064
      %5097 = vst [vmem:[%s955 + $0xb8] sm:$0xff] %v5065
      %5098 = vst [vmem:[%s955 + $0xc0] sm:$0xff] %v5066
      %5099 = vst [vmem:[%s955 + $0xc8] sm:$0xff] %v5067
      %5100 = vst [vmem:[%s955 + $0xd0] sm:$0xff] %v5068
      %5101 = vst [vmem:[%s955 + $0xd8] sm:$0xff] %v5069
      %5102 = vst [vmem:[%s955 + $0xe0] sm:$0xff] %v5070
      %5103 = vst [vmem:[%s955 + $0xe8] sm:$0xff] %v5071
      %5104 = vst [vmem:[%s955 + $0xf0] sm:$0xff] %v5072
      %5105 = vst [vmem:[%s955 + $0xf8] sm:$0xff] %v5073
      %v5106 = vld [vmem:[%s944] sm:$0x3]
      %v5107 = vld [vmem:[%s947] sm:$0x1]
      %5109 = vset.pattern.permute.xlu0 0
      %5110 = vperm.xlu0 %5109, %v5107
      %v5111 = vpop.permute.xlu0 %5110
      %v5113 = vlaneseq
      %v5114 = vshrl.u32 %v5113, 7
      %v5115 = vsub.s32 0, %v5114
      %v5116 = vrot.slane %v5111, %v5115
      %v5118 = vlaneseq
      %v5119 = vshrl.u32 %v5118, 7
      %v5120 = vsub.s32 0, %v5119
      %v5121 = vrot.slane %v5106, %v5120
      %v5122 = vlaneseq
      %v5123 = vshrl.u32 %v5122, 7
      %v5124 = vsub.s32 1, %v5123
      %v5125 = vrot.slane %v5106, %v5124
      %5128 = vmatprep.subr.mxu0 0.0
      %5129 = vmatpush1.msra.mxu0 %v5042
      %5130 = vmatprep.subr.mxu0 0.0
      %5131 = vmatpush1.msra.mxu0 %v5043
      %5132 = vmatprep.subr.mxu0 0.0
      %5133 = vmatpush1.msra.mxu0 %v5044
      %5134 = vmatprep.subr.mxu0 0.0
      %5135 = vmatpush1.msra.mxu0 %v5045
      %5136 = vmatprep.subr.mxu0 0.0
      %5137 = vmatpush1.msra.mxu0 %v5046
      %5138 = vmatprep.subr.mxu0 0.0
      %5139 = vmatpush1.msra.mxu0 %v5047
      %5140 = vmatprep.subr.mxu0 0.0
      %5141 = vmatpush1.msra.mxu0 %v5048
      %5142 = vmatprep.subr.mxu0 0.0
      %5143 = vmatpush1.msra.mxu0 %v5049
      %5144 = vmatprep.subr.mxu0 0.0
      %5145 = vmatpush1.msra.mxu0 %v5050
      %5146 = vmatprep.subr.mxu0 0.0
      %5147 = vmatpush1.msra.mxu0 %v5051
      %5148 = vmatprep.subr.mxu0 0.0
      %5149 = vmatpush1.msra.mxu0 %v5052
      %5150 = vmatprep.subr.mxu0 0.0
      %5151 = vmatpush1.msra.mxu0 %v5053
      %5152 = vmatprep.subr.mxu0 0.0
      %5153 = vmatpush1.msra.mxu0 %v5054
      %5154 = vmatprep.subr.mxu0 0.0
      %5155 = vmatpush1.msra.mxu0 %v5055
      %5156 = vmatprep.subr.mxu0 0.0
      %5157 = vmatpush1.msra.mxu0 %v5056
      %5158 = vmatprep.subr.mxu0 0.0
      %5159 = vmatpush1.msra.mxu0 %v5057
      %5160 = vmatprep.subr.mxu0 0.0
      %5161 = vmatpush1.msra.mxu0 %v5058
      %5162 = vmatprep.subr.mxu0 0.0
      %5163 = vmatpush1.msra.mxu0 %v5059
      %5164 = vmatprep.subr.mxu0 0.0
      %5165 = vmatpush1.msra.mxu0 %v5060
      %5166 = vmatprep.subr.mxu0 0.0
      %5167 = vmatpush1.msra.mxu0 %v5061
      %5168 = vmatprep.subr.mxu0 0.0
      %5169 = vmatpush1.msra.mxu0 %v5062
      %5170 = vmatprep.subr.mxu0 0.0
      %5171 = vmatpush1.msra.mxu0 %v5063
      %5172 = vmatprep.subr.mxu0 0.0
      %5173 = vmatpush1.msra.mxu0 %v5064
      %5174 = vmatprep.subr.mxu0 0.0
      %5175 = vmatpush1.msra.mxu0 %v5065
      %5176 = vmatprep.subr.mxu0 0.0
      %5177 = vmatpush1.msra.mxu0 %v5066
      %5178 = vmatprep.subr.mxu0 0.0
      %5179 = vmatpush1.msra.mxu0 %v5067
      %5180 = vmatprep.subr.mxu0 0.0
      %5181 = vmatpush1.msra.mxu0 %v5068
      %5182 = vmatprep.subr.mxu0 0.0
      %5183 = vmatpush1.msra.mxu0 %v5069
      %5184 = vmatprep.subr.mxu0 0.0
      %5185 = vmatpush1.msra.mxu0 %v5070
      %5186 = vmatprep.subr.mxu0 0.0
      %5187 = vmatpush1.msra.mxu0 %v5071
      %5188 = vmatprep.subr.mxu0 0.0
      %5189 = vmatpush1.msra.mxu0 %v5072
      %5190 = vmatprep.subr.mxu0 0.0
      %5191 = vmatpush1.msra.mxu0 %v5073
      %5192 = vmatprep.mubr.f32.mxu0 %v5125
      %5193 = vmatmul.mubr.f32.gmra.mrb[0].mxu0 %v5121
      %v5194 = vpop.f32.mrb[0].mxu0
      %v5195 = vadd.f32 %v5116, %v5194
      %v5196 = vpop.f32.mrb[0].mxu0
      %5197 = vdwg.mxu0
      %v5198 = vxor.u32 %v5195, 2147483648
      %v5199 = vmul.f32 %v5198, 1.442695
      %v5200 = vpow.pop %v5199
      %v5201 = vadd.f32 %v5200, 1.0
      %v5202 = vrcp.pop %v5201
      %v5203 = vmul.f32 1.0, %v5202
      %5204 = vst [vmem:[%s961] sm:$0x1] %v5203
      %p5205 = scmp.lt.s32.totalorder %s36, 2
      %s5206 = scalar_select %p5205, %s36, 2
      %p5207 = scmp.lt.s32.totalorder %s35, 0
      %s5208 = scalar_select %p5207, %s35, 0
      %s5209 = smul.addr %s5206, 32
      %s5210 = sadd.s32 %s5208, %s5209
      %s5211 = smul.addr %s5210, 8
      %s5212 = scalar_lea.vmem %s18, %s5211
      %p5213 = scmp.lt.s32.totalorder %s36, 2
      %s5214 = scalar_select %p5213, %s36, 2
      %p5215 = scmp.lt.s32.totalorder %s35, 0
      %s5216 = scalar_select %p5215, %s35, 0
      %s5217 = sadd.s32 %s5216, %s5214
      %s5218 = scalar_lea.vmem %s19, %s5217
      // Predicated region
      $region93: #{gtad_forward.9} parent=91 // pred_check
        %p5219 = pneg %p531
      $region94: #{gtad_forward.9} parent=91 // pred_check_branch
        %5221 = sbr.rel (%p5219) target = $region96
      $region95: #{gtad_forward.9} parent=91 // pred_region
        _
      $region96: #{gtad_forward.9} parent=91 // pred_fallthru
        _
      // Predicated region
      $region97: #{gtad_forward.9} parent=91 // pred_check
        %p5222 = pneg %p559
      $region98: #{gtad_forward.9} parent=91 // pred_check_branch
        %5224 = sbr.rel (%p5222) target = $region100
      $region99: #{gtad_forward.9} parent=91 // pred_region
        _
      $region100: #{gtad_forward.9} parent=91 // pred_fallthru
        _
    $region92: #{gtad_forward.9} parent=5 // pred_fallthru
      _
    %p5225 = scmp.le.s32.totalorder 2, %s26
    // Predicated region
    $region101: #{gtad_forward.9} parent=5 // pred_check
      %p5226 = pneg %p5225
    $region102: #{gtad_forward.9} parent=5 // pred_check_branch
      %5228 = sbr.rel (%p5226) target = $region104
    $region103: #{gtad_forward.9} parent=5 // pred_region
      %s5229 = ssub.s32 %s26, 2
      // Predicated region
      $region105: #{gtad_forward.9} parent=103 // pred_check
        %p5230 = pneg %p537
      $region106: #{gtad_forward.9} parent=103 // pred_check_branch
        %5232 = sbr.rel (%p5230) target = $region108
      $region107: #{gtad_forward.9} parent=103 // pred_region
        %p5233 = scmp.lt.s32.totalorder %s38, 2
        %s5234 = scalar_select %p5233, %s38, 2
        %p5235 = scmp.lt.s32.totalorder %s37, 0
        %s5236 = scalar_select %p5235, %s37, 0
        %s5237 = smul.addr %s5234, 32
        %s5238 = sadd.s32 %s5236, %s5237
        %s5239 = smul.addr %s5238, 8
        %s5240 = scalar_lea.vmem %s18, %s5239
      $region108: #{gtad_forward.9} parent=103 // pred_fallthru
        _
      // Predicated region
      $region109: #{gtad_forward.9} parent=103 // pred_check
        %p5241 = pneg %p565
      $region110: #{gtad_forward.9} parent=103 // pred_check_branch
        %5243 = sbr.rel (%p5241) target = $region112
      $region111: #{gtad_forward.9} parent=103 // pred_region
        %p5244 = scmp.lt.s32.totalorder %s38, 2
        %s5245 = scalar_select %p5244, %s38, 2
        %p5246 = scmp.lt.s32.totalorder %s37, 0
        %s5247 = scalar_select %p5246, %s37, 0
        %s5248 = sadd.s32 %s5247, %s5245
        %s5249 = scalar_lea.vmem %s19, %s5248
      $region112: #{gtad_forward.9} parent=103 // pred_fallthru
        _
    $region104: #{gtad_forward.9} parent=5 // pred_fallthru
      _
  $region6: #{gtad_forward.9} parent=0 // loop_footer
    %s30 = sadd.s32 1, %s26
  $region7: #{gtad_forward.9} parent=0 // loop_footer_branch
    %25 = sbr.rel target = $region3
  $region8: #{gtad_forward.9} parent=0 // loop_exit
    _

</llo_original>
